<compile_context>
chip_gen: v5e
topology: v5e:2x2
jax: 0.10.0
libtpu: 0.0.40
codegen_flags: <defaults>
</compile_context>

<pallas_src>
import functools

import jax
import jax.numpy as jnp
from jax.experimental import pallas as pl
from jax.experimental.pallas import tpu as pltpu


# ----------------------------------------------------------------------------
# Helpers.
# ----------------------------------------------------------------------------
def _round_up(x, m):
    return ((x + m - 1) // m) * m


def space_to_depth(x, s):
    """NHWC space-to-depth; stride-s conv(x, w) == stride-1 conv(s2d_s(x), w')."""
    if s == 1:
        return x
    b, h, w, c = x.shape
    hp, wp = _round_up(h, s), _round_up(w, s)
    if (hp, wp) != (h, w):
        x = jnp.pad(x, ((0, 0), (0, hp - h), (0, wp - w), (0, 0)))
    x = x.reshape(b, hp // s, s, wp // s, s, c)
    x = x.transpose(0, 1, 3, 2, 4, 5)                 # (B, H/s, W/s, s, s, C)
    return x.reshape(b, hp // s, wp // s, s * s * c)  # lane order (p, q, c)


# ----------------------------------------------------------------------------
# Conv kernel: stride-1 conv over the s2d'd NHWC block, IN-KERNEL im2col via
# contiguous slices + lane concat, one MXU dot per output row, fused bias+ReLU,
# bf16 writeback of only the real output channels.
# ----------------------------------------------------------------------------
def _make_conv_kernel(tb, kr, kc, ho, wo):
    def kernel(x_ref, w_ref, b_ref, o_ref):
        bias = b_ref[...]                                        # (1, OC) f32
        for t in range(tb):                                      # static unroll
            for oh in range(ho):
                taps = [x_ref[t, oh + a, b:b + wo, :]            # (wo, Cy) each
                        for a in range(kr) for b in range(kc)]
                lhs = taps[0] if len(taps) == 1 else jnp.concatenate(taps, axis=-1)
                acc = jnp.dot(lhs, w_ref[...],                   # (wo, OC) f32
                              preferred_element_type=jnp.float32)
                acc = jnp.maximum(acc + bias, 0.0)               # f32 epilogue
                o_ref[t, oh] = acc.astype(o_ref.dtype)           # bf16 store
    return kernel


def conv2d_s2d(y, w_eq, bias, *, kr, kc, oc, out_h, out_w):
    """y: (B, Hy, Wy, Cy) bf16 space-to-depth'd activation.
    w_eq: (kr*kc*Cy, oc) bf16 (tap-concat K order), bias: (1, oc) f32.
    Returns ReLU(conv(y) + bias): (B, out_h, out_w, oc) bf16."""
    b, hy, wy, cy = y.shape
    ho_k, wo_k = hy - kr + 1, wy - kc + 1
    pixels = ho_k * wo_k
    # Batch-block size: ~256 output pixels per grid step amortizes the
    # ~0.35us/step overhead; cap it so the static unroll and VMEM stay small.
    tb = max(1, min(b, 8, 256 // max(pixels, 1)))
    bp = _round_up(b, tb)
    if bp != b:
        y = jnp.pad(y, ((0, bp - b), (0, 0), (0, 0), (0, 0)))
    # VMEM/step budget (all generations, incl. v7x 32 MiB scoped default):
    #   2*tb*hy*wy*cy*2B (in) + 2*tb*ho*wo*oc*2B (out) + K*oc*2B (weights)
    #   + per-row (wo, K) bf16 patch temporaries   ->  << 4 MiB here.
    out = pl.pallas_call(
        _make_conv_kernel(tb, kr, kc, ho_k, wo_k),
        out_shape=jax.ShapeDtypeStruct((bp, ho_k, wo_k, oc), jnp.bfloat16),
        grid=(bp // tb,),
        in_specs=[
            pl.BlockSpec((tb, hy, wy, cy), lambda i: (i, 0, 0, 0)),
            pl.BlockSpec(w_eq.shape, lambda i: (0, 0)),      # VMEM-resident
            pl.BlockSpec(bias.shape, lambda i: (0, 0)),
        ],
        out_specs=pl.BlockSpec((tb, ho_k, wo_k, oc), lambda i: (i, 0, 0, 0)),
        compiler_params=pltpu.CompilerParams(
            dimension_semantics=("parallel",),               # batch over TCs
            vmem_limit_bytes=32 * 1024 * 1024),
    )(y, w_eq, bias)
    return out[:b, :out_h, :out_w, :]


# ----------------------------------------------------------------------------
# MLP head: relu(x @ W1 + b1) @ W2 + b2, tiled over M, weights VMEM-resident.
# ----------------------------------------------------------------------------
def _mlp_head_kernel(x_ref, w1_ref, b1_ref, w2_ref, b2_ref, o_ref):
    h = jnp.dot(x_ref[...], w1_ref[...], preferred_element_type=jnp.float32)
    h = jnp.maximum(h + b1_ref[...], 0.0)
    out = jnp.dot(h.astype(jnp.bfloat16), w2_ref[...],
                  preferred_element_type=jnp.float32)
    o_ref[...] = out + b2_ref[...]


def mlp_head(flat, w1, b1, w2, b2):
    """flat: (M, K).  w1: (K, 512) bf16, b1: (1, 512) f32,
    w2: (512, N) bf16, b2: (1, N) f32.  Returns (M, N) f32."""
    m, k = flat.shape
    _, hdim = w1.shape
    _, n = w2.shape
    tm = min(256, _round_up(max(m, 8), 8))
    mp = _round_up(m, tm)
    x = jnp.pad(flat.astype(jnp.bfloat16), ((0, mp - m), (0, 0)))
    # VMEM/step: 2*tm*k*2B (x) + k*512*2B + 512*n*2B (weights, index-constant)
    #            + tm*512*4B (h) + 2*tm*n*4B (out)  ->  few MiB at Atari scale.
    out = pl.pallas_call(
        _mlp_head_kernel,
        out_shape=jax.ShapeDtypeStruct((mp, n), jnp.float32),
        grid=(mp // tm,),
        in_specs=[
            pl.BlockSpec((tm, k), lambda i: (i, 0)),
            pl.BlockSpec((k, hdim), lambda i: (0, 0)),
            pl.BlockSpec((1, hdim), lambda i: (0, 0)),
            pl.BlockSpec((hdim, n), lambda i: (0, 0)),
            pl.BlockSpec((1, n), lambda i: (0, 0)),
        ],
        out_specs=pl.BlockSpec((tm, n), lambda i: (i, 0)),
        compiler_params=pltpu.CompilerParams(
            dimension_semantics=("parallel",),
            vmem_limit_bytes=32 * 1024 * 1024),
    )(x, w1, b1, w2, b2)
    return out[:m]


# ----------------------------------------------------------------------------
# Parameters: raw PyTorch-shaped params + one-time prep (reorder / cast bf16).
# ----------------------------------------------------------------------------
def _conv_out_hw(h, w):
    h1, w1 = (h - 8) // 4 + 1, (w - 8) // 4 + 1
    h2, w2 = (h1 - 4) // 2 + 1, (w1 - 4) // 2 + 1
    h3, w3 = (h2 - 3) // 1 + 1, (w2 - 3) // 1 + 1
    return (h1, w1), (h2, w2), (h3, w3)


def init_raw_params(input_shape, output_dim, key):
    c_in, h, w = input_shape
    (_, _), (_, _), (h3, w3) = _conv_out_hw(h, w)
    n_flatten = 64 * h3 * w3
    ks = jax.random.split(key, 10)
    s = 0.05
    raw = {
        "w1": s * jax.random.normal(ks[0], (32, c_in, 8, 8), jnp.float32),
        "b1": s * jax.random.normal(ks[1], (32,), jnp.float32),
        "w2": s * jax.random.normal(ks[2], (64, 32, 4, 4), jnp.float32),
        "b2": s * jax.random.normal(ks[3], (64,), jnp.float32),
        "w3": s * jax.random.normal(ks[4], (64, 64, 3, 3), jnp.float32),
        "b3": s * jax.random.normal(ks[5], (64,), jnp.float32),
        "wl1": s * jax.random.normal(ks[6], (512, n_flatten), jnp.float32),
        "bl1": s * jax.random.normal(ks[7], (512,), jnp.float32),
        "wl2": s * jax.random.normal(ks[8], (output_dim, 512), jnp.float32),
        "bl2": s * jax.random.normal(ks[9], (output_dim,), jnp.float32),
    }
    return raw, n_flatten


def _prep_conv(w, b, stride):
    """PyTorch (OC, C, KH, KW) -> (KR*KC*s*s*C, OC) bf16 matrix whose K order
    matches the kernel's tap-concat over the space-to-depth'd input
    (tap (a,b) major, then (p, q, c) = s2d lane order)."""
    oc, c, kh, kw = w.shape
    s = stride
    kr, kc = kh // s, kw // s
    w_eq = jnp.transpose(w, (2, 3, 1, 0))                  # (kh, kw, c, oc)
    w_eq = w_eq.reshape(kr, s, kc, s, c, oc)               # [a, p, b, q, c, oc]
    w_eq = jnp.transpose(w_eq, (0, 2, 1, 3, 4, 5))         # [a, b, p, q, c, oc]
    w_eq = w_eq.reshape(kr * kc * s * s * c, oc).astype(jnp.bfloat16)
    b_p = b.astype(jnp.float32).reshape(1, oc)
    return w_eq, b_p


def prepare_params(raw, input_shape, output_dim):
    """One-time (outside jit): reorder conv weights for the s2d tap-concat,
    permute/transpose FC weights, cast matmul operands to bf16."""
    _, h, w = input_shape
    (_, _), (_, _), (h3, w3) = _conv_out_hw(h, w)
    c3 = 64
    prep = {}
    prep["cw1"], prep["cb1"] = _prep_conv(raw["w1"], raw["b1"], 4)
    prep["cw2"], prep["cb2"] = _prep_conv(raw["w2"], raw["b2"], 2)
    prep["cw3"], prep["cb3"] = _prep_conv(raw["w3"], raw["b3"], 1)
    # fc1: permute columns from PyTorch NCHW-flatten order to our NHWC-flatten
    # order, then transpose once to (n_flatten, 512).
    h_idx, w_idx, c_idx = jnp.meshgrid(
        jnp.arange(h3), jnp.arange(w3), jnp.arange(c3), indexing="ij")
    nchw_idx = (c_idx * h3 * w3 + h_idx * w3 + w_idx).reshape(-1)
    prep["wl1"] = raw["wl1"][:, nchw_idx].T.astype(jnp.bfloat16)   # (n_flat, 512)
    prep["bl1"] = raw["bl1"].astype(jnp.float32).reshape(1, -1)
    prep["wl2"] = raw["wl2"].T.astype(jnp.bfloat16)                # (512, out)
    prep["bl2"] = raw["bl2"].astype(jnp.float32).reshape(1, -1)
    return prep


# ----------------------------------------------------------------------------
# Forward pass: 3x (conv + ReLU), flatten, linear(512)+ReLU, linear(out).
# ----------------------------------------------------------------------------
def convnet_forward(x_nchw, prep, *, output_dim):
    batch, _, hh, ww = x_nchw.shape
    (h1, w1), (h2, w2), (h3, w3) = _conv_out_hw(hh, ww)
    x = jnp.transpose(x_nchw, (0, 2, 3, 1)).astype(jnp.bfloat16)   # NHWC bf16 once
    # conv1: 8x8 stride 4 == s2d(4) + 2x2 stride-1 conv (K = 16*c_in*4)
    a = conv2d_s2d(space_to_depth(x, 4), prep["cw1"], prep["cb1"],
                   kr=2, kc=2, oc=32, out_h=h1, out_w=w1)
    # conv2: 4x4 stride 2 == s2d(2) + 2x2 stride-1 conv (K = 512)
    a = conv2d_s2d(space_to_depth(a, 2), prep["cw2"], prep["cb2"],
                   kr=2, kc=2, oc=64, out_h=h2, out_w=w2)
    # conv3: 3x3 stride 1 (K = 576)
    a = conv2d_s2d(a, prep["cw3"], prep["cb3"],
                   kr=3, kc=3, oc=64, out_h=h3, out_w=w3)
    flat = a.reshape(batch, h3 * w3 * 64)        # NHWC flatten; fc1 pre-permuted
    out = mlp_head(flat, prep["wl1"], prep["bl1"], prep["wl2"], prep["bl2"])
    return out[:, :output_dim]


# ----------------------------------------------------------------------------
# Pure-JAX reference (f32, XLA convs) for a sanity check of the Pallas path.
# ----------------------------------------------------------------------------
def reference_forward(x, raw):
    def conv(x, w, b, s):
        y = jax.lax.conv_general_dilated(
            x, w, window_strides=(s, s), padding="VALID",
            dimension_numbers=("NCHW", "OIHW", "NCHW"))
        return jnp.maximum(y + b[None, :, None, None], 0.0)
    h = conv(x, raw["w1"], raw["b1"], 4)
    h = conv(h, raw["w2"], raw["b2"], 2)
    h = conv(h, raw["w3"], raw["b3"], 1)
    flat = h.reshape(h.shape[0], -1)
    h = jnp.maximum(flat @ raw["wl1"].T + raw["bl1"], 0.0)
    return h @ raw["wl2"].T + raw["bl2"]


if __name__ == "__main__":
    # Smallest shapes consistent with the module's conv arithmetic:
    # 36x36 input -> 8x8 -> 3x3 -> 1x1 spatial, n_flatten = 64.
    input_shape = (4, 36, 36)
    output_dim = 8
    batch = 2

    key = jax.random.PRNGKey(0)
    k_x, k_p = jax.random.split(key)
    x = jax.random.normal(k_x, (batch, *input_shape), dtype=jnp.float32)

    raw, n_flatten = init_raw_params(input_shape, output_dim, k_p)
    prep = prepare_params(raw, input_shape, output_dim)   # one-time, outside jit

    forward = jax.jit(functools.partial(convnet_forward, output_dim=output_dim))
    out = jax.block_until_ready(forward(x, prep))

    assert out.shape == (batch, output_dim), out.shape
    assert bool(jnp.all(jnp.isfinite(out)))

    # Numerical sanity vs the f32 XLA reference (bf16 MXU inputs, f32 accum).
    ref = jax.block_until_ready(jax.jit(reference_forward)(x, raw))
    assert float(jnp.max(jnp.abs(out - ref))) < 5e-2

    print("KERNEL_OK")
</pallas_src>

<mosaic_0001>
module attributes {stable_mosaic.version = 11 : i64} {
  func.func @kernel(%arg0: i32, %arg1: memref<2x9x9x64xbf16, #tpu.memory_space<vmem>>, %arg2: memref<256x32xbf16, #tpu.memory_space<vmem>>, %arg3: memref<1x32xf32, #tpu.memory_space<vmem>>, %arg4: memref<2x8x8x32xbf16, #tpu.memory_space<vmem>>) attributes {dimension_semantics = [#tpu.dimension_semantics<parallel>], iteration_bounds = array<i64: 1>, scalar_prefetch = 0 : i64, scratch_operands = 0 : i64, tpu.core_type = #tpu.core_type<tc>, window_params = [{transform_indices = @transform_0, window_bounds = array<i64: 2, 9, 9, 64>}, {pipeline_mode = #tpu.pipeline_mode<synchronous>, transform_indices = @transform_1, window_bounds = array<i64: 256, 32>}, {pipeline_mode = #tpu.pipeline_mode<synchronous>, transform_indices = @transform_2, window_bounds = array<i64: 1, 32>}, {transform_indices = @transform_3, window_bounds = array<i64: 2, 8, 8, 32>}]} {
    %c0 = arith.constant 0 : index
    %c0_0 = arith.constant 0 : index
    %0 = vector.load %arg3[%c0, %c0_0] : memref<1x32xf32, #tpu.memory_space<vmem>>, vector<1x32xf32>
    %c0_1 = arith.constant 0 : index
    %c0_2 = arith.constant 0 : index
    %c0_3 = arith.constant 0 : index
    %c0_4 = arith.constant 0 : index
    %1 = vector.load %arg1[%c0_1, %c0_2, %c0_3, %c0_4] : memref<2x9x9x64xbf16, #tpu.memory_space<vmem>>, vector<1x1x8x64xbf16>
    %2 = vector.shape_cast %1 : vector<1x1x8x64xbf16> to vector<8x64xbf16>
    %c0_5 = arith.constant 0 : index
    %c0_6 = arith.constant 0 : index
    %c1 = arith.constant 1 : index
    %c0_7 = arith.constant 0 : index
    %3 = vector.load %arg1[%c0_5, %c0_6, %c1, %c0_7] : memref<2x9x9x64xbf16, #tpu.memory_space<vmem>>, vector<1x1x8x64xbf16>
    %4 = vector.shape_cast %3 : vector<1x1x8x64xbf16> to vector<8x64xbf16>
    %c0_8 = arith.constant 0 : index
    %c1_9 = arith.constant 1 : index
    %c0_10 = arith.constant 0 : index
    %c0_11 = arith.constant 0 : index
    %5 = vector.load %arg1[%c0_8, %c1_9, %c0_10, %c0_11] : memref<2x9x9x64xbf16, #tpu.memory_space<vmem>>, vector<1x1x8x64xbf16>
    %6 = vector.shape_cast %5 : vector<1x1x8x64xbf16> to vector<8x64xbf16>
    %c0_12 = arith.constant 0 : index
    %c1_13 = arith.constant 1 : index
    %c1_14 = arith.constant 1 : index
    %c0_15 = arith.constant 0 : index
    %7 = vector.load %arg1[%c0_12, %c1_13, %c1_14, %c0_15] : memref<2x9x9x64xbf16, #tpu.memory_space<vmem>>, vector<1x1x8x64xbf16>
    %8 = vector.shape_cast %7 : vector<1x1x8x64xbf16> to vector<8x64xbf16>
    %9 = tpu.concatenate %2, %4, %6, %8 in 1 : vector<8x64xbf16>, vector<8x64xbf16>, vector<8x64xbf16>, vector<8x64xbf16> -> vector<8x256xbf16>
    %c0_16 = arith.constant 0 : index
    %c0_17 = arith.constant 0 : index
    %10 = vector.load %arg2[%c0_16, %c0_17] : memref<256x32xbf16, #tpu.memory_space<vmem>>, vector<256x32xbf16>
    %cst = arith.constant dense<0.000000e+00> : vector<8x32xf32>
    %11 = tpu.matmul %9, %10, %cst {dimension_numbers = #tpu.dot_dimension_numbers<[1], [0], [0], [1], [0, 0, 1, 1], [], []>} : vector<8x256xbf16>, vector<256x32xbf16>, vector<8x32xf32> -> vector<8x32xf32>
    %12 = vector.broadcast %0 : vector<1x32xf32> to vector<8x32xf32>
    %13 = arith.addf %11, %12 : vector<8x32xf32>
    %cst_18 = arith.constant 0.000000e+00 : f32
    %14 = vector.broadcast %cst_18 : f32 to vector<8x32xf32>
    %15 = arith.maximumf %13, %14 : vector<8x32xf32>
    %16 = arith.truncf %15 : vector<8x32xf32> to vector<8x32xbf16>
    %c0_19 = arith.constant 0 : index
    %c0_20 = arith.constant 0 : index
    %c0_21 = arith.constant 0 : index
    %c0_22 = arith.constant 0 : index
    %17 = vector.load %arg4[%c0_19, %c0_20, %c0_21, %c0_22] : memref<2x8x8x32xbf16, #tpu.memory_space<vmem>>, vector<1x1x8x32xbf16>
    %18 = vector.shape_cast %17 : vector<1x1x8x32xbf16> to vector<8x32xbf16>
    %19 = vector.shape_cast %16 : vector<8x32xbf16> to vector<1x1x8x32xbf16>
    tpu.vector_store %arg4[%c0_19, %c0_20, %c0_21, %c0_22], %19 {strides = array<i32>} : memref<2x8x8x32xbf16, #tpu.memory_space<vmem>>, vector<1x1x8x32xbf16>,
    %c0_23 = arith.constant 0 : index
    %c1_24 = arith.constant 1 : index
    %c0_25 = arith.constant 0 : index
    %c0_26 = arith.constant 0 : index
    %20 = vector.load %arg1[%c0_23, %c1_24, %c0_25, %c0_26] : memref<2x9x9x64xbf16, #tpu.memory_space<vmem>>, vector<1x1x8x64xbf16>
    %21 = vector.shape_cast %20 : vector<1x1x8x64xbf16> to vector<8x64xbf16>
    %c0_27 = arith.constant 0 : index
    %c1_28 = arith.constant 1 : index
    %c1_29 = arith.constant 1 : index
    %c0_30 = arith.constant 0 : index
    %22 = vector.load %arg1[%c0_27, %c1_28, %c1_29, %c0_30] : memref<2x9x9x64xbf16, #tpu.memory_space<vmem>>, vector<1x1x8x64xbf16>
    %23 = vector.shape_cast %22 : vector<1x1x8x64xbf16> to vector<8x64xbf16>
    %c0_31 = arith.constant 0 : index
    %c2 = arith.constant 2 : index
    %c0_32 = arith.constant 0 : index
    %c0_33 = arith.constant 0 : index
    %24 = vector.load %arg1[%c0_31, %c2, %c0_32, %c0_33] : memref<2x9x9x64xbf16, #tpu.memory_space<vmem>>, vector<1x1x8x64xbf16>
    %25 = vector.shape_cast %24 : vector<1x1x8x64xbf16> to vector<8x64xbf16>
    %c0_34 = arith.constant 0 : index
    %c2_35 = arith.constant 2 : index
    %c1_36 = arith.constant 1 : index
    %c0_37 = arith.constant 0 : index
    %26 = vector.load %arg1[%c0_34, %c2_35, %c1_36, %c0_37] : memref<2x9x9x64xbf16, #tpu.memory_space<vmem>>, vector<1x1x8x64xbf16>
    %27 = vector.shape_cast %26 : vector<1x1x8x64xbf16> to vector<8x64xbf16>
    %28 = tpu.concatenate %21, %23, %25, %27 in 1 : vector<8x64xbf16>, vector<8x64xbf16>, vector<8x64xbf16>, vector<8x64xbf16> -> vector<8x256xbf16>
    %c0_38 = arith.constant 0 : index
    %c0_39 = arith.constant 0 : index
    %29 = vector.load %arg2[%c0_38, %c0_39] : memref<256x32xbf16, #tpu.memory_space<vmem>>, vector<256x32xbf16>
    %cst_40 = arith.constant dense<0.000000e+00> : vector<8x32xf32>
    %30 = tpu.matmul %28, %29, %cst_40 {dimension_numbers = #tpu.dot_dimension_numbers<[1], [0], [0], [1], [0, 0, 1, 1], [], []>} : vector<8x256xbf16>, vector<256x32xbf16>, vector<8x32xf32> -> vector<8x32xf32>
    %31 = vector.broadcast %0 : vector<1x32xf32> to vector<8x32xf32>
    %32 = arith.addf %30, %31 : vector<8x32xf32>
    %cst_41 = arith.constant 0.000000e+00 : f32
    %33 = vector.broadcast %cst_41 : f32 to vector<8x32xf32>
    %34 = arith.maximumf %32, %33 : vector<8x32xf32>
    %35 = arith.truncf %34 : vector<8x32xf32> to vector<8x32xbf16>
    %c0_42 = arith.constant 0 : index
    %c1_43 = arith.constant 1 : index
    %c0_44 = arith.constant 0 : index
    %c0_45 = arith.constant 0 : index
    %36 = vector.load %arg4[%c0_42, %c1_43, %c0_44, %c0_45] : memref<2x8x8x32xbf16, #tpu.memory_space<vmem>>, vector<1x1x8x32xbf16>
    %37 = vector.shape_cast %36 : vector<1x1x8x32xbf16> to vector<8x32xbf16>
    %38 = vector.shape_cast %35 : vector<8x32xbf16> to vector<1x1x8x32xbf16>
    tpu.vector_store %arg4[%c0_42, %c1_43, %c0_44, %c0_45], %38 {strides = array<i32>} : memref<2x8x8x32xbf16, #tpu.memory_space<vmem>>, vector<1x1x8x32xbf16>,
    %c0_46 = arith.constant 0 : index
    %c2_47 = arith.constant 2 : index
    %c0_48 = arith.constant 0 : index
    %c0_49 = arith.constant 0 : index
    %39 = vector.load %arg1[%c0_46, %c2_47, %c0_48, %c0_49] : memref<2x9x9x64xbf16, #tpu.memory_space<vmem>>, vector<1x1x8x64xbf16>
    %40 = vector.shape_cast %39 : vector<1x1x8x64xbf16> to vector<8x64xbf16>
    %c0_50 = arith.constant 0 : index
    %c2_51 = arith.constant 2 : index
    %c1_52 = arith.constant 1 : index
    %c0_53 = arith.constant 0 : index
    %41 = vector.load %arg1[%c0_50, %c2_51, %c1_52, %c0_53] : memref<2x9x9x64xbf16, #tpu.memory_space<vmem>>, vector<1x1x8x64xbf16>
    %42 = vector.shape_cast %41 : vector<1x1x8x64xbf16> to vector<8x64xbf16>
    %c0_54 = arith.constant 0 : index
    %c3 = arith.constant 3 : index
    %c0_55 = arith.constant 0 : index
    %c0_56 = arith.constant 0 : index
    %43 = vector.load %arg1[%c0_54, %c3, %c0_55, %c0_56] : memref<2x9x9x64xbf16, #tpu.memory_space<vmem>>, vector<1x1x8x64xbf16>
    %44 = vector.shape_cast %43 : vector<1x1x8x64xbf16> to vector<8x64xbf16>
    %c0_57 = arith.constant 0 : index
    %c3_58 = arith.constant 3 : index
    %c1_59 = arith.constant 1 : index
    %c0_60 = arith.constant 0 : index
    %45 = vector.load %arg1[%c0_57, %c3_58, %c1_59, %c0_60] : memref<2x9x9x64xbf16, #tpu.memory_space<vmem>>, vector<1x1x8x64xbf16>
    %46 = vector.shape_cast %45 : vector<1x1x8x64xbf16> to vector<8x64xbf16>
    %47 = tpu.concatenate %40, %42, %44, %46 in 1 : vector<8x64xbf16>, vector<8x64xbf16>, vector<8x64xbf16>, vector<8x64xbf16> -> vector<8x256xbf16>
    %c0_61 = arith.constant 0 : index
    %c0_62 = arith.constant 0 : index
    %48 = vector.load %arg2[%c0_61, %c0_62] : memref<256x32xbf16, #tpu.memory_space<vmem>>, vector<256x32xbf16>
    %cst_63 = arith.constant dense<0.000000e+00> : vector<8x32xf32>
    %49 = tpu.matmul %47, %48, %cst_63 {dimension_numbers = #tpu.dot_dimension_numbers<[1], [0], [0], [1], [0, 0, 1, 1], [], []>} : vector<8x256xbf16>, vector<256x32xbf16>, vector<8x32xf32> -> vector<8x32xf32>
    %50 = vector.broadcast %0 : vector<1x32xf32> to vector<8x32xf32>
    %51 = arith.addf %49, %50 : vector<8x32xf32>
    %cst_64 = arith.constant 0.000000e+00 : f32
    %52 = vector.broadcast %cst_64 : f32 to vector<8x32xf32>
    %53 = arith.maximumf %51, %52 : vector<8x32xf32>
    %54 = arith.truncf %53 : vector<8x32xf32> to vector<8x32xbf16>
    %c0_65 = arith.constant 0 : index
    %c2_66 = arith.constant 2 : index
    %c0_67 = arith.constant 0 : index
    %c0_68 = arith.constant 0 : index
    %55 = vector.load %arg4[%c0_65, %c2_66, %c0_67, %c0_68] : memref<2x8x8x32xbf16, #tpu.memory_space<vmem>>, vector<1x1x8x32xbf16>
    %56 = vector.shape_cast %55 : vector<1x1x8x32xbf16> to vector<8x32xbf16>
    %57 = vector.shape_cast %54 : vector<8x32xbf16> to vector<1x1x8x32xbf16>
    tpu.vector_store %arg4[%c0_65, %c2_66, %c0_67, %c0_68], %57 {strides = array<i32>} : memref<2x8x8x32xbf16, #tpu.memory_space<vmem>>, vector<1x1x8x32xbf16>,
    %c0_69 = arith.constant 0 : index
    %c3_70 = arith.constant 3 : index
    %c0_71 = arith.constant 0 : index
    %c0_72 = arith.constant 0 : index
    %58 = vector.load %arg1[%c0_69, %c3_70, %c0_71, %c0_72] : memref<2x9x9x64xbf16, #tpu.memory_space<vmem>>, vector<1x1x8x64xbf16>
    %59 = vector.shape_cast %58 : vector<1x1x8x64xbf16> to vector<8x64xbf16>
    %c0_73 = arith.constant 0 : index
    %c3_74 = arith.constant 3 : index
    %c1_75 = arith.constant 1 : index
    %c0_76 = arith.constant 0 : index
    %60 = vector.load %arg1[%c0_73, %c3_74, %c1_75, %c0_76] : memref<2x9x9x64xbf16, #tpu.memory_space<vmem>>, vector<1x1x8x64xbf16>
    %61 = vector.shape_cast %60 : vector<1x1x8x64xbf16> to vector<8x64xbf16>
    %c0_77 = arith.constant 0 : index
    %c4 = arith.constant 4 : index
    %c0_78 = arith.constant 0 : index
    %c0_79 = arith.constant 0 : index
    %62 = vector.load %arg1[%c0_77, %c4, %c0_78, %c0_79] : memref<2x9x9x64xbf16, #tpu.memory_space<vmem>>, vector<1x1x8x64xbf16>
    %63 = vector.shape_cast %62 : vector<1x1x8x64xbf16> to vector<8x64xbf16>
    %c0_80 = arith.constant 0 : index
    %c4_81 = arith.constant 4 : index
    %c1_82 = arith.constant 1 : index
    %c0_83 = arith.constant 0 : index
    %64 = vector.load %arg1[%c0_80, %c4_81, %c1_82, %c0_83] : memref<2x9x9x64xbf16, #tpu.memory_space<vmem>>, vector<1x1x8x64xbf16>
    %65 = vector.shape_cast %64 : vector<1x1x8x64xbf16> to vector<8x64xbf16>
    %66 = tpu.concatenate %59, %61, %63, %65 in 1 : vector<8x64xbf16>, vector<8x64xbf16>, vector<8x64xbf16>, vector<8x64xbf16> -> vector<8x256xbf16>
    %c0_84 = arith.constant 0 : index
    %c0_85 = arith.constant 0 : index
    %67 = vector.load %arg2[%c0_84, %c0_85] : memref<256x32xbf16, #tpu.memory_space<vmem>>, vector<256x32xbf16>
    %cst_86 = arith.constant dense<0.000000e+00> : vector<8x32xf32>
    %68 = tpu.matmul %66, %67, %cst_86 {dimension_numbers = #tpu.dot_dimension_numbers<[1], [0], [0], [1], [0, 0, 1, 1], [], []>} : vector<8x256xbf16>, vector<256x32xbf16>, vector<8x32xf32> -> vector<8x32xf32>
    %69 = vector.broadcast %0 : vector<1x32xf32> to vector<8x32xf32>
    %70 = arith.addf %68, %69 : vector<8x32xf32>
    %cst_87 = arith.constant 0.000000e+00 : f32
    %71 = vector.broadcast %cst_87 : f32 to vector<8x32xf32>
    %72 = arith.maximumf %70, %71 : vector<8x32xf32>
    %73 = arith.truncf %72 : vector<8x32xf32> to vector<8x32xbf16>
    %c0_88 = arith.constant 0 : index
    %c3_89 = arith.constant 3 : index
    %c0_90 = arith.constant 0 : index
    %c0_91 = arith.constant 0 : index
    %74 = vector.load %arg4[%c0_88, %c3_89, %c0_90, %c0_91] : memref<2x8x8x32xbf16, #tpu.memory_space<vmem>>, vector<1x1x8x32xbf16>
    %75 = vector.shape_cast %74 : vector<1x1x8x32xbf16> to vector<8x32xbf16>
    %76 = vector.shape_cast %73 : vector<8x32xbf16> to vector<1x1x8x32xbf16>
    tpu.vector_store %arg4[%c0_88, %c3_89, %c0_90, %c0_91], %76 {strides = array<i32>} : memref<2x8x8x32xbf16, #tpu.memory_space<vmem>>, vector<1x1x8x32xbf16>,
    %c0_92 = arith.constant 0 : index
    %c4_93 = arith.constant 4 : index
    %c0_94 = arith.constant 0 : index
    %c0_95 = arith.constant 0 : index
    %77 = vector.load %arg1[%c0_92, %c4_93, %c0_94, %c0_95] : memref<2x9x9x64xbf16, #tpu.memory_space<vmem>>, vector<1x1x8x64xbf16>
    %78 = vector.shape_cast %77 : vector<1x1x8x64xbf16> to vector<8x64xbf16>
    %c0_96 = arith.constant 0 : index
    %c4_97 = arith.constant 4 : index
    %c1_98 = arith.constant 1 : index
    %c0_99 = arith.constant 0 : index
    %79 = vector.load %arg1[%c0_96, %c4_97, %c1_98, %c0_99] : memref<2x9x9x64xbf16, #tpu.memory_space<vmem>>, vector<1x1x8x64xbf16>
    %80 = vector.shape_cast %79 : vector<1x1x8x64xbf16> to vector<8x64xbf16>
    %c0_100 = arith.constant 0 : index
    %c5 = arith.constant 5 : index
    %c0_101 = arith.constant 0 : index
    %c0_102 = arith.constant 0 : index
    %81 = vector.load %arg1[%c0_100, %c5, %c0_101, %c0_102] : memref<2x9x9x64xbf16, #tpu.memory_space<vmem>>, vector<1x1x8x64xbf16>
    %82 = vector.shape_cast %81 : vector<1x1x8x64xbf16> to vector<8x64xbf16>
    %c0_103 = arith.constant 0 : index
    %c5_104 = arith.constant 5 : index
    %c1_105 = arith.constant 1 : index
    %c0_106 = arith.constant 0 : index
    %83 = vector.load %arg1[%c0_103, %c5_104, %c1_105, %c0_106] : memref<2x9x9x64xbf16, #tpu.memory_space<vmem>>, vector<1x1x8x64xbf16>
    %84 = vector.shape_cast %83 : vector<1x1x8x64xbf16> to vector<8x64xbf16>
    %85 = tpu.concatenate %78, %80, %82, %84 in 1 : vector<8x64xbf16>, vector<8x64xbf16>, vector<8x64xbf16>, vector<8x64xbf16> -> vector<8x256xbf16>
    %c0_107 = arith.constant 0 : index
    %c0_108 = arith.constant 0 : index
    %86 = vector.load %arg2[%c0_107, %c0_108] : memref<256x32xbf16, #tpu.memory_space<vmem>>, vector<256x32xbf16>
    %cst_109 = arith.constant dense<0.000000e+00> : vector<8x32xf32>
    %87 = tpu.matmul %85, %86, %cst_109 {dimension_numbers = #tpu.dot_dimension_numbers<[1], [0], [0], [1], [0, 0, 1, 1], [], []>} : vector<8x256xbf16>, vector<256x32xbf16>, vector<8x32xf32> -> vector<8x32xf32>
    %88 = vector.broadcast %0 : vector<1x32xf32> to vector<8x32xf32>
    %89 = arith.addf %87, %88 : vector<8x32xf32>
    %cst_110 = arith.constant 0.000000e+00 : f32
    %90 = vector.broadcast %cst_110 : f32 to vector<8x32xf32>
    %91 = arith.maximumf %89, %90 : vector<8x32xf32>
    %92 = arith.truncf %91 : vector<8x32xf32> to vector<8x32xbf16>
    %c0_111 = arith.constant 0 : index
    %c4_112 = arith.constant 4 : index
    %c0_113 = arith.constant 0 : index
    %c0_114 = arith.constant 0 : index
    %93 = vector.load %arg4[%c0_111, %c4_112, %c0_113, %c0_114] : memref<2x8x8x32xbf16, #tpu.memory_space<vmem>>, vector<1x1x8x32xbf16>
    %94 = vector.shape_cast %93 : vector<1x1x8x32xbf16> to vector<8x32xbf16>
    %95 = vector.shape_cast %92 : vector<8x32xbf16> to vector<1x1x8x32xbf16>
    tpu.vector_store %arg4[%c0_111, %c4_112, %c0_113, %c0_114], %95 {strides = array<i32>} : memref<2x8x8x32xbf16, #tpu.memory_space<vmem>>, vector<1x1x8x32xbf16>,
    %c0_115 = arith.constant 0 : index
    %c5_116 = arith.constant 5 : index
    %c0_117 = arith.constant 0 : index
    %c0_118 = arith.constant 0 : index
    %96 = vector.load %arg1[%c0_115, %c5_116, %c0_117, %c0_118] : memref<2x9x9x64xbf16, #tpu.memory_space<vmem>>, vector<1x1x8x64xbf16>
    %97 = vector.shape_cast %96 : vector<1x1x8x64xbf16> to vector<8x64xbf16>
    %c0_119 = arith.constant 0 : index
    %c5_120 = arith.constant 5 : index
    %c1_121 = arith.constant 1 : index
    %c0_122 = arith.constant 0 : index
    %98 = vector.load %arg1[%c0_119, %c5_120, %c1_121, %c0_122] : memref<2x9x9x64xbf16, #tpu.memory_space<vmem>>, vector<1x1x8x64xbf16>
    %99 = vector.shape_cast %98 : vector<1x1x8x64xbf16> to vector<8x64xbf16>
    %c0_123 = arith.constant 0 : index
    %c6 = arith.constant 6 : index
    %c0_124 = arith.constant 0 : index
    %c0_125 = arith.constant 0 : index
    %100 = vector.load %arg1[%c0_123, %c6, %c0_124, %c0_125] : memref<2x9x9x64xbf16, #tpu.memory_space<vmem>>, vector<1x1x8x64xbf16>
    %101 = vector.shape_cast %100 : vector<1x1x8x64xbf16> to vector<8x64xbf16>
    %c0_126 = arith.constant 0 : index
    %c6_127 = arith.constant 6 : index
    %c1_128 = arith.constant 1 : index
    %c0_129 = arith.constant 0 : index
    %102 = vector.load %arg1[%c0_126, %c6_127, %c1_128, %c0_129] : memref<2x9x9x64xbf16, #tpu.memory_space<vmem>>, vector<1x1x8x64xbf16>
    %103 = vector.shape_cast %102 : vector<1x1x8x64xbf16> to vector<8x64xbf16>
    %104 = tpu.concatenate %97, %99, %101, %103 in 1 : vector<8x64xbf16>, vector<8x64xbf16>, vector<8x64xbf16>, vector<8x64xbf16> -> vector<8x256xbf16>
    %c0_130 = arith.constant 0 : index
    %c0_131 = arith.constant 0 : index
    %105 = vector.load %arg2[%c0_130, %c0_131] : memref<256x32xbf16, #tpu.memory_space<vmem>>, vector<256x32xbf16>
    %cst_132 = arith.constant dense<0.000000e+00> : vector<8x32xf32>
    %106 = tpu.matmul %104, %105, %cst_132 {dimension_numbers = #tpu.dot_dimension_numbers<[1], [0], [0], [1], [0, 0, 1, 1], [], []>} : vector<8x256xbf16>, vector<256x32xbf16>, vector<8x32xf32> -> vector<8x32xf32>
    %107 = vector.broadcast %0 : vector<1x32xf32> to vector<8x32xf32>
    %108 = arith.addf %106, %107 : vector<8x32xf32>
    %cst_133 = arith.constant 0.000000e+00 : f32
    %109 = vector.broadcast %cst_133 : f32 to vector<8x32xf32>
    %110 = arith.maximumf %108, %109 : vector<8x32xf32>
    %111 = arith.truncf %110 : vector<8x32xf32> to vector<8x32xbf16>
    %c0_134 = arith.constant 0 : index
    %c5_135 = arith.constant 5 : index
    %c0_136 = arith.constant 0 : index
    %c0_137 = arith.constant 0 : index
    %112 = vector.load %arg4[%c0_134, %c5_135, %c0_136, %c0_137] : memref<2x8x8x32xbf16, #tpu.memory_space<vmem>>, vector<1x1x8x32xbf16>
    %113 = vector.shape_cast %112 : vector<1x1x8x32xbf16> to vector<8x32xbf16>
    %114 = vector.shape_cast %111 : vector<8x32xbf16> to vector<1x1x8x32xbf16>
    tpu.vector_store %arg4[%c0_134, %c5_135, %c0_136, %c0_137], %114 {strides = array<i32>} : memref<2x8x8x32xbf16, #tpu.memory_space<vmem>>, vector<1x1x8x32xbf16>,
    %c0_138 = arith.constant 0 : index
    %c6_139 = arith.constant 6 : index
    %c0_140 = arith.constant 0 : index
    %c0_141 = arith.constant 0 : index
    %115 = vector.load %arg1[%c0_138, %c6_139, %c0_140, %c0_141] : memref<2x9x9x64xbf16, #tpu.memory_space<vmem>>, vector<1x1x8x64xbf16>
    %116 = vector.shape_cast %115 : vector<1x1x8x64xbf16> to vector<8x64xbf16>
    %c0_142 = arith.constant 0 : index
    %c6_143 = arith.constant 6 : index
    %c1_144 = arith.constant 1 : index
    %c0_145 = arith.constant 0 : index
    %117 = vector.load %arg1[%c0_142, %c6_143, %c1_144, %c0_145] : memref<2x9x9x64xbf16, #tpu.memory_space<vmem>>, vector<1x1x8x64xbf16>
    %118 = vector.shape_cast %117 : vector<1x1x8x64xbf16> to vector<8x64xbf16>
    %c0_146 = arith.constant 0 : index
    %c7 = arith.constant 7 : index
    %c0_147 = arith.constant 0 : index
    %c0_148 = arith.constant 0 : index
    %119 = vector.load %arg1[%c0_146, %c7, %c0_147, %c0_148] : memref<2x9x9x64xbf16, #tpu.memory_space<vmem>>, vector<1x1x8x64xbf16>
    %120 = vector.shape_cast %119 : vector<1x1x8x64xbf16> to vector<8x64xbf16>
    %c0_149 = arith.constant 0 : index
    %c7_150 = arith.constant 7 : index
    %c1_151 = arith.constant 1 : index
    %c0_152 = arith.constant 0 : index
    %121 = vector.load %arg1[%c0_149, %c7_150, %c1_151, %c0_152] : memref<2x9x9x64xbf16, #tpu.memory_space<vmem>>, vector<1x1x8x64xbf16>
    %122 = vector.shape_cast %121 : vector<1x1x8x64xbf16> to vector<8x64xbf16>
    %123 = tpu.concatenate %116, %118, %120, %122 in 1 : vector<8x64xbf16>, vector<8x64xbf16>, vector<8x64xbf16>, vector<8x64xbf16> -> vector<8x256xbf16>
    %c0_153 = arith.constant 0 : index
    %c0_154 = arith.constant 0 : index
    %124 = vector.load %arg2[%c0_153, %c0_154] : memref<256x32xbf16, #tpu.memory_space<vmem>>, vector<256x32xbf16>
    %cst_155 = arith.constant dense<0.000000e+00> : vector<8x32xf32>
    %125 = tpu.matmul %123, %124, %cst_155 {dimension_numbers = #tpu.dot_dimension_numbers<[1], [0], [0], [1], [0, 0, 1, 1], [], []>} : vector<8x256xbf16>, vector<256x32xbf16>, vector<8x32xf32> -> vector<8x32xf32>
    %126 = vector.broadcast %0 : vector<1x32xf32> to vector<8x32xf32>
    %127 = arith.addf %125, %126 : vector<8x32xf32>
    %cst_156 = arith.constant 0.000000e+00 : f32
    %128 = vector.broadcast %cst_156 : f32 to vector<8x32xf32>
    %129 = arith.maximumf %127, %128 : vector<8x32xf32>
    %130 = arith.truncf %129 : vector<8x32xf32> to vector<8x32xbf16>
    %c0_157 = arith.constant 0 : index
    %c6_158 = arith.constant 6 : index
    %c0_159 = arith.constant 0 : index
    %c0_160 = arith.constant 0 : index
    %131 = vector.load %arg4[%c0_157, %c6_158, %c0_159, %c0_160] : memref<2x8x8x32xbf16, #tpu.memory_space<vmem>>, vector<1x1x8x32xbf16>
    %132 = vector.shape_cast %131 : vector<1x1x8x32xbf16> to vector<8x32xbf16>
    %133 = vector.shape_cast %130 : vector<8x32xbf16> to vector<1x1x8x32xbf16>
    tpu.vector_store %arg4[%c0_157, %c6_158, %c0_159, %c0_160], %133 {strides = array<i32>} : memref<2x8x8x32xbf16, #tpu.memory_space<vmem>>, vector<1x1x8x32xbf16>,
    %c0_161 = arith.constant 0 : index
    %c7_162 = arith.constant 7 : index
    %c0_163 = arith.constant 0 : index
    %c0_164 = arith.constant 0 : index
    %134 = vector.load %arg1[%c0_161, %c7_162, %c0_163, %c0_164] : memref<2x9x9x64xbf16, #tpu.memory_space<vmem>>, vector<1x1x8x64xbf16>
    %135 = vector.shape_cast %134 : vector<1x1x8x64xbf16> to vector<8x64xbf16>
    %c0_165 = arith.constant 0 : index
    %c7_166 = arith.constant 7 : index
    %c1_167 = arith.constant 1 : index
    %c0_168 = arith.constant 0 : index
    %136 = vector.load %arg1[%c0_165, %c7_166, %c1_167, %c0_168] : memref<2x9x9x64xbf16, #tpu.memory_space<vmem>>, vector<1x1x8x64xbf16>
    %137 = vector.shape_cast %136 : vector<1x1x8x64xbf16> to vector<8x64xbf16>
    %c0_169 = arith.constant 0 : index
    %c8 = arith.constant 8 : index
    %c0_170 = arith.constant 0 : index
    %c0_171 = arith.constant 0 : index
    %138 = vector.load %arg1[%c0_169, %c8, %c0_170, %c0_171] : memref<2x9x9x64xbf16, #tpu.memory_space<vmem>>, vector<1x1x8x64xbf16>
    %139 = vector.shape_cast %138 : vector<1x1x8x64xbf16> to vector<8x64xbf16>
    %c0_172 = arith.constant 0 : index
    %c8_173 = arith.constant 8 : index
    %c1_174 = arith.constant 1 : index
    %c0_175 = arith.constant 0 : index
    %140 = vector.load %arg1[%c0_172, %c8_173, %c1_174, %c0_175] : memref<2x9x9x64xbf16, #tpu.memory_space<vmem>>, vector<1x1x8x64xbf16>
    %141 = vector.shape_cast %140 : vector<1x1x8x64xbf16> to vector<8x64xbf16>
    %142 = tpu.concatenate %135, %137, %139, %141 in 1 : vector<8x64xbf16>, vector<8x64xbf16>, vector<8x64xbf16>, vector<8x64xbf16> -> vector<8x256xbf16>
    %c0_176 = arith.constant 0 : index
    %c0_177 = arith.constant 0 : index
    %143 = vector.load %arg2[%c0_176, %c0_177] : memref<256x32xbf16, #tpu.memory_space<vmem>>, vector<256x32xbf16>
    %cst_178 = arith.constant dense<0.000000e+00> : vector<8x32xf32>
    %144 = tpu.matmul %142, %143, %cst_178 {dimension_numbers = #tpu.dot_dimension_numbers<[1], [0], [0], [1], [0, 0, 1, 1], [], []>} : vector<8x256xbf16>, vector<256x32xbf16>, vector<8x32xf32> -> vector<8x32xf32>
    %145 = vector.broadcast %0 : vector<1x32xf32> to vector<8x32xf32>
    %146 = arith.addf %144, %145 : vector<8x32xf32>
    %cst_179 = arith.constant 0.000000e+00 : f32
    %147 = vector.broadcast %cst_179 : f32 to vector<8x32xf32>
    %148 = arith.maximumf %146, %147 : vector<8x32xf32>
    %149 = arith.truncf %148 : vector<8x32xf32> to vector<8x32xbf16>
    %c0_180 = arith.constant 0 : index
    %c7_181 = arith.constant 7 : index
    %c0_182 = arith.constant 0 : index
    %c0_183 = arith.constant 0 : index
    %150 = vector.load %arg4[%c0_180, %c7_181, %c0_182, %c0_183] : memref<2x8x8x32xbf16, #tpu.memory_space<vmem>>, vector<1x1x8x32xbf16>
    %151 = vector.shape_cast %150 : vector<1x1x8x32xbf16> to vector<8x32xbf16>
    %152 = vector.shape_cast %149 : vector<8x32xbf16> to vector<1x1x8x32xbf16>
    tpu.vector_store %arg4[%c0_180, %c7_181, %c0_182, %c0_183], %152 {strides = array<i32>} : memref<2x8x8x32xbf16, #tpu.memory_space<vmem>>, vector<1x1x8x32xbf16>,
    %c1_184 = arith.constant 1 : index
    %c0_185 = arith.constant 0 : index
    %c0_186 = arith.constant 0 : index
    %c0_187 = arith.constant 0 : index
    %153 = vector.load %arg1[%c1_184, %c0_185, %c0_186, %c0_187] : memref<2x9x9x64xbf16, #tpu.memory_space<vmem>>, vector<1x1x8x64xbf16>
    %154 = vector.shape_cast %153 : vector<1x1x8x64xbf16> to vector<8x64xbf16>
    %c1_188 = arith.constant 1 : index
    %c0_189 = arith.constant 0 : index
    %c1_190 = arith.constant 1 : index
    %c0_191 = arith.constant 0 : index
    %155 = vector.load %arg1[%c1_188, %c0_189, %c1_190, %c0_191] : memref<2x9x9x64xbf16, #tpu.memory_space<vmem>>, vector<1x1x8x64xbf16>
    %156 = vector.shape_cast %155 : vector<1x1x8x64xbf16> to vector<8x64xbf16>
    %c1_192 = arith.constant 1 : index
    %c1_193 = arith.constant 1 : index
    %c0_194 = arith.constant 0 : index
    %c0_195 = arith.constant 0 : index
    %157 = vector.load %arg1[%c1_192, %c1_193, %c0_194, %c0_195] : memref<2x9x9x64xbf16, #tpu.memory_space<vmem>>, vector<1x1x8x64xbf16>
    %158 = vector.shape_cast %157 : vector<1x1x8x64xbf16> to vector<8x64xbf16>
    %c1_196 = arith.constant 1 : index
    %c1_197 = arith.constant 1 : index
    %c1_198 = arith.constant 1 : index
    %c0_199 = arith.constant 0 : index
    %159 = vector.load %arg1[%c1_196, %c1_197, %c1_198, %c0_199] : memref<2x9x9x64xbf16, #tpu.memory_space<vmem>>, vector<1x1x8x64xbf16>
    %160 = vector.shape_cast %159 : vector<1x1x8x64xbf16> to vector<8x64xbf16>
    %161 = tpu.concatenate %154, %156, %158, %160 in 1 : vector<8x64xbf16>, vector<8x64xbf16>, vector<8x64xbf16>, vector<8x64xbf16> -> vector<8x256xbf16>
    %c0_200 = arith.constant 0 : index
    %c0_201 = arith.constant 0 : index
    %162 = vector.load %arg2[%c0_200, %c0_201] : memref<256x32xbf16, #tpu.memory_space<vmem>>, vector<256x32xbf16>
    %cst_202 = arith.constant dense<0.000000e+00> : vector<8x32xf32>
    %163 = tpu.matmul %161, %162, %cst_202 {dimension_numbers = #tpu.dot_dimension_numbers<[1], [0], [0], [1], [0, 0, 1, 1], [], []>} : vector<8x256xbf16>, vector<256x32xbf16>, vector<8x32xf32> -> vector<8x32xf32>
    %164 = vector.broadcast %0 : vector<1x32xf32> to vector<8x32xf32>
    %165 = arith.addf %163, %164 : vector<8x32xf32>
    %cst_203 = arith.constant 0.000000e+00 : f32
    %166 = vector.broadcast %cst_203 : f32 to vector<8x32xf32>
    %167 = arith.maximumf %165, %166 : vector<8x32xf32>
    %168 = arith.truncf %167 : vector<8x32xf32> to vector<8x32xbf16>
    %c1_204 = arith.constant 1 : index
    %c0_205 = arith.constant 0 : index
    %c0_206 = arith.constant 0 : index
    %c0_207 = arith.constant 0 : index
    %169 = vector.load %arg4[%c1_204, %c0_205, %c0_206, %c0_207] : memref<2x8x8x32xbf16, #tpu.memory_space<vmem>>, vector<1x1x8x32xbf16>
    %170 = vector.shape_cast %169 : vector<1x1x8x32xbf16> to vector<8x32xbf16>
    %171 = vector.shape_cast %168 : vector<8x32xbf16> to vector<1x1x8x32xbf16>
    tpu.vector_store %arg4[%c1_204, %c0_205, %c0_206, %c0_207], %171 {strides = array<i32>} : memref<2x8x8x32xbf16, #tpu.memory_space<vmem>>, vector<1x1x8x32xbf16>,
    %c1_208 = arith.constant 1 : index
    %c1_209 = arith.constant 1 : index
    %c0_210 = arith.constant 0 : index
    %c0_211 = arith.constant 0 : index
    %172 = vector.load %arg1[%c1_208, %c1_209, %c0_210, %c0_211] : memref<2x9x9x64xbf16, #tpu.memory_space<vmem>>, vector<1x1x8x64xbf16>
    %173 = vector.shape_cast %172 : vector<1x1x8x64xbf16> to vector<8x64xbf16>
    %c1_212 = arith.constant 1 : index
    %c1_213 = arith.constant 1 : index
    %c1_214 = arith.constant 1 : index
    %c0_215 = arith.constant 0 : index
    %174 = vector.load %arg1[%c1_212, %c1_213, %c1_214, %c0_215] : memref<2x9x9x64xbf16, #tpu.memory_space<vmem>>, vector<1x1x8x64xbf16>
    %175 = vector.shape_cast %174 : vector<1x1x8x64xbf16> to vector<8x64xbf16>
    %c1_216 = arith.constant 1 : index
    %c2_217 = arith.constant 2 : index
    %c0_218 = arith.constant 0 : index
    %c0_219 = arith.constant 0 : index
    %176 = vector.load %arg1[%c1_216, %c2_217, %c0_218, %c0_219] : memref<2x9x9x64xbf16, #tpu.memory_space<vmem>>, vector<1x1x8x64xbf16>
    %177 = vector.shape_cast %176 : vector<1x1x8x64xbf16> to vector<8x64xbf16>
    %c1_220 = arith.constant 1 : index
    %c2_221 = arith.constant 2 : index
    %c1_222 = arith.constant 1 : index
    %c0_223 = arith.constant 0 : index
    %178 = vector.load %arg1[%c1_220, %c2_221, %c1_222, %c0_223] : memref<2x9x9x64xbf16, #tpu.memory_space<vmem>>, vector<1x1x8x64xbf16>
    %179 = vector.shape_cast %178 : vector<1x1x8x64xbf16> to vector<8x64xbf16>
    %180 = tpu.concatenate %173, %175, %177, %179 in 1 : vector<8x64xbf16>, vector<8x64xbf16>, vector<8x64xbf16>, vector<8x64xbf16> -> vector<8x256xbf16>
    %c0_224 = arith.constant 0 : index
    %c0_225 = arith.constant 0 : index
    %181 = vector.load %arg2[%c0_224, %c0_225] : memref<256x32xbf16, #tpu.memory_space<vmem>>, vector<256x32xbf16>
    %cst_226 = arith.constant dense<0.000000e+00> : vector<8x32xf32>
    %182 = tpu.matmul %180, %181, %cst_226 {dimension_numbers = #tpu.dot_dimension_numbers<[1], [0], [0], [1], [0, 0, 1, 1], [], []>} : vector<8x256xbf16>, vector<256x32xbf16>, vector<8x32xf32> -> vector<8x32xf32>
    %183 = vector.broadcast %0 : vector<1x32xf32> to vector<8x32xf32>
    %184 = arith.addf %182, %183 : vector<8x32xf32>
    %cst_227 = arith.constant 0.000000e+00 : f32
    %185 = vector.broadcast %cst_227 : f32 to vector<8x32xf32>
    %186 = arith.maximumf %184, %185 : vector<8x32xf32>
    %187 = arith.truncf %186 : vector<8x32xf32> to vector<8x32xbf16>
    %c1_228 = arith.constant 1 : index
    %c1_229 = arith.constant 1 : index
    %c0_230 = arith.constant 0 : index
    %c0_231 = arith.constant 0 : index
    %188 = vector.load %arg4[%c1_228, %c1_229, %c0_230, %c0_231] : memref<2x8x8x32xbf16, #tpu.memory_space<vmem>>, vector<1x1x8x32xbf16>
    %189 = vector.shape_cast %188 : vector<1x1x8x32xbf16> to vector<8x32xbf16>
    %190 = vector.shape_cast %187 : vector<8x32xbf16> to vector<1x1x8x32xbf16>
    tpu.vector_store %arg4[%c1_228, %c1_229, %c0_230, %c0_231], %190 {strides = array<i32>} : memref<2x8x8x32xbf16, #tpu.memory_space<vmem>>, vector<1x1x8x32xbf16>,
    %c1_232 = arith.constant 1 : index
    %c2_233 = arith.constant 2 : index
    %c0_234 = arith.constant 0 : index
    %c0_235 = arith.constant 0 : index
    %191 = vector.load %arg1[%c1_232, %c2_233, %c0_234, %c0_235] : memref<2x9x9x64xbf16, #tpu.memory_space<vmem>>, vector<1x1x8x64xbf16>
    %192 = vector.shape_cast %191 : vector<1x1x8x64xbf16> to vector<8x64xbf16>
    %c1_236 = arith.constant 1 : index
    %c2_237 = arith.constant 2 : index
    %c1_238 = arith.constant 1 : index
    %c0_239 = arith.constant 0 : index
    %193 = vector.load %arg1[%c1_236, %c2_237, %c1_238, %c0_239] : memref<2x9x9x64xbf16, #tpu.memory_space<vmem>>, vector<1x1x8x64xbf16>
    %194 = vector.shape_cast %193 : vector<1x1x8x64xbf16> to vector<8x64xbf16>
    %c1_240 = arith.constant 1 : index
    %c3_241 = arith.constant 3 : index
    %c0_242 = arith.constant 0 : index
    %c0_243 = arith.constant 0 : index
    %195 = vector.load %arg1[%c1_240, %c3_241, %c0_242, %c0_243] : memref<2x9x9x64xbf16, #tpu.memory_space<vmem>>, vector<1x1x8x64xbf16>
    %196 = vector.shape_cast %195 : vector<1x1x8x64xbf16> to vector<8x64xbf16>
    %c1_244 = arith.constant 1 : index
    %c3_245 = arith.constant 3 : index
    %c1_246 = arith.constant 1 : index
    %c0_247 = arith.constant 0 : index
    %197 = vector.load %arg1[%c1_244, %c3_245, %c1_246, %c0_247] : memref<2x9x9x64xbf16, #tpu.memory_space<vmem>>, vector<1x1x8x64xbf16>
    %198 = vector.shape_cast %197 : vector<1x1x8x64xbf16> to vector<8x64xbf16>
    %199 = tpu.concatenate %192, %194, %196, %198 in 1 : vector<8x64xbf16>, vector<8x64xbf16>, vector<8x64xbf16>, vector<8x64xbf16> -> vector<8x256xbf16>
    %c0_248 = arith.constant 0 : index
    %c0_249 = arith.constant 0 : index
    %200 = vector.load %arg2[%c0_248, %c0_249] : memref<256x32xbf16, #tpu.memory_space<vmem>>, vector<256x32xbf16>
    %cst_250 = arith.constant dense<0.000000e+00> : vector<8x32xf32>
    %201 = tpu.matmul %199, %200, %cst_250 {dimension_numbers = #tpu.dot_dimension_numbers<[1], [0], [0], [1], [0, 0, 1, 1], [], []>} : vector<8x256xbf16>, vector<256x32xbf16>, vector<8x32xf32> -> vector<8x32xf32>
    %202 = vector.broadcast %0 : vector<1x32xf32> to vector<8x32xf32>
    %203 = arith.addf %201, %202 : vector<8x32xf32>
    %cst_251 = arith.constant 0.000000e+00 : f32
    %204 = vector.broadcast %cst_251 : f32 to vector<8x32xf32>
    %205 = arith.maximumf %203, %204 : vector<8x32xf32>
    %206 = arith.truncf %205 : vector<8x32xf32> to vector<8x32xbf16>
    %c1_252 = arith.constant 1 : index
    %c2_253 = arith.constant 2 : index
    %c0_254 = arith.constant 0 : index
    %c0_255 = arith.constant 0 : index
    %207 = vector.load %arg4[%c1_252, %c2_253, %c0_254, %c0_255] : memref<2x8x8x32xbf16, #tpu.memory_space<vmem>>, vector<1x1x8x32xbf16>
    %208 = vector.shape_cast %207 : vector<1x1x8x32xbf16> to vector<8x32xbf16>
    %209 = vector.shape_cast %206 : vector<8x32xbf16> to vector<1x1x8x32xbf16>
    tpu.vector_store %arg4[%c1_252, %c2_253, %c0_254, %c0_255], %209 {strides = array<i32>} : memref<2x8x8x32xbf16, #tpu.memory_space<vmem>>, vector<1x1x8x32xbf16>,
    %c1_256 = arith.constant 1 : index
    %c3_257 = arith.constant 3 : index
    %c0_258 = arith.constant 0 : index
    %c0_259 = arith.constant 0 : index
    %210 = vector.load %arg1[%c1_256, %c3_257, %c0_258, %c0_259] : memref<2x9x9x64xbf16, #tpu.memory_space<vmem>>, vector<1x1x8x64xbf16>
    %211 = vector.shape_cast %210 : vector<1x1x8x64xbf16> to vector<8x64xbf16>
    %c1_260 = arith.constant 1 : index
    %c3_261 = arith.constant 3 : index
    %c1_262 = arith.constant 1 : index
    %c0_263 = arith.constant 0 : index
    %212 = vector.load %arg1[%c1_260, %c3_261, %c1_262, %c0_263] : memref<2x9x9x64xbf16, #tpu.memory_space<vmem>>, vector<1x1x8x64xbf16>
    %213 = vector.shape_cast %212 : vector<1x1x8x64xbf16> to vector<8x64xbf16>
    %c1_264 = arith.constant 1 : index
    %c4_265 = arith.constant 4 : index
    %c0_266 = arith.constant 0 : index
    %c0_267 = arith.constant 0 : index
    %214 = vector.load %arg1[%c1_264, %c4_265, %c0_266, %c0_267] : memref<2x9x9x64xbf16, #tpu.memory_space<vmem>>, vector<1x1x8x64xbf16>
    %215 = vector.shape_cast %214 : vector<1x1x8x64xbf16> to vector<8x64xbf16>
    %c1_268 = arith.constant 1 : index
    %c4_269 = arith.constant 4 : index
    %c1_270 = arith.constant 1 : index
    %c0_271 = arith.constant 0 : index
    %216 = vector.load %arg1[%c1_268, %c4_269, %c1_270, %c0_271] : memref<2x9x9x64xbf16, #tpu.memory_space<vmem>>, vector<1x1x8x64xbf16>
    %217 = vector.shape_cast %216 : vector<1x1x8x64xbf16> to vector<8x64xbf16>
    %218 = tpu.concatenate %211, %213, %215, %217 in 1 : vector<8x64xbf16>, vector<8x64xbf16>, vector<8x64xbf16>, vector<8x64xbf16> -> vector<8x256xbf16>
    %c0_272 = arith.constant 0 : index
    %c0_273 = arith.constant 0 : index
    %219 = vector.load %arg2[%c0_272, %c0_273] : memref<256x32xbf16, #tpu.memory_space<vmem>>, vector<256x32xbf16>
    %cst_274 = arith.constant dense<0.000000e+00> : vector<8x32xf32>
    %220 = tpu.matmul %218, %219, %cst_274 {dimension_numbers = #tpu.dot_dimension_numbers<[1], [0], [0], [1], [0, 0, 1, 1], [], []>} : vector<8x256xbf16>, vector<256x32xbf16>, vector<8x32xf32> -> vector<8x32xf32>
    %221 = vector.broadcast %0 : vector<1x32xf32> to vector<8x32xf32>
    %222 = arith.addf %220, %221 : vector<8x32xf32>
    %cst_275 = arith.constant 0.000000e+00 : f32
    %223 = vector.broadcast %cst_275 : f32 to vector<8x32xf32>
    %224 = arith.maximumf %222, %223 : vector<8x32xf32>
    %225 = arith.truncf %224 : vector<8x32xf32> to vector<8x32xbf16>
    %c1_276 = arith.constant 1 : index
    %c3_277 = arith.constant 3 : index
    %c0_278 = arith.constant 0 : index
    %c0_279 = arith.constant 0 : index
    %226 = vector.load %arg4[%c1_276, %c3_277, %c0_278, %c0_279] : memref<2x8x8x32xbf16, #tpu.memory_space<vmem>>, vector<1x1x8x32xbf16>
    %227 = vector.shape_cast %226 : vector<1x1x8x32xbf16> to vector<8x32xbf16>
    %228 = vector.shape_cast %225 : vector<8x32xbf16> to vector<1x1x8x32xbf16>
    tpu.vector_store %arg4[%c1_276, %c3_277, %c0_278, %c0_279], %228 {strides = array<i32>} : memref<2x8x8x32xbf16, #tpu.memory_space<vmem>>, vector<1x1x8x32xbf16>,
    %c1_280 = arith.constant 1 : index
    %c4_281 = arith.constant 4 : index
    %c0_282 = arith.constant 0 : index
    %c0_283 = arith.constant 0 : index
    %229 = vector.load %arg1[%c1_280, %c4_281, %c0_282, %c0_283] : memref<2x9x9x64xbf16, #tpu.memory_space<vmem>>, vector<1x1x8x64xbf16>
    %230 = vector.shape_cast %229 : vector<1x1x8x64xbf16> to vector<8x64xbf16>
    %c1_284 = arith.constant 1 : index
    %c4_285 = arith.constant 4 : index
    %c1_286 = arith.constant 1 : index
    %c0_287 = arith.constant 0 : index
    %231 = vector.load %arg1[%c1_284, %c4_285, %c1_286, %c0_287] : memref<2x9x9x64xbf16, #tpu.memory_space<vmem>>, vector<1x1x8x64xbf16>
    %232 = vector.shape_cast %231 : vector<1x1x8x64xbf16> to vector<8x64xbf16>
    %c1_288 = arith.constant 1 : index
    %c5_289 = arith.constant 5 : index
    %c0_290 = arith.constant 0 : index
    %c0_291 = arith.constant 0 : index
    %233 = vector.load %arg1[%c1_288, %c5_289, %c0_290, %c0_291] : memref<2x9x9x64xbf16, #tpu.memory_space<vmem>>, vector<1x1x8x64xbf16>
    %234 = vector.shape_cast %233 : vector<1x1x8x64xbf16> to vector<8x64xbf16>
    %c1_292 = arith.constant 1 : index
    %c5_293 = arith.constant 5 : index
    %c1_294 = arith.constant 1 : index
    %c0_295 = arith.constant 0 : index
    %235 = vector.load %arg1[%c1_292, %c5_293, %c1_294, %c0_295] : memref<2x9x9x64xbf16, #tpu.memory_space<vmem>>, vector<1x1x8x64xbf16>
    %236 = vector.shape_cast %235 : vector<1x1x8x64xbf16> to vector<8x64xbf16>
    %237 = tpu.concatenate %230, %232, %234, %236 in 1 : vector<8x64xbf16>, vector<8x64xbf16>, vector<8x64xbf16>, vector<8x64xbf16> -> vector<8x256xbf16>
    %c0_296 = arith.constant 0 : index
    %c0_297 = arith.constant 0 : index
    %238 = vector.load %arg2[%c0_296, %c0_297] : memref<256x32xbf16, #tpu.memory_space<vmem>>, vector<256x32xbf16>
    %cst_298 = arith.constant dense<0.000000e+00> : vector<8x32xf32>
    %239 = tpu.matmul %237, %238, %cst_298 {dimension_numbers = #tpu.dot_dimension_numbers<[1], [0], [0], [1], [0, 0, 1, 1], [], []>} : vector<8x256xbf16>, vector<256x32xbf16>, vector<8x32xf32> -> vector<8x32xf32>
    %240 = vector.broadcast %0 : vector<1x32xf32> to vector<8x32xf32>
    %241 = arith.addf %239, %240 : vector<8x32xf32>
    %cst_299 = arith.constant 0.000000e+00 : f32
    %242 = vector.broadcast %cst_299 : f32 to vector<8x32xf32>
    %243 = arith.maximumf %241, %242 : vector<8x32xf32>
    %244 = arith.truncf %243 : vector<8x32xf32> to vector<8x32xbf16>
    %c1_300 = arith.constant 1 : index
    %c4_301 = arith.constant 4 : index
    %c0_302 = arith.constant 0 : index
    %c0_303 = arith.constant 0 : index
    %245 = vector.load %arg4[%c1_300, %c4_301, %c0_302, %c0_303] : memref<2x8x8x32xbf16, #tpu.memory_space<vmem>>, vector<1x1x8x32xbf16>
    %246 = vector.shape_cast %245 : vector<1x1x8x32xbf16> to vector<8x32xbf16>
    %247 = vector.shape_cast %244 : vector<8x32xbf16> to vector<1x1x8x32xbf16>
    tpu.vector_store %arg4[%c1_300, %c4_301, %c0_302, %c0_303], %247 {strides = array<i32>} : memref<2x8x8x32xbf16, #tpu.memory_space<vmem>>, vector<1x1x8x32xbf16>,
    %c1_304 = arith.constant 1 : index
    %c5_305 = arith.constant 5 : index
    %c0_306 = arith.constant 0 : index
    %c0_307 = arith.constant 0 : index
    %248 = vector.load %arg1[%c1_304, %c5_305, %c0_306, %c0_307] : memref<2x9x9x64xbf16, #tpu.memory_space<vmem>>, vector<1x1x8x64xbf16>
    %249 = vector.shape_cast %248 : vector<1x1x8x64xbf16> to vector<8x64xbf16>
    %c1_308 = arith.constant 1 : index
    %c5_309 = arith.constant 5 : index
    %c1_310 = arith.constant 1 : index
    %c0_311 = arith.constant 0 : index
    %250 = vector.load %arg1[%c1_308, %c5_309, %c1_310, %c0_311] : memref<2x9x9x64xbf16, #tpu.memory_space<vmem>>, vector<1x1x8x64xbf16>
    %251 = vector.shape_cast %250 : vector<1x1x8x64xbf16> to vector<8x64xbf16>
    %c1_312 = arith.constant 1 : index
    %c6_313 = arith.constant 6 : index
    %c0_314 = arith.constant 0 : index
    %c0_315 = arith.constant 0 : index
    %252 = vector.load %arg1[%c1_312, %c6_313, %c0_314, %c0_315] : memref<2x9x9x64xbf16, #tpu.memory_space<vmem>>, vector<1x1x8x64xbf16>
    %253 = vector.shape_cast %252 : vector<1x1x8x64xbf16> to vector<8x64xbf16>
    %c1_316 = arith.constant 1 : index
    %c6_317 = arith.constant 6 : index
    %c1_318 = arith.constant 1 : index
    %c0_319 = arith.constant 0 : index
    %254 = vector.load %arg1[%c1_316, %c6_317, %c1_318, %c0_319] : memref<2x9x9x64xbf16, #tpu.memory_space<vmem>>, vector<1x1x8x64xbf16>
    %255 = vector.shape_cast %254 : vector<1x1x8x64xbf16> to vector<8x64xbf16>
    %256 = tpu.concatenate %249, %251, %253, %255 in 1 : vector<8x64xbf16>, vector<8x64xbf16>, vector<8x64xbf16>, vector<8x64xbf16> -> vector<8x256xbf16>
    %c0_320 = arith.constant 0 : index
    %c0_321 = arith.constant 0 : index
    %257 = vector.load %arg2[%c0_320, %c0_321] : memref<256x32xbf16, #tpu.memory_space<vmem>>, vector<256x32xbf16>
    %cst_322 = arith.constant dense<0.000000e+00> : vector<8x32xf32>
    %258 = tpu.matmul %256, %257, %cst_322 {dimension_numbers = #tpu.dot_dimension_numbers<[1], [0], [0], [1], [0, 0, 1, 1], [], []>} : vector<8x256xbf16>, vector<256x32xbf16>, vector<8x32xf32> -> vector<8x32xf32>
    %259 = vector.broadcast %0 : vector<1x32xf32> to vector<8x32xf32>
    %260 = arith.addf %258, %259 : vector<8x32xf32>
    %cst_323 = arith.constant 0.000000e+00 : f32
    %261 = vector.broadcast %cst_323 : f32 to vector<8x32xf32>
    %262 = arith.maximumf %260, %261 : vector<8x32xf32>
    %263 = arith.truncf %262 : vector<8x32xf32> to vector<8x32xbf16>
    %c1_324 = arith.constant 1 : index
    %c5_325 = arith.constant 5 : index
    %c0_326 = arith.constant 0 : index
    %c0_327 = arith.constant 0 : index
    %264 = vector.load %arg4[%c1_324, %c5_325, %c0_326, %c0_327] : memref<2x8x8x32xbf16, #tpu.memory_space<vmem>>, vector<1x1x8x32xbf16>
    %265 = vector.shape_cast %264 : vector<1x1x8x32xbf16> to vector<8x32xbf16>
    %266 = vector.shape_cast %263 : vector<8x32xbf16> to vector<1x1x8x32xbf16>
    tpu.vector_store %arg4[%c1_324, %c5_325, %c0_326, %c0_327], %266 {strides = array<i32>} : memref<2x8x8x32xbf16, #tpu.memory_space<vmem>>, vector<1x1x8x32xbf16>,
    %c1_328 = arith.constant 1 : index
    %c6_329 = arith.constant 6 : index
    %c0_330 = arith.constant 0 : index
    %c0_331 = arith.constant 0 : index
    %267 = vector.load %arg1[%c1_328, %c6_329, %c0_330, %c0_331] : memref<2x9x9x64xbf16, #tpu.memory_space<vmem>>, vector<1x1x8x64xbf16>
    %268 = vector.shape_cast %267 : vector<1x1x8x64xbf16> to vector<8x64xbf16>
    %c1_332 = arith.constant 1 : index
    %c6_333 = arith.constant 6 : index
    %c1_334 = arith.constant 1 : index
    %c0_335 = arith.constant 0 : index
    %269 = vector.load %arg1[%c1_332, %c6_333, %c1_334, %c0_335] : memref<2x9x9x64xbf16, #tpu.memory_space<vmem>>, vector<1x1x8x64xbf16>
    %270 = vector.shape_cast %269 : vector<1x1x8x64xbf16> to vector<8x64xbf16>
    %c1_336 = arith.constant 1 : index
    %c7_337 = arith.constant 7 : index
    %c0_338 = arith.constant 0 : index
    %c0_339 = arith.constant 0 : index
    %271 = vector.load %arg1[%c1_336, %c7_337, %c0_338, %c0_339] : memref<2x9x9x64xbf16, #tpu.memory_space<vmem>>, vector<1x1x8x64xbf16>
    %272 = vector.shape_cast %271 : vector<1x1x8x64xbf16> to vector<8x64xbf16>
    %c1_340 = arith.constant 1 : index
    %c7_341 = arith.constant 7 : index
    %c1_342 = arith.constant 1 : index
    %c0_343 = arith.constant 0 : index
    %273 = vector.load %arg1[%c1_340, %c7_341, %c1_342, %c0_343] : memref<2x9x9x64xbf16, #tpu.memory_space<vmem>>, vector<1x1x8x64xbf16>
    %274 = vector.shape_cast %273 : vector<1x1x8x64xbf16> to vector<8x64xbf16>
    %275 = tpu.concatenate %268, %270, %272, %274 in 1 : vector<8x64xbf16>, vector<8x64xbf16>, vector<8x64xbf16>, vector<8x64xbf16> -> vector<8x256xbf16>
    %c0_344 = arith.constant 0 : index
    %c0_345 = arith.constant 0 : index
    %276 = vector.load %arg2[%c0_344, %c0_345] : memref<256x32xbf16, #tpu.memory_space<vmem>>, vector<256x32xbf16>
    %cst_346 = arith.constant dense<0.000000e+00> : vector<8x32xf32>
    %277 = tpu.matmul %275, %276, %cst_346 {dimension_numbers = #tpu.dot_dimension_numbers<[1], [0], [0], [1], [0, 0, 1, 1], [], []>} : vector<8x256xbf16>, vector<256x32xbf16>, vector<8x32xf32> -> vector<8x32xf32>
    %278 = vector.broadcast %0 : vector<1x32xf32> to vector<8x32xf32>
    %279 = arith.addf %277, %278 : vector<8x32xf32>
    %cst_347 = arith.constant 0.000000e+00 : f32
    %280 = vector.broadcast %cst_347 : f32 to vector<8x32xf32>
    %281 = arith.maximumf %279, %280 : vector<8x32xf32>
    %282 = arith.truncf %281 : vector<8x32xf32> to vector<8x32xbf16>
    %c1_348 = arith.constant 1 : index
    %c6_349 = arith.constant 6 : index
    %c0_350 = arith.constant 0 : index
    %c0_351 = arith.constant 0 : index
    %283 = vector.load %arg4[%c1_348, %c6_349, %c0_350, %c0_351] : memref<2x8x8x32xbf16, #tpu.memory_space<vmem>>, vector<1x1x8x32xbf16>
    %284 = vector.shape_cast %283 : vector<1x1x8x32xbf16> to vector<8x32xbf16>
    %285 = vector.shape_cast %282 : vector<8x32xbf16> to vector<1x1x8x32xbf16>
    tpu.vector_store %arg4[%c1_348, %c6_349, %c0_350, %c0_351], %285 {strides = array<i32>} : memref<2x8x8x32xbf16, #tpu.memory_space<vmem>>, vector<1x1x8x32xbf16>,
    %c1_352 = arith.constant 1 : index
    %c7_353 = arith.constant 7 : index
    %c0_354 = arith.constant 0 : index
    %c0_355 = arith.constant 0 : index
    %286 = vector.load %arg1[%c1_352, %c7_353, %c0_354, %c0_355] : memref<2x9x9x64xbf16, #tpu.memory_space<vmem>>, vector<1x1x8x64xbf16>
    %287 = vector.shape_cast %286 : vector<1x1x8x64xbf16> to vector<8x64xbf16>
    %c1_356 = arith.constant 1 : index
    %c7_357 = arith.constant 7 : index
    %c1_358 = arith.constant 1 : index
    %c0_359 = arith.constant 0 : index
    %288 = vector.load %arg1[%c1_356, %c7_357, %c1_358, %c0_359] : memref<2x9x9x64xbf16, #tpu.memory_space<vmem>>, vector<1x1x8x64xbf16>
    %289 = vector.shape_cast %288 : vector<1x1x8x64xbf16> to vector<8x64xbf16>
    %c1_360 = arith.constant 1 : index
    %c8_361 = arith.constant 8 : index
    %c0_362 = arith.constant 0 : index
    %c0_363 = arith.constant 0 : index
    %290 = vector.load %arg1[%c1_360, %c8_361, %c0_362, %c0_363] : memref<2x9x9x64xbf16, #tpu.memory_space<vmem>>, vector<1x1x8x64xbf16>
    %291 = vector.shape_cast %290 : vector<1x1x8x64xbf16> to vector<8x64xbf16>
    %c1_364 = arith.constant 1 : index
    %c8_365 = arith.constant 8 : index
    %c1_366 = arith.constant 1 : index
    %c0_367 = arith.constant 0 : index
    %292 = vector.load %arg1[%c1_364, %c8_365, %c1_366, %c0_367] : memref<2x9x9x64xbf16, #tpu.memory_space<vmem>>, vector<1x1x8x64xbf16>
    %293 = vector.shape_cast %292 : vector<1x1x8x64xbf16> to vector<8x64xbf16>
    %294 = tpu.concatenate %287, %289, %291, %293 in 1 : vector<8x64xbf16>, vector<8x64xbf16>, vector<8x64xbf16>, vector<8x64xbf16> -> vector<8x256xbf16>
    %c0_368 = arith.constant 0 : index
    %c0_369 = arith.constant 0 : index
    %295 = vector.load %arg2[%c0_368, %c0_369] : memref<256x32xbf16, #tpu.memory_space<vmem>>, vector<256x32xbf16>
    %cst_370 = arith.constant dense<0.000000e+00> : vector<8x32xf32>
    %296 = tpu.matmul %294, %295, %cst_370 {dimension_numbers = #tpu.dot_dimension_numbers<[1], [0], [0], [1], [0, 0, 1, 1], [], []>} : vector<8x256xbf16>, vector<256x32xbf16>, vector<8x32xf32> -> vector<8x32xf32>
    %297 = vector.broadcast %0 : vector<1x32xf32> to vector<8x32xf32>
    %298 = arith.addf %296, %297 : vector<8x32xf32>
    %cst_371 = arith.constant 0.000000e+00 : f32
    %299 = vector.broadcast %cst_371 : f32 to vector<8x32xf32>
    %300 = arith.maximumf %298, %299 : vector<8x32xf32>
    %301 = arith.truncf %300 : vector<8x32xf32> to vector<8x32xbf16>
    %c1_372 = arith.constant 1 : index
    %c7_373 = arith.constant 7 : index
    %c0_374 = arith.constant 0 : index
    %c0_375 = arith.constant 0 : index
    %302 = vector.load %arg4[%c1_372, %c7_373, %c0_374, %c0_375] : memref<2x8x8x32xbf16, #tpu.memory_space<vmem>>, vector<1x1x8x32xbf16>
    %303 = vector.shape_cast %302 : vector<1x1x8x32xbf16> to vector<8x32xbf16>
    %304 = vector.shape_cast %301 : vector<8x32xbf16> to vector<1x1x8x32xbf16>
    tpu.vector_store %arg4[%c1_372, %c7_373, %c0_374, %c0_375], %304 {strides = array<i32>} : memref<2x8x8x32xbf16, #tpu.memory_space<vmem>>, vector<1x1x8x32xbf16>,
    return
  }
  func.func @transform_0(%arg0: i32) -> (i32, i32, i32, i32) {
    %c0_i32 = arith.constant 0 : i32
    %c0_i32_0 = arith.constant 0 : i32
    %c0_i32_1 = arith.constant 0 : i32
    %c0_i32_2 = arith.constant 0 : i32
    return %arg0, %c0_i32, %c0_i32_0, %c0_i32_1 : i32, i32, i32, i32
  }
  func.func @transform_1(%arg0: i32) -> (i32, i32) {
    %c0_i32 = arith.constant 0 : i32
    %c0_i32_0 = arith.constant 0 : i32
    %c0_i32_1 = arith.constant 0 : i32
    return %c0_i32, %c0_i32_0 : i32, i32
  }
  func.func @transform_2(%arg0: i32) -> (i32, i32) {
    %c0_i32 = arith.constant 0 : i32
    %c0_i32_0 = arith.constant 0 : i32
    %c0_i32_1 = arith.constant 0 : i32
    return %c0_i32, %c0_i32_0 : i32, i32
  }
  func.func @transform_3(%arg0: i32) -> (i32, i32, i32, i32) {
    %c0_i32 = arith.constant 0 : i32
    %c0_i32_0 = arith.constant 0 : i32
    %c0_i32_1 = arith.constant 0 : i32
    %c0_i32_2 = arith.constant 0 : i32
    return %arg0, %c0_i32, %c0_i32_0, %c0_i32_1 : i32, i32, i32, i32
  }
}

module attributes {stable_mosaic.version = 11 : i64} {
  func.func @kernel(%arg0: i32, %arg1: memref<2x4x4x128xbf16, #tpu.memory_space<vmem>>, %arg2: memref<512x64xbf16, #tpu.memory_space<vmem>>, %arg3: memref<1x64xf32, #tpu.memory_space<vmem>>, %arg4: memref<2x3x3x64xbf16, #tpu.memory_space<vmem>>) attributes {dimension_semantics = [#tpu.dimension_semantics<parallel>], iteration_bounds = array<i64: 1>, scalar_prefetch = 0 : i64, scratch_operands = 0 : i64, tpu.core_type = #tpu.core_type<tc>, window_params = [{transform_indices = @transform_0, window_bounds = array<i64: 2, 4, 4, 128>}, {pipeline_mode = #tpu.pipeline_mode<synchronous>, transform_indices = @transform_1, window_bounds = array<i64: 512, 64>}, {pipeline_mode = #tpu.pipeline_mode<synchronous>, transform_indices = @transform_2, window_bounds = array<i64: 1, 64>}, {transform_indices = @transform_3, window_bounds = array<i64: 2, 3, 3, 64>}]} {
    %c0 = arith.constant 0 : index
    %c0_0 = arith.constant 0 : index
    %0 = vector.load %arg3[%c0, %c0_0] : memref<1x64xf32, #tpu.memory_space<vmem>>, vector<1x64xf32>
    %c0_1 = arith.constant 0 : index
    %c0_2 = arith.constant 0 : index
    %c0_3 = arith.constant 0 : index
    %c0_4 = arith.constant 0 : index
    %1 = vector.load %arg1[%c0_1, %c0_2, %c0_3, %c0_4] : memref<2x4x4x128xbf16, #tpu.memory_space<vmem>>, vector<1x1x3x128xbf16>
    %2 = vector.shape_cast %1 : vector<1x1x3x128xbf16> to vector<3x128xbf16>
    %c0_5 = arith.constant 0 : index
    %c0_6 = arith.constant 0 : index
    %c1 = arith.constant 1 : index
    %c0_7 = arith.constant 0 : index
    %3 = vector.load %arg1[%c0_5, %c0_6, %c1, %c0_7] : memref<2x4x4x128xbf16, #tpu.memory_space<vmem>>, vector<1x1x3x128xbf16>
    %4 = vector.shape_cast %3 : vector<1x1x3x128xbf16> to vector<3x128xbf16>
    %c0_8 = arith.constant 0 : index
    %c1_9 = arith.constant 1 : index
    %c0_10 = arith.constant 0 : index
    %c0_11 = arith.constant 0 : index
    %5 = vector.load %arg1[%c0_8, %c1_9, %c0_10, %c0_11] : memref<2x4x4x128xbf16, #tpu.memory_space<vmem>>, vector<1x1x3x128xbf16>
    %6 = vector.shape_cast %5 : vector<1x1x3x128xbf16> to vector<3x128xbf16>
    %c0_12 = arith.constant 0 : index
    %c1_13 = arith.constant 1 : index
    %c1_14 = arith.constant 1 : index
    %c0_15 = arith.constant 0 : index
    %7 = vector.load %arg1[%c0_12, %c1_13, %c1_14, %c0_15] : memref<2x4x4x128xbf16, #tpu.memory_space<vmem>>, vector<1x1x3x128xbf16>
    %8 = vector.shape_cast %7 : vector<1x1x3x128xbf16> to vector<3x128xbf16>
    %9 = tpu.concatenate %2, %4, %6, %8 in 1 : vector<3x128xbf16>, vector<3x128xbf16>, vector<3x128xbf16>, vector<3x128xbf16> -> vector<3x512xbf16>
    %c0_16 = arith.constant 0 : index
    %c0_17 = arith.constant 0 : index
    %10 = vector.load %arg2[%c0_16, %c0_17] : memref<512x64xbf16, #tpu.memory_space<vmem>>, vector<512x64xbf16>
    %cst = arith.constant dense<0.000000e+00> : vector<3x64xf32>
    %11 = tpu.matmul %9, %10, %cst {dimension_numbers = #tpu.dot_dimension_numbers<[1], [0], [0], [1], [0, 0, 1, 1], [], []>} : vector<3x512xbf16>, vector<512x64xbf16>, vector<3x64xf32> -> vector<3x64xf32>
    %12 = vector.broadcast %0 : vector<1x64xf32> to vector<3x64xf32>
    %13 = arith.addf %11, %12 : vector<3x64xf32>
    %cst_18 = arith.constant 0.000000e+00 : f32
    %14 = vector.broadcast %cst_18 : f32 to vector<3x64xf32>
    %15 = arith.maximumf %13, %14 : vector<3x64xf32>
    %16 = arith.truncf %15 : vector<3x64xf32> to vector<3x64xbf16>
    %c0_19 = arith.constant 0 : index
    %c0_20 = arith.constant 0 : index
    %c0_21 = arith.constant 0 : index
    %c0_22 = arith.constant 0 : index
    %17 = vector.load %arg4[%c0_19, %c0_20, %c0_21, %c0_22] : memref<2x3x3x64xbf16, #tpu.memory_space<vmem>>, vector<1x1x3x64xbf16>
    %18 = vector.shape_cast %17 : vector<1x1x3x64xbf16> to vector<3x64xbf16>
    %19 = vector.shape_cast %16 : vector<3x64xbf16> to vector<1x1x3x64xbf16>
    tpu.vector_store %arg4[%c0_19, %c0_20, %c0_21, %c0_22], %19 {strides = array<i32>} : memref<2x3x3x64xbf16, #tpu.memory_space<vmem>>, vector<1x1x3x64xbf16>,
    %c0_23 = arith.constant 0 : index
    %c1_24 = arith.constant 1 : index
    %c0_25 = arith.constant 0 : index
    %c0_26 = arith.constant 0 : index
    %20 = vector.load %arg1[%c0_23, %c1_24, %c0_25, %c0_26] : memref<2x4x4x128xbf16, #tpu.memory_space<vmem>>, vector<1x1x3x128xbf16>
    %21 = vector.shape_cast %20 : vector<1x1x3x128xbf16> to vector<3x128xbf16>
    %c0_27 = arith.constant 0 : index
    %c1_28 = arith.constant 1 : index
    %c1_29 = arith.constant 1 : index
    %c0_30 = arith.constant 0 : index
    %22 = vector.load %arg1[%c0_27, %c1_28, %c1_29, %c0_30] : memref<2x4x4x128xbf16, #tpu.memory_space<vmem>>, vector<1x1x3x128xbf16>
    %23 = vector.shape_cast %22 : vector<1x1x3x128xbf16> to vector<3x128xbf16>
    %c0_31 = arith.constant 0 : index
    %c2 = arith.constant 2 : index
    %c0_32 = arith.constant 0 : index
    %c0_33 = arith.constant 0 : index
    %24 = vector.load %arg1[%c0_31, %c2, %c0_32, %c0_33] : memref<2x4x4x128xbf16, #tpu.memory_space<vmem>>, vector<1x1x3x128xbf16>
    %25 = vector.shape_cast %24 : vector<1x1x3x128xbf16> to vector<3x128xbf16>
    %c0_34 = arith.constant 0 : index
    %c2_35 = arith.constant 2 : index
    %c1_36 = arith.constant 1 : index
    %c0_37 = arith.constant 0 : index
    %26 = vector.load %arg1[%c0_34, %c2_35, %c1_36, %c0_37] : memref<2x4x4x128xbf16, #tpu.memory_space<vmem>>, vector<1x1x3x128xbf16>
    %27 = vector.shape_cast %26 : vector<1x1x3x128xbf16> to vector<3x128xbf16>
    %28 = tpu.concatenate %21, %23, %25, %27 in 1 : vector<3x128xbf16>, vector<3x128xbf16>, vector<3x128xbf16>, vector<3x128xbf16> -> vector<3x512xbf16>
    %c0_38 = arith.constant 0 : index
    %c0_39 = arith.constant 0 : index
    %29 = vector.load %arg2[%c0_38, %c0_39] : memref<512x64xbf16, #tpu.memory_space<vmem>>, vector<512x64xbf16>
    %cst_40 = arith.constant dense<0.000000e+00> : vector<3x64xf32>
    %30 = tpu.matmul %28, %29, %cst_40 {dimension_numbers = #tpu.dot_dimension_numbers<[1], [0], [0], [1], [0, 0, 1, 1], [], []>} : vector<3x512xbf16>, vector<512x64xbf16>, vector<3x64xf32> -> vector<3x64xf32>
    %31 = vector.broadcast %0 : vector<1x64xf32> to vector<3x64xf32>
    %32 = arith.addf %30, %31 : vector<3x64xf32>
    %cst_41 = arith.constant 0.000000e+00 : f32
    %33 = vector.broadcast %cst_41 : f32 to vector<3x64xf32>
    %34 = arith.maximumf %32, %33 : vector<3x64xf32>
    %35 = arith.truncf %34 : vector<3x64xf32> to vector<3x64xbf16>
    %c0_42 = arith.constant 0 : index
    %c1_43 = arith.constant 1 : index
    %c0_44 = arith.constant 0 : index
    %c0_45 = arith.constant 0 : index
    %36 = vector.load %arg4[%c0_42, %c1_43, %c0_44, %c0_45] : memref<2x3x3x64xbf16, #tpu.memory_space<vmem>>, vector<1x1x3x64xbf16>
    %37 = vector.shape_cast %36 : vector<1x1x3x64xbf16> to vector<3x64xbf16>
    %38 = vector.shape_cast %35 : vector<3x64xbf16> to vector<1x1x3x64xbf16>
    tpu.vector_store %arg4[%c0_42, %c1_43, %c0_44, %c0_45], %38 {strides = array<i32>} : memref<2x3x3x64xbf16, #tpu.memory_space<vmem>>, vector<1x1x3x64xbf16>,
    %c0_46 = arith.constant 0 : index
    %c2_47 = arith.constant 2 : index
    %c0_48 = arith.constant 0 : index
    %c0_49 = arith.constant 0 : index
    %39 = vector.load %arg1[%c0_46, %c2_47, %c0_48, %c0_49] : memref<2x4x4x128xbf16, #tpu.memory_space<vmem>>, vector<1x1x3x128xbf16>
    %40 = vector.shape_cast %39 : vector<1x1x3x128xbf16> to vector<3x128xbf16>
    %c0_50 = arith.constant 0 : index
    %c2_51 = arith.constant 2 : index
    %c1_52 = arith.constant 1 : index
    %c0_53 = arith.constant 0 : index
    %41 = vector.load %arg1[%c0_50, %c2_51, %c1_52, %c0_53] : memref<2x4x4x128xbf16, #tpu.memory_space<vmem>>, vector<1x1x3x128xbf16>
    %42 = vector.shape_cast %41 : vector<1x1x3x128xbf16> to vector<3x128xbf16>
    %c0_54 = arith.constant 0 : index
    %c3 = arith.constant 3 : index
    %c0_55 = arith.constant 0 : index
    %c0_56 = arith.constant 0 : index
    %43 = vector.load %arg1[%c0_54, %c3, %c0_55, %c0_56] : memref<2x4x4x128xbf16, #tpu.memory_space<vmem>>, vector<1x1x3x128xbf16>
    %44 = vector.shape_cast %43 : vector<1x1x3x128xbf16> to vector<3x128xbf16>
    %c0_57 = arith.constant 0 : index
    %c3_58 = arith.constant 3 : index
    %c1_59 = arith.constant 1 : index
    %c0_60 = arith.constant 0 : index
    %45 = vector.load %arg1[%c0_57, %c3_58, %c1_59, %c0_60] : memref<2x4x4x128xbf16, #tpu.memory_space<vmem>>, vector<1x1x3x128xbf16>
    %46 = vector.shape_cast %45 : vector<1x1x3x128xbf16> to vector<3x128xbf16>
    %47 = tpu.concatenate %40, %42, %44, %46 in 1 : vector<3x128xbf16>, vector<3x128xbf16>, vector<3x128xbf16>, vector<3x128xbf16> -> vector<3x512xbf16>
    %c0_61 = arith.constant 0 : index
    %c0_62 = arith.constant 0 : index
    %48 = vector.load %arg2[%c0_61, %c0_62] : memref<512x64xbf16, #tpu.memory_space<vmem>>, vector<512x64xbf16>
    %cst_63 = arith.constant dense<0.000000e+00> : vector<3x64xf32>
    %49 = tpu.matmul %47, %48, %cst_63 {dimension_numbers = #tpu.dot_dimension_numbers<[1], [0], [0], [1], [0, 0, 1, 1], [], []>} : vector<3x512xbf16>, vector<512x64xbf16>, vector<3x64xf32> -> vector<3x64xf32>
    %50 = vector.broadcast %0 : vector<1x64xf32> to vector<3x64xf32>
    %51 = arith.addf %49, %50 : vector<3x64xf32>
    %cst_64 = arith.constant 0.000000e+00 : f32
    %52 = vector.broadcast %cst_64 : f32 to vector<3x64xf32>
    %53 = arith.maximumf %51, %52 : vector<3x64xf32>
    %54 = arith.truncf %53 : vector<3x64xf32> to vector<3x64xbf16>
    %c0_65 = arith.constant 0 : index
    %c2_66 = arith.constant 2 : index
    %c0_67 = arith.constant 0 : index
    %c0_68 = arith.constant 0 : index
    %55 = vector.load %arg4[%c0_65, %c2_66, %c0_67, %c0_68] : memref<2x3x3x64xbf16, #tpu.memory_space<vmem>>, vector<1x1x3x64xbf16>
    %56 = vector.shape_cast %55 : vector<1x1x3x64xbf16> to vector<3x64xbf16>
    %57 = vector.shape_cast %54 : vector<3x64xbf16> to vector<1x1x3x64xbf16>
    tpu.vector_store %arg4[%c0_65, %c2_66, %c0_67, %c0_68], %57 {strides = array<i32>} : memref<2x3x3x64xbf16, #tpu.memory_space<vmem>>, vector<1x1x3x64xbf16>,
    %c1_69 = arith.constant 1 : index
    %c0_70 = arith.constant 0 : index
    %c0_71 = arith.constant 0 : index
    %c0_72 = arith.constant 0 : index
    %58 = vector.load %arg1[%c1_69, %c0_70, %c0_71, %c0_72] : memref<2x4x4x128xbf16, #tpu.memory_space<vmem>>, vector<1x1x3x128xbf16>
    %59 = vector.shape_cast %58 : vector<1x1x3x128xbf16> to vector<3x128xbf16>
    %c1_73 = arith.constant 1 : index
    %c0_74 = arith.constant 0 : index
    %c1_75 = arith.constant 1 : index
    %c0_76 = arith.constant 0 : index
    %60 = vector.load %arg1[%c1_73, %c0_74, %c1_75, %c0_76] : memref<2x4x4x128xbf16, #tpu.memory_space<vmem>>, vector<1x1x3x128xbf16>
    %61 = vector.shape_cast %60 : vector<1x1x3x128xbf16> to vector<3x128xbf16>
    %c1_77 = arith.constant 1 : index
    %c1_78 = arith.constant 1 : index
    %c0_79 = arith.constant 0 : index
    %c0_80 = arith.constant 0 : index
    %62 = vector.load %arg1[%c1_77, %c1_78, %c0_79, %c0_80] : memref<2x4x4x128xbf16, #tpu.memory_space<vmem>>, vector<1x1x3x128xbf16>
    %63 = vector.shape_cast %62 : vector<1x1x3x128xbf16> to vector<3x128xbf16>
    %c1_81 = arith.constant 1 : index
    %c1_82 = arith.constant 1 : index
    %c1_83 = arith.constant 1 : index
    %c0_84 = arith.constant 0 : index
    %64 = vector.load %arg1[%c1_81, %c1_82, %c1_83, %c0_84] : memref<2x4x4x128xbf16, #tpu.memory_space<vmem>>, vector<1x1x3x128xbf16>
    %65 = vector.shape_cast %64 : vector<1x1x3x128xbf16> to vector<3x128xbf16>
    %66 = tpu.concatenate %59, %61, %63, %65 in 1 : vector<3x128xbf16>, vector<3x128xbf16>, vector<3x128xbf16>, vector<3x128xbf16> -> vector<3x512xbf16>
    %c0_85 = arith.constant 0 : index
    %c0_86 = arith.constant 0 : index
    %67 = vector.load %arg2[%c0_85, %c0_86] : memref<512x64xbf16, #tpu.memory_space<vmem>>, vector<512x64xbf16>
    %cst_87 = arith.constant dense<0.000000e+00> : vector<3x64xf32>
    %68 = tpu.matmul %66, %67, %cst_87 {dimension_numbers = #tpu.dot_dimension_numbers<[1], [0], [0], [1], [0, 0, 1, 1], [], []>} : vector<3x512xbf16>, vector<512x64xbf16>, vector<3x64xf32> -> vector<3x64xf32>
    %69 = vector.broadcast %0 : vector<1x64xf32> to vector<3x64xf32>
    %70 = arith.addf %68, %69 : vector<3x64xf32>
    %cst_88 = arith.constant 0.000000e+00 : f32
    %71 = vector.broadcast %cst_88 : f32 to vector<3x64xf32>
    %72 = arith.maximumf %70, %71 : vector<3x64xf32>
    %73 = arith.truncf %72 : vector<3x64xf32> to vector<3x64xbf16>
    %c1_89 = arith.constant 1 : index
    %c0_90 = arith.constant 0 : index
    %c0_91 = arith.constant 0 : index
    %c0_92 = arith.constant 0 : index
    %74 = vector.load %arg4[%c1_89, %c0_90, %c0_91, %c0_92] : memref<2x3x3x64xbf16, #tpu.memory_space<vmem>>, vector<1x1x3x64xbf16>
    %75 = vector.shape_cast %74 : vector<1x1x3x64xbf16> to vector<3x64xbf16>
    %76 = vector.shape_cast %73 : vector<3x64xbf16> to vector<1x1x3x64xbf16>
    tpu.vector_store %arg4[%c1_89, %c0_90, %c0_91, %c0_92], %76 {strides = array<i32>} : memref<2x3x3x64xbf16, #tpu.memory_space<vmem>>, vector<1x1x3x64xbf16>,
    %c1_93 = arith.constant 1 : index
    %c1_94 = arith.constant 1 : index
    %c0_95 = arith.constant 0 : index
    %c0_96 = arith.constant 0 : index
    %77 = vector.load %arg1[%c1_93, %c1_94, %c0_95, %c0_96] : memref<2x4x4x128xbf16, #tpu.memory_space<vmem>>, vector<1x1x3x128xbf16>
    %78 = vector.shape_cast %77 : vector<1x1x3x128xbf16> to vector<3x128xbf16>
    %c1_97 = arith.constant 1 : index
    %c1_98 = arith.constant 1 : index
    %c1_99 = arith.constant 1 : index
    %c0_100 = arith.constant 0 : index
    %79 = vector.load %arg1[%c1_97, %c1_98, %c1_99, %c0_100] : memref<2x4x4x128xbf16, #tpu.memory_space<vmem>>, vector<1x1x3x128xbf16>
    %80 = vector.shape_cast %79 : vector<1x1x3x128xbf16> to vector<3x128xbf16>
    %c1_101 = arith.constant 1 : index
    %c2_102 = arith.constant 2 : index
    %c0_103 = arith.constant 0 : index
    %c0_104 = arith.constant 0 : index
    %81 = vector.load %arg1[%c1_101, %c2_102, %c0_103, %c0_104] : memref<2x4x4x128xbf16, #tpu.memory_space<vmem>>, vector<1x1x3x128xbf16>
    %82 = vector.shape_cast %81 : vector<1x1x3x128xbf16> to vector<3x128xbf16>
    %c1_105 = arith.constant 1 : index
    %c2_106 = arith.constant 2 : index
    %c1_107 = arith.constant 1 : index
    %c0_108 = arith.constant 0 : index
    %83 = vector.load %arg1[%c1_105, %c2_106, %c1_107, %c0_108] : memref<2x4x4x128xbf16, #tpu.memory_space<vmem>>, vector<1x1x3x128xbf16>
    %84 = vector.shape_cast %83 : vector<1x1x3x128xbf16> to vector<3x128xbf16>
    %85 = tpu.concatenate %78, %80, %82, %84 in 1 : vector<3x128xbf16>, vector<3x128xbf16>, vector<3x128xbf16>, vector<3x128xbf16> -> vector<3x512xbf16>
    %c0_109 = arith.constant 0 : index
    %c0_110 = arith.constant 0 : index
    %86 = vector.load %arg2[%c0_109, %c0_110] : memref<512x64xbf16, #tpu.memory_space<vmem>>, vector<512x64xbf16>
    %cst_111 = arith.constant dense<0.000000e+00> : vector<3x64xf32>
    %87 = tpu.matmul %85, %86, %cst_111 {dimension_numbers = #tpu.dot_dimension_numbers<[1], [0], [0], [1], [0, 0, 1, 1], [], []>} : vector<3x512xbf16>, vector<512x64xbf16>, vector<3x64xf32> -> vector<3x64xf32>
    %88 = vector.broadcast %0 : vector<1x64xf32> to vector<3x64xf32>
    %89 = arith.addf %87, %88 : vector<3x64xf32>
    %cst_112 = arith.constant 0.000000e+00 : f32
    %90 = vector.broadcast %cst_112 : f32 to vector<3x64xf32>
    %91 = arith.maximumf %89, %90 : vector<3x64xf32>
    %92 = arith.truncf %91 : vector<3x64xf32> to vector<3x64xbf16>
    %c1_113 = arith.constant 1 : index
    %c1_114 = arith.constant 1 : index
    %c0_115 = arith.constant 0 : index
    %c0_116 = arith.constant 0 : index
    %93 = vector.load %arg4[%c1_113, %c1_114, %c0_115, %c0_116] : memref<2x3x3x64xbf16, #tpu.memory_space<vmem>>, vector<1x1x3x64xbf16>
    %94 = vector.shape_cast %93 : vector<1x1x3x64xbf16> to vector<3x64xbf16>
    %95 = vector.shape_cast %92 : vector<3x64xbf16> to vector<1x1x3x64xbf16>
    tpu.vector_store %arg4[%c1_113, %c1_114, %c0_115, %c0_116], %95 {strides = array<i32>} : memref<2x3x3x64xbf16, #tpu.memory_space<vmem>>, vector<1x1x3x64xbf16>,
    %c1_117 = arith.constant 1 : index
    %c2_118 = arith.constant 2 : index
    %c0_119 = arith.constant 0 : index
    %c0_120 = arith.constant 0 : index
    %96 = vector.load %arg1[%c1_117, %c2_118, %c0_119, %c0_120] : memref<2x4x4x128xbf16, #tpu.memory_space<vmem>>, vector<1x1x3x128xbf16>
    %97 = vector.shape_cast %96 : vector<1x1x3x128xbf16> to vector<3x128xbf16>
    %c1_121 = arith.constant 1 : index
    %c2_122 = arith.constant 2 : index
    %c1_123 = arith.constant 1 : index
    %c0_124 = arith.constant 0 : index
    %98 = vector.load %arg1[%c1_121, %c2_122, %c1_123, %c0_124] : memref<2x4x4x128xbf16, #tpu.memory_space<vmem>>, vector<1x1x3x128xbf16>
    %99 = vector.shape_cast %98 : vector<1x1x3x128xbf16> to vector<3x128xbf16>
    %c1_125 = arith.constant 1 : index
    %c3_126 = arith.constant 3 : index
    %c0_127 = arith.constant 0 : index
    %c0_128 = arith.constant 0 : index
    %100 = vector.load %arg1[%c1_125, %c3_126, %c0_127, %c0_128] : memref<2x4x4x128xbf16, #tpu.memory_space<vmem>>, vector<1x1x3x128xbf16>
    %101 = vector.shape_cast %100 : vector<1x1x3x128xbf16> to vector<3x128xbf16>
    %c1_129 = arith.constant 1 : index
    %c3_130 = arith.constant 3 : index
    %c1_131 = arith.constant 1 : index
    %c0_132 = arith.constant 0 : index
    %102 = vector.load %arg1[%c1_129, %c3_130, %c1_131, %c0_132] : memref<2x4x4x128xbf16, #tpu.memory_space<vmem>>, vector<1x1x3x128xbf16>
    %103 = vector.shape_cast %102 : vector<1x1x3x128xbf16> to vector<3x128xbf16>
    %104 = tpu.concatenate %97, %99, %101, %103 in 1 : vector<3x128xbf16>, vector<3x128xbf16>, vector<3x128xbf16>, vector<3x128xbf16> -> vector<3x512xbf16>
    %c0_133 = arith.constant 0 : index
    %c0_134 = arith.constant 0 : index
    %105 = vector.load %arg2[%c0_133, %c0_134] : memref<512x64xbf16, #tpu.memory_space<vmem>>, vector<512x64xbf16>
    %cst_135 = arith.constant dense<0.000000e+00> : vector<3x64xf32>
    %106 = tpu.matmul %104, %105, %cst_135 {dimension_numbers = #tpu.dot_dimension_numbers<[1], [0], [0], [1], [0, 0, 1, 1], [], []>} : vector<3x512xbf16>, vector<512x64xbf16>, vector<3x64xf32> -> vector<3x64xf32>
    %107 = vector.broadcast %0 : vector<1x64xf32> to vector<3x64xf32>
    %108 = arith.addf %106, %107 : vector<3x64xf32>
    %cst_136 = arith.constant 0.000000e+00 : f32
    %109 = vector.broadcast %cst_136 : f32 to vector<3x64xf32>
    %110 = arith.maximumf %108, %109 : vector<3x64xf32>
    %111 = arith.truncf %110 : vector<3x64xf32> to vector<3x64xbf16>
    %c1_137 = arith.constant 1 : index
    %c2_138 = arith.constant 2 : index
    %c0_139 = arith.constant 0 : index
    %c0_140 = arith.constant 0 : index
    %112 = vector.load %arg4[%c1_137, %c2_138, %c0_139, %c0_140] : memref<2x3x3x64xbf16, #tpu.memory_space<vmem>>, vector<1x1x3x64xbf16>
    %113 = vector.shape_cast %112 : vector<1x1x3x64xbf16> to vector<3x64xbf16>
    %114 = vector.shape_cast %111 : vector<3x64xbf16> to vector<1x1x3x64xbf16>
    tpu.vector_store %arg4[%c1_137, %c2_138, %c0_139, %c0_140], %114 {strides = array<i32>} : memref<2x3x3x64xbf16, #tpu.memory_space<vmem>>, vector<1x1x3x64xbf16>,
    return
  }
  func.func @transform_0(%arg0: i32) -> (i32, i32, i32, i32) {
    %c0_i32 = arith.constant 0 : i32
    %c0_i32_0 = arith.constant 0 : i32
    %c0_i32_1 = arith.constant 0 : i32
    %c0_i32_2 = arith.constant 0 : i32
    return %arg0, %c0_i32, %c0_i32_0, %c0_i32_1 : i32, i32, i32, i32
  }
  func.func @transform_1(%arg0: i32) -> (i32, i32) {
    %c0_i32 = arith.constant 0 : i32
    %c0_i32_0 = arith.constant 0 : i32
    %c0_i32_1 = arith.constant 0 : i32
    return %c0_i32, %c0_i32_0 : i32, i32
  }
  func.func @transform_2(%arg0: i32) -> (i32, i32) {
    %c0_i32 = arith.constant 0 : i32
    %c0_i32_0 = arith.constant 0 : i32
    %c0_i32_1 = arith.constant 0 : i32
    return %c0_i32, %c0_i32_0 : i32, i32
  }
  func.func @transform_3(%arg0: i32) -> (i32, i32, i32, i32) {
    %c0_i32 = arith.constant 0 : i32
    %c0_i32_0 = arith.constant 0 : i32
    %c0_i32_1 = arith.constant 0 : i32
    %c0_i32_2 = arith.constant 0 : i32
    return %arg0, %c0_i32, %c0_i32_0, %c0_i32_1 : i32, i32, i32, i32
  }
}

module attributes {stable_mosaic.version = 11 : i64} {
  func.func @kernel(%arg0: i32, %arg1: memref<2x3x3x64xbf16, #tpu.memory_space<vmem>>, %arg2: memref<576x64xbf16, #tpu.memory_space<vmem>>, %arg3: memref<1x64xf32, #tpu.memory_space<vmem>>, %arg4: memref<2x1x1x64xbf16, #tpu.memory_space<vmem>>) attributes {dimension_semantics = [#tpu.dimension_semantics<parallel>], iteration_bounds = array<i64: 1>, scalar_prefetch = 0 : i64, scratch_operands = 0 : i64, tpu.core_type = #tpu.core_type<tc>, window_params = [{transform_indices = @transform_0, window_bounds = array<i64: 2, 3, 3, 64>}, {pipeline_mode = #tpu.pipeline_mode<synchronous>, transform_indices = @transform_1, window_bounds = array<i64: 576, 64>}, {pipeline_mode = #tpu.pipeline_mode<synchronous>, transform_indices = @transform_2, window_bounds = array<i64: 1, 64>}, {transform_indices = @transform_3, window_bounds = array<i64: 2, 1, 1, 64>}]} {
    %c0 = arith.constant 0 : index
    %c0_0 = arith.constant 0 : index
    %0 = vector.load %arg3[%c0, %c0_0] : memref<1x64xf32, #tpu.memory_space<vmem>>, vector<1x64xf32>
    %c0_1 = arith.constant 0 : index
    %c0_2 = arith.constant 0 : index
    %c0_3 = arith.constant 0 : index
    %c0_4 = arith.constant 0 : index
    %1 = vector.load %arg1[%c0_1, %c0_2, %c0_3, %c0_4] : memref<2x3x3x64xbf16, #tpu.memory_space<vmem>>, vector<1x1x1x64xbf16>
    %2 = vector.shape_cast %1 : vector<1x1x1x64xbf16> to vector<1x64xbf16>
    %c0_5 = arith.constant 0 : index
    %c0_6 = arith.constant 0 : index
    %c1 = arith.constant 1 : index
    %c0_7 = arith.constant 0 : index
    %3 = vector.load %arg1[%c0_5, %c0_6, %c1, %c0_7] : memref<2x3x3x64xbf16, #tpu.memory_space<vmem>>, vector<1x1x1x64xbf16>
    %4 = vector.shape_cast %3 : vector<1x1x1x64xbf16> to vector<1x64xbf16>
    %c0_8 = arith.constant 0 : index
    %c0_9 = arith.constant 0 : index
    %c2 = arith.constant 2 : index
    %c0_10 = arith.constant 0 : index
    %5 = vector.load %arg1[%c0_8, %c0_9, %c2, %c0_10] : memref<2x3x3x64xbf16, #tpu.memory_space<vmem>>, vector<1x1x1x64xbf16>
    %6 = vector.shape_cast %5 : vector<1x1x1x64xbf16> to vector<1x64xbf16>
    %c0_11 = arith.constant 0 : index
    %c1_12 = arith.constant 1 : index
    %c0_13 = arith.constant 0 : index
    %c0_14 = arith.constant 0 : index
    %7 = vector.load %arg1[%c0_11, %c1_12, %c0_13, %c0_14] : memref<2x3x3x64xbf16, #tpu.memory_space<vmem>>, vector<1x1x1x64xbf16>
    %8 = vector.shape_cast %7 : vector<1x1x1x64xbf16> to vector<1x64xbf16>
    %c0_15 = arith.constant 0 : index
    %c1_16 = arith.constant 1 : index
    %c1_17 = arith.constant 1 : index
    %c0_18 = arith.constant 0 : index
    %9 = vector.load %arg1[%c0_15, %c1_16, %c1_17, %c0_18] : memref<2x3x3x64xbf16, #tpu.memory_space<vmem>>, vector<1x1x1x64xbf16>
    %10 = vector.shape_cast %9 : vector<1x1x1x64xbf16> to vector<1x64xbf16>
    %c0_19 = arith.constant 0 : index
    %c1_20 = arith.constant 1 : index
    %c2_21 = arith.constant 2 : index
    %c0_22 = arith.constant 0 : index
    %11 = vector.load %arg1[%c0_19, %c1_20, %c2_21, %c0_22] : memref<2x3x3x64xbf16, #tpu.memory_space<vmem>>, vector<1x1x1x64xbf16>
    %12 = vector.shape_cast %11 : vector<1x1x1x64xbf16> to vector<1x64xbf16>
    %c0_23 = arith.constant 0 : index
    %c2_24 = arith.constant 2 : index
    %c0_25 = arith.constant 0 : index
    %c0_26 = arith.constant 0 : index
    %13 = vector.load %arg1[%c0_23, %c2_24, %c0_25, %c0_26] : memref<2x3x3x64xbf16, #tpu.memory_space<vmem>>, vector<1x1x1x64xbf16>
    %14 = vector.shape_cast %13 : vector<1x1x1x64xbf16> to vector<1x64xbf16>
    %c0_27 = arith.constant 0 : index
    %c2_28 = arith.constant 2 : index
    %c1_29 = arith.constant 1 : index
    %c0_30 = arith.constant 0 : index
    %15 = vector.load %arg1[%c0_27, %c2_28, %c1_29, %c0_30] : memref<2x3x3x64xbf16, #tpu.memory_space<vmem>>, vector<1x1x1x64xbf16>
    %16 = vector.shape_cast %15 : vector<1x1x1x64xbf16> to vector<1x64xbf16>
    %c0_31 = arith.constant 0 : index
    %c2_32 = arith.constant 2 : index
    %c2_33 = arith.constant 2 : index
    %c0_34 = arith.constant 0 : index
    %17 = vector.load %arg1[%c0_31, %c2_32, %c2_33, %c0_34] : memref<2x3x3x64xbf16, #tpu.memory_space<vmem>>, vector<1x1x1x64xbf16>
    %18 = vector.shape_cast %17 : vector<1x1x1x64xbf16> to vector<1x64xbf16>
    %19 = tpu.concatenate %2, %4, %6, %8, %10, %12, %14, %16, %18 in 1 : vector<1x64xbf16>, vector<1x64xbf16>, vector<1x64xbf16>, vector<1x64xbf16>, vector<1x64xbf16>, vector<1x64xbf16>, vector<1x64xbf16>, vector<1x64xbf16>, vector<1x64xbf16> -> vector<1x576xbf16>
    %c0_35 = arith.constant 0 : index
    %c0_36 = arith.constant 0 : index
    %20 = vector.load %arg2[%c0_35, %c0_36] : memref<576x64xbf16, #tpu.memory_space<vmem>>, vector<576x64xbf16>
    %cst = arith.constant dense<0.000000e+00> : vector<1x64xf32>
    %21 = tpu.matmul %19, %20, %cst {dimension_numbers = #tpu.dot_dimension_numbers<[1], [0], [0], [1], [0, 0, 1, 1], [], []>} : vector<1x576xbf16>, vector<576x64xbf16>, vector<1x64xf32> -> vector<1x64xf32>
    %22 = arith.addf %21, %0 : vector<1x64xf32>
    %cst_37 = arith.constant 0.000000e+00 : f32
    %23 = vector.broadcast %cst_37 : f32 to vector<1x64xf32>
    %24 = arith.maximumf %22, %23 : vector<1x64xf32>
    %25 = arith.truncf %24 : vector<1x64xf32> to vector<1x64xbf16>
    %c0_38 = arith.constant 0 : index
    %c0_39 = arith.constant 0 : index
    %c0_40 = arith.constant 0 : index
    %c0_41 = arith.constant 0 : index
    %26 = vector.load %arg4[%c0_38, %c0_39, %c0_40, %c0_41] : memref<2x1x1x64xbf16, #tpu.memory_space<vmem>>, vector<1x1x1x64xbf16>
    %27 = vector.shape_cast %26 : vector<1x1x1x64xbf16> to vector<1x64xbf16>
    %28 = vector.shape_cast %25 : vector<1x64xbf16> to vector<1x1x1x64xbf16>
    tpu.vector_store %arg4[%c0_38, %c0_39, %c0_40, %c0_41], %28 {strides = array<i32>} : memref<2x1x1x64xbf16, #tpu.memory_space<vmem>>, vector<1x1x1x64xbf16>,
    %c1_42 = arith.constant 1 : index
    %c0_43 = arith.constant 0 : index
    %c0_44 = arith.constant 0 : index
    %c0_45 = arith.constant 0 : index
    %29 = vector.load %arg1[%c1_42, %c0_43, %c0_44, %c0_45] : memref<2x3x3x64xbf16, #tpu.memory_space<vmem>>, vector<1x1x1x64xbf16>
    %30 = vector.shape_cast %29 : vector<1x1x1x64xbf16> to vector<1x64xbf16>
    %c1_46 = arith.constant 1 : index
    %c0_47 = arith.constant 0 : index
    %c1_48 = arith.constant 1 : index
    %c0_49 = arith.constant 0 : index
    %31 = vector.load %arg1[%c1_46, %c0_47, %c1_48, %c0_49] : memref<2x3x3x64xbf16, #tpu.memory_space<vmem>>, vector<1x1x1x64xbf16>
    %32 = vector.shape_cast %31 : vector<1x1x1x64xbf16> to vector<1x64xbf16>
    %c1_50 = arith.constant 1 : index
    %c0_51 = arith.constant 0 : index
    %c2_52 = arith.constant 2 : index
    %c0_53 = arith.constant 0 : index
    %33 = vector.load %arg1[%c1_50, %c0_51, %c2_52, %c0_53] : memref<2x3x3x64xbf16, #tpu.memory_space<vmem>>, vector<1x1x1x64xbf16>
    %34 = vector.shape_cast %33 : vector<1x1x1x64xbf16> to vector<1x64xbf16>
    %c1_54 = arith.constant 1 : index
    %c1_55 = arith.constant 1 : index
    %c0_56 = arith.constant 0 : index
    %c0_57 = arith.constant 0 : index
    %35 = vector.load %arg1[%c1_54, %c1_55, %c0_56, %c0_57] : memref<2x3x3x64xbf16, #tpu.memory_space<vmem>>, vector<1x1x1x64xbf16>
    %36 = vector.shape_cast %35 : vector<1x1x1x64xbf16> to vector<1x64xbf16>
    %c1_58 = arith.constant 1 : index
    %c1_59 = arith.constant 1 : index
    %c1_60 = arith.constant 1 : index
    %c0_61 = arith.constant 0 : index
    %37 = vector.load %arg1[%c1_58, %c1_59, %c1_60, %c0_61] : memref<2x3x3x64xbf16, #tpu.memory_space<vmem>>, vector<1x1x1x64xbf16>
    %38 = vector.shape_cast %37 : vector<1x1x1x64xbf16> to vector<1x64xbf16>
    %c1_62 = arith.constant 1 : index
    %c1_63 = arith.constant 1 : index
    %c2_64 = arith.constant 2 : index
    %c0_65 = arith.constant 0 : index
    %39 = vector.load %arg1[%c1_62, %c1_63, %c2_64, %c0_65] : memref<2x3x3x64xbf16, #tpu.memory_space<vmem>>, vector<1x1x1x64xbf16>
    %40 = vector.shape_cast %39 : vector<1x1x1x64xbf16> to vector<1x64xbf16>
    %c1_66 = arith.constant 1 : index
    %c2_67 = arith.constant 2 : index
    %c0_68 = arith.constant 0 : index
    %c0_69 = arith.constant 0 : index
    %41 = vector.load %arg1[%c1_66, %c2_67, %c0_68, %c0_69] : memref<2x3x3x64xbf16, #tpu.memory_space<vmem>>, vector<1x1x1x64xbf16>
    %42 = vector.shape_cast %41 : vector<1x1x1x64xbf16> to vector<1x64xbf16>
    %c1_70 = arith.constant 1 : index
    %c2_71 = arith.constant 2 : index
    %c1_72 = arith.constant 1 : index
    %c0_73 = arith.constant 0 : index
    %43 = vector.load %arg1[%c1_70, %c2_71, %c1_72, %c0_73] : memref<2x3x3x64xbf16, #tpu.memory_space<vmem>>, vector<1x1x1x64xbf16>
    %44 = vector.shape_cast %43 : vector<1x1x1x64xbf16> to vector<1x64xbf16>
    %c1_74 = arith.constant 1 : index
    %c2_75 = arith.constant 2 : index
    %c2_76 = arith.constant 2 : index
    %c0_77 = arith.constant 0 : index
    %45 = vector.load %arg1[%c1_74, %c2_75, %c2_76, %c0_77] : memref<2x3x3x64xbf16, #tpu.memory_space<vmem>>, vector<1x1x1x64xbf16>
    %46 = vector.shape_cast %45 : vector<1x1x1x64xbf16> to vector<1x64xbf16>
    %47 = tpu.concatenate %30, %32, %34, %36, %38, %40, %42, %44, %46 in 1 : vector<1x64xbf16>, vector<1x64xbf16>, vector<1x64xbf16>, vector<1x64xbf16>, vector<1x64xbf16>, vector<1x64xbf16>, vector<1x64xbf16>, vector<1x64xbf16>, vector<1x64xbf16> -> vector<1x576xbf16>
    %c0_78 = arith.constant 0 : index
    %c0_79 = arith.constant 0 : index
    %48 = vector.load %arg2[%c0_78, %c0_79] : memref<576x64xbf16, #tpu.memory_space<vmem>>, vector<576x64xbf16>
    %cst_80 = arith.constant dense<0.000000e+00> : vector<1x64xf32>
    %49 = tpu.matmul %47, %48, %cst_80 {dimension_numbers = #tpu.dot_dimension_numbers<[1], [0], [0], [1], [0, 0, 1, 1], [], []>} : vector<1x576xbf16>, vector<576x64xbf16>, vector<1x64xf32> -> vector<1x64xf32>
    %50 = arith.addf %49, %0 : vector<1x64xf32>
    %cst_81 = arith.constant 0.000000e+00 : f32
    %51 = vector.broadcast %cst_81 : f32 to vector<1x64xf32>
    %52 = arith.maximumf %50, %51 : vector<1x64xf32>
    %53 = arith.truncf %52 : vector<1x64xf32> to vector<1x64xbf16>
    %c1_82 = arith.constant 1 : index
    %c0_83 = arith.constant 0 : index
    %c0_84 = arith.constant 0 : index
    %c0_85 = arith.constant 0 : index
    %54 = vector.load %arg4[%c1_82, %c0_83, %c0_84, %c0_85] : memref<2x1x1x64xbf16, #tpu.memory_space<vmem>>, vector<1x1x1x64xbf16>
    %55 = vector.shape_cast %54 : vector<1x1x1x64xbf16> to vector<1x64xbf16>
    %56 = vector.shape_cast %53 : vector<1x64xbf16> to vector<1x1x1x64xbf16>
    tpu.vector_store %arg4[%c1_82, %c0_83, %c0_84, %c0_85], %56 {strides = array<i32>} : memref<2x1x1x64xbf16, #tpu.memory_space<vmem>>, vector<1x1x1x64xbf16>,
    return
  }
  func.func @transform_0(%arg0: i32) -> (i32, i32, i32, i32) {
    %c0_i32 = arith.constant 0 : i32
    %c0_i32_0 = arith.constant 0 : i32
    %c0_i32_1 = arith.constant 0 : i32
    %c0_i32_2 = arith.constant 0 : i32
    return %arg0, %c0_i32, %c0_i32_0, %c0_i32_1 : i32, i32, i32, i32
  }
  func.func @transform_1(%arg0: i32) -> (i32, i32) {
    %c0_i32 = arith.constant 0 : i32
    %c0_i32_0 = arith.constant 0 : i32
    %c0_i32_1 = arith.constant 0 : i32
    return %c0_i32, %c0_i32_0 : i32, i32
  }
  func.func @transform_2(%arg0: i32) -> (i32, i32) {
    %c0_i32 = arith.constant 0 : i32
    %c0_i32_0 = arith.constant 0 : i32
    %c0_i32_1 = arith.constant 0 : i32
    return %c0_i32, %c0_i32_0 : i32, i32
  }
  func.func @transform_3(%arg0: i32) -> (i32, i32, i32, i32) {
    %c0_i32 = arith.constant 0 : i32
    %c0_i32_0 = arith.constant 0 : i32
    %c0_i32_1 = arith.constant 0 : i32
    %c0_i32_2 = arith.constant 0 : i32
    return %arg0, %c0_i32, %c0_i32_0, %c0_i32_1 : i32, i32, i32, i32
  }
}

module attributes {stable_mosaic.version = 11 : i64} {
  func.func @_mlp_head_kernel(%arg0: i32, %arg1: memref<8x64xbf16, #tpu.memory_space<vmem>>, %arg2: memref<64x512xbf16, #tpu.memory_space<vmem>>, %arg3: memref<1x512xf32, #tpu.memory_space<vmem>>, %arg4: memref<512x8xbf16, #tpu.memory_space<vmem>>, %arg5: memref<1x8xf32, #tpu.memory_space<vmem>>, %arg6: memref<8x8xf32, #tpu.memory_space<vmem>>) attributes {dimension_semantics = [#tpu.dimension_semantics<parallel>], iteration_bounds = array<i64: 1>, scalar_prefetch = 0 : i64, scratch_operands = 0 : i64, tpu.core_type = #tpu.core_type<tc>, window_params = [{transform_indices = @transform_0, window_bounds = array<i64: 8, 64>}, {pipeline_mode = #tpu.pipeline_mode<synchronous>, transform_indices = @transform_1, window_bounds = array<i64: 64, 512>}, {pipeline_mode = #tpu.pipeline_mode<synchronous>, transform_indices = @transform_2, window_bounds = array<i64: 1, 512>}, {pipeline_mode = #tpu.pipeline_mode<synchronous>, transform_indices = @transform_3, window_bounds = array<i64: 512, 8>}, {pipeline_mode = #tpu.pipeline_mode<synchronous>, transform_indices = @transform_4, window_bounds = array<i64: 1, 8>}, {transform_indices = @transform_5, window_bounds = array<i64: 8, 8>}]} {
    %c0 = arith.constant 0 : index
    %c0_0 = arith.constant 0 : index
    %0 = vector.load %arg1[%c0, %c0_0] : memref<8x64xbf16, #tpu.memory_space<vmem>>, vector<8x64xbf16>
    %c0_1 = arith.constant 0 : index
    %c0_2 = arith.constant 0 : index
    %1 = vector.load %arg2[%c0_1, %c0_2] : memref<64x512xbf16, #tpu.memory_space<vmem>>, vector<64x512xbf16>
    %cst = arith.constant dense<0.000000e+00> : vector<8x512xf32>
    %2 = tpu.matmul %0, %1, %cst {dimension_numbers = #tpu.dot_dimension_numbers<[1], [0], [0], [1], [0, 0, 1, 1], [], []>} : vector<8x64xbf16>, vector<64x512xbf16>, vector<8x512xf32> -> vector<8x512xf32>
    %c0_3 = arith.constant 0 : index
    %c0_4 = arith.constant 0 : index
    %3 = vector.load %arg3[%c0_3, %c0_4] : memref<1x512xf32, #tpu.memory_space<vmem>>, vector<1x512xf32>
    %4 = vector.broadcast %3 : vector<1x512xf32> to vector<8x512xf32>
    %5 = arith.addf %2, %4 : vector<8x512xf32>
    %cst_5 = arith.constant 0.000000e+00 : f32
    %6 = vector.broadcast %cst_5 : f32 to vector<8x512xf32>
    %7 = arith.maximumf %5, %6 : vector<8x512xf32>
    %8 = arith.truncf %7 : vector<8x512xf32> to vector<8x512xbf16>
    %c0_6 = arith.constant 0 : index
    %c0_7 = arith.constant 0 : index
    %9 = vector.load %arg4[%c0_6, %c0_7] : memref<512x8xbf16, #tpu.memory_space<vmem>>, vector<512x8xbf16>
    %cst_8 = arith.constant dense<0.000000e+00> : vector<8x8xf32>
    %10 = tpu.matmul %8, %9, %cst_8 {dimension_numbers = #tpu.dot_dimension_numbers<[1], [0], [0], [1], [0, 0, 1, 1], [], []>} : vector<8x512xbf16>, vector<512x8xbf16>, vector<8x8xf32> -> vector<8x8xf32>
    %c0_9 = arith.constant 0 : index
    %c0_10 = arith.constant 0 : index
    %11 = vector.load %arg5[%c0_9, %c0_10] : memref<1x8xf32, #tpu.memory_space<vmem>>, vector<1x8xf32>
    %12 = vector.broadcast %11 : vector<1x8xf32> to vector<8x8xf32>
    %13 = arith.addf %10, %12 : vector<8x8xf32>
    %c0_11 = arith.constant 0 : index
    %c0_12 = arith.constant 0 : index
    %14 = vector.load %arg6[%c0_11, %c0_12] : memref<8x8xf32, #tpu.memory_space<vmem>>, vector<8x8xf32>
    tpu.vector_store %arg6[%c0_11, %c0_12], %13 {strides = array<i32>} : memref<8x8xf32, #tpu.memory_space<vmem>>, vector<8x8xf32>,
    return
  }
  func.func @transform_0(%arg0: i32) -> (i32, i32) {
    %c0_i32 = arith.constant 0 : i32
    %c0_i32_0 = arith.constant 0 : i32
    return %arg0, %c0_i32 : i32, i32
  }
  func.func @transform_1(%arg0: i32) -> (i32, i32) {
    %c0_i32 = arith.constant 0 : i32
    %c0_i32_0 = arith.constant 0 : i32
    %c0_i32_1 = arith.constant 0 : i32
    return %c0_i32, %c0_i32_0 : i32, i32
  }
  func.func @transform_2(%arg0: i32) -> (i32, i32) {
    %c0_i32 = arith.constant 0 : i32
    %c0_i32_0 = arith.constant 0 : i32
    %c0_i32_1 = arith.constant 0 : i32
    return %c0_i32, %c0_i32_0 : i32, i32
  }
  func.func @transform_3(%arg0: i32) -> (i32, i32) {
    %c0_i32 = arith.constant 0 : i32
    %c0_i32_0 = arith.constant 0 : i32
    %c0_i32_1 = arith.constant 0 : i32
    return %c0_i32, %c0_i32_0 : i32, i32
  }
  func.func @transform_4(%arg0: i32) -> (i32, i32) {
    %c0_i32 = arith.constant 0 : i32
    %c0_i32_0 = arith.constant 0 : i32
    %c0_i32_1 = arith.constant 0 : i32
    return %c0_i32, %c0_i32_0 : i32, i32
  }
  func.func @transform_5(%arg0: i32) -> (i32, i32) {
    %c0_i32 = arith.constant 0 : i32
    %c0_i32_0 = arith.constant 0 : i32
    return %arg0, %c0_i32 : i32, i32
  }
}

</mosaic_0001>

<llo_original>
// kernel: convnet_forward.4
$region0: #{convnet_forward.4}
  #allocation0 [shape = 'u32[]', space=smem, size = 0x4, offset = 0x4, fixed_abs, tag = 'smem constant byte address 0x4 - core index']
  #allocation1 [shape = 'u32[72,128]{1,0:T(1,128)}', space=vmem, size = 0x9000, scoped, tag = 'internal scratch']
  %s0 = inlined_call_operand.vmem [shape: bf16[2,9,9,64], index: 0, kind: input, shape index: {}]
  %s1 = inlined_call_operand.vmem [shape: bf16[256,32], index: 1, kind: input, shape index: {}]
  %s2 = inlined_call_operand.vmem [shape: f32[1,32], index: 2, kind: input, shape index: {}]
  %s3 = inlined_call_operand.vmem [shape: bf16[2,8,8,32], index: 3, kind: output, shape index: {}]
  %s4 = sld [smem:[#allocation0]]
  $region22: #{convnet_forward.4} parent=0
    _
  %s6 = ssub.s32 1, %s4
  %s7 = scalar_select 0, %s6, %s4
  // Predicated region
  $region2: #{convnet_forward.4} parent=0 // pred_check
    _
  $region3: #{convnet_forward.4} parent=0 // pred_check_branch
    %9 = sbr.rel (0) target = $region5
  $region4: #{convnet_forward.4} parent=0 // pred_region
    _
  $region5: #{convnet_forward.4} parent=0 // pred_fallthru
    _
  // Predicated region
  $region6: #{convnet_forward.4} parent=0 // pred_check
    _
  $region7: #{convnet_forward.4} parent=0 // pred_check_branch
    %11 = sbr.rel (0) target = $region9
  $region8: #{convnet_forward.4} parent=0 // pred_region
    _
  $region9: #{convnet_forward.4} parent=0 // pred_fallthru
    _
  // Predicated region
  $region10: #{convnet_forward.4} parent=0 // pred_check
    _
  $region11: #{convnet_forward.4} parent=0 // pred_check_branch
    %13 = sbr.rel (0) target = $region13
  $region12: #{convnet_forward.4} parent=0 // pred_region
    _
  $region13: #{convnet_forward.4} parent=0 // pred_fallthru
    _
  %v14 = vld [vmem:[%s2] sm:$0x1]
  %v15 = vld [vmem:[%s0] sm:$0xf]
  %v16 = vld [vmem:[%s0 + $0x4] sm:$0x1]
  %s17 = scalar_lea.vmem %s0, 8
  %v18 = vld [vmem:[%s17] sm:$0xf]
  %v19 = vld [vmem:[%s17 + $0x4] sm:$0x1]
  %v22 = vunpack.c.l.b16 %v15
  %v23 = vunpack.c.l.b16 %v16
  %v24 = vpack.c.b16 %v23, %v22
  %v26 = vshrl.u32 %v24, 16
  %v28 = vshll.u32 %v24, 16
  %v30 = vrot.slane %v28, 1
  %v31 = vor.u32 %v26, %v30
  %32 = vrot.lane.b32.xlu0 %v31, 64
  %v33 = vpop.permute.xlu0 %32
  %v36 = vunpack.c.l.b16 %v18
  %v37 = vunpack.c.l.b16 %v19
  %v38 = vpack.c.b16 %v37, %v36
  %v40 = vshrl.u32 %v38, 16
  %v42 = vshll.u32 %v38, 16
  %v44 = vrot.slane %v42, 1
  %v45 = vor.u32 %v40, %v44
  %46 = vrot.lane.b32.xlu0 %v45, 64
  %v47 = vpop.permute.xlu0 %46
  %vm48 = vcmask 523264
  %v51 = vsel %vm48, %v15, %v33
  %v55 = vsel %vm48, %v18, %v47
  %v57 = vld [vmem:[%s1] sm:$0xf]
  %v58 = vld [vmem:[%s1 + $0x4] sm:$0xf]
  %v59 = vld [vmem:[%s1 + $0x8] sm:$0xf]
  %v60 = vld [vmem:[%s1 + $0xc] sm:$0xf]
  %v61 = vld [vmem:[%s1 + $0x10] sm:$0xf]
  %v62 = vld [vmem:[%s1 + $0x14] sm:$0xf]
  %v63 = vld [vmem:[%s1 + $0x18] sm:$0xf]
  %v64 = vld [vmem:[%s1 + $0x1c] sm:$0xf]
  %v65 = vld [vmem:[%s1 + $0x20] sm:$0xf]
  %v66 = vld [vmem:[%s1 + $0x24] sm:$0xf]
  %v67 = vld [vmem:[%s1 + $0x28] sm:$0xf]
  %v68 = vld [vmem:[%s1 + $0x2c] sm:$0xf]
  %v69 = vld [vmem:[%s1 + $0x30] sm:$0xf]
  %v70 = vld [vmem:[%s1 + $0x34] sm:$0xf]
  %v71 = vld [vmem:[%s1 + $0x38] sm:$0xf]
  %v72 = vld [vmem:[%s1 + $0x3c] sm:$0xf]
  %v73 = vld [vmem:[%s1 + $0x40] sm:$0xf]
  %v74 = vld [vmem:[%s1 + $0x44] sm:$0xf]
  %v75 = vld [vmem:[%s1 + $0x48] sm:$0xf]
  %v76 = vld [vmem:[%s1 + $0x4c] sm:$0xf]
  %v77 = vld [vmem:[%s1 + $0x50] sm:$0xf]
  %v78 = vld [vmem:[%s1 + $0x54] sm:$0xf]
  %v79 = vld [vmem:[%s1 + $0x58] sm:$0xf]
  %v80 = vld [vmem:[%s1 + $0x5c] sm:$0xf]
  %v81 = vld [vmem:[%s1 + $0x60] sm:$0xf]
  %v82 = vld [vmem:[%s1 + $0x64] sm:$0xf]
  %v83 = vld [vmem:[%s1 + $0x68] sm:$0xf]
  %v84 = vld [vmem:[%s1 + $0x6c] sm:$0xf]
  %v85 = vld [vmem:[%s1 + $0x70] sm:$0xf]
  %v86 = vld [vmem:[%s1 + $0x74] sm:$0xf]
  %v87 = vld [vmem:[%s1 + $0x78] sm:$0xf]
  %v88 = vld [vmem:[%s1 + $0x7c] sm:$0xf]
  %v90 = vperm.slane %v14, 0
  %v124 = vunpack.c.l.b16 %v57
  %v125 = vunpack.c.l.b16 %v58
  %v126 = vunpack.c.l.b16 %v59
  %v127 = vunpack.c.l.b16 %v60
  %v128 = vunpack.c.l.b16 %v61
  %v129 = vunpack.c.l.b16 %v62
  %v130 = vunpack.c.l.b16 %v63
  %v131 = vunpack.c.l.b16 %v64
  %v132 = vunpack.c.l.b16 %v65
  %v133 = vunpack.c.l.b16 %v66
  %v134 = vunpack.c.l.b16 %v67
  %v135 = vunpack.c.l.b16 %v68
  %v136 = vunpack.c.l.b16 %v69
  %v137 = vunpack.c.l.b16 %v70
  %v138 = vunpack.c.l.b16 %v71
  %v139 = vunpack.c.l.b16 %v72
  %v140 = vunpack.c.l.b16 %v73
  %v141 = vunpack.c.l.b16 %v74
  %v142 = vunpack.c.l.b16 %v75
  %v143 = vunpack.c.l.b16 %v76
  %v144 = vunpack.c.l.b16 %v77
  %v145 = vunpack.c.l.b16 %v78
  %v146 = vunpack.c.l.b16 %v79
  %v147 = vunpack.c.l.b16 %v80
  %v148 = vunpack.c.l.b16 %v81
  %v149 = vunpack.c.l.b16 %v82
  %v150 = vunpack.c.l.b16 %v83
  %v151 = vunpack.c.l.b16 %v84
  %v152 = vunpack.c.l.b16 %v85
  %v153 = vunpack.c.l.b16 %v86
  %v154 = vunpack.c.l.b16 %v87
  %v155 = vunpack.c.l.b16 %v88
  %v156 = vpack.c.b16 %v125, %v124
  %v157 = vpack.c.b16 %v127, %v126
  %v158 = vpack.c.b16 %v129, %v128
  %v159 = vpack.c.b16 %v131, %v130
  %v160 = vpack.c.b16 %v133, %v132
  %v161 = vpack.c.b16 %v135, %v134
  %v162 = vpack.c.b16 %v137, %v136
  %v163 = vpack.c.b16 %v139, %v138
  %v164 = vpack.c.b16 %v141, %v140
  %v165 = vpack.c.b16 %v143, %v142
  %v166 = vpack.c.b16 %v145, %v144
  %v167 = vpack.c.b16 %v147, %v146
  %v168 = vpack.c.b16 %v149, %v148
  %v169 = vpack.c.b16 %v151, %v150
  %v170 = vpack.c.b16 %v153, %v152
  %v171 = vpack.c.b16 %v155, %v154
  %188 = vmatpush.bf16.msra.mxu0 %v163
  %189 = vmatpush.bf16.msra.mxu0 %v162
  %190 = vmatpush.bf16.msra.mxu0 %v161
  %191 = vmatpush.bf16.msra.mxu0 %v160
  %192 = vmatpush.bf16.msra.mxu0 %v159
  %193 = vmatpush.bf16.msra.mxu0 %v158
  %194 = vmatpush.bf16.msra.mxu0 %v157
  %195 = vmatpush.bf16.msra.mxu0 %v156
  %196 = vmatmul.bf16.gmra.mxu0 %v51
  %v197 = vpop.f32.mrf.mxu0
  %v198 = vadd.f32 %v90, %v197
  %v199 = vpop.f32.mrf.mxu0
  %200 = vdwg.mxu0
  %201 = vmatpush.bf16.msra.mxu0 %v171
  %202 = vmatpush.bf16.msra.mxu0 %v170
  %203 = vmatpush.bf16.msra.mxu0 %v169
  %204 = vmatpush.bf16.msra.mxu0 %v168
  %205 = vmatpush.bf16.msra.mxu0 %v167
  %206 = vmatpush.bf16.msra.mxu0 %v166
  %207 = vmatpush.bf16.msra.mxu0 %v165
  %208 = vmatpush.bf16.msra.mxu0 %v164
  %209 = vmatmul.bf16.gmra.mxu0 %v55
  %v210 = vpop.f32.mrf.mxu0
  %v211 = vadd.f32 %v198, %v210
  %v212 = vpop.f32.mrf.mxu0
  %213 = vdwg.mxu0
  %v214 = vmax.f32 %v211, 0.0
  %v215 = vpack.c.bf16 %v214, %v214
  %vm216 = vcmask 257024
  %217 = vst.msk [vmem:[%s3] sm:$0xf] %vm216, %v215
  %v218 = vld [vmem:[%s17] sm:$0xf]
  %v219 = vld [vmem:[%s17 + $0x4] sm:$0x1]
  %s220 = scalar_lea.vmem %s0, 16
  %v221 = vld [vmem:[%s220] sm:$0xf]
  %v222 = vld [vmem:[%s220 + $0x4] sm:$0x1]
  %v225 = vunpack.c.l.b16 %v218
  %v226 = vunpack.c.l.b16 %v219
  %v227 = vpack.c.b16 %v226, %v225
  %v229 = vshrl.u32 %v227, 16
  %v231 = vshll.u32 %v227, 16
  %v233 = vrot.slane %v231, 1
  %v234 = vor.u32 %v229, %v233
  %235 = vrot.lane.b32.xlu0 %v234, 64
  %v236 = vpop.permute.xlu0 %235
  %v239 = vunpack.c.l.b16 %v221
  %v240 = vunpack.c.l.b16 %v222
  %v241 = vpack.c.b16 %v240, %v239
  %v243 = vshrl.u32 %v241, 16
  %v245 = vshll.u32 %v241, 16
  %v247 = vrot.slane %v245, 1
  %v248 = vor.u32 %v243, %v247
  %249 = vrot.lane.b32.xlu0 %v248, 64
  %v250 = vpop.permute.xlu0 %249
  %v253 = vsel %vm48, %v218, %v236
  %v257 = vsel %vm48, %v221, %v250
  %v259 = vld [vmem:[%s1] sm:$0xf]
  %v260 = vld [vmem:[%s1 + $0x4] sm:$0xf]
  %v261 = vld [vmem:[%s1 + $0x8] sm:$0xf]
  %v262 = vld [vmem:[%s1 + $0xc] sm:$0xf]
  %v263 = vld [vmem:[%s1 + $0x10] sm:$0xf]
  %v264 = vld [vmem:[%s1 + $0x14] sm:$0xf]
  %v265 = vld [vmem:[%s1 + $0x18] sm:$0xf]
  %v266 = vld [vmem:[%s1 + $0x1c] sm:$0xf]
  %v267 = vld [vmem:[%s1 + $0x20] sm:$0xf]
  %v268 = vld [vmem:[%s1 + $0x24] sm:$0xf]
  %v269 = vld [vmem:[%s1 + $0x28] sm:$0xf]
  %v270 = vld [vmem:[%s1 + $0x2c] sm:$0xf]
  %v271 = vld [vmem:[%s1 + $0x30] sm:$0xf]
  %v272 = vld [vmem:[%s1 + $0x34] sm:$0xf]
  %v273 = vld [vmem:[%s1 + $0x38] sm:$0xf]
  %v274 = vld [vmem:[%s1 + $0x3c] sm:$0xf]
  %v275 = vld [vmem:[%s1 + $0x40] sm:$0xf]
  %v276 = vld [vmem:[%s1 + $0x44] sm:$0xf]
  %v277 = vld [vmem:[%s1 + $0x48] sm:$0xf]
  %v278 = vld [vmem:[%s1 + $0x4c] sm:$0xf]
  %v279 = vld [vmem:[%s1 + $0x50] sm:$0xf]
  %v280 = vld [vmem:[%s1 + $0x54] sm:$0xf]
  %v281 = vld [vmem:[%s1 + $0x58] sm:$0xf]
  %v282 = vld [vmem:[%s1 + $0x5c] sm:$0xf]
  %v283 = vld [vmem:[%s1 + $0x60] sm:$0xf]
  %v284 = vld [vmem:[%s1 + $0x64] sm:$0xf]
  %v285 = vld [vmem:[%s1 + $0x68] sm:$0xf]
  %v286 = vld [vmem:[%s1 + $0x6c] sm:$0xf]
  %v287 = vld [vmem:[%s1 + $0x70] sm:$0xf]
  %v288 = vld [vmem:[%s1 + $0x74] sm:$0xf]
  %v289 = vld [vmem:[%s1 + $0x78] sm:$0xf]
  %v290 = vld [vmem:[%s1 + $0x7c] sm:$0xf]
  %v323 = vunpack.c.l.b16 %v259
  %v324 = vunpack.c.l.b16 %v260
  %v325 = vunpack.c.l.b16 %v261
  %v326 = vunpack.c.l.b16 %v262
  %v327 = vunpack.c.l.b16 %v263
  %v328 = vunpack.c.l.b16 %v264
  %v329 = vunpack.c.l.b16 %v265
  %v330 = vunpack.c.l.b16 %v266
  %v331 = vunpack.c.l.b16 %v267
  %v332 = vunpack.c.l.b16 %v268
  %v333 = vunpack.c.l.b16 %v269
  %v334 = vunpack.c.l.b16 %v270
  %v335 = vunpack.c.l.b16 %v271
  %v336 = vunpack.c.l.b16 %v272
  %v337 = vunpack.c.l.b16 %v273
  %v338 = vunpack.c.l.b16 %v274
  %v339 = vunpack.c.l.b16 %v275
  %v340 = vunpack.c.l.b16 %v276
  %v341 = vunpack.c.l.b16 %v277
  %v342 = vunpack.c.l.b16 %v278
  %v343 = vunpack.c.l.b16 %v279
  %v344 = vunpack.c.l.b16 %v280
  %v345 = vunpack.c.l.b16 %v281
  %v346 = vunpack.c.l.b16 %v282
  %v347 = vunpack.c.l.b16 %v283
  %v348 = vunpack.c.l.b16 %v284
  %v349 = vunpack.c.l.b16 %v285
  %v350 = vunpack.c.l.b16 %v286
  %v351 = vunpack.c.l.b16 %v287
  %v352 = vunpack.c.l.b16 %v288
  %v353 = vunpack.c.l.b16 %v289
  %v354 = vunpack.c.l.b16 %v290
  %v355 = vpack.c.b16 %v324, %v323
  %v356 = vpack.c.b16 %v326, %v325
  %v357 = vpack.c.b16 %v328, %v327
  %v358 = vpack.c.b16 %v330, %v329
  %v359 = vpack.c.b16 %v332, %v331
  %v360 = vpack.c.b16 %v334, %v333
  %v361 = vpack.c.b16 %v336, %v335
  %v362 = vpack.c.b16 %v338, %v337
  %v363 = vpack.c.b16 %v340, %v339
  %v364 = vpack.c.b16 %v342, %v341
  %v365 = vpack.c.b16 %v344, %v343
  %v366 = vpack.c.b16 %v346, %v345
  %v367 = vpack.c.b16 %v348, %v347
  %v368 = vpack.c.b16 %v350, %v349
  %v369 = vpack.c.b16 %v352, %v351
  %v370 = vpack.c.b16 %v354, %v353
  %387 = vmatpush.bf16.msra.mxu0 %v362
  %388 = vmatpush.bf16.msra.mxu0 %v361
  %389 = vmatpush.bf16.msra.mxu0 %v360
  %390 = vmatpush.bf16.msra.mxu0 %v359
  %391 = vmatpush.bf16.msra.mxu0 %v358
  %392 = vmatpush.bf16.msra.mxu0 %v357
  %393 = vmatpush.bf16.msra.mxu0 %v356
  %394 = vmatpush.bf16.msra.mxu0 %v355
  %395 = vmatmul.bf16.gmra.mxu0 %v253
  %v396 = vpop.f32.mrf.mxu0
  %v397 = vadd.f32 %v90, %v396
  %v398 = vpop.f32.mrf.mxu0
  %399 = vdwg.mxu0
  %400 = vmatpush.bf16.msra.mxu0 %v370
  %401 = vmatpush.bf16.msra.mxu0 %v369
  %402 = vmatpush.bf16.msra.mxu0 %v368
  %403 = vmatpush.bf16.msra.mxu0 %v367
  %404 = vmatpush.bf16.msra.mxu0 %v366
  %405 = vmatpush.bf16.msra.mxu0 %v365
  %406 = vmatpush.bf16.msra.mxu0 %v364
  %407 = vmatpush.bf16.msra.mxu0 %v363
  %408 = vmatmul.bf16.gmra.mxu0 %v257
  %v409 = vpop.f32.mrf.mxu0
  %v410 = vadd.f32 %v397, %v409
  %v411 = vpop.f32.mrf.mxu0
  %412 = vdwg.mxu0
  %v413 = vmax.f32 %v410, 0.0
  %v414 = vpack.c.bf16 %v413, %v413
  %s415 = scalar_lea.vmem %s3, 4
  %416 = vst.msk [vmem:[%s415] sm:$0xf] %vm216, %v414
  %v417 = vld [vmem:[%s220] sm:$0xf]
  %v418 = vld [vmem:[%s220 + $0x4] sm:$0x1]
  %s419 = scalar_lea.vmem %s0, 24
  %v420 = vld [vmem:[%s419] sm:$0xf]
  %v421 = vld [vmem:[%s419 + $0x4] sm:$0x1]
  %v424 = vunpack.c.l.b16 %v417
  %v425 = vunpack.c.l.b16 %v418
  %v426 = vpack.c.b16 %v425, %v424
  %v428 = vshrl.u32 %v426, 16
  %v430 = vshll.u32 %v426, 16
  %v432 = vrot.slane %v430, 1
  %v433 = vor.u32 %v428, %v432
  %434 = vrot.lane.b32.xlu0 %v433, 64
  %v435 = vpop.permute.xlu0 %434
  %v438 = vunpack.c.l.b16 %v420
  %v439 = vunpack.c.l.b16 %v421
  %v440 = vpack.c.b16 %v439, %v438
  %v442 = vshrl.u32 %v440, 16
  %v444 = vshll.u32 %v440, 16
  %v446 = vrot.slane %v444, 1
  %v447 = vor.u32 %v442, %v446
  %448 = vrot.lane.b32.xlu0 %v447, 64
  %v449 = vpop.permute.xlu0 %448
  %v452 = vsel %vm48, %v417, %v435
  %v456 = vsel %vm48, %v420, %v449
  %v458 = vld [vmem:[%s1] sm:$0xf]
  %v459 = vld [vmem:[%s1 + $0x4] sm:$0xf]
  %v460 = vld [vmem:[%s1 + $0x8] sm:$0xf]
  %v461 = vld [vmem:[%s1 + $0xc] sm:$0xf]
  %v462 = vld [vmem:[%s1 + $0x10] sm:$0xf]
  %v463 = vld [vmem:[%s1 + $0x14] sm:$0xf]
  %v464 = vld [vmem:[%s1 + $0x18] sm:$0xf]
  %v465 = vld [vmem:[%s1 + $0x1c] sm:$0xf]
  %v466 = vld [vmem:[%s1 + $0x20] sm:$0xf]
  %v467 = vld [vmem:[%s1 + $0x24] sm:$0xf]
  %v468 = vld [vmem:[%s1 + $0x28] sm:$0xf]
  %v469 = vld [vmem:[%s1 + $0x2c] sm:$0xf]
  %v470 = vld [vmem:[%s1 + $0x30] sm:$0xf]
  %v471 = vld [vmem:[%s1 + $0x34] sm:$0xf]
  %v472 = vld [vmem:[%s1 + $0x38] sm:$0xf]
  %v473 = vld [vmem:[%s1 + $0x3c] sm:$0xf]
  %v474 = vld [vmem:[%s1 + $0x40] sm:$0xf]
  %v475 = vld [vmem:[%s1 + $0x44] sm:$0xf]
  %v476 = vld [vmem:[%s1 + $0x48] sm:$0xf]
  %v477 = vld [vmem:[%s1 + $0x4c] sm:$0xf]
  %v478 = vld [vmem:[%s1 + $0x50] sm:$0xf]
  %v479 = vld [vmem:[%s1 + $0x54] sm:$0xf]
  %v480 = vld [vmem:[%s1 + $0x58] sm:$0xf]
  %v481 = vld [vmem:[%s1 + $0x5c] sm:$0xf]
  %v482 = vld [vmem:[%s1 + $0x60] sm:$0xf]
  %v483 = vld [vmem:[%s1 + $0x64] sm:$0xf]
  %v484 = vld [vmem:[%s1 + $0x68] sm:$0xf]
  %v485 = vld [vmem:[%s1 + $0x6c] sm:$0xf]
  %v486 = vld [vmem:[%s1 + $0x70] sm:$0xf]
  %v487 = vld [vmem:[%s1 + $0x74] sm:$0xf]
  %v488 = vld [vmem:[%s1 + $0x78] sm:$0xf]
  %v489 = vld [vmem:[%s1 + $0x7c] sm:$0xf]
  %v522 = vunpack.c.l.b16 %v458
  %v523 = vunpack.c.l.b16 %v459
  %v524 = vunpack.c.l.b16 %v460
  %v525 = vunpack.c.l.b16 %v461
  %v526 = vunpack.c.l.b16 %v462
  %v527 = vunpack.c.l.b16 %v463
  %v528 = vunpack.c.l.b16 %v464
  %v529 = vunpack.c.l.b16 %v465
  %v530 = vunpack.c.l.b16 %v466
  %v531 = vunpack.c.l.b16 %v467
  %v532 = vunpack.c.l.b16 %v468
  %v533 = vunpack.c.l.b16 %v469
  %v534 = vunpack.c.l.b16 %v470
  %v535 = vunpack.c.l.b16 %v471
  %v536 = vunpack.c.l.b16 %v472
  %v537 = vunpack.c.l.b16 %v473
  %v538 = vunpack.c.l.b16 %v474
  %v539 = vunpack.c.l.b16 %v475
  %v540 = vunpack.c.l.b16 %v476
  %v541 = vunpack.c.l.b16 %v477
  %v542 = vunpack.c.l.b16 %v478
  %v543 = vunpack.c.l.b16 %v479
  %v544 = vunpack.c.l.b16 %v480
  %v545 = vunpack.c.l.b16 %v481
  %v546 = vunpack.c.l.b16 %v482
  %v547 = vunpack.c.l.b16 %v483
  %v548 = vunpack.c.l.b16 %v484
  %v549 = vunpack.c.l.b16 %v485
  %v550 = vunpack.c.l.b16 %v486
  %v551 = vunpack.c.l.b16 %v487
  %v552 = vunpack.c.l.b16 %v488
  %v553 = vunpack.c.l.b16 %v489
  %v554 = vpack.c.b16 %v523, %v522
  %v555 = vpack.c.b16 %v525, %v524
  %v556 = vpack.c.b16 %v527, %v526
  %v557 = vpack.c.b16 %v529, %v528
  %v558 = vpack.c.b16 %v531, %v530
  %v559 = vpack.c.b16 %v533, %v532
  %v560 = vpack.c.b16 %v535, %v534
  %v561 = vpack.c.b16 %v537, %v536
  %v562 = vpack.c.b16 %v539, %v538
  %v563 = vpack.c.b16 %v541, %v540
  %v564 = vpack.c.b16 %v543, %v542
  %v565 = vpack.c.b16 %v545, %v544
  %v566 = vpack.c.b16 %v547, %v546
  %v567 = vpack.c.b16 %v549, %v548
  %v568 = vpack.c.b16 %v551, %v550
  %v569 = vpack.c.b16 %v553, %v552
  %586 = vmatpush.bf16.msra.mxu0 %v561
  %587 = vmatpush.bf16.msra.mxu0 %v560
  %588 = vmatpush.bf16.msra.mxu0 %v559
  %589 = vmatpush.bf16.msra.mxu0 %v558
  %590 = vmatpush.bf16.msra.mxu0 %v557
  %591 = vmatpush.bf16.msra.mxu0 %v556
  %592 = vmatpush.bf16.msra.mxu0 %v555
  %593 = vmatpush.bf16.msra.mxu0 %v554
  %594 = vmatmul.bf16.gmra.mxu0 %v452
  %v595 = vpop.f32.mrf.mxu0
  %v596 = vadd.f32 %v90, %v595
  %v597 = vpop.f32.mrf.mxu0
  %598 = vdwg.mxu0
  %599 = vmatpush.bf16.msra.mxu0 %v569
  %600 = vmatpush.bf16.msra.mxu0 %v568
  %601 = vmatpush.bf16.msra.mxu0 %v567
  %602 = vmatpush.bf16.msra.mxu0 %v566
  %603 = vmatpush.bf16.msra.mxu0 %v565
  %604 = vmatpush.bf16.msra.mxu0 %v564
  %605 = vmatpush.bf16.msra.mxu0 %v563
  %606 = vmatpush.bf16.msra.mxu0 %v562
  %607 = vmatmul.bf16.gmra.mxu0 %v456
  %v608 = vpop.f32.mrf.mxu0
  %v609 = vadd.f32 %v596, %v608
  %v610 = vpop.f32.mrf.mxu0
  %611 = vdwg.mxu0
  %v612 = vmax.f32 %v609, 0.0
  %v613 = vpack.c.bf16 %v612, %v612
  %s614 = scalar_lea.vmem %s3, 8
  %615 = vst.msk [vmem:[%s614] sm:$0xf] %vm216, %v613
  %v616 = vld [vmem:[%s419] sm:$0xf]
  %v617 = vld [vmem:[%s419 + $0x4] sm:$0x1]
  %s618 = scalar_lea.vmem %s0, 32
  %v619 = vld [vmem:[%s618] sm:$0xf]
  %v620 = vld [vmem:[%s618 + $0x4] sm:$0x1]
  %v623 = vunpack.c.l.b16 %v616
  %v624 = vunpack.c.l.b16 %v617
  %v625 = vpack.c.b16 %v624, %v623
  %v627 = vshrl.u32 %v625, 16
  %v629 = vshll.u32 %v625, 16
  %v631 = vrot.slane %v629, 1
  %v632 = vor.u32 %v627, %v631
  %633 = vrot.lane.b32.xlu0 %v632, 64
  %v634 = vpop.permute.xlu0 %633
  %v637 = vunpack.c.l.b16 %v619
  %v638 = vunpack.c.l.b16 %v620
  %v639 = vpack.c.b16 %v638, %v637
  %v641 = vshrl.u32 %v639, 16
  %v643 = vshll.u32 %v639, 16
  %v645 = vrot.slane %v643, 1
  %v646 = vor.u32 %v641, %v645
  %647 = vrot.lane.b32.xlu0 %v646, 64
  %v648 = vpop.permute.xlu0 %647
  %v651 = vsel %vm48, %v616, %v634
  %v655 = vsel %vm48, %v619, %v648
  %v657 = vld [vmem:[%s1] sm:$0xf]
  %v658 = vld [vmem:[%s1 + $0x4] sm:$0xf]
  %v659 = vld [vmem:[%s1 + $0x8] sm:$0xf]
  %v660 = vld [vmem:[%s1 + $0xc] sm:$0xf]
  %v661 = vld [vmem:[%s1 + $0x10] sm:$0xf]
  %v662 = vld [vmem:[%s1 + $0x14] sm:$0xf]
  %v663 = vld [vmem:[%s1 + $0x18] sm:$0xf]
  %v664 = vld [vmem:[%s1 + $0x1c] sm:$0xf]
  %v665 = vld [vmem:[%s1 + $0x20] sm:$0xf]
  %v666 = vld [vmem:[%s1 + $0x24] sm:$0xf]
  %v667 = vld [vmem:[%s1 + $0x28] sm:$0xf]
  %v668 = vld [vmem:[%s1 + $0x2c] sm:$0xf]
  %v669 = vld [vmem:[%s1 + $0x30] sm:$0xf]
  %v670 = vld [vmem:[%s1 + $0x34] sm:$0xf]
  %v671 = vld [vmem:[%s1 + $0x38] sm:$0xf]
  %v672 = vld [vmem:[%s1 + $0x3c] sm:$0xf]
  %v673 = vld [vmem:[%s1 + $0x40] sm:$0xf]
  %v674 = vld [vmem:[%s1 + $0x44] sm:$0xf]
  %v675 = vld [vmem:[%s1 + $0x48] sm:$0xf]
  %v676 = vld [vmem:[%s1 + $0x4c] sm:$0xf]
  %v677 = vld [vmem:[%s1 + $0x50] sm:$0xf]
  %v678 = vld [vmem:[%s1 + $0x54] sm:$0xf]
  %v679 = vld [vmem:[%s1 + $0x58] sm:$0xf]
  %v680 = vld [vmem:[%s1 + $0x5c] sm:$0xf]
  %v681 = vld [vmem:[%s1 + $0x60] sm:$0xf]
  %v682 = vld [vmem:[%s1 + $0x64] sm:$0xf]
  %v683 = vld [vmem:[%s1 + $0x68] sm:$0xf]
  %v684 = vld [vmem:[%s1 + $0x6c] sm:$0xf]
  %v685 = vld [vmem:[%s1 + $0x70] sm:$0xf]
  %v686 = vld [vmem:[%s1 + $0x74] sm:$0xf]
  %v687 = vld [vmem:[%s1 + $0x78] sm:$0xf]
  %v688 = vld [vmem:[%s1 + $0x7c] sm:$0xf]
  %v721 = vunpack.c.l.b16 %v657
  %v722 = vunpack.c.l.b16 %v658
  %v723 = vunpack.c.l.b16 %v659
  %v724 = vunpack.c.l.b16 %v660
  %v725 = vunpack.c.l.b16 %v661
  %v726 = vunpack.c.l.b16 %v662
  %v727 = vunpack.c.l.b16 %v663
  %v728 = vunpack.c.l.b16 %v664
  %v729 = vunpack.c.l.b16 %v665
  %v730 = vunpack.c.l.b16 %v666
  %v731 = vunpack.c.l.b16 %v667
  %v732 = vunpack.c.l.b16 %v668
  %v733 = vunpack.c.l.b16 %v669
  %v734 = vunpack.c.l.b16 %v670
  %v735 = vunpack.c.l.b16 %v671
  %v736 = vunpack.c.l.b16 %v672
  %v737 = vunpack.c.l.b16 %v673
  %v738 = vunpack.c.l.b16 %v674
  %v739 = vunpack.c.l.b16 %v675
  %v740 = vunpack.c.l.b16 %v676
  %v741 = vunpack.c.l.b16 %v677
  %v742 = vunpack.c.l.b16 %v678
  %v743 = vunpack.c.l.b16 %v679
  %v744 = vunpack.c.l.b16 %v680
  %v745 = vunpack.c.l.b16 %v681
  %v746 = vunpack.c.l.b16 %v682
  %v747 = vunpack.c.l.b16 %v683
  %v748 = vunpack.c.l.b16 %v684
  %v749 = vunpack.c.l.b16 %v685
  %v750 = vunpack.c.l.b16 %v686
  %v751 = vunpack.c.l.b16 %v687
  %v752 = vunpack.c.l.b16 %v688
  %v753 = vpack.c.b16 %v722, %v721
  %v754 = vpack.c.b16 %v724, %v723
  %v755 = vpack.c.b16 %v726, %v725
  %v756 = vpack.c.b16 %v728, %v727
  %v757 = vpack.c.b16 %v730, %v729
  %v758 = vpack.c.b16 %v732, %v731
  %v759 = vpack.c.b16 %v734, %v733
  %v760 = vpack.c.b16 %v736, %v735
  %v761 = vpack.c.b16 %v738, %v737
  %v762 = vpack.c.b16 %v740, %v739
  %v763 = vpack.c.b16 %v742, %v741
  %v764 = vpack.c.b16 %v744, %v743
  %v765 = vpack.c.b16 %v746, %v745
  %v766 = vpack.c.b16 %v748, %v747
  %v767 = vpack.c.b16 %v750, %v749
  %v768 = vpack.c.b16 %v752, %v751
  %785 = vmatpush.bf16.msra.mxu0 %v760
  %786 = vmatpush.bf16.msra.mxu0 %v759
  %787 = vmatpush.bf16.msra.mxu0 %v758
  %788 = vmatpush.bf16.msra.mxu0 %v757
  %789 = vmatpush.bf16.msra.mxu0 %v756
  %790 = vmatpush.bf16.msra.mxu0 %v755
  %791 = vmatpush.bf16.msra.mxu0 %v754
  %792 = vmatpush.bf16.msra.mxu0 %v753
  %793 = vmatmul.bf16.gmra.mxu0 %v651
  %v794 = vpop.f32.mrf.mxu0
  %v795 = vadd.f32 %v90, %v794
  %v796 = vpop.f32.mrf.mxu0
  %797 = vdwg.mxu0
  %798 = vmatpush.bf16.msra.mxu0 %v768
  %799 = vmatpush.bf16.msra.mxu0 %v767
  %800 = vmatpush.bf16.msra.mxu0 %v766
  %801 = vmatpush.bf16.msra.mxu0 %v765
  %802 = vmatpush.bf16.msra.mxu0 %v764
  %803 = vmatpush.bf16.msra.mxu0 %v763
  %804 = vmatpush.bf16.msra.mxu0 %v762
  %805 = vmatpush.bf16.msra.mxu0 %v761
  %806 = vmatmul.bf16.gmra.mxu0 %v655
  %v807 = vpop.f32.mrf.mxu0
  %v808 = vadd.f32 %v795, %v807
  %v809 = vpop.f32.mrf.mxu0
  %810 = vdwg.mxu0
  %v811 = vmax.f32 %v808, 0.0
  %v812 = vpack.c.bf16 %v811, %v811
  %s813 = scalar_lea.vmem %s3, 12
  %814 = vst.msk [vmem:[%s813] sm:$0xf] %vm216, %v812
  %v815 = vld [vmem:[%s618] sm:$0xf]
  %v816 = vld [vmem:[%s618 + $0x4] sm:$0x1]
  %s817 = scalar_lea.vmem %s0, 40
  %v818 = vld [vmem:[%s817] sm:$0xf]
  %v819 = vld [vmem:[%s817 + $0x4] sm:$0x1]
  %v822 = vunpack.c.l.b16 %v815
  %v823 = vunpack.c.l.b16 %v816
  %v824 = vpack.c.b16 %v823, %v822
  %v826 = vshrl.u32 %v824, 16
  %v828 = vshll.u32 %v824, 16
  %v830 = vrot.slane %v828, 1
  %v831 = vor.u32 %v826, %v830
  %832 = vrot.lane.b32.xlu0 %v831, 64
  %v833 = vpop.permute.xlu0 %832
  %v836 = vunpack.c.l.b16 %v818
  %v837 = vunpack.c.l.b16 %v819
  %v838 = vpack.c.b16 %v837, %v836
  %v840 = vshrl.u32 %v838, 16
  %v842 = vshll.u32 %v838, 16
  %v844 = vrot.slane %v842, 1
  %v845 = vor.u32 %v840, %v844
  %846 = vrot.lane.b32.xlu0 %v845, 64
  %v847 = vpop.permute.xlu0 %846
  %v850 = vsel %vm48, %v815, %v833
  %v854 = vsel %vm48, %v818, %v847
  %v856 = vld [vmem:[%s1] sm:$0xf]
  %v857 = vld [vmem:[%s1 + $0x4] sm:$0xf]
  %v858 = vld [vmem:[%s1 + $0x8] sm:$0xf]
  %v859 = vld [vmem:[%s1 + $0xc] sm:$0xf]
  %v860 = vld [vmem:[%s1 + $0x10] sm:$0xf]
  %v861 = vld [vmem:[%s1 + $0x14] sm:$0xf]
  %v862 = vld [vmem:[%s1 + $0x18] sm:$0xf]
  %v863 = vld [vmem:[%s1 + $0x1c] sm:$0xf]
  %v864 = vld [vmem:[%s1 + $0x20] sm:$0xf]
  %v865 = vld [vmem:[%s1 + $0x24] sm:$0xf]
  %v866 = vld [vmem:[%s1 + $0x28] sm:$0xf]
  %v867 = vld [vmem:[%s1 + $0x2c] sm:$0xf]
  %v868 = vld [vmem:[%s1 + $0x30] sm:$0xf]
  %v869 = vld [vmem:[%s1 + $0x34] sm:$0xf]
  %v870 = vld [vmem:[%s1 + $0x38] sm:$0xf]
  %v871 = vld [vmem:[%s1 + $0x3c] sm:$0xf]
  %v872 = vld [vmem:[%s1 + $0x40] sm:$0xf]
  %v873 = vld [vmem:[%s1 + $0x44] sm:$0xf]
  %v874 = vld [vmem:[%s1 + $0x48] sm:$0xf]
  %v875 = vld [vmem:[%s1 + $0x4c] sm:$0xf]
  %v876 = vld [vmem:[%s1 + $0x50] sm:$0xf]
  %v877 = vld [vmem:[%s1 + $0x54] sm:$0xf]
  %v878 = vld [vmem:[%s1 + $0x58] sm:$0xf]
  %v879 = vld [vmem:[%s1 + $0x5c] sm:$0xf]
  %v880 = vld [vmem:[%s1 + $0x60] sm:$0xf]
  %v881 = vld [vmem:[%s1 + $0x64] sm:$0xf]
  %v882 = vld [vmem:[%s1 + $0x68] sm:$0xf]
  %v883 = vld [vmem:[%s1 + $0x6c] sm:$0xf]
  %v884 = vld [vmem:[%s1 + $0x70] sm:$0xf]
  %v885 = vld [vmem:[%s1 + $0x74] sm:$0xf]
  %v886 = vld [vmem:[%s1 + $0x78] sm:$0xf]
  %v887 = vld [vmem:[%s1 + $0x7c] sm:$0xf]
  %v920 = vunpack.c.l.b16 %v856
  %v921 = vunpack.c.l.b16 %v857
  %v922 = vunpack.c.l.b16 %v858
  %v923 = vunpack.c.l.b16 %v859
  %v924 = vunpack.c.l.b16 %v860
  %v925 = vunpack.c.l.b16 %v861
  %v926 = vunpack.c.l.b16 %v862
  %v927 = vunpack.c.l.b16 %v863
  %v928 = vunpack.c.l.b16 %v864
  %v929 = vunpack.c.l.b16 %v865
  %v930 = vunpack.c.l.b16 %v866
  %v931 = vunpack.c.l.b16 %v867
  %v932 = vunpack.c.l.b16 %v868
  %v933 = vunpack.c.l.b16 %v869
  %v934 = vunpack.c.l.b16 %v870
  %v935 = vunpack.c.l.b16 %v871
  %v936 = vunpack.c.l.b16 %v872
  %v937 = vunpack.c.l.b16 %v873
  %v938 = vunpack.c.l.b16 %v874
  %v939 = vunpack.c.l.b16 %v875
  %v940 = vunpack.c.l.b16 %v876
  %v941 = vunpack.c.l.b16 %v877
  %v942 = vunpack.c.l.b16 %v878
  %v943 = vunpack.c.l.b16 %v879
  %v944 = vunpack.c.l.b16 %v880
  %v945 = vunpack.c.l.b16 %v881
  %v946 = vunpack.c.l.b16 %v882
  %v947 = vunpack.c.l.b16 %v883
  %v948 = vunpack.c.l.b16 %v884
  %v949 = vunpack.c.l.b16 %v885
  %v950 = vunpack.c.l.b16 %v886
  %v951 = vunpack.c.l.b16 %v887
  %v952 = vpack.c.b16 %v921, %v920
  %v953 = vpack.c.b16 %v923, %v922
  %v954 = vpack.c.b16 %v925, %v924
  %v955 = vpack.c.b16 %v927, %v926
  %v956 = vpack.c.b16 %v929, %v928
  %v957 = vpack.c.b16 %v931, %v930
  %v958 = vpack.c.b16 %v933, %v932
  %v959 = vpack.c.b16 %v935, %v934
  %v960 = vpack.c.b16 %v937, %v936
  %v961 = vpack.c.b16 %v939, %v938
  %v962 = vpack.c.b16 %v941, %v940
  %v963 = vpack.c.b16 %v943, %v942
  %v964 = vpack.c.b16 %v945, %v944
  %v965 = vpack.c.b16 %v947, %v946
  %v966 = vpack.c.b16 %v949, %v948
  %v967 = vpack.c.b16 %v951, %v950
  %984 = vmatpush.bf16.msra.mxu0 %v959
  %985 = vmatpush.bf16.msra.mxu0 %v958
  %986 = vmatpush.bf16.msra.mxu0 %v957
  %987 = vmatpush.bf16.msra.mxu0 %v956
  %988 = vmatpush.bf16.msra.mxu0 %v955
  %989 = vmatpush.bf16.msra.mxu0 %v954
  %990 = vmatpush.bf16.msra.mxu0 %v953
  %991 = vmatpush.bf16.msra.mxu0 %v952
  %992 = vmatmul.bf16.gmra.mxu0 %v850
  %v993 = vpop.f32.mrf.mxu0
  %v994 = vadd.f32 %v90, %v993
  %v995 = vpop.f32.mrf.mxu0
  %996 = vdwg.mxu0
  %997 = vmatpush.bf16.msra.mxu0 %v967
  %998 = vmatpush.bf16.msra.mxu0 %v966
  %999 = vmatpush.bf16.msra.mxu0 %v965
  %1000 = vmatpush.bf16.msra.mxu0 %v964
  %1001 = vmatpush.bf16.msra.mxu0 %v963
  %1002 = vmatpush.bf16.msra.mxu0 %v962
  %1003 = vmatpush.bf16.msra.mxu0 %v961
  %1004 = vmatpush.bf16.msra.mxu0 %v960
  %1005 = vmatmul.bf16.gmra.mxu0 %v854
  %v1006 = vpop.f32.mrf.mxu0
  %v1007 = vadd.f32 %v994, %v1006
  %v1008 = vpop.f32.mrf.mxu0
  %1009 = vdwg.mxu0
  %v1010 = vmax.f32 %v1007, 0.0
  %v1011 = vpack.c.bf16 %v1010, %v1010
  %s1012 = scalar_lea.vmem %s3, 16
  %1013 = vst.msk [vmem:[%s1012] sm:$0xf] %vm216, %v1011
  %v1014 = vld [vmem:[%s817] sm:$0xf]
  %v1015 = vld [vmem:[%s817 + $0x4] sm:$0x1]
  %s1016 = scalar_lea.vmem %s0, 48
  %v1017 = vld [vmem:[%s1016] sm:$0xf]
  %v1018 = vld [vmem:[%s1016 + $0x4] sm:$0x1]
  %v1021 = vunpack.c.l.b16 %v1014
  %v1022 = vunpack.c.l.b16 %v1015
  %v1023 = vpack.c.b16 %v1022, %v1021
  %v1025 = vshrl.u32 %v1023, 16
  %v1027 = vshll.u32 %v1023, 16
  %v1029 = vrot.slane %v1027, 1
  %v1030 = vor.u32 %v1025, %v1029
  %1031 = vrot.lane.b32.xlu0 %v1030, 64
  %v1032 = vpop.permute.xlu0 %1031
  %v1035 = vunpack.c.l.b16 %v1017
  %v1036 = vunpack.c.l.b16 %v1018
  %v1037 = vpack.c.b16 %v1036, %v1035
  %v1039 = vshrl.u32 %v1037, 16
  %v1041 = vshll.u32 %v1037, 16
  %v1043 = vrot.slane %v1041, 1
  %v1044 = vor.u32 %v1039, %v1043
  %1045 = vrot.lane.b32.xlu0 %v1044, 64
  %v1046 = vpop.permute.xlu0 %1045
  %v1049 = vsel %vm48, %v1014, %v1032
  %v1053 = vsel %vm48, %v1017, %v1046
  %v1055 = vld [vmem:[%s1] sm:$0xf]
  %v1056 = vld [vmem:[%s1 + $0x4] sm:$0xf]
  %v1057 = vld [vmem:[%s1 + $0x8] sm:$0xf]
  %v1058 = vld [vmem:[%s1 + $0xc] sm:$0xf]
  %v1059 = vld [vmem:[%s1 + $0x10] sm:$0xf]
  %v1060 = vld [vmem:[%s1 + $0x14] sm:$0xf]
  %v1061 = vld [vmem:[%s1 + $0x18] sm:$0xf]
  %v1062 = vld [vmem:[%s1 + $0x1c] sm:$0xf]
  %v1063 = vld [vmem:[%s1 + $0x20] sm:$0xf]
  %v1064 = vld [vmem:[%s1 + $0x24] sm:$0xf]
  %v1065 = vld [vmem:[%s1 + $0x28] sm:$0xf]
  %v1066 = vld [vmem:[%s1 + $0x2c] sm:$0xf]
  %v1067 = vld [vmem:[%s1 + $0x30] sm:$0xf]
  %v1068 = vld [vmem:[%s1 + $0x34] sm:$0xf]
  %v1069 = vld [vmem:[%s1 + $0x38] sm:$0xf]
  %v1070 = vld [vmem:[%s1 + $0x3c] sm:$0xf]
  %v1071 = vld [vmem:[%s1 + $0x40] sm:$0xf]
  %v1072 = vld [vmem:[%s1 + $0x44] sm:$0xf]
  %v1073 = vld [vmem:[%s1 + $0x48] sm:$0xf]
  %v1074 = vld [vmem:[%s1 + $0x4c] sm:$0xf]
  %v1075 = vld [vmem:[%s1 + $0x50] sm:$0xf]
  %v1076 = vld [vmem:[%s1 + $0x54] sm:$0xf]
  %v1077 = vld [vmem:[%s1 + $0x58] sm:$0xf]
  %v1078 = vld [vmem:[%s1 + $0x5c] sm:$0xf]
  %v1079 = vld [vmem:[%s1 + $0x60] sm:$0xf]
  %v1080 = vld [vmem:[%s1 + $0x64] sm:$0xf]
  %v1081 = vld [vmem:[%s1 + $0x68] sm:$0xf]
  %v1082 = vld [vmem:[%s1 + $0x6c] sm:$0xf]
  %v1083 = vld [vmem:[%s1 + $0x70] sm:$0xf]
  %v1084 = vld [vmem:[%s1 + $0x74] sm:$0xf]
  %v1085 = vld [vmem:[%s1 + $0x78] sm:$0xf]
  %v1086 = vld [vmem:[%s1 + $0x7c] sm:$0xf]
  %v1119 = vunpack.c.l.b16 %v1055
  %v1120 = vunpack.c.l.b16 %v1056
  %v1121 = vunpack.c.l.b16 %v1057
  %v1122 = vunpack.c.l.b16 %v1058
  %v1123 = vunpack.c.l.b16 %v1059
  %v1124 = vunpack.c.l.b16 %v1060
  %v1125 = vunpack.c.l.b16 %v1061
  %v1126 = vunpack.c.l.b16 %v1062
  %v1127 = vunpack.c.l.b16 %v1063
  %v1128 = vunpack.c.l.b16 %v1064
  %v1129 = vunpack.c.l.b16 %v1065
  %v1130 = vunpack.c.l.b16 %v1066
  %v1131 = vunpack.c.l.b16 %v1067
  %v1132 = vunpack.c.l.b16 %v1068
  %v1133 = vunpack.c.l.b16 %v1069
  %v1134 = vunpack.c.l.b16 %v1070
  %v1135 = vunpack.c.l.b16 %v1071
  %v1136 = vunpack.c.l.b16 %v1072
  %v1137 = vunpack.c.l.b16 %v1073
  %v1138 = vunpack.c.l.b16 %v1074
  %v1139 = vunpack.c.l.b16 %v1075
  %v1140 = vunpack.c.l.b16 %v1076
  %v1141 = vunpack.c.l.b16 %v1077
  %v1142 = vunpack.c.l.b16 %v1078
  %v1143 = vunpack.c.l.b16 %v1079
  %v1144 = vunpack.c.l.b16 %v1080
  %v1145 = vunpack.c.l.b16 %v1081
  %v1146 = vunpack.c.l.b16 %v1082
  %v1147 = vunpack.c.l.b16 %v1083
  %v1148 = vunpack.c.l.b16 %v1084
  %v1149 = vunpack.c.l.b16 %v1085
  %v1150 = vunpack.c.l.b16 %v1086
  %v1151 = vpack.c.b16 %v1120, %v1119
  %v1152 = vpack.c.b16 %v1122, %v1121
  %v1153 = vpack.c.b16 %v1124, %v1123
  %v1154 = vpack.c.b16 %v1126, %v1125
  %v1155 = vpack.c.b16 %v1128, %v1127
  %v1156 = vpack.c.b16 %v1130, %v1129
  %v1157 = vpack.c.b16 %v1132, %v1131
  %v1158 = vpack.c.b16 %v1134, %v1133
  %v1159 = vpack.c.b16 %v1136, %v1135
  %v1160 = vpack.c.b16 %v1138, %v1137
  %v1161 = vpack.c.b16 %v1140, %v1139
  %v1162 = vpack.c.b16 %v1142, %v1141
  %v1163 = vpack.c.b16 %v1144, %v1143
  %v1164 = vpack.c.b16 %v1146, %v1145
  %v1165 = vpack.c.b16 %v1148, %v1147
  %v1166 = vpack.c.b16 %v1150, %v1149
  %1183 = vmatpush.bf16.msra.mxu0 %v1158
  %1184 = vmatpush.bf16.msra.mxu0 %v1157
  %1185 = vmatpush.bf16.msra.mxu0 %v1156
  %1186 = vmatpush.bf16.msra.mxu0 %v1155
  %1187 = vmatpush.bf16.msra.mxu0 %v1154
  %1188 = vmatpush.bf16.msra.mxu0 %v1153
  %1189 = vmatpush.bf16.msra.mxu0 %v1152
  %1190 = vmatpush.bf16.msra.mxu0 %v1151
  %1191 = vmatmul.bf16.gmra.mxu0 %v1049
  %v1192 = vpop.f32.mrf.mxu0
  %v1193 = vadd.f32 %v90, %v1192
  %v1194 = vpop.f32.mrf.mxu0
  %1195 = vdwg.mxu0
  %1196 = vmatpush.bf16.msra.mxu0 %v1166
  %1197 = vmatpush.bf16.msra.mxu0 %v1165
  %1198 = vmatpush.bf16.msra.mxu0 %v1164
  %1199 = vmatpush.bf16.msra.mxu0 %v1163
  %1200 = vmatpush.bf16.msra.mxu0 %v1162
  %1201 = vmatpush.bf16.msra.mxu0 %v1161
  %1202 = vmatpush.bf16.msra.mxu0 %v1160
  %1203 = vmatpush.bf16.msra.mxu0 %v1159
  %1204 = vmatmul.bf16.gmra.mxu0 %v1053
  %v1205 = vpop.f32.mrf.mxu0
  %v1206 = vadd.f32 %v1193, %v1205
  %v1207 = vpop.f32.mrf.mxu0
  %1208 = vdwg.mxu0
  %v1209 = vmax.f32 %v1206, 0.0
  %v1210 = vpack.c.bf16 %v1209, %v1209
  %s1211 = scalar_lea.vmem %s3, 20
  %1212 = vst.msk [vmem:[%s1211] sm:$0xf] %vm216, %v1210
  %v1213 = vld [vmem:[%s1016] sm:$0xf]
  %v1214 = vld [vmem:[%s1016 + $0x4] sm:$0x1]
  %s1215 = scalar_lea.vmem %s0, 56
  %v1216 = vld [vmem:[%s1215] sm:$0xf]
  %v1217 = vld [vmem:[%s1215 + $0x4] sm:$0x1]
  %v1220 = vunpack.c.l.b16 %v1213
  %v1221 = vunpack.c.l.b16 %v1214
  %v1222 = vpack.c.b16 %v1221, %v1220
  %v1224 = vshrl.u32 %v1222, 16
  %v1226 = vshll.u32 %v1222, 16
  %v1228 = vrot.slane %v1226, 1
  %v1229 = vor.u32 %v1224, %v1228
  %1230 = vrot.lane.b32.xlu0 %v1229, 64
  %v1231 = vpop.permute.xlu0 %1230
  %v1234 = vunpack.c.l.b16 %v1216
  %v1235 = vunpack.c.l.b16 %v1217
  %v1236 = vpack.c.b16 %v1235, %v1234
  %v1238 = vshrl.u32 %v1236, 16
  %v1240 = vshll.u32 %v1236, 16
  %v1242 = vrot.slane %v1240, 1
  %v1243 = vor.u32 %v1238, %v1242
  %1244 = vrot.lane.b32.xlu0 %v1243, 64
  %v1245 = vpop.permute.xlu0 %1244
  %v1248 = vsel %vm48, %v1213, %v1231
  %v1252 = vsel %vm48, %v1216, %v1245
  %v1254 = vld [vmem:[%s1] sm:$0xf]
  %v1255 = vld [vmem:[%s1 + $0x4] sm:$0xf]
  %v1256 = vld [vmem:[%s1 + $0x8] sm:$0xf]
  %v1257 = vld [vmem:[%s1 + $0xc] sm:$0xf]
  %v1258 = vld [vmem:[%s1 + $0x10] sm:$0xf]
  %v1259 = vld [vmem:[%s1 + $0x14] sm:$0xf]
  %v1260 = vld [vmem:[%s1 + $0x18] sm:$0xf]
  %v1261 = vld [vmem:[%s1 + $0x1c] sm:$0xf]
  %v1262 = vld [vmem:[%s1 + $0x20] sm:$0xf]
  %v1263 = vld [vmem:[%s1 + $0x24] sm:$0xf]
  %v1264 = vld [vmem:[%s1 + $0x28] sm:$0xf]
  %v1265 = vld [vmem:[%s1 + $0x2c] sm:$0xf]
  %v1266 = vld [vmem:[%s1 + $0x30] sm:$0xf]
  %v1267 = vld [vmem:[%s1 + $0x34] sm:$0xf]
  %v1268 = vld [vmem:[%s1 + $0x38] sm:$0xf]
  %v1269 = vld [vmem:[%s1 + $0x3c] sm:$0xf]
  %v1270 = vld [vmem:[%s1 + $0x40] sm:$0xf]
  %v1271 = vld [vmem:[%s1 + $0x44] sm:$0xf]
  %v1272 = vld [vmem:[%s1 + $0x48] sm:$0xf]
  %v1273 = vld [vmem:[%s1 + $0x4c] sm:$0xf]
  %v1274 = vld [vmem:[%s1 + $0x50] sm:$0xf]
  %v1275 = vld [vmem:[%s1 + $0x54] sm:$0xf]
  %v1276 = vld [vmem:[%s1 + $0x58] sm:$0xf]
  %v1277 = vld [vmem:[%s1 + $0x5c] sm:$0xf]
  %v1278 = vld [vmem:[%s1 + $0x60] sm:$0xf]
  %v1279 = vld [vmem:[%s1 + $0x64] sm:$0xf]
  %v1280 = vld [vmem:[%s1 + $0x68] sm:$0xf]
  %v1281 = vld [vmem:[%s1 + $0x6c] sm:$0xf]
  %v1282 = vld [vmem:[%s1 + $0x70] sm:$0xf]
  %v1283 = vld [vmem:[%s1 + $0x74] sm:$0xf]
  %v1284 = vld [vmem:[%s1 + $0x78] sm:$0xf]
  %v1285 = vld [vmem:[%s1 + $0x7c] sm:$0xf]
  %v1318 = vunpack.c.l.b16 %v1254
  %v1319 = vunpack.c.l.b16 %v1255
  %v1320 = vunpack.c.l.b16 %v1256
  %v1321 = vunpack.c.l.b16 %v1257
  %v1322 = vunpack.c.l.b16 %v1258
  %v1323 = vunpack.c.l.b16 %v1259
  %v1324 = vunpack.c.l.b16 %v1260
  %v1325 = vunpack.c.l.b16 %v1261
  %v1326 = vunpack.c.l.b16 %v1262
  %v1327 = vunpack.c.l.b16 %v1263
  %v1328 = vunpack.c.l.b16 %v1264
  %v1329 = vunpack.c.l.b16 %v1265
  %v1330 = vunpack.c.l.b16 %v1266
  %v1331 = vunpack.c.l.b16 %v1267
  %v1332 = vunpack.c.l.b16 %v1268
  %v1333 = vunpack.c.l.b16 %v1269
  %v1334 = vunpack.c.l.b16 %v1270
  %v1335 = vunpack.c.l.b16 %v1271
  %v1336 = vunpack.c.l.b16 %v1272
  %v1337 = vunpack.c.l.b16 %v1273
  %v1338 = vunpack.c.l.b16 %v1274
  %v1339 = vunpack.c.l.b16 %v1275
  %v1340 = vunpack.c.l.b16 %v1276
  %v1341 = vunpack.c.l.b16 %v1277
  %v1342 = vunpack.c.l.b16 %v1278
  %v1343 = vunpack.c.l.b16 %v1279
  %v1344 = vunpack.c.l.b16 %v1280
  %v1345 = vunpack.c.l.b16 %v1281
  %v1346 = vunpack.c.l.b16 %v1282
  %v1347 = vunpack.c.l.b16 %v1283
  %v1348 = vunpack.c.l.b16 %v1284
  %v1349 = vunpack.c.l.b16 %v1285
  %v1350 = vpack.c.b16 %v1319, %v1318
  %v1351 = vpack.c.b16 %v1321, %v1320
  %v1352 = vpack.c.b16 %v1323, %v1322
  %v1353 = vpack.c.b16 %v1325, %v1324
  %v1354 = vpack.c.b16 %v1327, %v1326
  %v1355 = vpack.c.b16 %v1329, %v1328
  %v1356 = vpack.c.b16 %v1331, %v1330
  %v1357 = vpack.c.b16 %v1333, %v1332
  %v1358 = vpack.c.b16 %v1335, %v1334
  %v1359 = vpack.c.b16 %v1337, %v1336
  %v1360 = vpack.c.b16 %v1339, %v1338
  %v1361 = vpack.c.b16 %v1341, %v1340
  %v1362 = vpack.c.b16 %v1343, %v1342
  %v1363 = vpack.c.b16 %v1345, %v1344
  %v1364 = vpack.c.b16 %v1347, %v1346
  %v1365 = vpack.c.b16 %v1349, %v1348
  %1382 = vmatpush.bf16.msra.mxu0 %v1357
  %1383 = vmatpush.bf16.msra.mxu0 %v1356
  %1384 = vmatpush.bf16.msra.mxu0 %v1355
  %1385 = vmatpush.bf16.msra.mxu0 %v1354
  %1386 = vmatpush.bf16.msra.mxu0 %v1353
  %1387 = vmatpush.bf16.msra.mxu0 %v1352
  %1388 = vmatpush.bf16.msra.mxu0 %v1351
  %1389 = vmatpush.bf16.msra.mxu0 %v1350
  %1390 = vmatmul.bf16.gmra.mxu0 %v1248
  %v1391 = vpop.f32.mrf.mxu0
  %v1392 = vadd.f32 %v90, %v1391
  %v1393 = vpop.f32.mrf.mxu0
  %1394 = vdwg.mxu0
  %1395 = vmatpush.bf16.msra.mxu0 %v1365
  %1396 = vmatpush.bf16.msra.mxu0 %v1364
  %1397 = vmatpush.bf16.msra.mxu0 %v1363
  %1398 = vmatpush.bf16.msra.mxu0 %v1362
  %1399 = vmatpush.bf16.msra.mxu0 %v1361
  %1400 = vmatpush.bf16.msra.mxu0 %v1360
  %1401 = vmatpush.bf16.msra.mxu0 %v1359
  %1402 = vmatpush.bf16.msra.mxu0 %v1358
  %1403 = vmatmul.bf16.gmra.mxu0 %v1252
  %v1404 = vpop.f32.mrf.mxu0
  %v1405 = vadd.f32 %v1392, %v1404
  %v1406 = vpop.f32.mrf.mxu0
  %1407 = vdwg.mxu0
  %v1408 = vmax.f32 %v1405, 0.0
  %v1409 = vpack.c.bf16 %v1408, %v1408
  %s1410 = scalar_lea.vmem %s3, 24
  %1411 = vst.msk [vmem:[%s1410] sm:$0xf] %vm216, %v1409
  %v1412 = vld [vmem:[%s1215] sm:$0xf]
  %v1413 = vld [vmem:[%s1215 + $0x4] sm:$0x1]
  %s1414 = scalar_lea.vmem %s0, 64
  %v1415 = vld [vmem:[%s1414] sm:$0xf]
  %v1416 = vld [vmem:[%s1414 + $0x4] sm:$0x1]
  %v1419 = vunpack.c.l.b16 %v1412
  %v1420 = vunpack.c.l.b16 %v1413
  %v1421 = vpack.c.b16 %v1420, %v1419
  %v1423 = vshrl.u32 %v1421, 16
  %v1425 = vshll.u32 %v1421, 16
  %v1427 = vrot.slane %v1425, 1
  %v1428 = vor.u32 %v1423, %v1427
  %1429 = vrot.lane.b32.xlu0 %v1428, 64
  %v1430 = vpop.permute.xlu0 %1429
  %v1433 = vunpack.c.l.b16 %v1415
  %v1434 = vunpack.c.l.b16 %v1416
  %v1435 = vpack.c.b16 %v1434, %v1433
  %v1437 = vshrl.u32 %v1435, 16
  %v1439 = vshll.u32 %v1435, 16
  %v1441 = vrot.slane %v1439, 1
  %v1442 = vor.u32 %v1437, %v1441
  %1443 = vrot.lane.b32.xlu0 %v1442, 64
  %v1444 = vpop.permute.xlu0 %1443
  %v1447 = vsel %vm48, %v1412, %v1430
  %v1451 = vsel %vm48, %v1415, %v1444
  %v1453 = vld [vmem:[%s1] sm:$0xf]
  %v1454 = vld [vmem:[%s1 + $0x4] sm:$0xf]
  %v1455 = vld [vmem:[%s1 + $0x8] sm:$0xf]
  %v1456 = vld [vmem:[%s1 + $0xc] sm:$0xf]
  %v1457 = vld [vmem:[%s1 + $0x10] sm:$0xf]
  %v1458 = vld [vmem:[%s1 + $0x14] sm:$0xf]
  %v1459 = vld [vmem:[%s1 + $0x18] sm:$0xf]
  %v1460 = vld [vmem:[%s1 + $0x1c] sm:$0xf]
  %v1461 = vld [vmem:[%s1 + $0x20] sm:$0xf]
  %v1462 = vld [vmem:[%s1 + $0x24] sm:$0xf]
  %v1463 = vld [vmem:[%s1 + $0x28] sm:$0xf]
  %v1464 = vld [vmem:[%s1 + $0x2c] sm:$0xf]
  %v1465 = vld [vmem:[%s1 + $0x30] sm:$0xf]
  %v1466 = vld [vmem:[%s1 + $0x34] sm:$0xf]
  %v1467 = vld [vmem:[%s1 + $0x38] sm:$0xf]
  %v1468 = vld [vmem:[%s1 + $0x3c] sm:$0xf]
  %v1469 = vld [vmem:[%s1 + $0x40] sm:$0xf]
  %v1470 = vld [vmem:[%s1 + $0x44] sm:$0xf]
  %v1471 = vld [vmem:[%s1 + $0x48] sm:$0xf]
  %v1472 = vld [vmem:[%s1 + $0x4c] sm:$0xf]
  %v1473 = vld [vmem:[%s1 + $0x50] sm:$0xf]
  %v1474 = vld [vmem:[%s1 + $0x54] sm:$0xf]
  %v1475 = vld [vmem:[%s1 + $0x58] sm:$0xf]
  %v1476 = vld [vmem:[%s1 + $0x5c] sm:$0xf]
  %v1477 = vld [vmem:[%s1 + $0x60] sm:$0xf]
  %v1478 = vld [vmem:[%s1 + $0x64] sm:$0xf]
  %v1479 = vld [vmem:[%s1 + $0x68] sm:$0xf]
  %v1480 = vld [vmem:[%s1 + $0x6c] sm:$0xf]
  %v1481 = vld [vmem:[%s1 + $0x70] sm:$0xf]
  %v1482 = vld [vmem:[%s1 + $0x74] sm:$0xf]
  %v1483 = vld [vmem:[%s1 + $0x78] sm:$0xf]
  %v1484 = vld [vmem:[%s1 + $0x7c] sm:$0xf]
  %v1517 = vunpack.c.l.b16 %v1453
  %v1518 = vunpack.c.l.b16 %v1454
  %v1519 = vunpack.c.l.b16 %v1455
  %v1520 = vunpack.c.l.b16 %v1456
  %v1521 = vunpack.c.l.b16 %v1457
  %v1522 = vunpack.c.l.b16 %v1458
  %v1523 = vunpack.c.l.b16 %v1459
  %v1524 = vunpack.c.l.b16 %v1460
  %v1525 = vunpack.c.l.b16 %v1461
  %v1526 = vunpack.c.l.b16 %v1462
  %v1527 = vunpack.c.l.b16 %v1463
  %v1528 = vunpack.c.l.b16 %v1464
  %v1529 = vunpack.c.l.b16 %v1465
  %v1530 = vunpack.c.l.b16 %v1466
  %v1531 = vunpack.c.l.b16 %v1467
  %v1532 = vunpack.c.l.b16 %v1468
  %v1533 = vunpack.c.l.b16 %v1469
  %v1534 = vunpack.c.l.b16 %v1470
  %v1535 = vunpack.c.l.b16 %v1471
  %v1536 = vunpack.c.l.b16 %v1472
  %v1537 = vunpack.c.l.b16 %v1473
  %v1538 = vunpack.c.l.b16 %v1474
  %v1539 = vunpack.c.l.b16 %v1475
  %v1540 = vunpack.c.l.b16 %v1476
  %v1541 = vunpack.c.l.b16 %v1477
  %v1542 = vunpack.c.l.b16 %v1478
  %v1543 = vunpack.c.l.b16 %v1479
  %v1544 = vunpack.c.l.b16 %v1480
  %v1545 = vunpack.c.l.b16 %v1481
  %v1546 = vunpack.c.l.b16 %v1482
  %v1547 = vunpack.c.l.b16 %v1483
  %v1548 = vunpack.c.l.b16 %v1484
  %v1549 = vpack.c.b16 %v1518, %v1517
  %v1550 = vpack.c.b16 %v1520, %v1519
  %v1551 = vpack.c.b16 %v1522, %v1521
  %v1552 = vpack.c.b16 %v1524, %v1523
  %v1553 = vpack.c.b16 %v1526, %v1525
  %v1554 = vpack.c.b16 %v1528, %v1527
  %v1555 = vpack.c.b16 %v1530, %v1529
  %v1556 = vpack.c.b16 %v1532, %v1531
  %v1557 = vpack.c.b16 %v1534, %v1533
  %v1558 = vpack.c.b16 %v1536, %v1535
  %v1559 = vpack.c.b16 %v1538, %v1537
  %v1560 = vpack.c.b16 %v1540, %v1539
  %v1561 = vpack.c.b16 %v1542, %v1541
  %v1562 = vpack.c.b16 %v1544, %v1543
  %v1563 = vpack.c.b16 %v1546, %v1545
  %v1564 = vpack.c.b16 %v1548, %v1547
  %1581 = vmatpush.bf16.msra.mxu0 %v1556
  %1582 = vmatpush.bf16.msra.mxu0 %v1555
  %1583 = vmatpush.bf16.msra.mxu0 %v1554
  %1584 = vmatpush.bf16.msra.mxu0 %v1553
  %1585 = vmatpush.bf16.msra.mxu0 %v1552
  %1586 = vmatpush.bf16.msra.mxu0 %v1551
  %1587 = vmatpush.bf16.msra.mxu0 %v1550
  %1588 = vmatpush.bf16.msra.mxu0 %v1549
  %1589 = vmatmul.bf16.gmra.mxu0 %v1447
  %v1590 = vpop.f32.mrf.mxu0
  %v1591 = vadd.f32 %v90, %v1590
  %v1592 = vpop.f32.mrf.mxu0
  %1593 = vdwg.mxu0
  %1594 = vmatpush.bf16.msra.mxu0 %v1564
  %1595 = vmatpush.bf16.msra.mxu0 %v1563
  %1596 = vmatpush.bf16.msra.mxu0 %v1562
  %1597 = vmatpush.bf16.msra.mxu0 %v1561
  %1598 = vmatpush.bf16.msra.mxu0 %v1560
  %1599 = vmatpush.bf16.msra.mxu0 %v1559
  %1600 = vmatpush.bf16.msra.mxu0 %v1558
  %1601 = vmatpush.bf16.msra.mxu0 %v1557
  %1602 = vmatmul.bf16.gmra.mxu0 %v1451
  %v1603 = vpop.f32.mrf.mxu0
  %v1604 = vadd.f32 %v1591, %v1603
  %v1605 = vpop.f32.mrf.mxu0
  %1606 = vdwg.mxu0
  %v1607 = vmax.f32 %v1604, 0.0
  %v1608 = vpack.c.bf16 %v1607, %v1607
  %s1609 = scalar_lea.vmem %s3, 28
  %1610 = vst.msk [vmem:[%s1609] sm:$0xf] %vm216, %v1608
  %s1611 = scalar_lea.vmem %s0, 72
  %v1612 = vld [vmem:[%s1611] sm:$0xf]
  %v1613 = vld [vmem:[%s1611 + $0x4] sm:$0x1]
  %s1614 = scalar_lea.vmem %s0, 80
  %v1615 = vld [vmem:[%s1614] sm:$0xf]
  %v1616 = vld [vmem:[%s1614 + $0x4] sm:$0x1]
  %v1619 = vunpack.c.l.b16 %v1612
  %v1620 = vunpack.c.l.b16 %v1613
  %v1621 = vpack.c.b16 %v1620, %v1619
  %v1623 = vshrl.u32 %v1621, 16
  %v1625 = vshll.u32 %v1621, 16
  %v1627 = vrot.slane %v1625, 1
  %v1628 = vor.u32 %v1623, %v1627
  %1629 = vrot.lane.b32.xlu0 %v1628, 64
  %v1630 = vpop.permute.xlu0 %1629
  %v1633 = vunpack.c.l.b16 %v1615
  %v1634 = vunpack.c.l.b16 %v1616
  %v1635 = vpack.c.b16 %v1634, %v1633
  %v1637 = vshrl.u32 %v1635, 16
  %v1639 = vshll.u32 %v1635, 16
  %v1641 = vrot.slane %v1639, 1
  %v1642 = vor.u32 %v1637, %v1641
  %1643 = vrot.lane.b32.xlu0 %v1642, 64
  %v1644 = vpop.permute.xlu0 %1643
  %v1647 = vsel %vm48, %v1612, %v1630
  %v1651 = vsel %vm48, %v1615, %v1644
  %v1653 = vld [vmem:[%s1] sm:$0xf]
  %v1654 = vld [vmem:[%s1 + $0x4] sm:$0xf]
  %v1655 = vld [vmem:[%s1 + $0x8] sm:$0xf]
  %v1656 = vld [vmem:[%s1 + $0xc] sm:$0xf]
  %v1657 = vld [vmem:[%s1 + $0x10] sm:$0xf]
  %v1658 = vld [vmem:[%s1 + $0x14] sm:$0xf]
  %v1659 = vld [vmem:[%s1 + $0x18] sm:$0xf]
  %v1660 = vld [vmem:[%s1 + $0x1c] sm:$0xf]
  %v1661 = vld [vmem:[%s1 + $0x20] sm:$0xf]
  %v1662 = vld [vmem:[%s1 + $0x24] sm:$0xf]
  %v1663 = vld [vmem:[%s1 + $0x28] sm:$0xf]
  %v1664 = vld [vmem:[%s1 + $0x2c] sm:$0xf]
  %v1665 = vld [vmem:[%s1 + $0x30] sm:$0xf]
  %v1666 = vld [vmem:[%s1 + $0x34] sm:$0xf]
  %v1667 = vld [vmem:[%s1 + $0x38] sm:$0xf]
  %v1668 = vld [vmem:[%s1 + $0x3c] sm:$0xf]
  %v1669 = vld [vmem:[%s1 + $0x40] sm:$0xf]
  %v1670 = vld [vmem:[%s1 + $0x44] sm:$0xf]
  %v1671 = vld [vmem:[%s1 + $0x48] sm:$0xf]
  %v1672 = vld [vmem:[%s1 + $0x4c] sm:$0xf]
  %v1673 = vld [vmem:[%s1 + $0x50] sm:$0xf]
  %v1674 = vld [vmem:[%s1 + $0x54] sm:$0xf]
  %v1675 = vld [vmem:[%s1 + $0x58] sm:$0xf]
  %v1676 = vld [vmem:[%s1 + $0x5c] sm:$0xf]
  %v1677 = vld [vmem:[%s1 + $0x60] sm:$0xf]
  %v1678 = vld [vmem:[%s1 + $0x64] sm:$0xf]
  %v1679 = vld [vmem:[%s1 + $0x68] sm:$0xf]
  %v1680 = vld [vmem:[%s1 + $0x6c] sm:$0xf]
  %v1681 = vld [vmem:[%s1 + $0x70] sm:$0xf]
  %v1682 = vld [vmem:[%s1 + $0x74] sm:$0xf]
  %v1683 = vld [vmem:[%s1 + $0x78] sm:$0xf]
  %v1684 = vld [vmem:[%s1 + $0x7c] sm:$0xf]
  %v1717 = vunpack.c.l.b16 %v1653
  %v1718 = vunpack.c.l.b16 %v1654
  %v1719 = vunpack.c.l.b16 %v1655
  %v1720 = vunpack.c.l.b16 %v1656
  %v1721 = vunpack.c.l.b16 %v1657
  %v1722 = vunpack.c.l.b16 %v1658
  %v1723 = vunpack.c.l.b16 %v1659
  %v1724 = vunpack.c.l.b16 %v1660
  %v1725 = vunpack.c.l.b16 %v1661
  %v1726 = vunpack.c.l.b16 %v1662
  %v1727 = vunpack.c.l.b16 %v1663
  %v1728 = vunpack.c.l.b16 %v1664
  %v1729 = vunpack.c.l.b16 %v1665
  %v1730 = vunpack.c.l.b16 %v1666
  %v1731 = vunpack.c.l.b16 %v1667
  %v1732 = vunpack.c.l.b16 %v1668
  %v1733 = vunpack.c.l.b16 %v1669
  %v1734 = vunpack.c.l.b16 %v1670
  %v1735 = vunpack.c.l.b16 %v1671
  %v1736 = vunpack.c.l.b16 %v1672
  %v1737 = vunpack.c.l.b16 %v1673
  %v1738 = vunpack.c.l.b16 %v1674
  %v1739 = vunpack.c.l.b16 %v1675
  %v1740 = vunpack.c.l.b16 %v1676
  %v1741 = vunpack.c.l.b16 %v1677
  %v1742 = vunpack.c.l.b16 %v1678
  %v1743 = vunpack.c.l.b16 %v1679
  %v1744 = vunpack.c.l.b16 %v1680
  %v1745 = vunpack.c.l.b16 %v1681
  %v1746 = vunpack.c.l.b16 %v1682
  %v1747 = vunpack.c.l.b16 %v1683
  %v1748 = vunpack.c.l.b16 %v1684
  %v1749 = vpack.c.b16 %v1718, %v1717
  %v1750 = vpack.c.b16 %v1720, %v1719
  %v1751 = vpack.c.b16 %v1722, %v1721
  %v1752 = vpack.c.b16 %v1724, %v1723
  %v1753 = vpack.c.b16 %v1726, %v1725
  %v1754 = vpack.c.b16 %v1728, %v1727
  %v1755 = vpack.c.b16 %v1730, %v1729
  %v1756 = vpack.c.b16 %v1732, %v1731
  %v1757 = vpack.c.b16 %v1734, %v1733
  %v1758 = vpack.c.b16 %v1736, %v1735
  %v1759 = vpack.c.b16 %v1738, %v1737
  %v1760 = vpack.c.b16 %v1740, %v1739
  %v1761 = vpack.c.b16 %v1742, %v1741
  %v1762 = vpack.c.b16 %v1744, %v1743
  %v1763 = vpack.c.b16 %v1746, %v1745
  %v1764 = vpack.c.b16 %v1748, %v1747
  %1781 = vmatpush.bf16.msra.mxu0 %v1756
  %1782 = vmatpush.bf16.msra.mxu0 %v1755
  %1783 = vmatpush.bf16.msra.mxu0 %v1754
  %1784 = vmatpush.bf16.msra.mxu0 %v1753
  %1785 = vmatpush.bf16.msra.mxu0 %v1752
  %1786 = vmatpush.bf16.msra.mxu0 %v1751
  %1787 = vmatpush.bf16.msra.mxu0 %v1750
  %1788 = vmatpush.bf16.msra.mxu0 %v1749
  %1789 = vmatmul.bf16.gmra.mxu0 %v1647
  %v1790 = vpop.f32.mrf.mxu0
  %v1791 = vadd.f32 %v90, %v1790
  %v1792 = vpop.f32.mrf.mxu0
  %1793 = vdwg.mxu0
  %1794 = vmatpush.bf16.msra.mxu0 %v1764
  %1795 = vmatpush.bf16.msra.mxu0 %v1763
  %1796 = vmatpush.bf16.msra.mxu0 %v1762
  %1797 = vmatpush.bf16.msra.mxu0 %v1761
  %1798 = vmatpush.bf16.msra.mxu0 %v1760
  %1799 = vmatpush.bf16.msra.mxu0 %v1759
  %1800 = vmatpush.bf16.msra.mxu0 %v1758
  %1801 = vmatpush.bf16.msra.mxu0 %v1757
  %1802 = vmatmul.bf16.gmra.mxu0 %v1651
  %v1803 = vpop.f32.mrf.mxu0
  %v1804 = vadd.f32 %v1791, %v1803
  %v1805 = vpop.f32.mrf.mxu0
  %1806 = vdwg.mxu0
  %v1807 = vmax.f32 %v1804, 0.0
  %v1808 = vpack.c.bf16 %v1807, %v1807
  %s1809 = scalar_lea.vmem %s3, 32
  %1810 = vst.msk [vmem:[%s1809] sm:$0xf] %vm216, %v1808
  %v1811 = vld [vmem:[%s1614] sm:$0xf]
  %v1812 = vld [vmem:[%s1614 + $0x4] sm:$0x1]
  %s1813 = scalar_lea.vmem %s0, 88
  %v1814 = vld [vmem:[%s1813] sm:$0xf]
  %v1815 = vld [vmem:[%s1813 + $0x4] sm:$0x1]
  %v1818 = vunpack.c.l.b16 %v1811
  %v1819 = vunpack.c.l.b16 %v1812
  %v1820 = vpack.c.b16 %v1819, %v1818
  %v1822 = vshrl.u32 %v1820, 16
  %v1824 = vshll.u32 %v1820, 16
  %v1826 = vrot.slane %v1824, 1
  %v1827 = vor.u32 %v1822, %v1826
  %1828 = vrot.lane.b32.xlu0 %v1827, 64
  %v1829 = vpop.permute.xlu0 %1828
  %v1832 = vunpack.c.l.b16 %v1814
  %v1833 = vunpack.c.l.b16 %v1815
  %v1834 = vpack.c.b16 %v1833, %v1832
  %v1836 = vshrl.u32 %v1834, 16
  %v1838 = vshll.u32 %v1834, 16
  %v1840 = vrot.slane %v1838, 1
  %v1841 = vor.u32 %v1836, %v1840
  %1842 = vrot.lane.b32.xlu0 %v1841, 64
  %v1843 = vpop.permute.xlu0 %1842
  %v1846 = vsel %vm48, %v1811, %v1829
  %v1850 = vsel %vm48, %v1814, %v1843
  %v1852 = vld [vmem:[%s1] sm:$0xf]
  %v1853 = vld [vmem:[%s1 + $0x4] sm:$0xf]
  %v1854 = vld [vmem:[%s1 + $0x8] sm:$0xf]
  %v1855 = vld [vmem:[%s1 + $0xc] sm:$0xf]
  %v1856 = vld [vmem:[%s1 + $0x10] sm:$0xf]
  %v1857 = vld [vmem:[%s1 + $0x14] sm:$0xf]
  %v1858 = vld [vmem:[%s1 + $0x18] sm:$0xf]
  %v1859 = vld [vmem:[%s1 + $0x1c] sm:$0xf]
  %v1860 = vld [vmem:[%s1 + $0x20] sm:$0xf]
  %v1861 = vld [vmem:[%s1 + $0x24] sm:$0xf]
  %v1862 = vld [vmem:[%s1 + $0x28] sm:$0xf]
  %v1863 = vld [vmem:[%s1 + $0x2c] sm:$0xf]
  %v1864 = vld [vmem:[%s1 + $0x30] sm:$0xf]
  %v1865 = vld [vmem:[%s1 + $0x34] sm:$0xf]
  %v1866 = vld [vmem:[%s1 + $0x38] sm:$0xf]
  %v1867 = vld [vmem:[%s1 + $0x3c] sm:$0xf]
  %v1868 = vld [vmem:[%s1 + $0x40] sm:$0xf]
  %v1869 = vld [vmem:[%s1 + $0x44] sm:$0xf]
  %v1870 = vld [vmem:[%s1 + $0x48] sm:$0xf]
  %v1871 = vld [vmem:[%s1 + $0x4c] sm:$0xf]
  %v1872 = vld [vmem:[%s1 + $0x50] sm:$0xf]
  %v1873 = vld [vmem:[%s1 + $0x54] sm:$0xf]
  %v1874 = vld [vmem:[%s1 + $0x58] sm:$0xf]
  %v1875 = vld [vmem:[%s1 + $0x5c] sm:$0xf]
  %v1876 = vld [vmem:[%s1 + $0x60] sm:$0xf]
  %v1877 = vld [vmem:[%s1 + $0x64] sm:$0xf]
  %v1878 = vld [vmem:[%s1 + $0x68] sm:$0xf]
  %v1879 = vld [vmem:[%s1 + $0x6c] sm:$0xf]
  %v1880 = vld [vmem:[%s1 + $0x70] sm:$0xf]
  %v1881 = vld [vmem:[%s1 + $0x74] sm:$0xf]
  %v1882 = vld [vmem:[%s1 + $0x78] sm:$0xf]
  %v1883 = vld [vmem:[%s1 + $0x7c] sm:$0xf]
  %v1916 = vunpack.c.l.b16 %v1852
  %v1917 = vunpack.c.l.b16 %v1853
  %v1918 = vunpack.c.l.b16 %v1854
  %v1919 = vunpack.c.l.b16 %v1855
  %v1920 = vunpack.c.l.b16 %v1856
  %v1921 = vunpack.c.l.b16 %v1857
  %v1922 = vunpack.c.l.b16 %v1858
  %v1923 = vunpack.c.l.b16 %v1859
  %v1924 = vunpack.c.l.b16 %v1860
  %v1925 = vunpack.c.l.b16 %v1861
  %v1926 = vunpack.c.l.b16 %v1862
  %v1927 = vunpack.c.l.b16 %v1863
  %v1928 = vunpack.c.l.b16 %v1864
  %v1929 = vunpack.c.l.b16 %v1865
  %v1930 = vunpack.c.l.b16 %v1866
  %v1931 = vunpack.c.l.b16 %v1867
  %v1932 = vunpack.c.l.b16 %v1868
  %v1933 = vunpack.c.l.b16 %v1869
  %v1934 = vunpack.c.l.b16 %v1870
  %v1935 = vunpack.c.l.b16 %v1871
  %v1936 = vunpack.c.l.b16 %v1872
  %v1937 = vunpack.c.l.b16 %v1873
  %v1938 = vunpack.c.l.b16 %v1874
  %v1939 = vunpack.c.l.b16 %v1875
  %v1940 = vunpack.c.l.b16 %v1876
  %v1941 = vunpack.c.l.b16 %v1877
  %v1942 = vunpack.c.l.b16 %v1878
  %v1943 = vunpack.c.l.b16 %v1879
  %v1944 = vunpack.c.l.b16 %v1880
  %v1945 = vunpack.c.l.b16 %v1881
  %v1946 = vunpack.c.l.b16 %v1882
  %v1947 = vunpack.c.l.b16 %v1883
  %v1948 = vpack.c.b16 %v1917, %v1916
  %v1949 = vpack.c.b16 %v1919, %v1918
  %v1950 = vpack.c.b16 %v1921, %v1920
  %v1951 = vpack.c.b16 %v1923, %v1922
  %v1952 = vpack.c.b16 %v1925, %v1924
  %v1953 = vpack.c.b16 %v1927, %v1926
  %v1954 = vpack.c.b16 %v1929, %v1928
  %v1955 = vpack.c.b16 %v1931, %v1930
  %v1956 = vpack.c.b16 %v1933, %v1932
  %v1957 = vpack.c.b16 %v1935, %v1934
  %v1958 = vpack.c.b16 %v1937, %v1936
  %v1959 = vpack.c.b16 %v1939, %v1938
  %v1960 = vpack.c.b16 %v1941, %v1940
  %v1961 = vpack.c.b16 %v1943, %v1942
  %v1962 = vpack.c.b16 %v1945, %v1944
  %v1963 = vpack.c.b16 %v1947, %v1946
  %1980 = vmatpush.bf16.msra.mxu0 %v1955
  %1981 = vmatpush.bf16.msra.mxu0 %v1954
  %1982 = vmatpush.bf16.msra.mxu0 %v1953
  %1983 = vmatpush.bf16.msra.mxu0 %v1952
  %1984 = vmatpush.bf16.msra.mxu0 %v1951
  %1985 = vmatpush.bf16.msra.mxu0 %v1950
  %1986 = vmatpush.bf16.msra.mxu0 %v1949
  %1987 = vmatpush.bf16.msra.mxu0 %v1948
  %1988 = vmatmul.bf16.gmra.mxu0 %v1846
  %v1989 = vpop.f32.mrf.mxu0
  %v1990 = vadd.f32 %v90, %v1989
  %v1991 = vpop.f32.mrf.mxu0
  %1992 = vdwg.mxu0
  %1993 = vmatpush.bf16.msra.mxu0 %v1963
  %1994 = vmatpush.bf16.msra.mxu0 %v1962
  %1995 = vmatpush.bf16.msra.mxu0 %v1961
  %1996 = vmatpush.bf16.msra.mxu0 %v1960
  %1997 = vmatpush.bf16.msra.mxu0 %v1959
  %1998 = vmatpush.bf16.msra.mxu0 %v1958
  %1999 = vmatpush.bf16.msra.mxu0 %v1957
  %2000 = vmatpush.bf16.msra.mxu0 %v1956
  %2001 = vmatmul.bf16.gmra.mxu0 %v1850
  %v2002 = vpop.f32.mrf.mxu0
  %v2003 = vadd.f32 %v1990, %v2002
  %v2004 = vpop.f32.mrf.mxu0
  %2005 = vdwg.mxu0
  %v2006 = vmax.f32 %v2003, 0.0
  %v2007 = vpack.c.bf16 %v2006, %v2006
  %s2008 = scalar_lea.vmem %s3, 36
  %2009 = vst.msk [vmem:[%s2008] sm:$0xf] %vm216, %v2007
  %v2010 = vld [vmem:[%s1813] sm:$0xf]
  %v2011 = vld [vmem:[%s1813 + $0x4] sm:$0x1]
  %s2012 = scalar_lea.vmem %s0, 96
  %v2013 = vld [vmem:[%s2012] sm:$0xf]
  %v2014 = vld [vmem:[%s2012 + $0x4] sm:$0x1]
  %v2017 = vunpack.c.l.b16 %v2010
  %v2018 = vunpack.c.l.b16 %v2011
  %v2019 = vpack.c.b16 %v2018, %v2017
  %v2021 = vshrl.u32 %v2019, 16
  %v2023 = vshll.u32 %v2019, 16
  %v2025 = vrot.slane %v2023, 1
  %v2026 = vor.u32 %v2021, %v2025
  %2027 = vrot.lane.b32.xlu0 %v2026, 64
  %v2028 = vpop.permute.xlu0 %2027
  %v2031 = vunpack.c.l.b16 %v2013
  %v2032 = vunpack.c.l.b16 %v2014
  %v2033 = vpack.c.b16 %v2032, %v2031
  %v2035 = vshrl.u32 %v2033, 16
  %v2037 = vshll.u32 %v2033, 16
  %v2039 = vrot.slane %v2037, 1
  %v2040 = vor.u32 %v2035, %v2039
  %2041 = vrot.lane.b32.xlu0 %v2040, 64
  %v2042 = vpop.permute.xlu0 %2041
  %v2045 = vsel %vm48, %v2010, %v2028
  %v2049 = vsel %vm48, %v2013, %v2042
  %v2051 = vld [vmem:[%s1] sm:$0xf]
  %v2052 = vld [vmem:[%s1 + $0x4] sm:$0xf]
  %v2053 = vld [vmem:[%s1 + $0x8] sm:$0xf]
  %v2054 = vld [vmem:[%s1 + $0xc] sm:$0xf]
  %v2055 = vld [vmem:[%s1 + $0x10] sm:$0xf]
  %v2056 = vld [vmem:[%s1 + $0x14] sm:$0xf]
  %v2057 = vld [vmem:[%s1 + $0x18] sm:$0xf]
  %v2058 = vld [vmem:[%s1 + $0x1c] sm:$0xf]
  %v2059 = vld [vmem:[%s1 + $0x20] sm:$0xf]
  %v2060 = vld [vmem:[%s1 + $0x24] sm:$0xf]
  %v2061 = vld [vmem:[%s1 + $0x28] sm:$0xf]
  %v2062 = vld [vmem:[%s1 + $0x2c] sm:$0xf]
  %v2063 = vld [vmem:[%s1 + $0x30] sm:$0xf]
  %v2064 = vld [vmem:[%s1 + $0x34] sm:$0xf]
  %v2065 = vld [vmem:[%s1 + $0x38] sm:$0xf]
  %v2066 = vld [vmem:[%s1 + $0x3c] sm:$0xf]
  %v2067 = vld [vmem:[%s1 + $0x40] sm:$0xf]
  %v2068 = vld [vmem:[%s1 + $0x44] sm:$0xf]
  %v2069 = vld [vmem:[%s1 + $0x48] sm:$0xf]
  %v2070 = vld [vmem:[%s1 + $0x4c] sm:$0xf]
  %v2071 = vld [vmem:[%s1 + $0x50] sm:$0xf]
  %v2072 = vld [vmem:[%s1 + $0x54] sm:$0xf]
  %v2073 = vld [vmem:[%s1 + $0x58] sm:$0xf]
  %v2074 = vld [vmem:[%s1 + $0x5c] sm:$0xf]
  %v2075 = vld [vmem:[%s1 + $0x60] sm:$0xf]
  %v2076 = vld [vmem:[%s1 + $0x64] sm:$0xf]
  %v2077 = vld [vmem:[%s1 + $0x68] sm:$0xf]
  %v2078 = vld [vmem:[%s1 + $0x6c] sm:$0xf]
  %v2079 = vld [vmem:[%s1 + $0x70] sm:$0xf]
  %v2080 = vld [vmem:[%s1 + $0x74] sm:$0xf]
  %v2081 = vld [vmem:[%s1 + $0x78] sm:$0xf]
  %v2082 = vld [vmem:[%s1 + $0x7c] sm:$0xf]
  %v2115 = vunpack.c.l.b16 %v2051
  %v2116 = vunpack.c.l.b16 %v2052
  %v2117 = vunpack.c.l.b16 %v2053
  %v2118 = vunpack.c.l.b16 %v2054
  %v2119 = vunpack.c.l.b16 %v2055
  %v2120 = vunpack.c.l.b16 %v2056
  %v2121 = vunpack.c.l.b16 %v2057
  %v2122 = vunpack.c.l.b16 %v2058
  %v2123 = vunpack.c.l.b16 %v2059
  %v2124 = vunpack.c.l.b16 %v2060
  %v2125 = vunpack.c.l.b16 %v2061
  %v2126 = vunpack.c.l.b16 %v2062
  %v2127 = vunpack.c.l.b16 %v2063
  %v2128 = vunpack.c.l.b16 %v2064
  %v2129 = vunpack.c.l.b16 %v2065
  %v2130 = vunpack.c.l.b16 %v2066
  %v2131 = vunpack.c.l.b16 %v2067
  %v2132 = vunpack.c.l.b16 %v2068
  %v2133 = vunpack.c.l.b16 %v2069
  %v2134 = vunpack.c.l.b16 %v2070
  %v2135 = vunpack.c.l.b16 %v2071
  %v2136 = vunpack.c.l.b16 %v2072
  %v2137 = vunpack.c.l.b16 %v2073
  %v2138 = vunpack.c.l.b16 %v2074
  %v2139 = vunpack.c.l.b16 %v2075
  %v2140 = vunpack.c.l.b16 %v2076
  %v2141 = vunpack.c.l.b16 %v2077
  %v2142 = vunpack.c.l.b16 %v2078
  %v2143 = vunpack.c.l.b16 %v2079
  %v2144 = vunpack.c.l.b16 %v2080
  %v2145 = vunpack.c.l.b16 %v2081
  %v2146 = vunpack.c.l.b16 %v2082
  %v2147 = vpack.c.b16 %v2116, %v2115
  %v2148 = vpack.c.b16 %v2118, %v2117
  %v2149 = vpack.c.b16 %v2120, %v2119
  %v2150 = vpack.c.b16 %v2122, %v2121
  %v2151 = vpack.c.b16 %v2124, %v2123
  %v2152 = vpack.c.b16 %v2126, %v2125
  %v2153 = vpack.c.b16 %v2128, %v2127
  %v2154 = vpack.c.b16 %v2130, %v2129
  %v2155 = vpack.c.b16 %v2132, %v2131
  %v2156 = vpack.c.b16 %v2134, %v2133
  %v2157 = vpack.c.b16 %v2136, %v2135
  %v2158 = vpack.c.b16 %v2138, %v2137
  %v2159 = vpack.c.b16 %v2140, %v2139
  %v2160 = vpack.c.b16 %v2142, %v2141
  %v2161 = vpack.c.b16 %v2144, %v2143
  %v2162 = vpack.c.b16 %v2146, %v2145
  %2179 = vmatpush.bf16.msra.mxu0 %v2154
  %2180 = vmatpush.bf16.msra.mxu0 %v2153
  %2181 = vmatpush.bf16.msra.mxu0 %v2152
  %2182 = vmatpush.bf16.msra.mxu0 %v2151
  %2183 = vmatpush.bf16.msra.mxu0 %v2150
  %2184 = vmatpush.bf16.msra.mxu0 %v2149
  %2185 = vmatpush.bf16.msra.mxu0 %v2148
  %2186 = vmatpush.bf16.msra.mxu0 %v2147
  %2187 = vmatmul.bf16.gmra.mxu0 %v2045
  %v2188 = vpop.f32.mrf.mxu0
  %v2189 = vadd.f32 %v90, %v2188
  %v2190 = vpop.f32.mrf.mxu0
  %2191 = vdwg.mxu0
  %2192 = vmatpush.bf16.msra.mxu0 %v2162
  %2193 = vmatpush.bf16.msra.mxu0 %v2161
  %2194 = vmatpush.bf16.msra.mxu0 %v2160
  %2195 = vmatpush.bf16.msra.mxu0 %v2159
  %2196 = vmatpush.bf16.msra.mxu0 %v2158
  %2197 = vmatpush.bf16.msra.mxu0 %v2157
  %2198 = vmatpush.bf16.msra.mxu0 %v2156
  %2199 = vmatpush.bf16.msra.mxu0 %v2155
  %2200 = vmatmul.bf16.gmra.mxu0 %v2049
  %v2201 = vpop.f32.mrf.mxu0
  %v2202 = vadd.f32 %v2189, %v2201
  %v2203 = vpop.f32.mrf.mxu0
  %2204 = vdwg.mxu0
  %v2205 = vmax.f32 %v2202, 0.0
  %v2206 = vpack.c.bf16 %v2205, %v2205
  %s2207 = scalar_lea.vmem %s3, 40
  %2208 = vst.msk [vmem:[%s2207] sm:$0xf] %vm216, %v2206
  %v2209 = vld [vmem:[%s2012] sm:$0xf]
  %v2210 = vld [vmem:[%s2012 + $0x4] sm:$0x1]
  %s2211 = scalar_lea.vmem %s0, 104
  %v2212 = vld [vmem:[%s2211] sm:$0xf]
  %v2213 = vld [vmem:[%s2211 + $0x4] sm:$0x1]
  %v2216 = vunpack.c.l.b16 %v2209
  %v2217 = vunpack.c.l.b16 %v2210
  %v2218 = vpack.c.b16 %v2217, %v2216
  %v2220 = vshrl.u32 %v2218, 16
  %v2222 = vshll.u32 %v2218, 16
  %v2224 = vrot.slane %v2222, 1
  %v2225 = vor.u32 %v2220, %v2224
  %2226 = vrot.lane.b32.xlu0 %v2225, 64
  %v2227 = vpop.permute.xlu0 %2226
  %v2230 = vunpack.c.l.b16 %v2212
  %v2231 = vunpack.c.l.b16 %v2213
  %v2232 = vpack.c.b16 %v2231, %v2230
  %v2234 = vshrl.u32 %v2232, 16
  %v2236 = vshll.u32 %v2232, 16
  %v2238 = vrot.slane %v2236, 1
  %v2239 = vor.u32 %v2234, %v2238
  %2240 = vrot.lane.b32.xlu0 %v2239, 64
  %v2241 = vpop.permute.xlu0 %2240
  %v2244 = vsel %vm48, %v2209, %v2227
  %v2248 = vsel %vm48, %v2212, %v2241
  %v2250 = vld [vmem:[%s1] sm:$0xf]
  %v2251 = vld [vmem:[%s1 + $0x4] sm:$0xf]
  %v2252 = vld [vmem:[%s1 + $0x8] sm:$0xf]
  %v2253 = vld [vmem:[%s1 + $0xc] sm:$0xf]
  %v2254 = vld [vmem:[%s1 + $0x10] sm:$0xf]
  %v2255 = vld [vmem:[%s1 + $0x14] sm:$0xf]
  %v2256 = vld [vmem:[%s1 + $0x18] sm:$0xf]
  %v2257 = vld [vmem:[%s1 + $0x1c] sm:$0xf]
  %v2258 = vld [vmem:[%s1 + $0x20] sm:$0xf]
  %v2259 = vld [vmem:[%s1 + $0x24] sm:$0xf]
  %v2260 = vld [vmem:[%s1 + $0x28] sm:$0xf]
  %v2261 = vld [vmem:[%s1 + $0x2c] sm:$0xf]
  %v2262 = vld [vmem:[%s1 + $0x30] sm:$0xf]
  %v2263 = vld [vmem:[%s1 + $0x34] sm:$0xf]
  %v2264 = vld [vmem:[%s1 + $0x38] sm:$0xf]
  %v2265 = vld [vmem:[%s1 + $0x3c] sm:$0xf]
  %v2266 = vld [vmem:[%s1 + $0x40] sm:$0xf]
  %v2267 = vld [vmem:[%s1 + $0x44] sm:$0xf]
  %v2268 = vld [vmem:[%s1 + $0x48] sm:$0xf]
  %v2269 = vld [vmem:[%s1 + $0x4c] sm:$0xf]
  %v2270 = vld [vmem:[%s1 + $0x50] sm:$0xf]
  %v2271 = vld [vmem:[%s1 + $0x54] sm:$0xf]
  %v2272 = vld [vmem:[%s1 + $0x58] sm:$0xf]
  %v2273 = vld [vmem:[%s1 + $0x5c] sm:$0xf]
  %v2274 = vld [vmem:[%s1 + $0x60] sm:$0xf]
  %v2275 = vld [vmem:[%s1 + $0x64] sm:$0xf]
  %v2276 = vld [vmem:[%s1 + $0x68] sm:$0xf]
  %v2277 = vld [vmem:[%s1 + $0x6c] sm:$0xf]
  %v2278 = vld [vmem:[%s1 + $0x70] sm:$0xf]
  %v2279 = vld [vmem:[%s1 + $0x74] sm:$0xf]
  %v2280 = vld [vmem:[%s1 + $0x78] sm:$0xf]
  %v2281 = vld [vmem:[%s1 + $0x7c] sm:$0xf]
  %v2314 = vunpack.c.l.b16 %v2250
  %v2315 = vunpack.c.l.b16 %v2251
  %v2316 = vunpack.c.l.b16 %v2252
  %v2317 = vunpack.c.l.b16 %v2253
  %v2318 = vunpack.c.l.b16 %v2254
  %v2319 = vunpack.c.l.b16 %v2255
  %v2320 = vunpack.c.l.b16 %v2256
  %v2321 = vunpack.c.l.b16 %v2257
  %v2322 = vunpack.c.l.b16 %v2258
  %v2323 = vunpack.c.l.b16 %v2259
  %v2324 = vunpack.c.l.b16 %v2260
  %v2325 = vunpack.c.l.b16 %v2261
  %v2326 = vunpack.c.l.b16 %v2262
  %v2327 = vunpack.c.l.b16 %v2263
  %v2328 = vunpack.c.l.b16 %v2264
  %v2329 = vunpack.c.l.b16 %v2265
  %v2330 = vunpack.c.l.b16 %v2266
  %v2331 = vunpack.c.l.b16 %v2267
  %v2332 = vunpack.c.l.b16 %v2268
  %v2333 = vunpack.c.l.b16 %v2269
  %v2334 = vunpack.c.l.b16 %v2270
  %v2335 = vunpack.c.l.b16 %v2271
  %v2336 = vunpack.c.l.b16 %v2272
  %v2337 = vunpack.c.l.b16 %v2273
  %v2338 = vunpack.c.l.b16 %v2274
  %v2339 = vunpack.c.l.b16 %v2275
  %v2340 = vunpack.c.l.b16 %v2276
  %v2341 = vunpack.c.l.b16 %v2277
  %v2342 = vunpack.c.l.b16 %v2278
  %v2343 = vunpack.c.l.b16 %v2279
  %v2344 = vunpack.c.l.b16 %v2280
  %v2345 = vunpack.c.l.b16 %v2281
  %v2346 = vpack.c.b16 %v2315, %v2314
  %v2347 = vpack.c.b16 %v2317, %v2316
  %v2348 = vpack.c.b16 %v2319, %v2318
  %v2349 = vpack.c.b16 %v2321, %v2320
  %v2350 = vpack.c.b16 %v2323, %v2322
  %v2351 = vpack.c.b16 %v2325, %v2324
  %v2352 = vpack.c.b16 %v2327, %v2326
  %v2353 = vpack.c.b16 %v2329, %v2328
  %v2354 = vpack.c.b16 %v2331, %v2330
  %v2355 = vpack.c.b16 %v2333, %v2332
  %v2356 = vpack.c.b16 %v2335, %v2334
  %v2357 = vpack.c.b16 %v2337, %v2336
  %v2358 = vpack.c.b16 %v2339, %v2338
  %v2359 = vpack.c.b16 %v2341, %v2340
  %v2360 = vpack.c.b16 %v2343, %v2342
  %v2361 = vpack.c.b16 %v2345, %v2344
  %2378 = vmatpush.bf16.msra.mxu0 %v2353
  %2379 = vmatpush.bf16.msra.mxu0 %v2352
  %2380 = vmatpush.bf16.msra.mxu0 %v2351
  %2381 = vmatpush.bf16.msra.mxu0 %v2350
  %2382 = vmatpush.bf16.msra.mxu0 %v2349
  %2383 = vmatpush.bf16.msra.mxu0 %v2348
  %2384 = vmatpush.bf16.msra.mxu0 %v2347
  %2385 = vmatpush.bf16.msra.mxu0 %v2346
  %2386 = vmatmul.bf16.gmra.mxu0 %v2244
  %v2387 = vpop.f32.mrf.mxu0
  %v2388 = vadd.f32 %v90, %v2387
  %v2389 = vpop.f32.mrf.mxu0
  %2390 = vdwg.mxu0
  %2391 = vmatpush.bf16.msra.mxu0 %v2361
  %2392 = vmatpush.bf16.msra.mxu0 %v2360
  %2393 = vmatpush.bf16.msra.mxu0 %v2359
  %2394 = vmatpush.bf16.msra.mxu0 %v2358
  %2395 = vmatpush.bf16.msra.mxu0 %v2357
  %2396 = vmatpush.bf16.msra.mxu0 %v2356
  %2397 = vmatpush.bf16.msra.mxu0 %v2355
  %2398 = vmatpush.bf16.msra.mxu0 %v2354
  %2399 = vmatmul.bf16.gmra.mxu0 %v2248
  %v2400 = vpop.f32.mrf.mxu0
  %v2401 = vadd.f32 %v2388, %v2400
  %v2402 = vpop.f32.mrf.mxu0
  %2403 = vdwg.mxu0
  %v2404 = vmax.f32 %v2401, 0.0
  %v2405 = vpack.c.bf16 %v2404, %v2404
  %s2406 = scalar_lea.vmem %s3, 44
  %2407 = vst.msk [vmem:[%s2406] sm:$0xf] %vm216, %v2405
  %v2408 = vld [vmem:[%s2211] sm:$0xf]
  %v2409 = vld [vmem:[%s2211 + $0x4] sm:$0x1]
  %s2410 = scalar_lea.vmem %s0, 112
  %v2411 = vld [vmem:[%s2410] sm:$0xf]
  %v2412 = vld [vmem:[%s2410 + $0x4] sm:$0x1]
  %v2415 = vunpack.c.l.b16 %v2408
  %v2416 = vunpack.c.l.b16 %v2409
  %v2417 = vpack.c.b16 %v2416, %v2415
  %v2419 = vshrl.u32 %v2417, 16
  %v2421 = vshll.u32 %v2417, 16
  %v2423 = vrot.slane %v2421, 1
  %v2424 = vor.u32 %v2419, %v2423
  %2425 = vrot.lane.b32.xlu0 %v2424, 64
  %v2426 = vpop.permute.xlu0 %2425
  %v2429 = vunpack.c.l.b16 %v2411
  %v2430 = vunpack.c.l.b16 %v2412
  %v2431 = vpack.c.b16 %v2430, %v2429
  %v2433 = vshrl.u32 %v2431, 16
  %v2435 = vshll.u32 %v2431, 16
  %v2437 = vrot.slane %v2435, 1
  %v2438 = vor.u32 %v2433, %v2437
  %2439 = vrot.lane.b32.xlu0 %v2438, 64
  %v2440 = vpop.permute.xlu0 %2439
  %v2443 = vsel %vm48, %v2408, %v2426
  %v2447 = vsel %vm48, %v2411, %v2440
  %v2449 = vld [vmem:[%s1] sm:$0xf]
  %v2450 = vld [vmem:[%s1 + $0x4] sm:$0xf]
  %v2451 = vld [vmem:[%s1 + $0x8] sm:$0xf]
  %v2452 = vld [vmem:[%s1 + $0xc] sm:$0xf]
  %v2453 = vld [vmem:[%s1 + $0x10] sm:$0xf]
  %v2454 = vld [vmem:[%s1 + $0x14] sm:$0xf]
  %v2455 = vld [vmem:[%s1 + $0x18] sm:$0xf]
  %v2456 = vld [vmem:[%s1 + $0x1c] sm:$0xf]
  %v2457 = vld [vmem:[%s1 + $0x20] sm:$0xf]
  %v2458 = vld [vmem:[%s1 + $0x24] sm:$0xf]
  %v2459 = vld [vmem:[%s1 + $0x28] sm:$0xf]
  %v2460 = vld [vmem:[%s1 + $0x2c] sm:$0xf]
  %v2461 = vld [vmem:[%s1 + $0x30] sm:$0xf]
  %v2462 = vld [vmem:[%s1 + $0x34] sm:$0xf]
  %v2463 = vld [vmem:[%s1 + $0x38] sm:$0xf]
  %v2464 = vld [vmem:[%s1 + $0x3c] sm:$0xf]
  %v2465 = vld [vmem:[%s1 + $0x40] sm:$0xf]
  %v2466 = vld [vmem:[%s1 + $0x44] sm:$0xf]
  %v2467 = vld [vmem:[%s1 + $0x48] sm:$0xf]
  %v2468 = vld [vmem:[%s1 + $0x4c] sm:$0xf]
  %v2469 = vld [vmem:[%s1 + $0x50] sm:$0xf]
  %v2470 = vld [vmem:[%s1 + $0x54] sm:$0xf]
  %v2471 = vld [vmem:[%s1 + $0x58] sm:$0xf]
  %v2472 = vld [vmem:[%s1 + $0x5c] sm:$0xf]
  %v2473 = vld [vmem:[%s1 + $0x60] sm:$0xf]
  %v2474 = vld [vmem:[%s1 + $0x64] sm:$0xf]
  %v2475 = vld [vmem:[%s1 + $0x68] sm:$0xf]
  %v2476 = vld [vmem:[%s1 + $0x6c] sm:$0xf]
  %v2477 = vld [vmem:[%s1 + $0x70] sm:$0xf]
  %v2478 = vld [vmem:[%s1 + $0x74] sm:$0xf]
  %v2479 = vld [vmem:[%s1 + $0x78] sm:$0xf]
  %v2480 = vld [vmem:[%s1 + $0x7c] sm:$0xf]
  %v2513 = vunpack.c.l.b16 %v2449
  %v2514 = vunpack.c.l.b16 %v2450
  %v2515 = vunpack.c.l.b16 %v2451
  %v2516 = vunpack.c.l.b16 %v2452
  %v2517 = vunpack.c.l.b16 %v2453
  %v2518 = vunpack.c.l.b16 %v2454
  %v2519 = vunpack.c.l.b16 %v2455
  %v2520 = vunpack.c.l.b16 %v2456
  %v2521 = vunpack.c.l.b16 %v2457
  %v2522 = vunpack.c.l.b16 %v2458
  %v2523 = vunpack.c.l.b16 %v2459
  %v2524 = vunpack.c.l.b16 %v2460
  %v2525 = vunpack.c.l.b16 %v2461
  %v2526 = vunpack.c.l.b16 %v2462
  %v2527 = vunpack.c.l.b16 %v2463
  %v2528 = vunpack.c.l.b16 %v2464
  %v2529 = vunpack.c.l.b16 %v2465
  %v2530 = vunpack.c.l.b16 %v2466
  %v2531 = vunpack.c.l.b16 %v2467
  %v2532 = vunpack.c.l.b16 %v2468
  %v2533 = vunpack.c.l.b16 %v2469
  %v2534 = vunpack.c.l.b16 %v2470
  %v2535 = vunpack.c.l.b16 %v2471
  %v2536 = vunpack.c.l.b16 %v2472
  %v2537 = vunpack.c.l.b16 %v2473
  %v2538 = vunpack.c.l.b16 %v2474
  %v2539 = vunpack.c.l.b16 %v2475
  %v2540 = vunpack.c.l.b16 %v2476
  %v2541 = vunpack.c.l.b16 %v2477
  %v2542 = vunpack.c.l.b16 %v2478
  %v2543 = vunpack.c.l.b16 %v2479
  %v2544 = vunpack.c.l.b16 %v2480
  %v2545 = vpack.c.b16 %v2514, %v2513
  %v2546 = vpack.c.b16 %v2516, %v2515
  %v2547 = vpack.c.b16 %v2518, %v2517
  %v2548 = vpack.c.b16 %v2520, %v2519
  %v2549 = vpack.c.b16 %v2522, %v2521
  %v2550 = vpack.c.b16 %v2524, %v2523
  %v2551 = vpack.c.b16 %v2526, %v2525
  %v2552 = vpack.c.b16 %v2528, %v2527
  %v2553 = vpack.c.b16 %v2530, %v2529
  %v2554 = vpack.c.b16 %v2532, %v2531
  %v2555 = vpack.c.b16 %v2534, %v2533
  %v2556 = vpack.c.b16 %v2536, %v2535
  %v2557 = vpack.c.b16 %v2538, %v2537
  %v2558 = vpack.c.b16 %v2540, %v2539
  %v2559 = vpack.c.b16 %v2542, %v2541
  %v2560 = vpack.c.b16 %v2544, %v2543
  %2577 = vmatpush.bf16.msra.mxu0 %v2552
  %2578 = vmatpush.bf16.msra.mxu0 %v2551
  %2579 = vmatpush.bf16.msra.mxu0 %v2550
  %2580 = vmatpush.bf16.msra.mxu0 %v2549
  %2581 = vmatpush.bf16.msra.mxu0 %v2548
  %2582 = vmatpush.bf16.msra.mxu0 %v2547
  %2583 = vmatpush.bf16.msra.mxu0 %v2546
  %2584 = vmatpush.bf16.msra.mxu0 %v2545
  %2585 = vmatmul.bf16.gmra.mxu0 %v2443
  %v2586 = vpop.f32.mrf.mxu0
  %v2587 = vadd.f32 %v90, %v2586
  %v2588 = vpop.f32.mrf.mxu0
  %2589 = vdwg.mxu0
  %2590 = vmatpush.bf16.msra.mxu0 %v2560
  %2591 = vmatpush.bf16.msra.mxu0 %v2559
  %2592 = vmatpush.bf16.msra.mxu0 %v2558
  %2593 = vmatpush.bf16.msra.mxu0 %v2557
  %2594 = vmatpush.bf16.msra.mxu0 %v2556
  %2595 = vmatpush.bf16.msra.mxu0 %v2555
  %2596 = vmatpush.bf16.msra.mxu0 %v2554
  %2597 = vmatpush.bf16.msra.mxu0 %v2553
  %2598 = vmatmul.bf16.gmra.mxu0 %v2447
  %v2599 = vpop.f32.mrf.mxu0
  %v2600 = vadd.f32 %v2587, %v2599
  %v2601 = vpop.f32.mrf.mxu0
  %2602 = vdwg.mxu0
  %v2603 = vmax.f32 %v2600, 0.0
  %v2604 = vpack.c.bf16 %v2603, %v2603
  %s2605 = scalar_lea.vmem %s3, 48
  %2606 = vst.msk [vmem:[%s2605] sm:$0xf] %vm216, %v2604
  %v2607 = vld [vmem:[%s2410] sm:$0xf]
  %v2608 = vld [vmem:[%s2410 + $0x4] sm:$0x1]
  %s2609 = scalar_lea.vmem %s0, 120
  %v2610 = vld [vmem:[%s2609] sm:$0xf]
  %v2611 = vld [vmem:[%s2609 + $0x4] sm:$0x1]
  %v2614 = vunpack.c.l.b16 %v2607
  %v2615 = vunpack.c.l.b16 %v2608
  %v2616 = vpack.c.b16 %v2615, %v2614
  %v2618 = vshrl.u32 %v2616, 16
  %v2620 = vshll.u32 %v2616, 16
  %v2622 = vrot.slane %v2620, 1
  %v2623 = vor.u32 %v2618, %v2622
  %2624 = vrot.lane.b32.xlu0 %v2623, 64
  %v2625 = vpop.permute.xlu0 %2624
  %v2628 = vunpack.c.l.b16 %v2610
  %v2629 = vunpack.c.l.b16 %v2611
  %v2630 = vpack.c.b16 %v2629, %v2628
  %v2632 = vshrl.u32 %v2630, 16
  %v2634 = vshll.u32 %v2630, 16
  %v2636 = vrot.slane %v2634, 1
  %v2637 = vor.u32 %v2632, %v2636
  %2638 = vrot.lane.b32.xlu0 %v2637, 64
  %v2639 = vpop.permute.xlu0 %2638
  %v2642 = vsel %vm48, %v2607, %v2625
  %v2646 = vsel %vm48, %v2610, %v2639
  %v2648 = vld [vmem:[%s1] sm:$0xf]
  %v2649 = vld [vmem:[%s1 + $0x4] sm:$0xf]
  %v2650 = vld [vmem:[%s1 + $0x8] sm:$0xf]
  %v2651 = vld [vmem:[%s1 + $0xc] sm:$0xf]
  %v2652 = vld [vmem:[%s1 + $0x10] sm:$0xf]
  %v2653 = vld [vmem:[%s1 + $0x14] sm:$0xf]
  %v2654 = vld [vmem:[%s1 + $0x18] sm:$0xf]
  %v2655 = vld [vmem:[%s1 + $0x1c] sm:$0xf]
  %v2656 = vld [vmem:[%s1 + $0x20] sm:$0xf]
  %v2657 = vld [vmem:[%s1 + $0x24] sm:$0xf]
  %v2658 = vld [vmem:[%s1 + $0x28] sm:$0xf]
  %v2659 = vld [vmem:[%s1 + $0x2c] sm:$0xf]
  %v2660 = vld [vmem:[%s1 + $0x30] sm:$0xf]
  %v2661 = vld [vmem:[%s1 + $0x34] sm:$0xf]
  %v2662 = vld [vmem:[%s1 + $0x38] sm:$0xf]
  %v2663 = vld [vmem:[%s1 + $0x3c] sm:$0xf]
  %v2664 = vld [vmem:[%s1 + $0x40] sm:$0xf]
  %v2665 = vld [vmem:[%s1 + $0x44] sm:$0xf]
  %v2666 = vld [vmem:[%s1 + $0x48] sm:$0xf]
  %v2667 = vld [vmem:[%s1 + $0x4c] sm:$0xf]
  %v2668 = vld [vmem:[%s1 + $0x50] sm:$0xf]
  %v2669 = vld [vmem:[%s1 + $0x54] sm:$0xf]
  %v2670 = vld [vmem:[%s1 + $0x58] sm:$0xf]
  %v2671 = vld [vmem:[%s1 + $0x5c] sm:$0xf]
  %v2672 = vld [vmem:[%s1 + $0x60] sm:$0xf]
  %v2673 = vld [vmem:[%s1 + $0x64] sm:$0xf]
  %v2674 = vld [vmem:[%s1 + $0x68] sm:$0xf]
  %v2675 = vld [vmem:[%s1 + $0x6c] sm:$0xf]
  %v2676 = vld [vmem:[%s1 + $0x70] sm:$0xf]
  %v2677 = vld [vmem:[%s1 + $0x74] sm:$0xf]
  %v2678 = vld [vmem:[%s1 + $0x78] sm:$0xf]
  %v2679 = vld [vmem:[%s1 + $0x7c] sm:$0xf]
  %v2712 = vunpack.c.l.b16 %v2648
  %v2713 = vunpack.c.l.b16 %v2649
  %v2714 = vunpack.c.l.b16 %v2650
  %v2715 = vunpack.c.l.b16 %v2651
  %v2716 = vunpack.c.l.b16 %v2652
  %v2717 = vunpack.c.l.b16 %v2653
  %v2718 = vunpack.c.l.b16 %v2654
  %v2719 = vunpack.c.l.b16 %v2655
  %v2720 = vunpack.c.l.b16 %v2656
  %v2721 = vunpack.c.l.b16 %v2657
  %v2722 = vunpack.c.l.b16 %v2658
  %v2723 = vunpack.c.l.b16 %v2659
  %v2724 = vunpack.c.l.b16 %v2660
  %v2725 = vunpack.c.l.b16 %v2661
  %v2726 = vunpack.c.l.b16 %v2662
  %v2727 = vunpack.c.l.b16 %v2663
  %v2728 = vunpack.c.l.b16 %v2664
  %v2729 = vunpack.c.l.b16 %v2665
  %v2730 = vunpack.c.l.b16 %v2666
  %v2731 = vunpack.c.l.b16 %v2667
  %v2732 = vunpack.c.l.b16 %v2668
  %v2733 = vunpack.c.l.b16 %v2669
  %v2734 = vunpack.c.l.b16 %v2670
  %v2735 = vunpack.c.l.b16 %v2671
  %v2736 = vunpack.c.l.b16 %v2672
  %v2737 = vunpack.c.l.b16 %v2673
  %v2738 = vunpack.c.l.b16 %v2674
  %v2739 = vunpack.c.l.b16 %v2675
  %v2740 = vunpack.c.l.b16 %v2676
  %v2741 = vunpack.c.l.b16 %v2677
  %v2742 = vunpack.c.l.b16 %v2678
  %v2743 = vunpack.c.l.b16 %v2679
  %v2744 = vpack.c.b16 %v2713, %v2712
  %v2745 = vpack.c.b16 %v2715, %v2714
  %v2746 = vpack.c.b16 %v2717, %v2716
  %v2747 = vpack.c.b16 %v2719, %v2718
  %v2748 = vpack.c.b16 %v2721, %v2720
  %v2749 = vpack.c.b16 %v2723, %v2722
  %v2750 = vpack.c.b16 %v2725, %v2724
  %v2751 = vpack.c.b16 %v2727, %v2726
  %v2752 = vpack.c.b16 %v2729, %v2728
  %v2753 = vpack.c.b16 %v2731, %v2730
  %v2754 = vpack.c.b16 %v2733, %v2732
  %v2755 = vpack.c.b16 %v2735, %v2734
  %v2756 = vpack.c.b16 %v2737, %v2736
  %v2757 = vpack.c.b16 %v2739, %v2738
  %v2758 = vpack.c.b16 %v2741, %v2740
  %v2759 = vpack.c.b16 %v2743, %v2742
  %2776 = vmatpush.bf16.msra.mxu0 %v2751
  %2777 = vmatpush.bf16.msra.mxu0 %v2750
  %2778 = vmatpush.bf16.msra.mxu0 %v2749
  %2779 = vmatpush.bf16.msra.mxu0 %v2748
  %2780 = vmatpush.bf16.msra.mxu0 %v2747
  %2781 = vmatpush.bf16.msra.mxu0 %v2746
  %2782 = vmatpush.bf16.msra.mxu0 %v2745
  %2783 = vmatpush.bf16.msra.mxu0 %v2744
  %2784 = vmatmul.bf16.gmra.mxu0 %v2642
  %v2785 = vpop.f32.mrf.mxu0
  %v2786 = vadd.f32 %v90, %v2785
  %v2787 = vpop.f32.mrf.mxu0
  %2788 = vdwg.mxu0
  %2789 = vmatpush.bf16.msra.mxu0 %v2759
  %2790 = vmatpush.bf16.msra.mxu0 %v2758
  %2791 = vmatpush.bf16.msra.mxu0 %v2757
  %2792 = vmatpush.bf16.msra.mxu0 %v2756
  %2793 = vmatpush.bf16.msra.mxu0 %v2755
  %2794 = vmatpush.bf16.msra.mxu0 %v2754
  %2795 = vmatpush.bf16.msra.mxu0 %v2753
  %2796 = vmatpush.bf16.msra.mxu0 %v2752
  %2797 = vmatmul.bf16.gmra.mxu0 %v2646
  %v2798 = vpop.f32.mrf.mxu0
  %v2799 = vadd.f32 %v2786, %v2798
  %v2800 = vpop.f32.mrf.mxu0
  %2801 = vdwg.mxu0
  %v2802 = vmax.f32 %v2799, 0.0
  %v2803 = vpack.c.bf16 %v2802, %v2802
  %s2804 = scalar_lea.vmem %s3, 52
  %2805 = vst.msk [vmem:[%s2804] sm:$0xf] %vm216, %v2803
  %v2806 = vld [vmem:[%s2609] sm:$0xf]
  %v2807 = vld [vmem:[%s2609 + $0x4] sm:$0x1]
  %s2808 = scalar_lea.vmem %s0, 128
  %v2809 = vld [vmem:[%s2808] sm:$0xf]
  %v2810 = vld [vmem:[%s2808 + $0x4] sm:$0x1]
  %v2813 = vunpack.c.l.b16 %v2806
  %v2814 = vunpack.c.l.b16 %v2807
  %v2815 = vpack.c.b16 %v2814, %v2813
  %v2817 = vshrl.u32 %v2815, 16
  %v2819 = vshll.u32 %v2815, 16
  %v2821 = vrot.slane %v2819, 1
  %v2822 = vor.u32 %v2817, %v2821
  %2823 = vrot.lane.b32.xlu0 %v2822, 64
  %v2824 = vpop.permute.xlu0 %2823
  %v2827 = vunpack.c.l.b16 %v2809
  %v2828 = vunpack.c.l.b16 %v2810
  %v2829 = vpack.c.b16 %v2828, %v2827
  %v2831 = vshrl.u32 %v2829, 16
  %v2833 = vshll.u32 %v2829, 16
  %v2835 = vrot.slane %v2833, 1
  %v2836 = vor.u32 %v2831, %v2835
  %2837 = vrot.lane.b32.xlu0 %v2836, 64
  %v2838 = vpop.permute.xlu0 %2837
  %v2841 = vsel %vm48, %v2806, %v2824
  %v2845 = vsel %vm48, %v2809, %v2838
  %v2847 = vld [vmem:[%s1] sm:$0xf]
  %v2848 = vld [vmem:[%s1 + $0x4] sm:$0xf]
  %v2849 = vld [vmem:[%s1 + $0x8] sm:$0xf]
  %v2850 = vld [vmem:[%s1 + $0xc] sm:$0xf]
  %v2851 = vld [vmem:[%s1 + $0x10] sm:$0xf]
  %v2852 = vld [vmem:[%s1 + $0x14] sm:$0xf]
  %v2853 = vld [vmem:[%s1 + $0x18] sm:$0xf]
  %v2854 = vld [vmem:[%s1 + $0x1c] sm:$0xf]
  %v2855 = vld [vmem:[%s1 + $0x20] sm:$0xf]
  %v2856 = vld [vmem:[%s1 + $0x24] sm:$0xf]
  %v2857 = vld [vmem:[%s1 + $0x28] sm:$0xf]
  %v2858 = vld [vmem:[%s1 + $0x2c] sm:$0xf]
  %v2859 = vld [vmem:[%s1 + $0x30] sm:$0xf]
  %v2860 = vld [vmem:[%s1 + $0x34] sm:$0xf]
  %v2861 = vld [vmem:[%s1 + $0x38] sm:$0xf]
  %v2862 = vld [vmem:[%s1 + $0x3c] sm:$0xf]
  %v2863 = vld [vmem:[%s1 + $0x40] sm:$0xf]
  %v2864 = vld [vmem:[%s1 + $0x44] sm:$0xf]
  %v2865 = vld [vmem:[%s1 + $0x48] sm:$0xf]
  %v2866 = vld [vmem:[%s1 + $0x4c] sm:$0xf]
  %v2867 = vld [vmem:[%s1 + $0x50] sm:$0xf]
  %v2868 = vld [vmem:[%s1 + $0x54] sm:$0xf]
  %v2869 = vld [vmem:[%s1 + $0x58] sm:$0xf]
  %v2870 = vld [vmem:[%s1 + $0x5c] sm:$0xf]
  %v2871 = vld [vmem:[%s1 + $0x60] sm:$0xf]
  %v2872 = vld [vmem:[%s1 + $0x64] sm:$0xf]
  %v2873 = vld [vmem:[%s1 + $0x68] sm:$0xf]
  %v2874 = vld [vmem:[%s1 + $0x6c] sm:$0xf]
  %v2875 = vld [vmem:[%s1 + $0x70] sm:$0xf]
  %v2876 = vld [vmem:[%s1 + $0x74] sm:$0xf]
  %v2877 = vld [vmem:[%s1 + $0x78] sm:$0xf]
  %v2878 = vld [vmem:[%s1 + $0x7c] sm:$0xf]
  %v2911 = vunpack.c.l.b16 %v2847
  %v2912 = vunpack.c.l.b16 %v2848
  %v2913 = vunpack.c.l.b16 %v2849
  %v2914 = vunpack.c.l.b16 %v2850
  %v2915 = vunpack.c.l.b16 %v2851
  %v2916 = vunpack.c.l.b16 %v2852
  %v2917 = vunpack.c.l.b16 %v2853
  %v2918 = vunpack.c.l.b16 %v2854
  %v2919 = vunpack.c.l.b16 %v2855
  %v2920 = vunpack.c.l.b16 %v2856
  %v2921 = vunpack.c.l.b16 %v2857
  %v2922 = vunpack.c.l.b16 %v2858
  %v2923 = vunpack.c.l.b16 %v2859
  %v2924 = vunpack.c.l.b16 %v2860
  %v2925 = vunpack.c.l.b16 %v2861
  %v2926 = vunpack.c.l.b16 %v2862
  %v2927 = vunpack.c.l.b16 %v2863
  %v2928 = vunpack.c.l.b16 %v2864
  %v2929 = vunpack.c.l.b16 %v2865
  %v2930 = vunpack.c.l.b16 %v2866
  %v2931 = vunpack.c.l.b16 %v2867
  %v2932 = vunpack.c.l.b16 %v2868
  %v2933 = vunpack.c.l.b16 %v2869
  %v2934 = vunpack.c.l.b16 %v2870
  %v2935 = vunpack.c.l.b16 %v2871
  %v2936 = vunpack.c.l.b16 %v2872
  %v2937 = vunpack.c.l.b16 %v2873
  %v2938 = vunpack.c.l.b16 %v2874
  %v2939 = vunpack.c.l.b16 %v2875
  %v2940 = vunpack.c.l.b16 %v2876
  %v2941 = vunpack.c.l.b16 %v2877
  %v2942 = vunpack.c.l.b16 %v2878
  %v2943 = vpack.c.b16 %v2912, %v2911
  %v2944 = vpack.c.b16 %v2914, %v2913
  %v2945 = vpack.c.b16 %v2916, %v2915
  %v2946 = vpack.c.b16 %v2918, %v2917
  %v2947 = vpack.c.b16 %v2920, %v2919
  %v2948 = vpack.c.b16 %v2922, %v2921
  %v2949 = vpack.c.b16 %v2924, %v2923
  %v2950 = vpack.c.b16 %v2926, %v2925
  %v2951 = vpack.c.b16 %v2928, %v2927
  %v2952 = vpack.c.b16 %v2930, %v2929
  %v2953 = vpack.c.b16 %v2932, %v2931
  %v2954 = vpack.c.b16 %v2934, %v2933
  %v2955 = vpack.c.b16 %v2936, %v2935
  %v2956 = vpack.c.b16 %v2938, %v2937
  %v2957 = vpack.c.b16 %v2940, %v2939
  %v2958 = vpack.c.b16 %v2942, %v2941
  %2975 = vmatpush.bf16.msra.mxu0 %v2950
  %2976 = vmatpush.bf16.msra.mxu0 %v2949
  %2977 = vmatpush.bf16.msra.mxu0 %v2948
  %2978 = vmatpush.bf16.msra.mxu0 %v2947
  %2979 = vmatpush.bf16.msra.mxu0 %v2946
  %2980 = vmatpush.bf16.msra.mxu0 %v2945
  %2981 = vmatpush.bf16.msra.mxu0 %v2944
  %2982 = vmatpush.bf16.msra.mxu0 %v2943
  %2983 = vmatmul.bf16.gmra.mxu0 %v2841
  %v2984 = vpop.f32.mrf.mxu0
  %v2985 = vadd.f32 %v90, %v2984
  %v2986 = vpop.f32.mrf.mxu0
  %2987 = vdwg.mxu0
  %2988 = vmatpush.bf16.msra.mxu0 %v2958
  %2989 = vmatpush.bf16.msra.mxu0 %v2957
  %2990 = vmatpush.bf16.msra.mxu0 %v2956
  %2991 = vmatpush.bf16.msra.mxu0 %v2955
  %2992 = vmatpush.bf16.msra.mxu0 %v2954
  %2993 = vmatpush.bf16.msra.mxu0 %v2953
  %2994 = vmatpush.bf16.msra.mxu0 %v2952
  %2995 = vmatpush.bf16.msra.mxu0 %v2951
  %2996 = vmatmul.bf16.gmra.mxu0 %v2845
  %v2997 = vpop.f32.mrf.mxu0
  %v2998 = vadd.f32 %v2985, %v2997
  %v2999 = vpop.f32.mrf.mxu0
  %3000 = vdwg.mxu0
  %v3001 = vmax.f32 %v2998, 0.0
  %v3002 = vpack.c.bf16 %v3001, %v3001
  %s3003 = scalar_lea.vmem %s3, 56
  %3004 = vst.msk [vmem:[%s3003] sm:$0xf] %vm216, %v3002
  %v3005 = vld [vmem:[%s2808] sm:$0xf]
  %v3006 = vld [vmem:[%s2808 + $0x4] sm:$0x1]
  %s3007 = scalar_lea.vmem %s0, 136
  %v3008 = vld [vmem:[%s3007] sm:$0xf]
  %v3009 = vld [vmem:[%s3007 + $0x4] sm:$0x1]
  %v3012 = vunpack.c.l.b16 %v3005
  %v3013 = vunpack.c.l.b16 %v3006
  %v3014 = vpack.c.b16 %v3013, %v3012
  %v3016 = vshrl.u32 %v3014, 16
  %v3018 = vshll.u32 %v3014, 16
  %v3020 = vrot.slane %v3018, 1
  %v3021 = vor.u32 %v3016, %v3020
  %3022 = vrot.lane.b32.xlu0 %v3021, 64
  %v3023 = vpop.permute.xlu0 %3022
  %v3026 = vunpack.c.l.b16 %v3008
  %v3027 = vunpack.c.l.b16 %v3009
  %v3028 = vpack.c.b16 %v3027, %v3026
  %v3030 = vshrl.u32 %v3028, 16
  %v3032 = vshll.u32 %v3028, 16
  %v3034 = vrot.slane %v3032, 1
  %v3035 = vor.u32 %v3030, %v3034
  %3036 = vrot.lane.b32.xlu0 %v3035, 64
  %v3037 = vpop.permute.xlu0 %3036
  %v3040 = vsel %vm48, %v3005, %v3023
  %v3044 = vsel %vm48, %v3008, %v3037
  %v3046 = vld [vmem:[%s1] sm:$0xf]
  %v3047 = vld [vmem:[%s1 + $0x4] sm:$0xf]
  %v3048 = vld [vmem:[%s1 + $0x8] sm:$0xf]
  %v3049 = vld [vmem:[%s1 + $0xc] sm:$0xf]
  %v3050 = vld [vmem:[%s1 + $0x10] sm:$0xf]
  %v3051 = vld [vmem:[%s1 + $0x14] sm:$0xf]
  %v3052 = vld [vmem:[%s1 + $0x18] sm:$0xf]
  %v3053 = vld [vmem:[%s1 + $0x1c] sm:$0xf]
  %v3054 = vld [vmem:[%s1 + $0x20] sm:$0xf]
  %v3055 = vld [vmem:[%s1 + $0x24] sm:$0xf]
  %v3056 = vld [vmem:[%s1 + $0x28] sm:$0xf]
  %v3057 = vld [vmem:[%s1 + $0x2c] sm:$0xf]
  %v3058 = vld [vmem:[%s1 + $0x30] sm:$0xf]
  %v3059 = vld [vmem:[%s1 + $0x34] sm:$0xf]
  %v3060 = vld [vmem:[%s1 + $0x38] sm:$0xf]
  %v3061 = vld [vmem:[%s1 + $0x3c] sm:$0xf]
  %v3062 = vld [vmem:[%s1 + $0x40] sm:$0xf]
  %v3063 = vld [vmem:[%s1 + $0x44] sm:$0xf]
  %v3064 = vld [vmem:[%s1 + $0x48] sm:$0xf]
  %v3065 = vld [vmem:[%s1 + $0x4c] sm:$0xf]
  %v3066 = vld [vmem:[%s1 + $0x50] sm:$0xf]
  %v3067 = vld [vmem:[%s1 + $0x54] sm:$0xf]
  %v3068 = vld [vmem:[%s1 + $0x58] sm:$0xf]
  %v3069 = vld [vmem:[%s1 + $0x5c] sm:$0xf]
  %v3070 = vld [vmem:[%s1 + $0x60] sm:$0xf]
  %v3071 = vld [vmem:[%s1 + $0x64] sm:$0xf]
  %v3072 = vld [vmem:[%s1 + $0x68] sm:$0xf]
  %v3073 = vld [vmem:[%s1 + $0x6c] sm:$0xf]
  %v3074 = vld [vmem:[%s1 + $0x70] sm:$0xf]
  %v3075 = vld [vmem:[%s1 + $0x74] sm:$0xf]
  %v3076 = vld [vmem:[%s1 + $0x78] sm:$0xf]
  %v3077 = vld [vmem:[%s1 + $0x7c] sm:$0xf]
  %v3110 = vunpack.c.l.b16 %v3046
  %v3111 = vunpack.c.l.b16 %v3047
  %v3112 = vunpack.c.l.b16 %v3048
  %v3113 = vunpack.c.l.b16 %v3049
  %v3114 = vunpack.c.l.b16 %v3050
  %v3115 = vunpack.c.l.b16 %v3051
  %v3116 = vunpack.c.l.b16 %v3052
  %v3117 = vunpack.c.l.b16 %v3053
  %v3118 = vunpack.c.l.b16 %v3054
  %v3119 = vunpack.c.l.b16 %v3055
  %v3120 = vunpack.c.l.b16 %v3056
  %v3121 = vunpack.c.l.b16 %v3057
  %v3122 = vunpack.c.l.b16 %v3058
  %v3123 = vunpack.c.l.b16 %v3059
  %v3124 = vunpack.c.l.b16 %v3060
  %v3125 = vunpack.c.l.b16 %v3061
  %v3126 = vunpack.c.l.b16 %v3062
  %v3127 = vunpack.c.l.b16 %v3063
  %v3128 = vunpack.c.l.b16 %v3064
  %v3129 = vunpack.c.l.b16 %v3065
  %v3130 = vunpack.c.l.b16 %v3066
  %v3131 = vunpack.c.l.b16 %v3067
  %v3132 = vunpack.c.l.b16 %v3068
  %v3133 = vunpack.c.l.b16 %v3069
  %v3134 = vunpack.c.l.b16 %v3070
  %v3135 = vunpack.c.l.b16 %v3071
  %v3136 = vunpack.c.l.b16 %v3072
  %v3137 = vunpack.c.l.b16 %v3073
  %v3138 = vunpack.c.l.b16 %v3074
  %v3139 = vunpack.c.l.b16 %v3075
  %v3140 = vunpack.c.l.b16 %v3076
  %v3141 = vunpack.c.l.b16 %v3077
  %v3142 = vpack.c.b16 %v3111, %v3110
  %v3143 = vpack.c.b16 %v3113, %v3112
  %v3144 = vpack.c.b16 %v3115, %v3114
  %v3145 = vpack.c.b16 %v3117, %v3116
  %v3146 = vpack.c.b16 %v3119, %v3118
  %v3147 = vpack.c.b16 %v3121, %v3120
  %v3148 = vpack.c.b16 %v3123, %v3122
  %v3149 = vpack.c.b16 %v3125, %v3124
  %v3150 = vpack.c.b16 %v3127, %v3126
  %v3151 = vpack.c.b16 %v3129, %v3128
  %v3152 = vpack.c.b16 %v3131, %v3130
  %v3153 = vpack.c.b16 %v3133, %v3132
  %v3154 = vpack.c.b16 %v3135, %v3134
  %v3155 = vpack.c.b16 %v3137, %v3136
  %v3156 = vpack.c.b16 %v3139, %v3138
  %v3157 = vpack.c.b16 %v3141, %v3140
  %3174 = vmatpush.bf16.msra.mxu0 %v3149
  %3175 = vmatpush.bf16.msra.mxu0 %v3148
  %3176 = vmatpush.bf16.msra.mxu0 %v3147
  %3177 = vmatpush.bf16.msra.mxu0 %v3146
  %3178 = vmatpush.bf16.msra.mxu0 %v3145
  %3179 = vmatpush.bf16.msra.mxu0 %v3144
  %3180 = vmatpush.bf16.msra.mxu0 %v3143
  %3181 = vmatpush.bf16.msra.mxu0 %v3142
  %3182 = vmatmul.bf16.gmra.mxu0 %v3040
  %v3183 = vpop.f32.mrf.mxu0
  %v3184 = vadd.f32 %v90, %v3183
  %v3185 = vpop.f32.mrf.mxu0
  %3186 = vdwg.mxu0
  %3187 = vmatpush.bf16.msra.mxu0 %v3157
  %3188 = vmatpush.bf16.msra.mxu0 %v3156
  %3189 = vmatpush.bf16.msra.mxu0 %v3155
  %3190 = vmatpush.bf16.msra.mxu0 %v3154
  %3191 = vmatpush.bf16.msra.mxu0 %v3153
  %3192 = vmatpush.bf16.msra.mxu0 %v3152
  %3193 = vmatpush.bf16.msra.mxu0 %v3151
  %3194 = vmatpush.bf16.msra.mxu0 %v3150
  %3195 = vmatmul.bf16.gmra.mxu0 %v3044
  %v3196 = vpop.f32.mrf.mxu0
  %v3197 = vadd.f32 %v3184, %v3196
  %v3198 = vpop.f32.mrf.mxu0
  %3199 = vdwg.mxu0
  %v3200 = vmax.f32 %v3197, 0.0
  %v3201 = vpack.c.bf16 %v3200, %v3200
  %s3202 = scalar_lea.vmem %s3, 60
  %3203 = vst.msk [vmem:[%s3202] sm:$0xf] %vm216, %v3201
  // Predicated region
  $region14: #{convnet_forward.4} parent=0 // pred_check
    _
  $region15: #{convnet_forward.4} parent=0 // pred_check_branch
    %3205 = sbr.rel (0) target = $region17
  $region16: #{convnet_forward.4} parent=0 // pred_region
    _
  $region17: #{convnet_forward.4} parent=0 // pred_fallthru
    _
  // Predicated region
  $region18: #{convnet_forward.4} parent=0 // pred_check
    _
  $region19: #{convnet_forward.4} parent=0 // pred_check_branch
    %3207 = sbr.rel (0) target = $region21
  $region20: #{convnet_forward.4} parent=0 // pred_region
    _
  $region21: #{convnet_forward.4} parent=0 // pred_fallthru
    _

// kernel: convnet_forward.5
$region0: #{convnet_forward.5}
  #allocation0 [shape = 'u32[]', space=smem, size = 0x4, offset = 0x4, fixed_abs, tag = 'smem constant byte address 0x4 - core index']
  #allocation1 [shape = 'u32[72,128]{1,0:T(1,128)}', space=vmem, size = 0x9000, scoped, tag = 'internal scratch']
  %s0 = inlined_call_operand.vmem [shape: bf16[2,4,4,128], index: 0, kind: input, shape index: {}]
  %s1 = inlined_call_operand.vmem [shape: bf16[512,64], index: 1, kind: input, shape index: {}]
  %s2 = inlined_call_operand.vmem [shape: f32[1,64], index: 2, kind: input, shape index: {}]
  %s3 = inlined_call_operand.vmem [shape: bf16[2,3,3,64], index: 3, kind: output, shape index: {}]
  %s4 = sld [smem:[#allocation0]]
  $region22: #{convnet_forward.5} parent=0
    _
  %s6 = ssub.s32 1, %s4
  %s7 = scalar_select 0, %s6, %s4
  // Predicated region
  $region2: #{convnet_forward.5} parent=0 // pred_check
    _
  $region3: #{convnet_forward.5} parent=0 // pred_check_branch
    %9 = sbr.rel (0) target = $region5
  $region4: #{convnet_forward.5} parent=0 // pred_region
    _
  $region5: #{convnet_forward.5} parent=0 // pred_fallthru
    _
  // Predicated region
  $region6: #{convnet_forward.5} parent=0 // pred_check
    _
  $region7: #{convnet_forward.5} parent=0 // pred_check_branch
    %11 = sbr.rel (0) target = $region9
  $region8: #{convnet_forward.5} parent=0 // pred_region
    _
  $region9: #{convnet_forward.5} parent=0 // pred_fallthru
    _
  // Predicated region
  $region10: #{convnet_forward.5} parent=0 // pred_check
    _
  $region11: #{convnet_forward.5} parent=0 // pred_check_branch
    %13 = sbr.rel (0) target = $region13
  $region12: #{convnet_forward.5} parent=0 // pred_region
    _
  $region13: #{convnet_forward.5} parent=0 // pred_fallthru
    _
  %v14 = vld [vmem:[%s2] sm:$0x1]
  %v15 = vld [vmem:[%s0] sm:$0x3]
  %s16 = scalar_lea.vmem %s0, 2
  %v17 = vld [vmem:[%s16] sm:$0x3]
  %19 = vst [vmem:[#allocation1] ss:$4 sm:$0xff] %v15
  %v20 = vld.sshfl [vmem:[#allocation1] sm:$0xff pattern:$0x73625140]
  %v21 = vshrl.u32 %v20, 16
  %v23 = vshll.u32 %v20, 16
  %v25 = vrot.slane %v23, 1
  %v26 = vor.u32 %v21, %v25
  %29 = vst [vmem:[#allocation1] ss:$4 sm:$0xff] %v17
  %v30 = vld.sshfl [vmem:[#allocation1] sm:$0xff pattern:$0x73625140]
  %v31 = vshrl.u32 %v30, 16
  %v33 = vshll.u32 %v30, 16
  %v35 = vrot.slane %v33, 1
  %v36 = vor.u32 %v31, %v35
  %v38 = vld [vmem:[%s1] sm:$0xf]
  %v39 = vld [vmem:[%s1 + $0x4] sm:$0xf]
  %v40 = vld [vmem:[%s1 + $0x8] sm:$0xf]
  %v41 = vld [vmem:[%s1 + $0xc] sm:$0xf]
  %v42 = vld [vmem:[%s1 + $0x10] sm:$0xf]
  %v43 = vld [vmem:[%s1 + $0x14] sm:$0xf]
  %v44 = vld [vmem:[%s1 + $0x18] sm:$0xf]
  %v45 = vld [vmem:[%s1 + $0x1c] sm:$0xf]
  %v46 = vld [vmem:[%s1 + $0x20] sm:$0xf]
  %v47 = vld [vmem:[%s1 + $0x24] sm:$0xf]
  %v48 = vld [vmem:[%s1 + $0x28] sm:$0xf]
  %v49 = vld [vmem:[%s1 + $0x2c] sm:$0xf]
  %v50 = vld [vmem:[%s1 + $0x30] sm:$0xf]
  %v51 = vld [vmem:[%s1 + $0x34] sm:$0xf]
  %v52 = vld [vmem:[%s1 + $0x38] sm:$0xf]
  %v53 = vld [vmem:[%s1 + $0x3c] sm:$0xf]
  %v54 = vld [vmem:[%s1 + $0x40] sm:$0xf]
  %v55 = vld [vmem:[%s1 + $0x44] sm:$0xf]
  %v56 = vld [vmem:[%s1 + $0x48] sm:$0xf]
  %v57 = vld [vmem:[%s1 + $0x4c] sm:$0xf]
  %v58 = vld [vmem:[%s1 + $0x50] sm:$0xf]
  %v59 = vld [vmem:[%s1 + $0x54] sm:$0xf]
  %v60 = vld [vmem:[%s1 + $0x58] sm:$0xf]
  %v61 = vld [vmem:[%s1 + $0x5c] sm:$0xf]
  %v62 = vld [vmem:[%s1 + $0x60] sm:$0xf]
  %v63 = vld [vmem:[%s1 + $0x64] sm:$0xf]
  %v64 = vld [vmem:[%s1 + $0x68] sm:$0xf]
  %v65 = vld [vmem:[%s1 + $0x6c] sm:$0xf]
  %v66 = vld [vmem:[%s1 + $0x70] sm:$0xf]
  %v67 = vld [vmem:[%s1 + $0x74] sm:$0xf]
  %v68 = vld [vmem:[%s1 + $0x78] sm:$0xf]
  %v69 = vld [vmem:[%s1 + $0x7c] sm:$0xf]
  %v70 = vld [vmem:[%s1 + $0x80] sm:$0xf]
  %v71 = vld [vmem:[%s1 + $0x84] sm:$0xf]
  %v72 = vld [vmem:[%s1 + $0x88] sm:$0xf]
  %v73 = vld [vmem:[%s1 + $0x8c] sm:$0xf]
  %v74 = vld [vmem:[%s1 + $0x90] sm:$0xf]
  %v75 = vld [vmem:[%s1 + $0x94] sm:$0xf]
  %v76 = vld [vmem:[%s1 + $0x98] sm:$0xf]
  %v77 = vld [vmem:[%s1 + $0x9c] sm:$0xf]
  %v78 = vld [vmem:[%s1 + $0xa0] sm:$0xf]
  %v79 = vld [vmem:[%s1 + $0xa4] sm:$0xf]
  %v80 = vld [vmem:[%s1 + $0xa8] sm:$0xf]
  %v81 = vld [vmem:[%s1 + $0xac] sm:$0xf]
  %v82 = vld [vmem:[%s1 + $0xb0] sm:$0xf]
  %v83 = vld [vmem:[%s1 + $0xb4] sm:$0xf]
  %v84 = vld [vmem:[%s1 + $0xb8] sm:$0xf]
  %v85 = vld [vmem:[%s1 + $0xbc] sm:$0xf]
  %v86 = vld [vmem:[%s1 + $0xc0] sm:$0xf]
  %v87 = vld [vmem:[%s1 + $0xc4] sm:$0xf]
  %v88 = vld [vmem:[%s1 + $0xc8] sm:$0xf]
  %v89 = vld [vmem:[%s1 + $0xcc] sm:$0xf]
  %v90 = vld [vmem:[%s1 + $0xd0] sm:$0xf]
  %v91 = vld [vmem:[%s1 + $0xd4] sm:$0xf]
  %v92 = vld [vmem:[%s1 + $0xd8] sm:$0xf]
  %v93 = vld [vmem:[%s1 + $0xdc] sm:$0xf]
  %v94 = vld [vmem:[%s1 + $0xe0] sm:$0xf]
  %v95 = vld [vmem:[%s1 + $0xe4] sm:$0xf]
  %v96 = vld [vmem:[%s1 + $0xe8] sm:$0xf]
  %v97 = vld [vmem:[%s1 + $0xec] sm:$0xf]
  %v98 = vld [vmem:[%s1 + $0xf0] sm:$0xf]
  %v99 = vld [vmem:[%s1 + $0xf4] sm:$0xf]
  %v100 = vld [vmem:[%s1 + $0xf8] sm:$0xf]
  %v101 = vld [vmem:[%s1 + $0xfc] sm:$0xf]
  %v103 = vperm.slane %v14, 0
  %v169 = vunpack.c.l.b16 %v38
  %v170 = vunpack.c.l.b16 %v39
  %v171 = vunpack.c.l.b16 %v40
  %v172 = vunpack.c.l.b16 %v41
  %v173 = vunpack.c.l.b16 %v42
  %v174 = vunpack.c.l.b16 %v43
  %v175 = vunpack.c.l.b16 %v44
  %v176 = vunpack.c.l.b16 %v45
  %v177 = vunpack.c.l.b16 %v46
  %v178 = vunpack.c.l.b16 %v47
  %v179 = vunpack.c.l.b16 %v48
  %v180 = vunpack.c.l.b16 %v49
  %v181 = vunpack.c.l.b16 %v50
  %v182 = vunpack.c.l.b16 %v51
  %v183 = vunpack.c.l.b16 %v52
  %v184 = vunpack.c.l.b16 %v53
  %v185 = vunpack.c.l.b16 %v54
  %v186 = vunpack.c.l.b16 %v55
  %v187 = vunpack.c.l.b16 %v56
  %v188 = vunpack.c.l.b16 %v57
  %v189 = vunpack.c.l.b16 %v58
  %v190 = vunpack.c.l.b16 %v59
  %v191 = vunpack.c.l.b16 %v60
  %v192 = vunpack.c.l.b16 %v61
  %v193 = vunpack.c.l.b16 %v62
  %v194 = vunpack.c.l.b16 %v63
  %v195 = vunpack.c.l.b16 %v64
  %v196 = vunpack.c.l.b16 %v65
  %v197 = vunpack.c.l.b16 %v66
  %v198 = vunpack.c.l.b16 %v67
  %v199 = vunpack.c.l.b16 %v68
  %v200 = vunpack.c.l.b16 %v69
  %v201 = vunpack.c.l.b16 %v70
  %v202 = vunpack.c.l.b16 %v71
  %v203 = vunpack.c.l.b16 %v72
  %v204 = vunpack.c.l.b16 %v73
  %v205 = vunpack.c.l.b16 %v74
  %v206 = vunpack.c.l.b16 %v75
  %v207 = vunpack.c.l.b16 %v76
  %v208 = vunpack.c.l.b16 %v77
  %v209 = vunpack.c.l.b16 %v78
  %v210 = vunpack.c.l.b16 %v79
  %v211 = vunpack.c.l.b16 %v80
  %v212 = vunpack.c.l.b16 %v81
  %v213 = vunpack.c.l.b16 %v82
  %v214 = vunpack.c.l.b16 %v83
  %v215 = vunpack.c.l.b16 %v84
  %v216 = vunpack.c.l.b16 %v85
  %v217 = vunpack.c.l.b16 %v86
  %v218 = vunpack.c.l.b16 %v87
  %v219 = vunpack.c.l.b16 %v88
  %v220 = vunpack.c.l.b16 %v89
  %v221 = vunpack.c.l.b16 %v90
  %v222 = vunpack.c.l.b16 %v91
  %v223 = vunpack.c.l.b16 %v92
  %v224 = vunpack.c.l.b16 %v93
  %v225 = vunpack.c.l.b16 %v94
  %v226 = vunpack.c.l.b16 %v95
  %v227 = vunpack.c.l.b16 %v96
  %v228 = vunpack.c.l.b16 %v97
  %v229 = vunpack.c.l.b16 %v98
  %v230 = vunpack.c.l.b16 %v99
  %v231 = vunpack.c.l.b16 %v100
  %v232 = vunpack.c.l.b16 %v101
  %v233 = vpack.c.b16 %v170, %v169
  %v234 = vpack.c.b16 %v172, %v171
  %v235 = vpack.c.b16 %v174, %v173
  %v236 = vpack.c.b16 %v176, %v175
  %v237 = vpack.c.b16 %v178, %v177
  %v238 = vpack.c.b16 %v180, %v179
  %v239 = vpack.c.b16 %v182, %v181
  %v240 = vpack.c.b16 %v184, %v183
  %v241 = vpack.c.b16 %v186, %v185
  %v242 = vpack.c.b16 %v188, %v187
  %v243 = vpack.c.b16 %v190, %v189
  %v244 = vpack.c.b16 %v192, %v191
  %v245 = vpack.c.b16 %v194, %v193
  %v246 = vpack.c.b16 %v196, %v195
  %v247 = vpack.c.b16 %v198, %v197
  %v248 = vpack.c.b16 %v200, %v199
  %v249 = vpack.c.b16 %v202, %v201
  %v250 = vpack.c.b16 %v204, %v203
  %v251 = vpack.c.b16 %v206, %v205
  %v252 = vpack.c.b16 %v208, %v207
  %v253 = vpack.c.b16 %v210, %v209
  %v254 = vpack.c.b16 %v212, %v211
  %v255 = vpack.c.b16 %v214, %v213
  %v256 = vpack.c.b16 %v216, %v215
  %v257 = vpack.c.b16 %v218, %v217
  %v258 = vpack.c.b16 %v220, %v219
  %v259 = vpack.c.b16 %v222, %v221
  %v260 = vpack.c.b16 %v224, %v223
  %v261 = vpack.c.b16 %v226, %v225
  %v262 = vpack.c.b16 %v228, %v227
  %v263 = vpack.c.b16 %v230, %v229
  %v264 = vpack.c.b16 %v232, %v231
  %297 = vmatpush.bf16.msra.mxu0 %v240
  %298 = vmatpush.bf16.msra.mxu0 %v239
  %299 = vmatpush.bf16.msra.mxu0 %v238
  %300 = vmatpush.bf16.msra.mxu0 %v237
  %301 = vmatpush.bf16.msra.mxu0 %v236
  %302 = vmatpush.bf16.msra.mxu0 %v235
  %303 = vmatpush.bf16.msra.mxu0 %v234
  %304 = vmatpush.bf16.msra.mxu0 %v233
  %305 = vmatmul.bf16.gmra.mxu0 %v15
  %v306 = vpop.f32.mrf.mxu0
  %v307 = vadd.f32 %v103, %v306
  %v308 = vpop.f32.mrf.mxu0
  %309 = vdwg.mxu0
  %310 = vmatpush.bf16.msra.mxu0 %v248
  %311 = vmatpush.bf16.msra.mxu0 %v247
  %312 = vmatpush.bf16.msra.mxu0 %v246
  %313 = vmatpush.bf16.msra.mxu0 %v245
  %314 = vmatpush.bf16.msra.mxu0 %v244
  %315 = vmatpush.bf16.msra.mxu0 %v243
  %316 = vmatpush.bf16.msra.mxu0 %v242
  %317 = vmatpush.bf16.msra.mxu0 %v241
  %318 = vmatmul.bf16.gmra.mxu0 %v26
  %v319 = vpop.f32.mrf.mxu0
  %v320 = vadd.f32 %v307, %v319
  %v321 = vpop.f32.mrf.mxu0
  %322 = vdwg.mxu0
  %323 = vmatpush.bf16.msra.mxu0 %v256
  %324 = vmatpush.bf16.msra.mxu0 %v255
  %325 = vmatpush.bf16.msra.mxu0 %v254
  %326 = vmatpush.bf16.msra.mxu0 %v253
  %327 = vmatpush.bf16.msra.mxu0 %v252
  %328 = vmatpush.bf16.msra.mxu0 %v251
  %329 = vmatpush.bf16.msra.mxu0 %v250
  %330 = vmatpush.bf16.msra.mxu0 %v249
  %331 = vmatmul.bf16.gmra.mxu0 %v17
  %v332 = vpop.f32.mrf.mxu0
  %v333 = vadd.f32 %v320, %v332
  %v334 = vpop.f32.mrf.mxu0
  %335 = vdwg.mxu0
  %336 = vmatpush.bf16.msra.mxu0 %v264
  %337 = vmatpush.bf16.msra.mxu0 %v263
  %338 = vmatpush.bf16.msra.mxu0 %v262
  %339 = vmatpush.bf16.msra.mxu0 %v261
  %340 = vmatpush.bf16.msra.mxu0 %v260
  %341 = vmatpush.bf16.msra.mxu0 %v259
  %342 = vmatpush.bf16.msra.mxu0 %v258
  %343 = vmatpush.bf16.msra.mxu0 %v257
  %344 = vmatmul.bf16.gmra.mxu0 %v36
  %v345 = vpop.f32.mrf.mxu0
  %v346 = vadd.f32 %v333, %v345
  %v347 = vpop.f32.mrf.mxu0
  %348 = vdwg.mxu0
  %v349 = vmax.f32 %v346, 0.0
  %v350 = vpack.c.bf16 %v349, %v349
  %vm351 = vcmask 517120
  %vm352 = vsmask.f32 1280
  %vm353 = vmand %vm351, %vm352
  %v354 = vld [vmem:[%s3] sm:$0x3]
  %v355 = vsel %vm353, %v350, %v354
  %356 = vst [vmem:[%s3] sm:$0x3] %v355
  %v357 = vld [vmem:[%s16] sm:$0x3]
  %s358 = scalar_lea.vmem %s0, 4
  %v359 = vld [vmem:[%s358] sm:$0x3]
  %361 = vst [vmem:[#allocation1] ss:$4 sm:$0xff] %v357
  %v362 = vld.sshfl [vmem:[#allocation1] sm:$0xff pattern:$0x73625140]
  %v363 = vshrl.u32 %v362, 16
  %v365 = vshll.u32 %v362, 16
  %v367 = vrot.slane %v365, 1
  %v368 = vor.u32 %v363, %v367
  %371 = vst [vmem:[#allocation1] ss:$4 sm:$0xff] %v359
  %v372 = vld.sshfl [vmem:[#allocation1] sm:$0xff pattern:$0x73625140]
  %v373 = vshrl.u32 %v372, 16
  %v375 = vshll.u32 %v372, 16
  %v377 = vrot.slane %v375, 1
  %v378 = vor.u32 %v373, %v377
  %v380 = vld [vmem:[%s1] sm:$0xf]
  %v381 = vld [vmem:[%s1 + $0x4] sm:$0xf]
  %v382 = vld [vmem:[%s1 + $0x8] sm:$0xf]
  %v383 = vld [vmem:[%s1 + $0xc] sm:$0xf]
  %v384 = vld [vmem:[%s1 + $0x10] sm:$0xf]
  %v385 = vld [vmem:[%s1 + $0x14] sm:$0xf]
  %v386 = vld [vmem:[%s1 + $0x18] sm:$0xf]
  %v387 = vld [vmem:[%s1 + $0x1c] sm:$0xf]
  %v388 = vld [vmem:[%s1 + $0x20] sm:$0xf]
  %v389 = vld [vmem:[%s1 + $0x24] sm:$0xf]
  %v390 = vld [vmem:[%s1 + $0x28] sm:$0xf]
  %v391 = vld [vmem:[%s1 + $0x2c] sm:$0xf]
  %v392 = vld [vmem:[%s1 + $0x30] sm:$0xf]
  %v393 = vld [vmem:[%s1 + $0x34] sm:$0xf]
  %v394 = vld [vmem:[%s1 + $0x38] sm:$0xf]
  %v395 = vld [vmem:[%s1 + $0x3c] sm:$0xf]
  %v396 = vld [vmem:[%s1 + $0x40] sm:$0xf]
  %v397 = vld [vmem:[%s1 + $0x44] sm:$0xf]
  %v398 = vld [vmem:[%s1 + $0x48] sm:$0xf]
  %v399 = vld [vmem:[%s1 + $0x4c] sm:$0xf]
  %v400 = vld [vmem:[%s1 + $0x50] sm:$0xf]
  %v401 = vld [vmem:[%s1 + $0x54] sm:$0xf]
  %v402 = vld [vmem:[%s1 + $0x58] sm:$0xf]
  %v403 = vld [vmem:[%s1 + $0x5c] sm:$0xf]
  %v404 = vld [vmem:[%s1 + $0x60] sm:$0xf]
  %v405 = vld [vmem:[%s1 + $0x64] sm:$0xf]
  %v406 = vld [vmem:[%s1 + $0x68] sm:$0xf]
  %v407 = vld [vmem:[%s1 + $0x6c] sm:$0xf]
  %v408 = vld [vmem:[%s1 + $0x70] sm:$0xf]
  %v409 = vld [vmem:[%s1 + $0x74] sm:$0xf]
  %v410 = vld [vmem:[%s1 + $0x78] sm:$0xf]
  %v411 = vld [vmem:[%s1 + $0x7c] sm:$0xf]
  %v412 = vld [vmem:[%s1 + $0x80] sm:$0xf]
  %v413 = vld [vmem:[%s1 + $0x84] sm:$0xf]
  %v414 = vld [vmem:[%s1 + $0x88] sm:$0xf]
  %v415 = vld [vmem:[%s1 + $0x8c] sm:$0xf]
  %v416 = vld [vmem:[%s1 + $0x90] sm:$0xf]
  %v417 = vld [vmem:[%s1 + $0x94] sm:$0xf]
  %v418 = vld [vmem:[%s1 + $0x98] sm:$0xf]
  %v419 = vld [vmem:[%s1 + $0x9c] sm:$0xf]
  %v420 = vld [vmem:[%s1 + $0xa0] sm:$0xf]
  %v421 = vld [vmem:[%s1 + $0xa4] sm:$0xf]
  %v422 = vld [vmem:[%s1 + $0xa8] sm:$0xf]
  %v423 = vld [vmem:[%s1 + $0xac] sm:$0xf]
  %v424 = vld [vmem:[%s1 + $0xb0] sm:$0xf]
  %v425 = vld [vmem:[%s1 + $0xb4] sm:$0xf]
  %v426 = vld [vmem:[%s1 + $0xb8] sm:$0xf]
  %v427 = vld [vmem:[%s1 + $0xbc] sm:$0xf]
  %v428 = vld [vmem:[%s1 + $0xc0] sm:$0xf]
  %v429 = vld [vmem:[%s1 + $0xc4] sm:$0xf]
  %v430 = vld [vmem:[%s1 + $0xc8] sm:$0xf]
  %v431 = vld [vmem:[%s1 + $0xcc] sm:$0xf]
  %v432 = vld [vmem:[%s1 + $0xd0] sm:$0xf]
  %v433 = vld [vmem:[%s1 + $0xd4] sm:$0xf]
  %v434 = vld [vmem:[%s1 + $0xd8] sm:$0xf]
  %v435 = vld [vmem:[%s1 + $0xdc] sm:$0xf]
  %v436 = vld [vmem:[%s1 + $0xe0] sm:$0xf]
  %v437 = vld [vmem:[%s1 + $0xe4] sm:$0xf]
  %v438 = vld [vmem:[%s1 + $0xe8] sm:$0xf]
  %v439 = vld [vmem:[%s1 + $0xec] sm:$0xf]
  %v440 = vld [vmem:[%s1 + $0xf0] sm:$0xf]
  %v441 = vld [vmem:[%s1 + $0xf4] sm:$0xf]
  %v442 = vld [vmem:[%s1 + $0xf8] sm:$0xf]
  %v443 = vld [vmem:[%s1 + $0xfc] sm:$0xf]
  %v508 = vunpack.c.l.b16 %v380
  %v509 = vunpack.c.l.b16 %v381
  %v510 = vunpack.c.l.b16 %v382
  %v511 = vunpack.c.l.b16 %v383
  %v512 = vunpack.c.l.b16 %v384
  %v513 = vunpack.c.l.b16 %v385
  %v514 = vunpack.c.l.b16 %v386
  %v515 = vunpack.c.l.b16 %v387
  %v516 = vunpack.c.l.b16 %v388
  %v517 = vunpack.c.l.b16 %v389
  %v518 = vunpack.c.l.b16 %v390
  %v519 = vunpack.c.l.b16 %v391
  %v520 = vunpack.c.l.b16 %v392
  %v521 = vunpack.c.l.b16 %v393
  %v522 = vunpack.c.l.b16 %v394
  %v523 = vunpack.c.l.b16 %v395
  %v524 = vunpack.c.l.b16 %v396
  %v525 = vunpack.c.l.b16 %v397
  %v526 = vunpack.c.l.b16 %v398
  %v527 = vunpack.c.l.b16 %v399
  %v528 = vunpack.c.l.b16 %v400
  %v529 = vunpack.c.l.b16 %v401
  %v530 = vunpack.c.l.b16 %v402
  %v531 = vunpack.c.l.b16 %v403
  %v532 = vunpack.c.l.b16 %v404
  %v533 = vunpack.c.l.b16 %v405
  %v534 = vunpack.c.l.b16 %v406
  %v535 = vunpack.c.l.b16 %v407
  %v536 = vunpack.c.l.b16 %v408
  %v537 = vunpack.c.l.b16 %v409
  %v538 = vunpack.c.l.b16 %v410
  %v539 = vunpack.c.l.b16 %v411
  %v540 = vunpack.c.l.b16 %v412
  %v541 = vunpack.c.l.b16 %v413
  %v542 = vunpack.c.l.b16 %v414
  %v543 = vunpack.c.l.b16 %v415
  %v544 = vunpack.c.l.b16 %v416
  %v545 = vunpack.c.l.b16 %v417
  %v546 = vunpack.c.l.b16 %v418
  %v547 = vunpack.c.l.b16 %v419
  %v548 = vunpack.c.l.b16 %v420
  %v549 = vunpack.c.l.b16 %v421
  %v550 = vunpack.c.l.b16 %v422
  %v551 = vunpack.c.l.b16 %v423
  %v552 = vunpack.c.l.b16 %v424
  %v553 = vunpack.c.l.b16 %v425
  %v554 = vunpack.c.l.b16 %v426
  %v555 = vunpack.c.l.b16 %v427
  %v556 = vunpack.c.l.b16 %v428
  %v557 = vunpack.c.l.b16 %v429
  %v558 = vunpack.c.l.b16 %v430
  %v559 = vunpack.c.l.b16 %v431
  %v560 = vunpack.c.l.b16 %v432
  %v561 = vunpack.c.l.b16 %v433
  %v562 = vunpack.c.l.b16 %v434
  %v563 = vunpack.c.l.b16 %v435
  %v564 = vunpack.c.l.b16 %v436
  %v565 = vunpack.c.l.b16 %v437
  %v566 = vunpack.c.l.b16 %v438
  %v567 = vunpack.c.l.b16 %v439
  %v568 = vunpack.c.l.b16 %v440
  %v569 = vunpack.c.l.b16 %v441
  %v570 = vunpack.c.l.b16 %v442
  %v571 = vunpack.c.l.b16 %v443
  %v572 = vpack.c.b16 %v509, %v508
  %v573 = vpack.c.b16 %v511, %v510
  %v574 = vpack.c.b16 %v513, %v512
  %v575 = vpack.c.b16 %v515, %v514
  %v576 = vpack.c.b16 %v517, %v516
  %v577 = vpack.c.b16 %v519, %v518
  %v578 = vpack.c.b16 %v521, %v520
  %v579 = vpack.c.b16 %v523, %v522
  %v580 = vpack.c.b16 %v525, %v524
  %v581 = vpack.c.b16 %v527, %v526
  %v582 = vpack.c.b16 %v529, %v528
  %v583 = vpack.c.b16 %v531, %v530
  %v584 = vpack.c.b16 %v533, %v532
  %v585 = vpack.c.b16 %v535, %v534
  %v586 = vpack.c.b16 %v537, %v536
  %v587 = vpack.c.b16 %v539, %v538
  %v588 = vpack.c.b16 %v541, %v540
  %v589 = vpack.c.b16 %v543, %v542
  %v590 = vpack.c.b16 %v545, %v544
  %v591 = vpack.c.b16 %v547, %v546
  %v592 = vpack.c.b16 %v549, %v548
  %v593 = vpack.c.b16 %v551, %v550
  %v594 = vpack.c.b16 %v553, %v552
  %v595 = vpack.c.b16 %v555, %v554
  %v596 = vpack.c.b16 %v557, %v556
  %v597 = vpack.c.b16 %v559, %v558
  %v598 = vpack.c.b16 %v561, %v560
  %v599 = vpack.c.b16 %v563, %v562
  %v600 = vpack.c.b16 %v565, %v564
  %v601 = vpack.c.b16 %v567, %v566
  %v602 = vpack.c.b16 %v569, %v568
  %v603 = vpack.c.b16 %v571, %v570
  %636 = vmatpush.bf16.msra.mxu0 %v579
  %637 = vmatpush.bf16.msra.mxu0 %v578
  %638 = vmatpush.bf16.msra.mxu0 %v577
  %639 = vmatpush.bf16.msra.mxu0 %v576
  %640 = vmatpush.bf16.msra.mxu0 %v575
  %641 = vmatpush.bf16.msra.mxu0 %v574
  %642 = vmatpush.bf16.msra.mxu0 %v573
  %643 = vmatpush.bf16.msra.mxu0 %v572
  %644 = vmatmul.bf16.gmra.mxu0 %v357
  %v645 = vpop.f32.mrf.mxu0
  %v646 = vadd.f32 %v103, %v645
  %v647 = vpop.f32.mrf.mxu0
  %648 = vdwg.mxu0
  %649 = vmatpush.bf16.msra.mxu0 %v587
  %650 = vmatpush.bf16.msra.mxu0 %v586
  %651 = vmatpush.bf16.msra.mxu0 %v585
  %652 = vmatpush.bf16.msra.mxu0 %v584
  %653 = vmatpush.bf16.msra.mxu0 %v583
  %654 = vmatpush.bf16.msra.mxu0 %v582
  %655 = vmatpush.bf16.msra.mxu0 %v581
  %656 = vmatpush.bf16.msra.mxu0 %v580
  %657 = vmatmul.bf16.gmra.mxu0 %v368
  %v658 = vpop.f32.mrf.mxu0
  %v659 = vadd.f32 %v646, %v658
  %v660 = vpop.f32.mrf.mxu0
  %661 = vdwg.mxu0
  %662 = vmatpush.bf16.msra.mxu0 %v595
  %663 = vmatpush.bf16.msra.mxu0 %v594
  %664 = vmatpush.bf16.msra.mxu0 %v593
  %665 = vmatpush.bf16.msra.mxu0 %v592
  %666 = vmatpush.bf16.msra.mxu0 %v591
  %667 = vmatpush.bf16.msra.mxu0 %v590
  %668 = vmatpush.bf16.msra.mxu0 %v589
  %669 = vmatpush.bf16.msra.mxu0 %v588
  %670 = vmatmul.bf16.gmra.mxu0 %v359
  %v671 = vpop.f32.mrf.mxu0
  %v672 = vadd.f32 %v659, %v671
  %v673 = vpop.f32.mrf.mxu0
  %674 = vdwg.mxu0
  %675 = vmatpush.bf16.msra.mxu0 %v603
  %676 = vmatpush.bf16.msra.mxu0 %v602
  %677 = vmatpush.bf16.msra.mxu0 %v601
  %678 = vmatpush.bf16.msra.mxu0 %v600
  %679 = vmatpush.bf16.msra.mxu0 %v599
  %680 = vmatpush.bf16.msra.mxu0 %v598
  %681 = vmatpush.bf16.msra.mxu0 %v597
  %682 = vmatpush.bf16.msra.mxu0 %v596
  %683 = vmatmul.bf16.gmra.mxu0 %v378
  %v684 = vpop.f32.mrf.mxu0
  %v685 = vadd.f32 %v672, %v684
  %v686 = vpop.f32.mrf.mxu0
  %687 = vdwg.mxu0
  %v688 = vmax.f32 %v685, 0.0
  %v689 = vpack.c.bf16 %v688, %v688
  %s690 = scalar_lea.vmem %s3, 2
  %v691 = vld [vmem:[%s690] sm:$0x3]
  %v692 = vsel %vm353, %v689, %v691
  %693 = vst [vmem:[%s690] sm:$0x3] %v692
  %v694 = vld [vmem:[%s358] sm:$0x3]
  %s695 = scalar_lea.vmem %s0, 6
  %v696 = vld [vmem:[%s695] sm:$0x3]
  %698 = vst [vmem:[#allocation1] ss:$4 sm:$0xff] %v694
  %v699 = vld.sshfl [vmem:[#allocation1] sm:$0xff pattern:$0x73625140]
  %v700 = vshrl.u32 %v699, 16
  %v702 = vshll.u32 %v699, 16
  %v704 = vrot.slane %v702, 1
  %v705 = vor.u32 %v700, %v704
  %708 = vst [vmem:[#allocation1] ss:$4 sm:$0xff] %v696
  %v709 = vld.sshfl [vmem:[#allocation1] sm:$0xff pattern:$0x73625140]
  %v710 = vshrl.u32 %v709, 16
  %v712 = vshll.u32 %v709, 16
  %v714 = vrot.slane %v712, 1
  %v715 = vor.u32 %v710, %v714
  %v717 = vld [vmem:[%s1] sm:$0xf]
  %v718 = vld [vmem:[%s1 + $0x4] sm:$0xf]
  %v719 = vld [vmem:[%s1 + $0x8] sm:$0xf]
  %v720 = vld [vmem:[%s1 + $0xc] sm:$0xf]
  %v721 = vld [vmem:[%s1 + $0x10] sm:$0xf]
  %v722 = vld [vmem:[%s1 + $0x14] sm:$0xf]
  %v723 = vld [vmem:[%s1 + $0x18] sm:$0xf]
  %v724 = vld [vmem:[%s1 + $0x1c] sm:$0xf]
  %v725 = vld [vmem:[%s1 + $0x20] sm:$0xf]
  %v726 = vld [vmem:[%s1 + $0x24] sm:$0xf]
  %v727 = vld [vmem:[%s1 + $0x28] sm:$0xf]
  %v728 = vld [vmem:[%s1 + $0x2c] sm:$0xf]
  %v729 = vld [vmem:[%s1 + $0x30] sm:$0xf]
  %v730 = vld [vmem:[%s1 + $0x34] sm:$0xf]
  %v731 = vld [vmem:[%s1 + $0x38] sm:$0xf]
  %v732 = vld [vmem:[%s1 + $0x3c] sm:$0xf]
  %v733 = vld [vmem:[%s1 + $0x40] sm:$0xf]
  %v734 = vld [vmem:[%s1 + $0x44] sm:$0xf]
  %v735 = vld [vmem:[%s1 + $0x48] sm:$0xf]
  %v736 = vld [vmem:[%s1 + $0x4c] sm:$0xf]
  %v737 = vld [vmem:[%s1 + $0x50] sm:$0xf]
  %v738 = vld [vmem:[%s1 + $0x54] sm:$0xf]
  %v739 = vld [vmem:[%s1 + $0x58] sm:$0xf]
  %v740 = vld [vmem:[%s1 + $0x5c] sm:$0xf]
  %v741 = vld [vmem:[%s1 + $0x60] sm:$0xf]
  %v742 = vld [vmem:[%s1 + $0x64] sm:$0xf]
  %v743 = vld [vmem:[%s1 + $0x68] sm:$0xf]
  %v744 = vld [vmem:[%s1 + $0x6c] sm:$0xf]
  %v745 = vld [vmem:[%s1 + $0x70] sm:$0xf]
  %v746 = vld [vmem:[%s1 + $0x74] sm:$0xf]
  %v747 = vld [vmem:[%s1 + $0x78] sm:$0xf]
  %v748 = vld [vmem:[%s1 + $0x7c] sm:$0xf]
  %v749 = vld [vmem:[%s1 + $0x80] sm:$0xf]
  %v750 = vld [vmem:[%s1 + $0x84] sm:$0xf]
  %v751 = vld [vmem:[%s1 + $0x88] sm:$0xf]
  %v752 = vld [vmem:[%s1 + $0x8c] sm:$0xf]
  %v753 = vld [vmem:[%s1 + $0x90] sm:$0xf]
  %v754 = vld [vmem:[%s1 + $0x94] sm:$0xf]
  %v755 = vld [vmem:[%s1 + $0x98] sm:$0xf]
  %v756 = vld [vmem:[%s1 + $0x9c] sm:$0xf]
  %v757 = vld [vmem:[%s1 + $0xa0] sm:$0xf]
  %v758 = vld [vmem:[%s1 + $0xa4] sm:$0xf]
  %v759 = vld [vmem:[%s1 + $0xa8] sm:$0xf]
  %v760 = vld [vmem:[%s1 + $0xac] sm:$0xf]
  %v761 = vld [vmem:[%s1 + $0xb0] sm:$0xf]
  %v762 = vld [vmem:[%s1 + $0xb4] sm:$0xf]
  %v763 = vld [vmem:[%s1 + $0xb8] sm:$0xf]
  %v764 = vld [vmem:[%s1 + $0xbc] sm:$0xf]
  %v765 = vld [vmem:[%s1 + $0xc0] sm:$0xf]
  %v766 = vld [vmem:[%s1 + $0xc4] sm:$0xf]
  %v767 = vld [vmem:[%s1 + $0xc8] sm:$0xf]
  %v768 = vld [vmem:[%s1 + $0xcc] sm:$0xf]
  %v769 = vld [vmem:[%s1 + $0xd0] sm:$0xf]
  %v770 = vld [vmem:[%s1 + $0xd4] sm:$0xf]
  %v771 = vld [vmem:[%s1 + $0xd8] sm:$0xf]
  %v772 = vld [vmem:[%s1 + $0xdc] sm:$0xf]
  %v773 = vld [vmem:[%s1 + $0xe0] sm:$0xf]
  %v774 = vld [vmem:[%s1 + $0xe4] sm:$0xf]
  %v775 = vld [vmem:[%s1 + $0xe8] sm:$0xf]
  %v776 = vld [vmem:[%s1 + $0xec] sm:$0xf]
  %v777 = vld [vmem:[%s1 + $0xf0] sm:$0xf]
  %v778 = vld [vmem:[%s1 + $0xf4] sm:$0xf]
  %v779 = vld [vmem:[%s1 + $0xf8] sm:$0xf]
  %v780 = vld [vmem:[%s1 + $0xfc] sm:$0xf]
  %v845 = vunpack.c.l.b16 %v717
  %v846 = vunpack.c.l.b16 %v718
  %v847 = vunpack.c.l.b16 %v719
  %v848 = vunpack.c.l.b16 %v720
  %v849 = vunpack.c.l.b16 %v721
  %v850 = vunpack.c.l.b16 %v722
  %v851 = vunpack.c.l.b16 %v723
  %v852 = vunpack.c.l.b16 %v724
  %v853 = vunpack.c.l.b16 %v725
  %v854 = vunpack.c.l.b16 %v726
  %v855 = vunpack.c.l.b16 %v727
  %v856 = vunpack.c.l.b16 %v728
  %v857 = vunpack.c.l.b16 %v729
  %v858 = vunpack.c.l.b16 %v730
  %v859 = vunpack.c.l.b16 %v731
  %v860 = vunpack.c.l.b16 %v732
  %v861 = vunpack.c.l.b16 %v733
  %v862 = vunpack.c.l.b16 %v734
  %v863 = vunpack.c.l.b16 %v735
  %v864 = vunpack.c.l.b16 %v736
  %v865 = vunpack.c.l.b16 %v737
  %v866 = vunpack.c.l.b16 %v738
  %v867 = vunpack.c.l.b16 %v739
  %v868 = vunpack.c.l.b16 %v740
  %v869 = vunpack.c.l.b16 %v741
  %v870 = vunpack.c.l.b16 %v742
  %v871 = vunpack.c.l.b16 %v743
  %v872 = vunpack.c.l.b16 %v744
  %v873 = vunpack.c.l.b16 %v745
  %v874 = vunpack.c.l.b16 %v746
  %v875 = vunpack.c.l.b16 %v747
  %v876 = vunpack.c.l.b16 %v748
  %v877 = vunpack.c.l.b16 %v749
  %v878 = vunpack.c.l.b16 %v750
  %v879 = vunpack.c.l.b16 %v751
  %v880 = vunpack.c.l.b16 %v752
  %v881 = vunpack.c.l.b16 %v753
  %v882 = vunpack.c.l.b16 %v754
  %v883 = vunpack.c.l.b16 %v755
  %v884 = vunpack.c.l.b16 %v756
  %v885 = vunpack.c.l.b16 %v757
  %v886 = vunpack.c.l.b16 %v758
  %v887 = vunpack.c.l.b16 %v759
  %v888 = vunpack.c.l.b16 %v760
  %v889 = vunpack.c.l.b16 %v761
  %v890 = vunpack.c.l.b16 %v762
  %v891 = vunpack.c.l.b16 %v763
  %v892 = vunpack.c.l.b16 %v764
  %v893 = vunpack.c.l.b16 %v765
  %v894 = vunpack.c.l.b16 %v766
  %v895 = vunpack.c.l.b16 %v767
  %v896 = vunpack.c.l.b16 %v768
  %v897 = vunpack.c.l.b16 %v769
  %v898 = vunpack.c.l.b16 %v770
  %v899 = vunpack.c.l.b16 %v771
  %v900 = vunpack.c.l.b16 %v772
  %v901 = vunpack.c.l.b16 %v773
  %v902 = vunpack.c.l.b16 %v774
  %v903 = vunpack.c.l.b16 %v775
  %v904 = vunpack.c.l.b16 %v776
  %v905 = vunpack.c.l.b16 %v777
  %v906 = vunpack.c.l.b16 %v778
  %v907 = vunpack.c.l.b16 %v779
  %v908 = vunpack.c.l.b16 %v780
  %v909 = vpack.c.b16 %v846, %v845
  %v910 = vpack.c.b16 %v848, %v847
  %v911 = vpack.c.b16 %v850, %v849
  %v912 = vpack.c.b16 %v852, %v851
  %v913 = vpack.c.b16 %v854, %v853
  %v914 = vpack.c.b16 %v856, %v855
  %v915 = vpack.c.b16 %v858, %v857
  %v916 = vpack.c.b16 %v860, %v859
  %v917 = vpack.c.b16 %v862, %v861
  %v918 = vpack.c.b16 %v864, %v863
  %v919 = vpack.c.b16 %v866, %v865
  %v920 = vpack.c.b16 %v868, %v867
  %v921 = vpack.c.b16 %v870, %v869
  %v922 = vpack.c.b16 %v872, %v871
  %v923 = vpack.c.b16 %v874, %v873
  %v924 = vpack.c.b16 %v876, %v875
  %v925 = vpack.c.b16 %v878, %v877
  %v926 = vpack.c.b16 %v880, %v879
  %v927 = vpack.c.b16 %v882, %v881
  %v928 = vpack.c.b16 %v884, %v883
  %v929 = vpack.c.b16 %v886, %v885
  %v930 = vpack.c.b16 %v888, %v887
  %v931 = vpack.c.b16 %v890, %v889
  %v932 = vpack.c.b16 %v892, %v891
  %v933 = vpack.c.b16 %v894, %v893
  %v934 = vpack.c.b16 %v896, %v895
  %v935 = vpack.c.b16 %v898, %v897
  %v936 = vpack.c.b16 %v900, %v899
  %v937 = vpack.c.b16 %v902, %v901
  %v938 = vpack.c.b16 %v904, %v903
  %v939 = vpack.c.b16 %v906, %v905
  %v940 = vpack.c.b16 %v908, %v907
  %973 = vmatpush.bf16.msra.mxu0 %v916
  %974 = vmatpush.bf16.msra.mxu0 %v915
  %975 = vmatpush.bf16.msra.mxu0 %v914
  %976 = vmatpush.bf16.msra.mxu0 %v913
  %977 = vmatpush.bf16.msra.mxu0 %v912
  %978 = vmatpush.bf16.msra.mxu0 %v911
  %979 = vmatpush.bf16.msra.mxu0 %v910
  %980 = vmatpush.bf16.msra.mxu0 %v909
  %981 = vmatmul.bf16.gmra.mxu0 %v694
  %v982 = vpop.f32.mrf.mxu0
  %v983 = vadd.f32 %v103, %v982
  %v984 = vpop.f32.mrf.mxu0
  %985 = vdwg.mxu0
  %986 = vmatpush.bf16.msra.mxu0 %v924
  %987 = vmatpush.bf16.msra.mxu0 %v923
  %988 = vmatpush.bf16.msra.mxu0 %v922
  %989 = vmatpush.bf16.msra.mxu0 %v921
  %990 = vmatpush.bf16.msra.mxu0 %v920
  %991 = vmatpush.bf16.msra.mxu0 %v919
  %992 = vmatpush.bf16.msra.mxu0 %v918
  %993 = vmatpush.bf16.msra.mxu0 %v917
  %994 = vmatmul.bf16.gmra.mxu0 %v705
  %v995 = vpop.f32.mrf.mxu0
  %v996 = vadd.f32 %v983, %v995
  %v997 = vpop.f32.mrf.mxu0
  %998 = vdwg.mxu0
  %999 = vmatpush.bf16.msra.mxu0 %v932
  %1000 = vmatpush.bf16.msra.mxu0 %v931
  %1001 = vmatpush.bf16.msra.mxu0 %v930
  %1002 = vmatpush.bf16.msra.mxu0 %v929
  %1003 = vmatpush.bf16.msra.mxu0 %v928
  %1004 = vmatpush.bf16.msra.mxu0 %v927
  %1005 = vmatpush.bf16.msra.mxu0 %v926
  %1006 = vmatpush.bf16.msra.mxu0 %v925
  %1007 = vmatmul.bf16.gmra.mxu0 %v696
  %v1008 = vpop.f32.mrf.mxu0
  %v1009 = vadd.f32 %v996, %v1008
  %v1010 = vpop.f32.mrf.mxu0
  %1011 = vdwg.mxu0
  %1012 = vmatpush.bf16.msra.mxu0 %v940
  %1013 = vmatpush.bf16.msra.mxu0 %v939
  %1014 = vmatpush.bf16.msra.mxu0 %v938
  %1015 = vmatpush.bf16.msra.mxu0 %v937
  %1016 = vmatpush.bf16.msra.mxu0 %v936
  %1017 = vmatpush.bf16.msra.mxu0 %v935
  %1018 = vmatpush.bf16.msra.mxu0 %v934
  %1019 = vmatpush.bf16.msra.mxu0 %v933
  %1020 = vmatmul.bf16.gmra.mxu0 %v715
  %v1021 = vpop.f32.mrf.mxu0
  %v1022 = vadd.f32 %v1009, %v1021
  %v1023 = vpop.f32.mrf.mxu0
  %1024 = vdwg.mxu0
  %v1025 = vmax.f32 %v1022, 0.0
  %v1026 = vpack.c.bf16 %v1025, %v1025
  %s1027 = scalar_lea.vmem %s3, 4
  %v1028 = vld [vmem:[%s1027] sm:$0x3]
  %v1029 = vsel %vm353, %v1026, %v1028
  %1030 = vst [vmem:[%s1027] sm:$0x3] %v1029
  %s1031 = scalar_lea.vmem %s0, 8
  %v1032 = vld [vmem:[%s1031] sm:$0x3]
  %s1033 = scalar_lea.vmem %s0, 10
  %v1034 = vld [vmem:[%s1033] sm:$0x3]
  %1036 = vst [vmem:[#allocation1] ss:$4 sm:$0xff] %v1032
  %v1037 = vld.sshfl [vmem:[#allocation1] sm:$0xff pattern:$0x73625140]
  %v1038 = vshrl.u32 %v1037, 16
  %v1040 = vshll.u32 %v1037, 16
  %v1042 = vrot.slane %v1040, 1
  %v1043 = vor.u32 %v1038, %v1042
  %1046 = vst [vmem:[#allocation1] ss:$4 sm:$0xff] %v1034
  %v1047 = vld.sshfl [vmem:[#allocation1] sm:$0xff pattern:$0x73625140]
  %v1048 = vshrl.u32 %v1047, 16
  %v1050 = vshll.u32 %v1047, 16
  %v1052 = vrot.slane %v1050, 1
  %v1053 = vor.u32 %v1048, %v1052
  %v1055 = vld [vmem:[%s1] sm:$0xf]
  %v1056 = vld [vmem:[%s1 + $0x4] sm:$0xf]
  %v1057 = vld [vmem:[%s1 + $0x8] sm:$0xf]
  %v1058 = vld [vmem:[%s1 + $0xc] sm:$0xf]
  %v1059 = vld [vmem:[%s1 + $0x10] sm:$0xf]
  %v1060 = vld [vmem:[%s1 + $0x14] sm:$0xf]
  %v1061 = vld [vmem:[%s1 + $0x18] sm:$0xf]
  %v1062 = vld [vmem:[%s1 + $0x1c] sm:$0xf]
  %v1063 = vld [vmem:[%s1 + $0x20] sm:$0xf]
  %v1064 = vld [vmem:[%s1 + $0x24] sm:$0xf]
  %v1065 = vld [vmem:[%s1 + $0x28] sm:$0xf]
  %v1066 = vld [vmem:[%s1 + $0x2c] sm:$0xf]
  %v1067 = vld [vmem:[%s1 + $0x30] sm:$0xf]
  %v1068 = vld [vmem:[%s1 + $0x34] sm:$0xf]
  %v1069 = vld [vmem:[%s1 + $0x38] sm:$0xf]
  %v1070 = vld [vmem:[%s1 + $0x3c] sm:$0xf]
  %v1071 = vld [vmem:[%s1 + $0x40] sm:$0xf]
  %v1072 = vld [vmem:[%s1 + $0x44] sm:$0xf]
  %v1073 = vld [vmem:[%s1 + $0x48] sm:$0xf]
  %v1074 = vld [vmem:[%s1 + $0x4c] sm:$0xf]
  %v1075 = vld [vmem:[%s1 + $0x50] sm:$0xf]
  %v1076 = vld [vmem:[%s1 + $0x54] sm:$0xf]
  %v1077 = vld [vmem:[%s1 + $0x58] sm:$0xf]
  %v1078 = vld [vmem:[%s1 + $0x5c] sm:$0xf]
  %v1079 = vld [vmem:[%s1 + $0x60] sm:$0xf]
  %v1080 = vld [vmem:[%s1 + $0x64] sm:$0xf]
  %v1081 = vld [vmem:[%s1 + $0x68] sm:$0xf]
  %v1082 = vld [vmem:[%s1 + $0x6c] sm:$0xf]
  %v1083 = vld [vmem:[%s1 + $0x70] sm:$0xf]
  %v1084 = vld [vmem:[%s1 + $0x74] sm:$0xf]
  %v1085 = vld [vmem:[%s1 + $0x78] sm:$0xf]
  %v1086 = vld [vmem:[%s1 + $0x7c] sm:$0xf]
  %v1087 = vld [vmem:[%s1 + $0x80] sm:$0xf]
  %v1088 = vld [vmem:[%s1 + $0x84] sm:$0xf]
  %v1089 = vld [vmem:[%s1 + $0x88] sm:$0xf]
  %v1090 = vld [vmem:[%s1 + $0x8c] sm:$0xf]
  %v1091 = vld [vmem:[%s1 + $0x90] sm:$0xf]
  %v1092 = vld [vmem:[%s1 + $0x94] sm:$0xf]
  %v1093 = vld [vmem:[%s1 + $0x98] sm:$0xf]
  %v1094 = vld [vmem:[%s1 + $0x9c] sm:$0xf]
  %v1095 = vld [vmem:[%s1 + $0xa0] sm:$0xf]
  %v1096 = vld [vmem:[%s1 + $0xa4] sm:$0xf]
  %v1097 = vld [vmem:[%s1 + $0xa8] sm:$0xf]
  %v1098 = vld [vmem:[%s1 + $0xac] sm:$0xf]
  %v1099 = vld [vmem:[%s1 + $0xb0] sm:$0xf]
  %v1100 = vld [vmem:[%s1 + $0xb4] sm:$0xf]
  %v1101 = vld [vmem:[%s1 + $0xb8] sm:$0xf]
  %v1102 = vld [vmem:[%s1 + $0xbc] sm:$0xf]
  %v1103 = vld [vmem:[%s1 + $0xc0] sm:$0xf]
  %v1104 = vld [vmem:[%s1 + $0xc4] sm:$0xf]
  %v1105 = vld [vmem:[%s1 + $0xc8] sm:$0xf]
  %v1106 = vld [vmem:[%s1 + $0xcc] sm:$0xf]
  %v1107 = vld [vmem:[%s1 + $0xd0] sm:$0xf]
  %v1108 = vld [vmem:[%s1 + $0xd4] sm:$0xf]
  %v1109 = vld [vmem:[%s1 + $0xd8] sm:$0xf]
  %v1110 = vld [vmem:[%s1 + $0xdc] sm:$0xf]
  %v1111 = vld [vmem:[%s1 + $0xe0] sm:$0xf]
  %v1112 = vld [vmem:[%s1 + $0xe4] sm:$0xf]
  %v1113 = vld [vmem:[%s1 + $0xe8] sm:$0xf]
  %v1114 = vld [vmem:[%s1 + $0xec] sm:$0xf]
  %v1115 = vld [vmem:[%s1 + $0xf0] sm:$0xf]
  %v1116 = vld [vmem:[%s1 + $0xf4] sm:$0xf]
  %v1117 = vld [vmem:[%s1 + $0xf8] sm:$0xf]
  %v1118 = vld [vmem:[%s1 + $0xfc] sm:$0xf]
  %v1183 = vunpack.c.l.b16 %v1055
  %v1184 = vunpack.c.l.b16 %v1056
  %v1185 = vunpack.c.l.b16 %v1057
  %v1186 = vunpack.c.l.b16 %v1058
  %v1187 = vunpack.c.l.b16 %v1059
  %v1188 = vunpack.c.l.b16 %v1060
  %v1189 = vunpack.c.l.b16 %v1061
  %v1190 = vunpack.c.l.b16 %v1062
  %v1191 = vunpack.c.l.b16 %v1063
  %v1192 = vunpack.c.l.b16 %v1064
  %v1193 = vunpack.c.l.b16 %v1065
  %v1194 = vunpack.c.l.b16 %v1066
  %v1195 = vunpack.c.l.b16 %v1067
  %v1196 = vunpack.c.l.b16 %v1068
  %v1197 = vunpack.c.l.b16 %v1069
  %v1198 = vunpack.c.l.b16 %v1070
  %v1199 = vunpack.c.l.b16 %v1071
  %v1200 = vunpack.c.l.b16 %v1072
  %v1201 = vunpack.c.l.b16 %v1073
  %v1202 = vunpack.c.l.b16 %v1074
  %v1203 = vunpack.c.l.b16 %v1075
  %v1204 = vunpack.c.l.b16 %v1076
  %v1205 = vunpack.c.l.b16 %v1077
  %v1206 = vunpack.c.l.b16 %v1078
  %v1207 = vunpack.c.l.b16 %v1079
  %v1208 = vunpack.c.l.b16 %v1080
  %v1209 = vunpack.c.l.b16 %v1081
  %v1210 = vunpack.c.l.b16 %v1082
  %v1211 = vunpack.c.l.b16 %v1083
  %v1212 = vunpack.c.l.b16 %v1084
  %v1213 = vunpack.c.l.b16 %v1085
  %v1214 = vunpack.c.l.b16 %v1086
  %v1215 = vunpack.c.l.b16 %v1087
  %v1216 = vunpack.c.l.b16 %v1088
  %v1217 = vunpack.c.l.b16 %v1089
  %v1218 = vunpack.c.l.b16 %v1090
  %v1219 = vunpack.c.l.b16 %v1091
  %v1220 = vunpack.c.l.b16 %v1092
  %v1221 = vunpack.c.l.b16 %v1093
  %v1222 = vunpack.c.l.b16 %v1094
  %v1223 = vunpack.c.l.b16 %v1095
  %v1224 = vunpack.c.l.b16 %v1096
  %v1225 = vunpack.c.l.b16 %v1097
  %v1226 = vunpack.c.l.b16 %v1098
  %v1227 = vunpack.c.l.b16 %v1099
  %v1228 = vunpack.c.l.b16 %v1100
  %v1229 = vunpack.c.l.b16 %v1101
  %v1230 = vunpack.c.l.b16 %v1102
  %v1231 = vunpack.c.l.b16 %v1103
  %v1232 = vunpack.c.l.b16 %v1104
  %v1233 = vunpack.c.l.b16 %v1105
  %v1234 = vunpack.c.l.b16 %v1106
  %v1235 = vunpack.c.l.b16 %v1107
  %v1236 = vunpack.c.l.b16 %v1108
  %v1237 = vunpack.c.l.b16 %v1109
  %v1238 = vunpack.c.l.b16 %v1110
  %v1239 = vunpack.c.l.b16 %v1111
  %v1240 = vunpack.c.l.b16 %v1112
  %v1241 = vunpack.c.l.b16 %v1113
  %v1242 = vunpack.c.l.b16 %v1114
  %v1243 = vunpack.c.l.b16 %v1115
  %v1244 = vunpack.c.l.b16 %v1116
  %v1245 = vunpack.c.l.b16 %v1117
  %v1246 = vunpack.c.l.b16 %v1118
  %v1247 = vpack.c.b16 %v1184, %v1183
  %v1248 = vpack.c.b16 %v1186, %v1185
  %v1249 = vpack.c.b16 %v1188, %v1187
  %v1250 = vpack.c.b16 %v1190, %v1189
  %v1251 = vpack.c.b16 %v1192, %v1191
  %v1252 = vpack.c.b16 %v1194, %v1193
  %v1253 = vpack.c.b16 %v1196, %v1195
  %v1254 = vpack.c.b16 %v1198, %v1197
  %v1255 = vpack.c.b16 %v1200, %v1199
  %v1256 = vpack.c.b16 %v1202, %v1201
  %v1257 = vpack.c.b16 %v1204, %v1203
  %v1258 = vpack.c.b16 %v1206, %v1205
  %v1259 = vpack.c.b16 %v1208, %v1207
  %v1260 = vpack.c.b16 %v1210, %v1209
  %v1261 = vpack.c.b16 %v1212, %v1211
  %v1262 = vpack.c.b16 %v1214, %v1213
  %v1263 = vpack.c.b16 %v1216, %v1215
  %v1264 = vpack.c.b16 %v1218, %v1217
  %v1265 = vpack.c.b16 %v1220, %v1219
  %v1266 = vpack.c.b16 %v1222, %v1221
  %v1267 = vpack.c.b16 %v1224, %v1223
  %v1268 = vpack.c.b16 %v1226, %v1225
  %v1269 = vpack.c.b16 %v1228, %v1227
  %v1270 = vpack.c.b16 %v1230, %v1229
  %v1271 = vpack.c.b16 %v1232, %v1231
  %v1272 = vpack.c.b16 %v1234, %v1233
  %v1273 = vpack.c.b16 %v1236, %v1235
  %v1274 = vpack.c.b16 %v1238, %v1237
  %v1275 = vpack.c.b16 %v1240, %v1239
  %v1276 = vpack.c.b16 %v1242, %v1241
  %v1277 = vpack.c.b16 %v1244, %v1243
  %v1278 = vpack.c.b16 %v1246, %v1245
  %1311 = vmatpush.bf16.msra.mxu0 %v1254
  %1312 = vmatpush.bf16.msra.mxu0 %v1253
  %1313 = vmatpush.bf16.msra.mxu0 %v1252
  %1314 = vmatpush.bf16.msra.mxu0 %v1251
  %1315 = vmatpush.bf16.msra.mxu0 %v1250
  %1316 = vmatpush.bf16.msra.mxu0 %v1249
  %1317 = vmatpush.bf16.msra.mxu0 %v1248
  %1318 = vmatpush.bf16.msra.mxu0 %v1247
  %1319 = vmatmul.bf16.gmra.mxu0 %v1032
  %v1320 = vpop.f32.mrf.mxu0
  %v1321 = vadd.f32 %v103, %v1320
  %v1322 = vpop.f32.mrf.mxu0
  %1323 = vdwg.mxu0
  %1324 = vmatpush.bf16.msra.mxu0 %v1262
  %1325 = vmatpush.bf16.msra.mxu0 %v1261
  %1326 = vmatpush.bf16.msra.mxu0 %v1260
  %1327 = vmatpush.bf16.msra.mxu0 %v1259
  %1328 = vmatpush.bf16.msra.mxu0 %v1258
  %1329 = vmatpush.bf16.msra.mxu0 %v1257
  %1330 = vmatpush.bf16.msra.mxu0 %v1256
  %1331 = vmatpush.bf16.msra.mxu0 %v1255
  %1332 = vmatmul.bf16.gmra.mxu0 %v1043
  %v1333 = vpop.f32.mrf.mxu0
  %v1334 = vadd.f32 %v1321, %v1333
  %v1335 = vpop.f32.mrf.mxu0
  %1336 = vdwg.mxu0
  %1337 = vmatpush.bf16.msra.mxu0 %v1270
  %1338 = vmatpush.bf16.msra.mxu0 %v1269
  %1339 = vmatpush.bf16.msra.mxu0 %v1268
  %1340 = vmatpush.bf16.msra.mxu0 %v1267
  %1341 = vmatpush.bf16.msra.mxu0 %v1266
  %1342 = vmatpush.bf16.msra.mxu0 %v1265
  %1343 = vmatpush.bf16.msra.mxu0 %v1264
  %1344 = vmatpush.bf16.msra.mxu0 %v1263
  %1345 = vmatmul.bf16.gmra.mxu0 %v1034
  %v1346 = vpop.f32.mrf.mxu0
  %v1347 = vadd.f32 %v1334, %v1346
  %v1348 = vpop.f32.mrf.mxu0
  %1349 = vdwg.mxu0
  %1350 = vmatpush.bf16.msra.mxu0 %v1278
  %1351 = vmatpush.bf16.msra.mxu0 %v1277
  %1352 = vmatpush.bf16.msra.mxu0 %v1276
  %1353 = vmatpush.bf16.msra.mxu0 %v1275
  %1354 = vmatpush.bf16.msra.mxu0 %v1274
  %1355 = vmatpush.bf16.msra.mxu0 %v1273
  %1356 = vmatpush.bf16.msra.mxu0 %v1272
  %1357 = vmatpush.bf16.msra.mxu0 %v1271
  %1358 = vmatmul.bf16.gmra.mxu0 %v1053
  %v1359 = vpop.f32.mrf.mxu0
  %v1360 = vadd.f32 %v1347, %v1359
  %v1361 = vpop.f32.mrf.mxu0
  %1362 = vdwg.mxu0
  %v1363 = vmax.f32 %v1360, 0.0
  %v1364 = vpack.c.bf16 %v1363, %v1363
  %s1365 = scalar_lea.vmem %s3, 6
  %v1366 = vld [vmem:[%s1365] sm:$0x3]
  %v1367 = vsel %vm353, %v1364, %v1366
  %1368 = vst [vmem:[%s1365] sm:$0x3] %v1367
  %v1369 = vld [vmem:[%s1033] sm:$0x3]
  %s1370 = scalar_lea.vmem %s0, 12
  %v1371 = vld [vmem:[%s1370] sm:$0x3]
  %1373 = vst [vmem:[#allocation1] ss:$4 sm:$0xff] %v1369
  %v1374 = vld.sshfl [vmem:[#allocation1] sm:$0xff pattern:$0x73625140]
  %v1375 = vshrl.u32 %v1374, 16
  %v1377 = vshll.u32 %v1374, 16
  %v1379 = vrot.slane %v1377, 1
  %v1380 = vor.u32 %v1375, %v1379
  %1383 = vst [vmem:[#allocation1] ss:$4 sm:$0xff] %v1371
  %v1384 = vld.sshfl [vmem:[#allocation1] sm:$0xff pattern:$0x73625140]
  %v1385 = vshrl.u32 %v1384, 16
  %v1387 = vshll.u32 %v1384, 16
  %v1389 = vrot.slane %v1387, 1
  %v1390 = vor.u32 %v1385, %v1389
  %v1392 = vld [vmem:[%s1] sm:$0xf]
  %v1393 = vld [vmem:[%s1 + $0x4] sm:$0xf]
  %v1394 = vld [vmem:[%s1 + $0x8] sm:$0xf]
  %v1395 = vld [vmem:[%s1 + $0xc] sm:$0xf]
  %v1396 = vld [vmem:[%s1 + $0x10] sm:$0xf]
  %v1397 = vld [vmem:[%s1 + $0x14] sm:$0xf]
  %v1398 = vld [vmem:[%s1 + $0x18] sm:$0xf]
  %v1399 = vld [vmem:[%s1 + $0x1c] sm:$0xf]
  %v1400 = vld [vmem:[%s1 + $0x20] sm:$0xf]
  %v1401 = vld [vmem:[%s1 + $0x24] sm:$0xf]
  %v1402 = vld [vmem:[%s1 + $0x28] sm:$0xf]
  %v1403 = vld [vmem:[%s1 + $0x2c] sm:$0xf]
  %v1404 = vld [vmem:[%s1 + $0x30] sm:$0xf]
  %v1405 = vld [vmem:[%s1 + $0x34] sm:$0xf]
  %v1406 = vld [vmem:[%s1 + $0x38] sm:$0xf]
  %v1407 = vld [vmem:[%s1 + $0x3c] sm:$0xf]
  %v1408 = vld [vmem:[%s1 + $0x40] sm:$0xf]
  %v1409 = vld [vmem:[%s1 + $0x44] sm:$0xf]
  %v1410 = vld [vmem:[%s1 + $0x48] sm:$0xf]
  %v1411 = vld [vmem:[%s1 + $0x4c] sm:$0xf]
  %v1412 = vld [vmem:[%s1 + $0x50] sm:$0xf]
  %v1413 = vld [vmem:[%s1 + $0x54] sm:$0xf]
  %v1414 = vld [vmem:[%s1 + $0x58] sm:$0xf]
  %v1415 = vld [vmem:[%s1 + $0x5c] sm:$0xf]
  %v1416 = vld [vmem:[%s1 + $0x60] sm:$0xf]
  %v1417 = vld [vmem:[%s1 + $0x64] sm:$0xf]
  %v1418 = vld [vmem:[%s1 + $0x68] sm:$0xf]
  %v1419 = vld [vmem:[%s1 + $0x6c] sm:$0xf]
  %v1420 = vld [vmem:[%s1 + $0x70] sm:$0xf]
  %v1421 = vld [vmem:[%s1 + $0x74] sm:$0xf]
  %v1422 = vld [vmem:[%s1 + $0x78] sm:$0xf]
  %v1423 = vld [vmem:[%s1 + $0x7c] sm:$0xf]
  %v1424 = vld [vmem:[%s1 + $0x80] sm:$0xf]
  %v1425 = vld [vmem:[%s1 + $0x84] sm:$0xf]
  %v1426 = vld [vmem:[%s1 + $0x88] sm:$0xf]
  %v1427 = vld [vmem:[%s1 + $0x8c] sm:$0xf]
  %v1428 = vld [vmem:[%s1 + $0x90] sm:$0xf]
  %v1429 = vld [vmem:[%s1 + $0x94] sm:$0xf]
  %v1430 = vld [vmem:[%s1 + $0x98] sm:$0xf]
  %v1431 = vld [vmem:[%s1 + $0x9c] sm:$0xf]
  %v1432 = vld [vmem:[%s1 + $0xa0] sm:$0xf]
  %v1433 = vld [vmem:[%s1 + $0xa4] sm:$0xf]
  %v1434 = vld [vmem:[%s1 + $0xa8] sm:$0xf]
  %v1435 = vld [vmem:[%s1 + $0xac] sm:$0xf]
  %v1436 = vld [vmem:[%s1 + $0xb0] sm:$0xf]
  %v1437 = vld [vmem:[%s1 + $0xb4] sm:$0xf]
  %v1438 = vld [vmem:[%s1 + $0xb8] sm:$0xf]
  %v1439 = vld [vmem:[%s1 + $0xbc] sm:$0xf]
  %v1440 = vld [vmem:[%s1 + $0xc0] sm:$0xf]
  %v1441 = vld [vmem:[%s1 + $0xc4] sm:$0xf]
  %v1442 = vld [vmem:[%s1 + $0xc8] sm:$0xf]
  %v1443 = vld [vmem:[%s1 + $0xcc] sm:$0xf]
  %v1444 = vld [vmem:[%s1 + $0xd0] sm:$0xf]
  %v1445 = vld [vmem:[%s1 + $0xd4] sm:$0xf]
  %v1446 = vld [vmem:[%s1 + $0xd8] sm:$0xf]
  %v1447 = vld [vmem:[%s1 + $0xdc] sm:$0xf]
  %v1448 = vld [vmem:[%s1 + $0xe0] sm:$0xf]
  %v1449 = vld [vmem:[%s1 + $0xe4] sm:$0xf]
  %v1450 = vld [vmem:[%s1 + $0xe8] sm:$0xf]
  %v1451 = vld [vmem:[%s1 + $0xec] sm:$0xf]
  %v1452 = vld [vmem:[%s1 + $0xf0] sm:$0xf]
  %v1453 = vld [vmem:[%s1 + $0xf4] sm:$0xf]
  %v1454 = vld [vmem:[%s1 + $0xf8] sm:$0xf]
  %v1455 = vld [vmem:[%s1 + $0xfc] sm:$0xf]
  %v1520 = vunpack.c.l.b16 %v1392
  %v1521 = vunpack.c.l.b16 %v1393
  %v1522 = vunpack.c.l.b16 %v1394
  %v1523 = vunpack.c.l.b16 %v1395
  %v1524 = vunpack.c.l.b16 %v1396
  %v1525 = vunpack.c.l.b16 %v1397
  %v1526 = vunpack.c.l.b16 %v1398
  %v1527 = vunpack.c.l.b16 %v1399
  %v1528 = vunpack.c.l.b16 %v1400
  %v1529 = vunpack.c.l.b16 %v1401
  %v1530 = vunpack.c.l.b16 %v1402
  %v1531 = vunpack.c.l.b16 %v1403
  %v1532 = vunpack.c.l.b16 %v1404
  %v1533 = vunpack.c.l.b16 %v1405
  %v1534 = vunpack.c.l.b16 %v1406
  %v1535 = vunpack.c.l.b16 %v1407
  %v1536 = vunpack.c.l.b16 %v1408
  %v1537 = vunpack.c.l.b16 %v1409
  %v1538 = vunpack.c.l.b16 %v1410
  %v1539 = vunpack.c.l.b16 %v1411
  %v1540 = vunpack.c.l.b16 %v1412
  %v1541 = vunpack.c.l.b16 %v1413
  %v1542 = vunpack.c.l.b16 %v1414
  %v1543 = vunpack.c.l.b16 %v1415
  %v1544 = vunpack.c.l.b16 %v1416
  %v1545 = vunpack.c.l.b16 %v1417
  %v1546 = vunpack.c.l.b16 %v1418
  %v1547 = vunpack.c.l.b16 %v1419
  %v1548 = vunpack.c.l.b16 %v1420
  %v1549 = vunpack.c.l.b16 %v1421
  %v1550 = vunpack.c.l.b16 %v1422
  %v1551 = vunpack.c.l.b16 %v1423
  %v1552 = vunpack.c.l.b16 %v1424
  %v1553 = vunpack.c.l.b16 %v1425
  %v1554 = vunpack.c.l.b16 %v1426
  %v1555 = vunpack.c.l.b16 %v1427
  %v1556 = vunpack.c.l.b16 %v1428
  %v1557 = vunpack.c.l.b16 %v1429
  %v1558 = vunpack.c.l.b16 %v1430
  %v1559 = vunpack.c.l.b16 %v1431
  %v1560 = vunpack.c.l.b16 %v1432
  %v1561 = vunpack.c.l.b16 %v1433
  %v1562 = vunpack.c.l.b16 %v1434
  %v1563 = vunpack.c.l.b16 %v1435
  %v1564 = vunpack.c.l.b16 %v1436
  %v1565 = vunpack.c.l.b16 %v1437
  %v1566 = vunpack.c.l.b16 %v1438
  %v1567 = vunpack.c.l.b16 %v1439
  %v1568 = vunpack.c.l.b16 %v1440
  %v1569 = vunpack.c.l.b16 %v1441
  %v1570 = vunpack.c.l.b16 %v1442
  %v1571 = vunpack.c.l.b16 %v1443
  %v1572 = vunpack.c.l.b16 %v1444
  %v1573 = vunpack.c.l.b16 %v1445
  %v1574 = vunpack.c.l.b16 %v1446
  %v1575 = vunpack.c.l.b16 %v1447
  %v1576 = vunpack.c.l.b16 %v1448
  %v1577 = vunpack.c.l.b16 %v1449
  %v1578 = vunpack.c.l.b16 %v1450
  %v1579 = vunpack.c.l.b16 %v1451
  %v1580 = vunpack.c.l.b16 %v1452
  %v1581 = vunpack.c.l.b16 %v1453
  %v1582 = vunpack.c.l.b16 %v1454
  %v1583 = vunpack.c.l.b16 %v1455
  %v1584 = vpack.c.b16 %v1521, %v1520
  %v1585 = vpack.c.b16 %v1523, %v1522
  %v1586 = vpack.c.b16 %v1525, %v1524
  %v1587 = vpack.c.b16 %v1527, %v1526
  %v1588 = vpack.c.b16 %v1529, %v1528
  %v1589 = vpack.c.b16 %v1531, %v1530
  %v1590 = vpack.c.b16 %v1533, %v1532
  %v1591 = vpack.c.b16 %v1535, %v1534
  %v1592 = vpack.c.b16 %v1537, %v1536
  %v1593 = vpack.c.b16 %v1539, %v1538
  %v1594 = vpack.c.b16 %v1541, %v1540
  %v1595 = vpack.c.b16 %v1543, %v1542
  %v1596 = vpack.c.b16 %v1545, %v1544
  %v1597 = vpack.c.b16 %v1547, %v1546
  %v1598 = vpack.c.b16 %v1549, %v1548
  %v1599 = vpack.c.b16 %v1551, %v1550
  %v1600 = vpack.c.b16 %v1553, %v1552
  %v1601 = vpack.c.b16 %v1555, %v1554
  %v1602 = vpack.c.b16 %v1557, %v1556
  %v1603 = vpack.c.b16 %v1559, %v1558
  %v1604 = vpack.c.b16 %v1561, %v1560
  %v1605 = vpack.c.b16 %v1563, %v1562
  %v1606 = vpack.c.b16 %v1565, %v1564
  %v1607 = vpack.c.b16 %v1567, %v1566
  %v1608 = vpack.c.b16 %v1569, %v1568
  %v1609 = vpack.c.b16 %v1571, %v1570
  %v1610 = vpack.c.b16 %v1573, %v1572
  %v1611 = vpack.c.b16 %v1575, %v1574
  %v1612 = vpack.c.b16 %v1577, %v1576
  %v1613 = vpack.c.b16 %v1579, %v1578
  %v1614 = vpack.c.b16 %v1581, %v1580
  %v1615 = vpack.c.b16 %v1583, %v1582
  %1648 = vmatpush.bf16.msra.mxu0 %v1591
  %1649 = vmatpush.bf16.msra.mxu0 %v1590
  %1650 = vmatpush.bf16.msra.mxu0 %v1589
  %1651 = vmatpush.bf16.msra.mxu0 %v1588
  %1652 = vmatpush.bf16.msra.mxu0 %v1587
  %1653 = vmatpush.bf16.msra.mxu0 %v1586
  %1654 = vmatpush.bf16.msra.mxu0 %v1585
  %1655 = vmatpush.bf16.msra.mxu0 %v1584
  %1656 = vmatmul.bf16.gmra.mxu0 %v1369
  %v1657 = vpop.f32.mrf.mxu0
  %v1658 = vadd.f32 %v103, %v1657
  %v1659 = vpop.f32.mrf.mxu0
  %1660 = vdwg.mxu0
  %1661 = vmatpush.bf16.msra.mxu0 %v1599
  %1662 = vmatpush.bf16.msra.mxu0 %v1598
  %1663 = vmatpush.bf16.msra.mxu0 %v1597
  %1664 = vmatpush.bf16.msra.mxu0 %v1596
  %1665 = vmatpush.bf16.msra.mxu0 %v1595
  %1666 = vmatpush.bf16.msra.mxu0 %v1594
  %1667 = vmatpush.bf16.msra.mxu0 %v1593
  %1668 = vmatpush.bf16.msra.mxu0 %v1592
  %1669 = vmatmul.bf16.gmra.mxu0 %v1380
  %v1670 = vpop.f32.mrf.mxu0
  %v1671 = vadd.f32 %v1658, %v1670
  %v1672 = vpop.f32.mrf.mxu0
  %1673 = vdwg.mxu0
  %1674 = vmatpush.bf16.msra.mxu0 %v1607
  %1675 = vmatpush.bf16.msra.mxu0 %v1606
  %1676 = vmatpush.bf16.msra.mxu0 %v1605
  %1677 = vmatpush.bf16.msra.mxu0 %v1604
  %1678 = vmatpush.bf16.msra.mxu0 %v1603
  %1679 = vmatpush.bf16.msra.mxu0 %v1602
  %1680 = vmatpush.bf16.msra.mxu0 %v1601
  %1681 = vmatpush.bf16.msra.mxu0 %v1600
  %1682 = vmatmul.bf16.gmra.mxu0 %v1371
  %v1683 = vpop.f32.mrf.mxu0
  %v1684 = vadd.f32 %v1671, %v1683
  %v1685 = vpop.f32.mrf.mxu0
  %1686 = vdwg.mxu0
  %1687 = vmatpush.bf16.msra.mxu0 %v1615
  %1688 = vmatpush.bf16.msra.mxu0 %v1614
  %1689 = vmatpush.bf16.msra.mxu0 %v1613
  %1690 = vmatpush.bf16.msra.mxu0 %v1612
  %1691 = vmatpush.bf16.msra.mxu0 %v1611
  %1692 = vmatpush.bf16.msra.mxu0 %v1610
  %1693 = vmatpush.bf16.msra.mxu0 %v1609
  %1694 = vmatpush.bf16.msra.mxu0 %v1608
  %1695 = vmatmul.bf16.gmra.mxu0 %v1390
  %v1696 = vpop.f32.mrf.mxu0
  %v1697 = vadd.f32 %v1684, %v1696
  %v1698 = vpop.f32.mrf.mxu0
  %1699 = vdwg.mxu0
  %v1700 = vmax.f32 %v1697, 0.0
  %v1701 = vpack.c.bf16 %v1700, %v1700
  %s1702 = scalar_lea.vmem %s3, 8
  %v1703 = vld [vmem:[%s1702] sm:$0x3]
  %v1704 = vsel %vm353, %v1701, %v1703
  %1705 = vst [vmem:[%s1702] sm:$0x3] %v1704
  %v1706 = vld [vmem:[%s1370] sm:$0x3]
  %s1707 = scalar_lea.vmem %s0, 14
  %v1708 = vld [vmem:[%s1707] sm:$0x3]
  %1710 = vst [vmem:[#allocation1] ss:$4 sm:$0xff] %v1706
  %v1711 = vld.sshfl [vmem:[#allocation1] sm:$0xff pattern:$0x73625140]
  %v1712 = vshrl.u32 %v1711, 16
  %v1714 = vshll.u32 %v1711, 16
  %v1716 = vrot.slane %v1714, 1
  %v1717 = vor.u32 %v1712, %v1716
  %1720 = vst [vmem:[#allocation1] ss:$4 sm:$0xff] %v1708
  %v1721 = vld.sshfl [vmem:[#allocation1] sm:$0xff pattern:$0x73625140]
  %v1722 = vshrl.u32 %v1721, 16
  %v1724 = vshll.u32 %v1721, 16
  %v1726 = vrot.slane %v1724, 1
  %v1727 = vor.u32 %v1722, %v1726
  %v1729 = vld [vmem:[%s1] sm:$0xf]
  %v1730 = vld [vmem:[%s1 + $0x4] sm:$0xf]
  %v1731 = vld [vmem:[%s1 + $0x8] sm:$0xf]
  %v1732 = vld [vmem:[%s1 + $0xc] sm:$0xf]
  %v1733 = vld [vmem:[%s1 + $0x10] sm:$0xf]
  %v1734 = vld [vmem:[%s1 + $0x14] sm:$0xf]
  %v1735 = vld [vmem:[%s1 + $0x18] sm:$0xf]
  %v1736 = vld [vmem:[%s1 + $0x1c] sm:$0xf]
  %v1737 = vld [vmem:[%s1 + $0x20] sm:$0xf]
  %v1738 = vld [vmem:[%s1 + $0x24] sm:$0xf]
  %v1739 = vld [vmem:[%s1 + $0x28] sm:$0xf]
  %v1740 = vld [vmem:[%s1 + $0x2c] sm:$0xf]
  %v1741 = vld [vmem:[%s1 + $0x30] sm:$0xf]
  %v1742 = vld [vmem:[%s1 + $0x34] sm:$0xf]
  %v1743 = vld [vmem:[%s1 + $0x38] sm:$0xf]
  %v1744 = vld [vmem:[%s1 + $0x3c] sm:$0xf]
  %v1745 = vld [vmem:[%s1 + $0x40] sm:$0xf]
  %v1746 = vld [vmem:[%s1 + $0x44] sm:$0xf]
  %v1747 = vld [vmem:[%s1 + $0x48] sm:$0xf]
  %v1748 = vld [vmem:[%s1 + $0x4c] sm:$0xf]
  %v1749 = vld [vmem:[%s1 + $0x50] sm:$0xf]
  %v1750 = vld [vmem:[%s1 + $0x54] sm:$0xf]
  %v1751 = vld [vmem:[%s1 + $0x58] sm:$0xf]
  %v1752 = vld [vmem:[%s1 + $0x5c] sm:$0xf]
  %v1753 = vld [vmem:[%s1 + $0x60] sm:$0xf]
  %v1754 = vld [vmem:[%s1 + $0x64] sm:$0xf]
  %v1755 = vld [vmem:[%s1 + $0x68] sm:$0xf]
  %v1756 = vld [vmem:[%s1 + $0x6c] sm:$0xf]
  %v1757 = vld [vmem:[%s1 + $0x70] sm:$0xf]
  %v1758 = vld [vmem:[%s1 + $0x74] sm:$0xf]
  %v1759 = vld [vmem:[%s1 + $0x78] sm:$0xf]
  %v1760 = vld [vmem:[%s1 + $0x7c] sm:$0xf]
  %v1761 = vld [vmem:[%s1 + $0x80] sm:$0xf]
  %v1762 = vld [vmem:[%s1 + $0x84] sm:$0xf]
  %v1763 = vld [vmem:[%s1 + $0x88] sm:$0xf]
  %v1764 = vld [vmem:[%s1 + $0x8c] sm:$0xf]
  %v1765 = vld [vmem:[%s1 + $0x90] sm:$0xf]
  %v1766 = vld [vmem:[%s1 + $0x94] sm:$0xf]
  %v1767 = vld [vmem:[%s1 + $0x98] sm:$0xf]
  %v1768 = vld [vmem:[%s1 + $0x9c] sm:$0xf]
  %v1769 = vld [vmem:[%s1 + $0xa0] sm:$0xf]
  %v1770 = vld [vmem:[%s1 + $0xa4] sm:$0xf]
  %v1771 = vld [vmem:[%s1 + $0xa8] sm:$0xf]
  %v1772 = vld [vmem:[%s1 + $0xac] sm:$0xf]
  %v1773 = vld [vmem:[%s1 + $0xb0] sm:$0xf]
  %v1774 = vld [vmem:[%s1 + $0xb4] sm:$0xf]
  %v1775 = vld [vmem:[%s1 + $0xb8] sm:$0xf]
  %v1776 = vld [vmem:[%s1 + $0xbc] sm:$0xf]
  %v1777 = vld [vmem:[%s1 + $0xc0] sm:$0xf]
  %v1778 = vld [vmem:[%s1 + $0xc4] sm:$0xf]
  %v1779 = vld [vmem:[%s1 + $0xc8] sm:$0xf]
  %v1780 = vld [vmem:[%s1 + $0xcc] sm:$0xf]
  %v1781 = vld [vmem:[%s1 + $0xd0] sm:$0xf]
  %v1782 = vld [vmem:[%s1 + $0xd4] sm:$0xf]
  %v1783 = vld [vmem:[%s1 + $0xd8] sm:$0xf]
  %v1784 = vld [vmem:[%s1 + $0xdc] sm:$0xf]
  %v1785 = vld [vmem:[%s1 + $0xe0] sm:$0xf]
  %v1786 = vld [vmem:[%s1 + $0xe4] sm:$0xf]
  %v1787 = vld [vmem:[%s1 + $0xe8] sm:$0xf]
  %v1788 = vld [vmem:[%s1 + $0xec] sm:$0xf]
  %v1789 = vld [vmem:[%s1 + $0xf0] sm:$0xf]
  %v1790 = vld [vmem:[%s1 + $0xf4] sm:$0xf]
  %v1791 = vld [vmem:[%s1 + $0xf8] sm:$0xf]
  %v1792 = vld [vmem:[%s1 + $0xfc] sm:$0xf]
  %v1857 = vunpack.c.l.b16 %v1729
  %v1858 = vunpack.c.l.b16 %v1730
  %v1859 = vunpack.c.l.b16 %v1731
  %v1860 = vunpack.c.l.b16 %v1732
  %v1861 = vunpack.c.l.b16 %v1733
  %v1862 = vunpack.c.l.b16 %v1734
  %v1863 = vunpack.c.l.b16 %v1735
  %v1864 = vunpack.c.l.b16 %v1736
  %v1865 = vunpack.c.l.b16 %v1737
  %v1866 = vunpack.c.l.b16 %v1738
  %v1867 = vunpack.c.l.b16 %v1739
  %v1868 = vunpack.c.l.b16 %v1740
  %v1869 = vunpack.c.l.b16 %v1741
  %v1870 = vunpack.c.l.b16 %v1742
  %v1871 = vunpack.c.l.b16 %v1743
  %v1872 = vunpack.c.l.b16 %v1744
  %v1873 = vunpack.c.l.b16 %v1745
  %v1874 = vunpack.c.l.b16 %v1746
  %v1875 = vunpack.c.l.b16 %v1747
  %v1876 = vunpack.c.l.b16 %v1748
  %v1877 = vunpack.c.l.b16 %v1749
  %v1878 = vunpack.c.l.b16 %v1750
  %v1879 = vunpack.c.l.b16 %v1751
  %v1880 = vunpack.c.l.b16 %v1752
  %v1881 = vunpack.c.l.b16 %v1753
  %v1882 = vunpack.c.l.b16 %v1754
  %v1883 = vunpack.c.l.b16 %v1755
  %v1884 = vunpack.c.l.b16 %v1756
  %v1885 = vunpack.c.l.b16 %v1757
  %v1886 = vunpack.c.l.b16 %v1758
  %v1887 = vunpack.c.l.b16 %v1759
  %v1888 = vunpack.c.l.b16 %v1760
  %v1889 = vunpack.c.l.b16 %v1761
  %v1890 = vunpack.c.l.b16 %v1762
  %v1891 = vunpack.c.l.b16 %v1763
  %v1892 = vunpack.c.l.b16 %v1764
  %v1893 = vunpack.c.l.b16 %v1765
  %v1894 = vunpack.c.l.b16 %v1766
  %v1895 = vunpack.c.l.b16 %v1767
  %v1896 = vunpack.c.l.b16 %v1768
  %v1897 = vunpack.c.l.b16 %v1769
  %v1898 = vunpack.c.l.b16 %v1770
  %v1899 = vunpack.c.l.b16 %v1771
  %v1900 = vunpack.c.l.b16 %v1772
  %v1901 = vunpack.c.l.b16 %v1773
  %v1902 = vunpack.c.l.b16 %v1774
  %v1903 = vunpack.c.l.b16 %v1775
  %v1904 = vunpack.c.l.b16 %v1776
  %v1905 = vunpack.c.l.b16 %v1777
  %v1906 = vunpack.c.l.b16 %v1778
  %v1907 = vunpack.c.l.b16 %v1779
  %v1908 = vunpack.c.l.b16 %v1780
  %v1909 = vunpack.c.l.b16 %v1781
  %v1910 = vunpack.c.l.b16 %v1782
  %v1911 = vunpack.c.l.b16 %v1783
  %v1912 = vunpack.c.l.b16 %v1784
  %v1913 = vunpack.c.l.b16 %v1785
  %v1914 = vunpack.c.l.b16 %v1786
  %v1915 = vunpack.c.l.b16 %v1787
  %v1916 = vunpack.c.l.b16 %v1788
  %v1917 = vunpack.c.l.b16 %v1789
  %v1918 = vunpack.c.l.b16 %v1790
  %v1919 = vunpack.c.l.b16 %v1791
  %v1920 = vunpack.c.l.b16 %v1792
  %v1921 = vpack.c.b16 %v1858, %v1857
  %v1922 = vpack.c.b16 %v1860, %v1859
  %v1923 = vpack.c.b16 %v1862, %v1861
  %v1924 = vpack.c.b16 %v1864, %v1863
  %v1925 = vpack.c.b16 %v1866, %v1865
  %v1926 = vpack.c.b16 %v1868, %v1867
  %v1927 = vpack.c.b16 %v1870, %v1869
  %v1928 = vpack.c.b16 %v1872, %v1871
  %v1929 = vpack.c.b16 %v1874, %v1873
  %v1930 = vpack.c.b16 %v1876, %v1875
  %v1931 = vpack.c.b16 %v1878, %v1877
  %v1932 = vpack.c.b16 %v1880, %v1879
  %v1933 = vpack.c.b16 %v1882, %v1881
  %v1934 = vpack.c.b16 %v1884, %v1883
  %v1935 = vpack.c.b16 %v1886, %v1885
  %v1936 = vpack.c.b16 %v1888, %v1887
  %v1937 = vpack.c.b16 %v1890, %v1889
  %v1938 = vpack.c.b16 %v1892, %v1891
  %v1939 = vpack.c.b16 %v1894, %v1893
  %v1940 = vpack.c.b16 %v1896, %v1895
  %v1941 = vpack.c.b16 %v1898, %v1897
  %v1942 = vpack.c.b16 %v1900, %v1899
  %v1943 = vpack.c.b16 %v1902, %v1901
  %v1944 = vpack.c.b16 %v1904, %v1903
  %v1945 = vpack.c.b16 %v1906, %v1905
  %v1946 = vpack.c.b16 %v1908, %v1907
  %v1947 = vpack.c.b16 %v1910, %v1909
  %v1948 = vpack.c.b16 %v1912, %v1911
  %v1949 = vpack.c.b16 %v1914, %v1913
  %v1950 = vpack.c.b16 %v1916, %v1915
  %v1951 = vpack.c.b16 %v1918, %v1917
  %v1952 = vpack.c.b16 %v1920, %v1919
  %1985 = vmatpush.bf16.msra.mxu0 %v1928
  %1986 = vmatpush.bf16.msra.mxu0 %v1927
  %1987 = vmatpush.bf16.msra.mxu0 %v1926
  %1988 = vmatpush.bf16.msra.mxu0 %v1925
  %1989 = vmatpush.bf16.msra.mxu0 %v1924
  %1990 = vmatpush.bf16.msra.mxu0 %v1923
  %1991 = vmatpush.bf16.msra.mxu0 %v1922
  %1992 = vmatpush.bf16.msra.mxu0 %v1921
  %1993 = vmatmul.bf16.gmra.mxu0 %v1706
  %v1994 = vpop.f32.mrf.mxu0
  %v1995 = vadd.f32 %v103, %v1994
  %v1996 = vpop.f32.mrf.mxu0
  %1997 = vdwg.mxu0
  %1998 = vmatpush.bf16.msra.mxu0 %v1936
  %1999 = vmatpush.bf16.msra.mxu0 %v1935
  %2000 = vmatpush.bf16.msra.mxu0 %v1934
  %2001 = vmatpush.bf16.msra.mxu0 %v1933
  %2002 = vmatpush.bf16.msra.mxu0 %v1932
  %2003 = vmatpush.bf16.msra.mxu0 %v1931
  %2004 = vmatpush.bf16.msra.mxu0 %v1930
  %2005 = vmatpush.bf16.msra.mxu0 %v1929
  %2006 = vmatmul.bf16.gmra.mxu0 %v1717
  %v2007 = vpop.f32.mrf.mxu0
  %v2008 = vadd.f32 %v1995, %v2007
  %v2009 = vpop.f32.mrf.mxu0
  %2010 = vdwg.mxu0
  %2011 = vmatpush.bf16.msra.mxu0 %v1944
  %2012 = vmatpush.bf16.msra.mxu0 %v1943
  %2013 = vmatpush.bf16.msra.mxu0 %v1942
  %2014 = vmatpush.bf16.msra.mxu0 %v1941
  %2015 = vmatpush.bf16.msra.mxu0 %v1940
  %2016 = vmatpush.bf16.msra.mxu0 %v1939
  %2017 = vmatpush.bf16.msra.mxu0 %v1938
  %2018 = vmatpush.bf16.msra.mxu0 %v1937
  %2019 = vmatmul.bf16.gmra.mxu0 %v1708
  %v2020 = vpop.f32.mrf.mxu0
  %v2021 = vadd.f32 %v2008, %v2020
  %v2022 = vpop.f32.mrf.mxu0
  %2023 = vdwg.mxu0
  %2024 = vmatpush.bf16.msra.mxu0 %v1952
  %2025 = vmatpush.bf16.msra.mxu0 %v1951
  %2026 = vmatpush.bf16.msra.mxu0 %v1950
  %2027 = vmatpush.bf16.msra.mxu0 %v1949
  %2028 = vmatpush.bf16.msra.mxu0 %v1948
  %2029 = vmatpush.bf16.msra.mxu0 %v1947
  %2030 = vmatpush.bf16.msra.mxu0 %v1946
  %2031 = vmatpush.bf16.msra.mxu0 %v1945
  %2032 = vmatmul.bf16.gmra.mxu0 %v1727
  %v2033 = vpop.f32.mrf.mxu0
  %v2034 = vadd.f32 %v2021, %v2033
  %v2035 = vpop.f32.mrf.mxu0
  %2036 = vdwg.mxu0
  %v2037 = vmax.f32 %v2034, 0.0
  %v2038 = vpack.c.bf16 %v2037, %v2037
  %s2039 = scalar_lea.vmem %s3, 10
  %v2040 = vld [vmem:[%s2039] sm:$0x3]
  %v2041 = vsel %vm353, %v2038, %v2040
  %2042 = vst [vmem:[%s2039] sm:$0x3] %v2041
  // Predicated region
  $region14: #{convnet_forward.5} parent=0 // pred_check
    _
  $region15: #{convnet_forward.5} parent=0 // pred_check_branch
    %2044 = sbr.rel (0) target = $region17
  $region16: #{convnet_forward.5} parent=0 // pred_region
    _
  $region17: #{convnet_forward.5} parent=0 // pred_fallthru
    _
  // Predicated region
  $region18: #{convnet_forward.5} parent=0 // pred_check
    _
  $region19: #{convnet_forward.5} parent=0 // pred_check_branch
    %2046 = sbr.rel (0) target = $region21
  $region20: #{convnet_forward.5} parent=0 // pred_region
    _
  $region21: #{convnet_forward.5} parent=0 // pred_fallthru
    _

// kernel: convnet_forward.6
$region0: #{convnet_forward.6}
  #allocation0 [shape = 'u32[]', space=smem, size = 0x4, offset = 0x4, fixed_abs, tag = 'smem constant byte address 0x4 - core index']
  #allocation1 [shape = 'u32[72,128]{1,0:T(1,128)}', space=vmem, size = 0x9000, scoped, tag = 'internal scratch']
  %s0 = inlined_call_operand.vmem [shape: bf16[2,3,3,64], index: 0, kind: input, shape index: {}]
  %s1 = inlined_call_operand.vmem [shape: bf16[576,64], index: 1, kind: input, shape index: {}]
  %s2 = inlined_call_operand.vmem [shape: f32[1,64], index: 2, kind: input, shape index: {}]
  %s3 = inlined_call_operand.vmem [shape: bf16[2,1,1,64], index: 3, kind: output, shape index: {}]
  %s4 = sld [smem:[#allocation0]]
  $region22: #{convnet_forward.6} parent=0
    _
  %s6 = ssub.s32 1, %s4
  %s7 = scalar_select 0, %s6, %s4
  // Predicated region
  $region2: #{convnet_forward.6} parent=0 // pred_check
    _
  $region3: #{convnet_forward.6} parent=0 // pred_check_branch
    %9 = sbr.rel (0) target = $region5
  $region4: #{convnet_forward.6} parent=0 // pred_region
    _
  $region5: #{convnet_forward.6} parent=0 // pred_fallthru
    _
  // Predicated region
  $region6: #{convnet_forward.6} parent=0 // pred_check
    _
  $region7: #{convnet_forward.6} parent=0 // pred_check_branch
    %11 = sbr.rel (0) target = $region9
  $region8: #{convnet_forward.6} parent=0 // pred_region
    _
  $region9: #{convnet_forward.6} parent=0 // pred_fallthru
    _
  // Predicated region
  $region10: #{convnet_forward.6} parent=0 // pred_check
    _
  $region11: #{convnet_forward.6} parent=0 // pred_check_branch
    %13 = sbr.rel (0) target = $region13
  $region12: #{convnet_forward.6} parent=0 // pred_region
    _
  $region13: #{convnet_forward.6} parent=0 // pred_fallthru
    _
  %v15 = vld [vmem:[%s2] sm:$0x1]
  %v16 = vld [vmem:[%s0] sm:$0x1]
  %v17 = vld [vmem:[%s0] sm:$0x2]
  %s18 = scalar_lea.vmem %s0, 2
  %v19 = vld [vmem:[%s18] sm:$0x1]
  %v20 = vld [vmem:[%s18] sm:$0x2]
  %s21 = scalar_lea.vmem %s0, 4
  %v22 = vld [vmem:[%s21] sm:$0x1]
  %v23 = vld [vmem:[%s21] sm:$0x2]
  %25 = vst [vmem:[#allocation1] ss:$4 sm:$0xff] %v16
  %v26 = vld.sshfl [vmem:[#allocation1] sm:$0xff pattern:$0x73625140]
  %v27 = vshrl.u32 %v26, 16
  %29 = vrot.lane.b32.xlu0 %v27, 64
  %v30 = vpop.permute.xlu0 %29
  %32 = vst [vmem:[#allocation1] ss:$4 sm:$0xff] %v17
  %v33 = vld.sshfl [vmem:[#allocation1] sm:$0xff pattern:$0x73625140]
  %v35 = vrot.slane %v33, 1
  %37 = vst [vmem:[#allocation1] ss:$4 sm:$0xff] %v19
  %v38 = vld.sshfl [vmem:[#allocation1] sm:$0xff pattern:$0x73625140]
  %40 = vrot.lane.b32.xlu0 %v38, 64
  %v41 = vpop.permute.xlu0 %40
  %42 = vst [vmem:[#allocation1] ss:$4 sm:$0xff] %v19
  %v43 = vld.sshfl [vmem:[#allocation1] sm:$0xff pattern:$0x73625140]
  %v44 = vshrl.u32 %v43, 16
  %47 = vst [vmem:[#allocation1] ss:$4 sm:$0xff] %v20
  %v48 = vld.sshfl [vmem:[#allocation1] sm:$0xff pattern:$0x73625140]
  %v50 = vrot.slane %v48, 1
  %51 = vrot.lane.b32.xlu0 %v50, 64
  %v52 = vpop.permute.xlu0 %51
  %54 = vst [vmem:[#allocation1] ss:$4 sm:$0xff] %v22
  %v55 = vld.sshfl [vmem:[#allocation1] sm:$0xff pattern:$0x73625140]
  %v56 = vshrl.u32 %v55, 16
  %58 = vrot.lane.b32.xlu0 %v56, 64
  %v59 = vpop.permute.xlu0 %58
  %61 = vst [vmem:[#allocation1] ss:$4 sm:$0xff] %v23
  %v62 = vld.sshfl [vmem:[#allocation1] sm:$0xff pattern:$0x73625140]
  %v64 = vrot.slane %v62, 1
  %vm65 = vcmask 523264
  %v67 = vsel %vm65, %v16, %v30
  %v71 = vsel %vm65, %v35, %v41
  %v75 = vsel %vm65, %v44, %v52
  %v78 = vsel %vm65, %v22, %v59
  %v80 = vld [vmem:[%s1] sm:$0xf]
  %v81 = vld [vmem:[%s1 + $0x4] sm:$0xf]
  %v82 = vld [vmem:[%s1 + $0x8] sm:$0xf]
  %v83 = vld [vmem:[%s1 + $0xc] sm:$0xf]
  %v84 = vld [vmem:[%s1 + $0x10] sm:$0xf]
  %v85 = vld [vmem:[%s1 + $0x14] sm:$0xf]
  %v86 = vld [vmem:[%s1 + $0x18] sm:$0xf]
  %v87 = vld [vmem:[%s1 + $0x1c] sm:$0xf]
  %v88 = vld [vmem:[%s1 + $0x20] sm:$0xf]
  %v89 = vld [vmem:[%s1 + $0x24] sm:$0xf]
  %v90 = vld [vmem:[%s1 + $0x28] sm:$0xf]
  %v91 = vld [vmem:[%s1 + $0x2c] sm:$0xf]
  %v92 = vld [vmem:[%s1 + $0x30] sm:$0xf]
  %v93 = vld [vmem:[%s1 + $0x34] sm:$0xf]
  %v94 = vld [vmem:[%s1 + $0x38] sm:$0xf]
  %v95 = vld [vmem:[%s1 + $0x3c] sm:$0xf]
  %v96 = vld [vmem:[%s1 + $0x40] sm:$0xf]
  %v97 = vld [vmem:[%s1 + $0x44] sm:$0xf]
  %v98 = vld [vmem:[%s1 + $0x48] sm:$0xf]
  %v99 = vld [vmem:[%s1 + $0x4c] sm:$0xf]
  %v100 = vld [vmem:[%s1 + $0x50] sm:$0xf]
  %v101 = vld [vmem:[%s1 + $0x54] sm:$0xf]
  %v102 = vld [vmem:[%s1 + $0x58] sm:$0xf]
  %v103 = vld [vmem:[%s1 + $0x5c] sm:$0xf]
  %v104 = vld [vmem:[%s1 + $0x60] sm:$0xf]
  %v105 = vld [vmem:[%s1 + $0x64] sm:$0xf]
  %v106 = vld [vmem:[%s1 + $0x68] sm:$0xf]
  %v107 = vld [vmem:[%s1 + $0x6c] sm:$0xf]
  %v108 = vld [vmem:[%s1 + $0x70] sm:$0xf]
  %v109 = vld [vmem:[%s1 + $0x74] sm:$0xf]
  %v110 = vld [vmem:[%s1 + $0x78] sm:$0xf]
  %v111 = vld [vmem:[%s1 + $0x7c] sm:$0xf]
  %v112 = vld [vmem:[%s1 + $0x80] sm:$0xf]
  %v113 = vld [vmem:[%s1 + $0x84] sm:$0xf]
  %v114 = vld [vmem:[%s1 + $0x88] sm:$0xf]
  %v115 = vld [vmem:[%s1 + $0x8c] sm:$0xf]
  %v116 = vld [vmem:[%s1 + $0x90] sm:$0xf]
  %v117 = vld [vmem:[%s1 + $0x94] sm:$0xf]
  %v118 = vld [vmem:[%s1 + $0x98] sm:$0xf]
  %v119 = vld [vmem:[%s1 + $0x9c] sm:$0xf]
  %v120 = vld [vmem:[%s1 + $0xa0] sm:$0xf]
  %v121 = vld [vmem:[%s1 + $0xa4] sm:$0xf]
  %v122 = vld [vmem:[%s1 + $0xa8] sm:$0xf]
  %v123 = vld [vmem:[%s1 + $0xac] sm:$0xf]
  %v124 = vld [vmem:[%s1 + $0xb0] sm:$0xf]
  %v125 = vld [vmem:[%s1 + $0xb4] sm:$0xf]
  %v126 = vld [vmem:[%s1 + $0xb8] sm:$0xf]
  %v127 = vld [vmem:[%s1 + $0xbc] sm:$0xf]
  %v128 = vld [vmem:[%s1 + $0xc0] sm:$0xf]
  %v129 = vld [vmem:[%s1 + $0xc4] sm:$0xf]
  %v130 = vld [vmem:[%s1 + $0xc8] sm:$0xf]
  %v131 = vld [vmem:[%s1 + $0xcc] sm:$0xf]
  %v132 = vld [vmem:[%s1 + $0xd0] sm:$0xf]
  %v133 = vld [vmem:[%s1 + $0xd4] sm:$0xf]
  %v134 = vld [vmem:[%s1 + $0xd8] sm:$0xf]
  %v135 = vld [vmem:[%s1 + $0xdc] sm:$0xf]
  %v136 = vld [vmem:[%s1 + $0xe0] sm:$0xf]
  %v137 = vld [vmem:[%s1 + $0xe4] sm:$0xf]
  %v138 = vld [vmem:[%s1 + $0xe8] sm:$0xf]
  %v139 = vld [vmem:[%s1 + $0xec] sm:$0xf]
  %v140 = vld [vmem:[%s1 + $0xf0] sm:$0xf]
  %v141 = vld [vmem:[%s1 + $0xf4] sm:$0xf]
  %v142 = vld [vmem:[%s1 + $0xf8] sm:$0xf]
  %v143 = vld [vmem:[%s1 + $0xfc] sm:$0xf]
  %v144 = vld [vmem:[%s1 + $0x100] sm:$0xf]
  %v145 = vld [vmem:[%s1 + $0x104] sm:$0xf]
  %v146 = vld [vmem:[%s1 + $0x108] sm:$0xf]
  %v147 = vld [vmem:[%s1 + $0x10c] sm:$0xf]
  %v148 = vld [vmem:[%s1 + $0x110] sm:$0xf]
  %v149 = vld [vmem:[%s1 + $0x114] sm:$0xf]
  %v150 = vld [vmem:[%s1 + $0x118] sm:$0xf]
  %v151 = vld [vmem:[%s1 + $0x11c] sm:$0xf]
  %v224 = vunpack.c.l.b16 %v80
  %v225 = vunpack.c.l.b16 %v81
  %v226 = vunpack.c.l.b16 %v82
  %v227 = vunpack.c.l.b16 %v83
  %v228 = vunpack.c.l.b16 %v84
  %v229 = vunpack.c.l.b16 %v85
  %v230 = vunpack.c.l.b16 %v86
  %v231 = vunpack.c.l.b16 %v87
  %v232 = vunpack.c.l.b16 %v88
  %v233 = vunpack.c.l.b16 %v89
  %v234 = vunpack.c.l.b16 %v90
  %v235 = vunpack.c.l.b16 %v91
  %v236 = vunpack.c.l.b16 %v92
  %v237 = vunpack.c.l.b16 %v93
  %v238 = vunpack.c.l.b16 %v94
  %v239 = vunpack.c.l.b16 %v95
  %v240 = vunpack.c.l.b16 %v96
  %v241 = vunpack.c.l.b16 %v97
  %v242 = vunpack.c.l.b16 %v98
  %v243 = vunpack.c.l.b16 %v99
  %v244 = vunpack.c.l.b16 %v100
  %v245 = vunpack.c.l.b16 %v101
  %v246 = vunpack.c.l.b16 %v102
  %v247 = vunpack.c.l.b16 %v103
  %v248 = vunpack.c.l.b16 %v104
  %v249 = vunpack.c.l.b16 %v105
  %v250 = vunpack.c.l.b16 %v106
  %v251 = vunpack.c.l.b16 %v107
  %v252 = vunpack.c.l.b16 %v108
  %v253 = vunpack.c.l.b16 %v109
  %v254 = vunpack.c.l.b16 %v110
  %v255 = vunpack.c.l.b16 %v111
  %v256 = vunpack.c.l.b16 %v112
  %v257 = vunpack.c.l.b16 %v113
  %v258 = vunpack.c.l.b16 %v114
  %v259 = vunpack.c.l.b16 %v115
  %v260 = vunpack.c.l.b16 %v116
  %v261 = vunpack.c.l.b16 %v117
  %v262 = vunpack.c.l.b16 %v118
  %v263 = vunpack.c.l.b16 %v119
  %v264 = vunpack.c.l.b16 %v120
  %v265 = vunpack.c.l.b16 %v121
  %v266 = vunpack.c.l.b16 %v122
  %v267 = vunpack.c.l.b16 %v123
  %v268 = vunpack.c.l.b16 %v124
  %v269 = vunpack.c.l.b16 %v125
  %v270 = vunpack.c.l.b16 %v126
  %v271 = vunpack.c.l.b16 %v127
  %v272 = vunpack.c.l.b16 %v128
  %v273 = vunpack.c.l.b16 %v129
  %v274 = vunpack.c.l.b16 %v130
  %v275 = vunpack.c.l.b16 %v131
  %v276 = vunpack.c.l.b16 %v132
  %v277 = vunpack.c.l.b16 %v133
  %v278 = vunpack.c.l.b16 %v134
  %v279 = vunpack.c.l.b16 %v135
  %v280 = vunpack.c.l.b16 %v136
  %v281 = vunpack.c.l.b16 %v137
  %v282 = vunpack.c.l.b16 %v138
  %v283 = vunpack.c.l.b16 %v139
  %v284 = vunpack.c.l.b16 %v140
  %v285 = vunpack.c.l.b16 %v141
  %v286 = vunpack.c.l.b16 %v142
  %v287 = vunpack.c.l.b16 %v143
  %v288 = vunpack.c.l.b16 %v144
  %v289 = vunpack.c.l.b16 %v145
  %v290 = vunpack.c.l.b16 %v146
  %v291 = vunpack.c.l.b16 %v147
  %v292 = vunpack.c.l.b16 %v148
  %v293 = vunpack.c.l.b16 %v149
  %v294 = vunpack.c.l.b16 %v150
  %v295 = vunpack.c.l.b16 %v151
  %v296 = vpack.c.b16 %v225, %v224
  %v297 = vpack.c.b16 %v227, %v226
  %v298 = vpack.c.b16 %v229, %v228
  %v299 = vpack.c.b16 %v231, %v230
  %v300 = vpack.c.b16 %v233, %v232
  %v301 = vpack.c.b16 %v235, %v234
  %v302 = vpack.c.b16 %v237, %v236
  %v303 = vpack.c.b16 %v239, %v238
  %v304 = vpack.c.b16 %v241, %v240
  %v305 = vpack.c.b16 %v243, %v242
  %v306 = vpack.c.b16 %v245, %v244
  %v307 = vpack.c.b16 %v247, %v246
  %v308 = vpack.c.b16 %v249, %v248
  %v309 = vpack.c.b16 %v251, %v250
  %v310 = vpack.c.b16 %v253, %v252
  %v311 = vpack.c.b16 %v255, %v254
  %v312 = vpack.c.b16 %v257, %v256
  %v313 = vpack.c.b16 %v259, %v258
  %v314 = vpack.c.b16 %v261, %v260
  %v315 = vpack.c.b16 %v263, %v262
  %v316 = vpack.c.b16 %v265, %v264
  %v317 = vpack.c.b16 %v267, %v266
  %v318 = vpack.c.b16 %v269, %v268
  %v319 = vpack.c.b16 %v271, %v270
  %v320 = vpack.c.b16 %v273, %v272
  %v321 = vpack.c.b16 %v275, %v274
  %v322 = vpack.c.b16 %v277, %v276
  %v323 = vpack.c.b16 %v279, %v278
  %v324 = vpack.c.b16 %v281, %v280
  %v325 = vpack.c.b16 %v283, %v282
  %v326 = vpack.c.b16 %v285, %v284
  %v327 = vpack.c.b16 %v287, %v286
  %v328 = vpack.c.b16 %v289, %v288
  %v329 = vpack.c.b16 %v291, %v290
  %v330 = vpack.c.b16 %v293, %v292
  %v331 = vpack.c.b16 %v295, %v294
  %v369 = vsel %vm65, %v64, 0
  %371 = vmatpush.bf16.msra.mxu0 %v303
  %372 = vmatpush.bf16.msra.mxu0 %v302
  %373 = vmatpush.bf16.msra.mxu0 %v301
  %374 = vmatpush.bf16.msra.mxu0 %v300
  %375 = vmatpush.bf16.msra.mxu0 %v299
  %376 = vmatpush.bf16.msra.mxu0 %v298
  %377 = vmatpush.bf16.msra.mxu0 %v297
  %378 = vmatpush.bf16.msra.mxu0 %v296
  %379 = vmatmul.bf16.gmra.mxu0 %v67
  %v380 = vpop.f32.mrf.mxu0
  %v381 = vadd.f32 %v15, %v380
  %v382 = vpop.f32.mrf.mxu0
  %383 = vdwg.mxu0
  %384 = vmatpush.bf16.msra.mxu0 %v311
  %385 = vmatpush.bf16.msra.mxu0 %v310
  %386 = vmatpush.bf16.msra.mxu0 %v309
  %387 = vmatpush.bf16.msra.mxu0 %v308
  %388 = vmatpush.bf16.msra.mxu0 %v307
  %389 = vmatpush.bf16.msra.mxu0 %v306
  %390 = vmatpush.bf16.msra.mxu0 %v305
  %391 = vmatpush.bf16.msra.mxu0 %v304
  %392 = vmatmul.bf16.gmra.mxu0 %v71
  %v393 = vpop.f32.mrf.mxu0
  %v394 = vadd.f32 %v381, %v393
  %v395 = vpop.f32.mrf.mxu0
  %396 = vdwg.mxu0
  %397 = vmatpush.bf16.msra.mxu0 %v319
  %398 = vmatpush.bf16.msra.mxu0 %v318
  %399 = vmatpush.bf16.msra.mxu0 %v317
  %400 = vmatpush.bf16.msra.mxu0 %v316
  %401 = vmatpush.bf16.msra.mxu0 %v315
  %402 = vmatpush.bf16.msra.mxu0 %v314
  %403 = vmatpush.bf16.msra.mxu0 %v313
  %404 = vmatpush.bf16.msra.mxu0 %v312
  %405 = vmatmul.bf16.gmra.mxu0 %v75
  %v406 = vpop.f32.mrf.mxu0
  %v407 = vadd.f32 %v394, %v406
  %v408 = vpop.f32.mrf.mxu0
  %409 = vdwg.mxu0
  %410 = vmatpush.bf16.msra.mxu0 %v327
  %411 = vmatpush.bf16.msra.mxu0 %v326
  %412 = vmatpush.bf16.msra.mxu0 %v325
  %413 = vmatpush.bf16.msra.mxu0 %v324
  %414 = vmatpush.bf16.msra.mxu0 %v323
  %415 = vmatpush.bf16.msra.mxu0 %v322
  %416 = vmatpush.bf16.msra.mxu0 %v321
  %417 = vmatpush.bf16.msra.mxu0 %v320
  %418 = vmatmul.bf16.gmra.mxu0 %v78
  %v419 = vpop.f32.mrf.mxu0
  %v420 = vadd.f32 %v407, %v419
  %v421 = vpop.f32.mrf.mxu0
  %422 = vdwg.mxu0
  %423 = vmatpush.bf16.msra.mxu0 0
  %424 = vmatpush.bf16.msra.mxu0 0
  %425 = vmatpush.bf16.msra.mxu0 0
  %426 = vmatpush.bf16.msra.mxu0 0
  %427 = vmatpush.bf16.msra.mxu0 %v331
  %428 = vmatpush.bf16.msra.mxu0 %v330
  %429 = vmatpush.bf16.msra.mxu0 %v329
  %430 = vmatpush.bf16.msra.mxu0 %v328
  %431 = vmatmul.bf16.gmra.mxu0 %v369
  %v432 = vpop.f32.mrf.mxu0
  %v433 = vadd.f32 %v420, %v432
  %v434 = vpop.f32.mrf.mxu0
  %435 = vdwg.mxu0
  %v436 = vmax.f32 %v433, 0.0
  %v437 = vpack.c.bf16 %v436, %v436
  %vm438 = vcmask 516096
  %vm439 = vsmask.f32 256
  %vm440 = vmand %vm438, %vm439
  %v441 = vld [vmem:[%s3] sm:$0x1]
  %v442 = vsel %vm440, %v437, %v441
  %443 = vst [vmem:[%s3] sm:$0x1] %v442
  %s444 = scalar_lea.vmem %s0, 6
  %v445 = vld [vmem:[%s444] sm:$0x1]
  %v446 = vld [vmem:[%s444] sm:$0x2]
  %s447 = scalar_lea.vmem %s0, 8
  %v448 = vld [vmem:[%s447] sm:$0x1]
  %v449 = vld [vmem:[%s447] sm:$0x2]
  %s450 = scalar_lea.vmem %s0, 10
  %v451 = vld [vmem:[%s450] sm:$0x1]
  %v452 = vld [vmem:[%s450] sm:$0x2]
  %454 = vst [vmem:[#allocation1] ss:$4 sm:$0xff] %v445
  %v455 = vld.sshfl [vmem:[#allocation1] sm:$0xff pattern:$0x73625140]
  %v456 = vshrl.u32 %v455, 16
  %458 = vrot.lane.b32.xlu0 %v456, 64
  %v459 = vpop.permute.xlu0 %458
  %461 = vst [vmem:[#allocation1] ss:$4 sm:$0xff] %v446
  %v462 = vld.sshfl [vmem:[#allocation1] sm:$0xff pattern:$0x73625140]
  %v464 = vrot.slane %v462, 1
  %466 = vst [vmem:[#allocation1] ss:$4 sm:$0xff] %v448
  %v467 = vld.sshfl [vmem:[#allocation1] sm:$0xff pattern:$0x73625140]
  %469 = vrot.lane.b32.xlu0 %v467, 64
  %v470 = vpop.permute.xlu0 %469
  %471 = vst [vmem:[#allocation1] ss:$4 sm:$0xff] %v448
  %v472 = vld.sshfl [vmem:[#allocation1] sm:$0xff pattern:$0x73625140]
  %v473 = vshrl.u32 %v472, 16
  %476 = vst [vmem:[#allocation1] ss:$4 sm:$0xff] %v449
  %v477 = vld.sshfl [vmem:[#allocation1] sm:$0xff pattern:$0x73625140]
  %v479 = vrot.slane %v477, 1
  %480 = vrot.lane.b32.xlu0 %v479, 64
  %v481 = vpop.permute.xlu0 %480
  %483 = vst [vmem:[#allocation1] ss:$4 sm:$0xff] %v451
  %v484 = vld.sshfl [vmem:[#allocation1] sm:$0xff pattern:$0x73625140]
  %v485 = vshrl.u32 %v484, 16
  %487 = vrot.lane.b32.xlu0 %v485, 64
  %v488 = vpop.permute.xlu0 %487
  %490 = vst [vmem:[#allocation1] ss:$4 sm:$0xff] %v452
  %v491 = vld.sshfl [vmem:[#allocation1] sm:$0xff pattern:$0x73625140]
  %v493 = vrot.slane %v491, 1
  %v495 = vsel %vm65, %v445, %v459
  %v499 = vsel %vm65, %v464, %v470
  %v503 = vsel %vm65, %v473, %v481
  %v506 = vsel %vm65, %v451, %v488
  %v508 = vld [vmem:[%s1] sm:$0xf]
  %v509 = vld [vmem:[%s1 + $0x4] sm:$0xf]
  %v510 = vld [vmem:[%s1 + $0x8] sm:$0xf]
  %v511 = vld [vmem:[%s1 + $0xc] sm:$0xf]
  %v512 = vld [vmem:[%s1 + $0x10] sm:$0xf]
  %v513 = vld [vmem:[%s1 + $0x14] sm:$0xf]
  %v514 = vld [vmem:[%s1 + $0x18] sm:$0xf]
  %v515 = vld [vmem:[%s1 + $0x1c] sm:$0xf]
  %v516 = vld [vmem:[%s1 + $0x20] sm:$0xf]
  %v517 = vld [vmem:[%s1 + $0x24] sm:$0xf]
  %v518 = vld [vmem:[%s1 + $0x28] sm:$0xf]
  %v519 = vld [vmem:[%s1 + $0x2c] sm:$0xf]
  %v520 = vld [vmem:[%s1 + $0x30] sm:$0xf]
  %v521 = vld [vmem:[%s1 + $0x34] sm:$0xf]
  %v522 = vld [vmem:[%s1 + $0x38] sm:$0xf]
  %v523 = vld [vmem:[%s1 + $0x3c] sm:$0xf]
  %v524 = vld [vmem:[%s1 + $0x40] sm:$0xf]
  %v525 = vld [vmem:[%s1 + $0x44] sm:$0xf]
  %v526 = vld [vmem:[%s1 + $0x48] sm:$0xf]
  %v527 = vld [vmem:[%s1 + $0x4c] sm:$0xf]
  %v528 = vld [vmem:[%s1 + $0x50] sm:$0xf]
  %v529 = vld [vmem:[%s1 + $0x54] sm:$0xf]
  %v530 = vld [vmem:[%s1 + $0x58] sm:$0xf]
  %v531 = vld [vmem:[%s1 + $0x5c] sm:$0xf]
  %v532 = vld [vmem:[%s1 + $0x60] sm:$0xf]
  %v533 = vld [vmem:[%s1 + $0x64] sm:$0xf]
  %v534 = vld [vmem:[%s1 + $0x68] sm:$0xf]
  %v535 = vld [vmem:[%s1 + $0x6c] sm:$0xf]
  %v536 = vld [vmem:[%s1 + $0x70] sm:$0xf]
  %v537 = vld [vmem:[%s1 + $0x74] sm:$0xf]
  %v538 = vld [vmem:[%s1 + $0x78] sm:$0xf]
  %v539 = vld [vmem:[%s1 + $0x7c] sm:$0xf]
  %v540 = vld [vmem:[%s1 + $0x80] sm:$0xf]
  %v541 = vld [vmem:[%s1 + $0x84] sm:$0xf]
  %v542 = vld [vmem:[%s1 + $0x88] sm:$0xf]
  %v543 = vld [vmem:[%s1 + $0x8c] sm:$0xf]
  %v544 = vld [vmem:[%s1 + $0x90] sm:$0xf]
  %v545 = vld [vmem:[%s1 + $0x94] sm:$0xf]
  %v546 = vld [vmem:[%s1 + $0x98] sm:$0xf]
  %v547 = vld [vmem:[%s1 + $0x9c] sm:$0xf]
  %v548 = vld [vmem:[%s1 + $0xa0] sm:$0xf]
  %v549 = vld [vmem:[%s1 + $0xa4] sm:$0xf]
  %v550 = vld [vmem:[%s1 + $0xa8] sm:$0xf]
  %v551 = vld [vmem:[%s1 + $0xac] sm:$0xf]
  %v552 = vld [vmem:[%s1 + $0xb0] sm:$0xf]
  %v553 = vld [vmem:[%s1 + $0xb4] sm:$0xf]
  %v554 = vld [vmem:[%s1 + $0xb8] sm:$0xf]
  %v555 = vld [vmem:[%s1 + $0xbc] sm:$0xf]
  %v556 = vld [vmem:[%s1 + $0xc0] sm:$0xf]
  %v557 = vld [vmem:[%s1 + $0xc4] sm:$0xf]
  %v558 = vld [vmem:[%s1 + $0xc8] sm:$0xf]
  %v559 = vld [vmem:[%s1 + $0xcc] sm:$0xf]
  %v560 = vld [vmem:[%s1 + $0xd0] sm:$0xf]
  %v561 = vld [vmem:[%s1 + $0xd4] sm:$0xf]
  %v562 = vld [vmem:[%s1 + $0xd8] sm:$0xf]
  %v563 = vld [vmem:[%s1 + $0xdc] sm:$0xf]
  %v564 = vld [vmem:[%s1 + $0xe0] sm:$0xf]
  %v565 = vld [vmem:[%s1 + $0xe4] sm:$0xf]
  %v566 = vld [vmem:[%s1 + $0xe8] sm:$0xf]
  %v567 = vld [vmem:[%s1 + $0xec] sm:$0xf]
  %v568 = vld [vmem:[%s1 + $0xf0] sm:$0xf]
  %v569 = vld [vmem:[%s1 + $0xf4] sm:$0xf]
  %v570 = vld [vmem:[%s1 + $0xf8] sm:$0xf]
  %v571 = vld [vmem:[%s1 + $0xfc] sm:$0xf]
  %v572 = vld [vmem:[%s1 + $0x100] sm:$0xf]
  %v573 = vld [vmem:[%s1 + $0x104] sm:$0xf]
  %v574 = vld [vmem:[%s1 + $0x108] sm:$0xf]
  %v575 = vld [vmem:[%s1 + $0x10c] sm:$0xf]
  %v576 = vld [vmem:[%s1 + $0x110] sm:$0xf]
  %v577 = vld [vmem:[%s1 + $0x114] sm:$0xf]
  %v578 = vld [vmem:[%s1 + $0x118] sm:$0xf]
  %v579 = vld [vmem:[%s1 + $0x11c] sm:$0xf]
  %v652 = vunpack.c.l.b16 %v508
  %v653 = vunpack.c.l.b16 %v509
  %v654 = vunpack.c.l.b16 %v510
  %v655 = vunpack.c.l.b16 %v511
  %v656 = vunpack.c.l.b16 %v512
  %v657 = vunpack.c.l.b16 %v513
  %v658 = vunpack.c.l.b16 %v514
  %v659 = vunpack.c.l.b16 %v515
  %v660 = vunpack.c.l.b16 %v516
  %v661 = vunpack.c.l.b16 %v517
  %v662 = vunpack.c.l.b16 %v518
  %v663 = vunpack.c.l.b16 %v519
  %v664 = vunpack.c.l.b16 %v520
  %v665 = vunpack.c.l.b16 %v521
  %v666 = vunpack.c.l.b16 %v522
  %v667 = vunpack.c.l.b16 %v523
  %v668 = vunpack.c.l.b16 %v524
  %v669 = vunpack.c.l.b16 %v525
  %v670 = vunpack.c.l.b16 %v526
  %v671 = vunpack.c.l.b16 %v527
  %v672 = vunpack.c.l.b16 %v528
  %v673 = vunpack.c.l.b16 %v529
  %v674 = vunpack.c.l.b16 %v530
  %v675 = vunpack.c.l.b16 %v531
  %v676 = vunpack.c.l.b16 %v532
  %v677 = vunpack.c.l.b16 %v533
  %v678 = vunpack.c.l.b16 %v534
  %v679 = vunpack.c.l.b16 %v535
  %v680 = vunpack.c.l.b16 %v536
  %v681 = vunpack.c.l.b16 %v537
  %v682 = vunpack.c.l.b16 %v538
  %v683 = vunpack.c.l.b16 %v539
  %v684 = vunpack.c.l.b16 %v540
  %v685 = vunpack.c.l.b16 %v541
  %v686 = vunpack.c.l.b16 %v542
  %v687 = vunpack.c.l.b16 %v543
  %v688 = vunpack.c.l.b16 %v544
  %v689 = vunpack.c.l.b16 %v545
  %v690 = vunpack.c.l.b16 %v546
  %v691 = vunpack.c.l.b16 %v547
  %v692 = vunpack.c.l.b16 %v548
  %v693 = vunpack.c.l.b16 %v549
  %v694 = vunpack.c.l.b16 %v550
  %v695 = vunpack.c.l.b16 %v551
  %v696 = vunpack.c.l.b16 %v552
  %v697 = vunpack.c.l.b16 %v553
  %v698 = vunpack.c.l.b16 %v554
  %v699 = vunpack.c.l.b16 %v555
  %v700 = vunpack.c.l.b16 %v556
  %v701 = vunpack.c.l.b16 %v557
  %v702 = vunpack.c.l.b16 %v558
  %v703 = vunpack.c.l.b16 %v559
  %v704 = vunpack.c.l.b16 %v560
  %v705 = vunpack.c.l.b16 %v561
  %v706 = vunpack.c.l.b16 %v562
  %v707 = vunpack.c.l.b16 %v563
  %v708 = vunpack.c.l.b16 %v564
  %v709 = vunpack.c.l.b16 %v565
  %v710 = vunpack.c.l.b16 %v566
  %v711 = vunpack.c.l.b16 %v567
  %v712 = vunpack.c.l.b16 %v568
  %v713 = vunpack.c.l.b16 %v569
  %v714 = vunpack.c.l.b16 %v570
  %v715 = vunpack.c.l.b16 %v571
  %v716 = vunpack.c.l.b16 %v572
  %v717 = vunpack.c.l.b16 %v573
  %v718 = vunpack.c.l.b16 %v574
  %v719 = vunpack.c.l.b16 %v575
  %v720 = vunpack.c.l.b16 %v576
  %v721 = vunpack.c.l.b16 %v577
  %v722 = vunpack.c.l.b16 %v578
  %v723 = vunpack.c.l.b16 %v579
  %v724 = vpack.c.b16 %v653, %v652
  %v725 = vpack.c.b16 %v655, %v654
  %v726 = vpack.c.b16 %v657, %v656
  %v727 = vpack.c.b16 %v659, %v658
  %v728 = vpack.c.b16 %v661, %v660
  %v729 = vpack.c.b16 %v663, %v662
  %v730 = vpack.c.b16 %v665, %v664
  %v731 = vpack.c.b16 %v667, %v666
  %v732 = vpack.c.b16 %v669, %v668
  %v733 = vpack.c.b16 %v671, %v670
  %v734 = vpack.c.b16 %v673, %v672
  %v735 = vpack.c.b16 %v675, %v674
  %v736 = vpack.c.b16 %v677, %v676
  %v737 = vpack.c.b16 %v679, %v678
  %v738 = vpack.c.b16 %v681, %v680
  %v739 = vpack.c.b16 %v683, %v682
  %v740 = vpack.c.b16 %v685, %v684
  %v741 = vpack.c.b16 %v687, %v686
  %v742 = vpack.c.b16 %v689, %v688
  %v743 = vpack.c.b16 %v691, %v690
  %v744 = vpack.c.b16 %v693, %v692
  %v745 = vpack.c.b16 %v695, %v694
  %v746 = vpack.c.b16 %v697, %v696
  %v747 = vpack.c.b16 %v699, %v698
  %v748 = vpack.c.b16 %v701, %v700
  %v749 = vpack.c.b16 %v703, %v702
  %v750 = vpack.c.b16 %v705, %v704
  %v751 = vpack.c.b16 %v707, %v706
  %v752 = vpack.c.b16 %v709, %v708
  %v753 = vpack.c.b16 %v711, %v710
  %v754 = vpack.c.b16 %v713, %v712
  %v755 = vpack.c.b16 %v715, %v714
  %v756 = vpack.c.b16 %v717, %v716
  %v757 = vpack.c.b16 %v719, %v718
  %v758 = vpack.c.b16 %v721, %v720
  %v759 = vpack.c.b16 %v723, %v722
  %v797 = vsel %vm65, %v493, 0
  %799 = vmatpush.bf16.msra.mxu0 %v731
  %800 = vmatpush.bf16.msra.mxu0 %v730
  %801 = vmatpush.bf16.msra.mxu0 %v729
  %802 = vmatpush.bf16.msra.mxu0 %v728
  %803 = vmatpush.bf16.msra.mxu0 %v727
  %804 = vmatpush.bf16.msra.mxu0 %v726
  %805 = vmatpush.bf16.msra.mxu0 %v725
  %806 = vmatpush.bf16.msra.mxu0 %v724
  %807 = vmatmul.bf16.gmra.mxu0 %v495
  %v808 = vpop.f32.mrf.mxu0
  %v809 = vadd.f32 %v15, %v808
  %v810 = vpop.f32.mrf.mxu0
  %811 = vdwg.mxu0
  %812 = vmatpush.bf16.msra.mxu0 %v739
  %813 = vmatpush.bf16.msra.mxu0 %v738
  %814 = vmatpush.bf16.msra.mxu0 %v737
  %815 = vmatpush.bf16.msra.mxu0 %v736
  %816 = vmatpush.bf16.msra.mxu0 %v735
  %817 = vmatpush.bf16.msra.mxu0 %v734
  %818 = vmatpush.bf16.msra.mxu0 %v733
  %819 = vmatpush.bf16.msra.mxu0 %v732
  %820 = vmatmul.bf16.gmra.mxu0 %v499
  %v821 = vpop.f32.mrf.mxu0
  %v822 = vadd.f32 %v809, %v821
  %v823 = vpop.f32.mrf.mxu0
  %824 = vdwg.mxu0
  %825 = vmatpush.bf16.msra.mxu0 %v747
  %826 = vmatpush.bf16.msra.mxu0 %v746
  %827 = vmatpush.bf16.msra.mxu0 %v745
  %828 = vmatpush.bf16.msra.mxu0 %v744
  %829 = vmatpush.bf16.msra.mxu0 %v743
  %830 = vmatpush.bf16.msra.mxu0 %v742
  %831 = vmatpush.bf16.msra.mxu0 %v741
  %832 = vmatpush.bf16.msra.mxu0 %v740
  %833 = vmatmul.bf16.gmra.mxu0 %v503
  %v834 = vpop.f32.mrf.mxu0
  %v835 = vadd.f32 %v822, %v834
  %v836 = vpop.f32.mrf.mxu0
  %837 = vdwg.mxu0
  %838 = vmatpush.bf16.msra.mxu0 %v755
  %839 = vmatpush.bf16.msra.mxu0 %v754
  %840 = vmatpush.bf16.msra.mxu0 %v753
  %841 = vmatpush.bf16.msra.mxu0 %v752
  %842 = vmatpush.bf16.msra.mxu0 %v751
  %843 = vmatpush.bf16.msra.mxu0 %v750
  %844 = vmatpush.bf16.msra.mxu0 %v749
  %845 = vmatpush.bf16.msra.mxu0 %v748
  %846 = vmatmul.bf16.gmra.mxu0 %v506
  %v847 = vpop.f32.mrf.mxu0
  %v848 = vadd.f32 %v835, %v847
  %v849 = vpop.f32.mrf.mxu0
  %850 = vdwg.mxu0
  %851 = vmatpush.bf16.msra.mxu0 0
  %852 = vmatpush.bf16.msra.mxu0 0
  %853 = vmatpush.bf16.msra.mxu0 0
  %854 = vmatpush.bf16.msra.mxu0 0
  %855 = vmatpush.bf16.msra.mxu0 %v759
  %856 = vmatpush.bf16.msra.mxu0 %v758
  %857 = vmatpush.bf16.msra.mxu0 %v757
  %858 = vmatpush.bf16.msra.mxu0 %v756
  %859 = vmatmul.bf16.gmra.mxu0 %v797
  %v860 = vpop.f32.mrf.mxu0
  %v861 = vadd.f32 %v848, %v860
  %v862 = vpop.f32.mrf.mxu0
  %863 = vdwg.mxu0
  %v864 = vmax.f32 %v861, 0.0
  %v865 = vpack.c.bf16 %v864, %v864
  %s866 = scalar_lea.vmem %s3, 1
  %v867 = vld [vmem:[%s866] sm:$0x1]
  %v868 = vsel %vm440, %v865, %v867
  %869 = vst [vmem:[%s866] sm:$0x1] %v868
  // Predicated region
  $region14: #{convnet_forward.6} parent=0 // pred_check
    _
  $region15: #{convnet_forward.6} parent=0 // pred_check_branch
    %871 = sbr.rel (0) target = $region17
  $region16: #{convnet_forward.6} parent=0 // pred_region
    _
  $region17: #{convnet_forward.6} parent=0 // pred_fallthru
    _
  // Predicated region
  $region18: #{convnet_forward.6} parent=0 // pred_check
    _
  $region19: #{convnet_forward.6} parent=0 // pred_check_branch
    %873 = sbr.rel (0) target = $region21
  $region20: #{convnet_forward.6} parent=0 // pred_region
    _
  $region21: #{convnet_forward.6} parent=0 // pred_fallthru
    _

// kernel: convnet_forward.7
$region0: #{convnet_forward.7}
  #allocation0 [shape = 'u32[]', space=smem, size = 0x4, offset = 0x4, fixed_abs, tag = 'smem constant byte address 0x4 - core index']
  #allocation1 [shape = 'u32[72,128]{1,0:T(1,128)}', space=vmem, size = 0x9000, scoped, tag = 'internal scratch']
  %s0 = inlined_call_operand.vmem [shape: bf16[8,64], index: 0, kind: input, shape index: {}]
  %s1 = inlined_call_operand.vmem [shape: bf16[64,512], index: 1, kind: input, shape index: {}]
  %s2 = inlined_call_operand.vmem [shape: f32[1,512], index: 2, kind: input, shape index: {}]
  %s3 = inlined_call_operand.vmem [shape: bf16[512,8], index: 3, kind: input, shape index: {}]
  %s4 = inlined_call_operand.vmem [shape: f32[1,8], index: 4, kind: input, shape index: {}]
  %s5 = inlined_call_operand.vmem [shape: f32[8,8], index: 5, kind: output, shape index: {}]
  %s6 = sld [smem:[#allocation0]]
  $region30: #{convnet_forward.7} parent=0
    _
  %s8 = ssub.s32 1, %s6
  %s9 = scalar_select 0, %s8, %s6
  // Predicated region
  $region2: #{convnet_forward.7} parent=0 // pred_check
    _
  $region3: #{convnet_forward.7} parent=0 // pred_check_branch
    %11 = sbr.rel (0) target = $region5
  $region4: #{convnet_forward.7} parent=0 // pred_region
    _
  $region5: #{convnet_forward.7} parent=0 // pred_fallthru
    _
  // Predicated region
  $region6: #{convnet_forward.7} parent=0 // pred_check
    _
  $region7: #{convnet_forward.7} parent=0 // pred_check_branch
    %13 = sbr.rel (0) target = $region9
  $region8: #{convnet_forward.7} parent=0 // pred_region
    _
  $region9: #{convnet_forward.7} parent=0 // pred_fallthru
    _
  // Predicated region
  $region10: #{convnet_forward.7} parent=0 // pred_check
    _
  $region11: #{convnet_forward.7} parent=0 // pred_check_branch
    %15 = sbr.rel (0) target = $region13
  $region12: #{convnet_forward.7} parent=0 // pred_region
    _
  $region13: #{convnet_forward.7} parent=0 // pred_fallthru
    _
  // Predicated region
  $region14: #{convnet_forward.7} parent=0 // pred_check
    _
  $region15: #{convnet_forward.7} parent=0 // pred_check_branch
    %17 = sbr.rel (0) target = $region17
  $region16: #{convnet_forward.7} parent=0 // pred_region
    _
  $region17: #{convnet_forward.7} parent=0 // pred_fallthru
    _
  // Predicated region
  $region18: #{convnet_forward.7} parent=0 // pred_check
    _
  $region19: #{convnet_forward.7} parent=0 // pred_check_branch
    %19 = sbr.rel (0) target = $region21
  $region20: #{convnet_forward.7} parent=0 // pred_region
    _
  $region21: #{convnet_forward.7} parent=0 // pred_fallthru
    _
  %v21 = vld [vmem:[%s0] sm:$0xf]
  %v22 = vld [vmem:[%s1] sm:$0xff]
  %v23 = vld [vmem:[%s1 + $0x8] sm:$0xff]
  %v24 = vld [vmem:[%s1 + $0x10] sm:$0xff]
  %v25 = vld [vmem:[%s1 + $0x18] sm:$0xff]
  %v26 = vld [vmem:[%s1 + $0x20] sm:$0xff]
  %v27 = vld [vmem:[%s1 + $0x28] sm:$0xff]
  %v28 = vld [vmem:[%s1 + $0x30] sm:$0xff]
  %v29 = vld [vmem:[%s1 + $0x38] sm:$0xff]
  %v30 = vld [vmem:[%s1 + $0x40] sm:$0xff]
  %v31 = vld [vmem:[%s1 + $0x48] sm:$0xff]
  %v32 = vld [vmem:[%s1 + $0x50] sm:$0xff]
  %v33 = vld [vmem:[%s1 + $0x58] sm:$0xff]
  %v34 = vld [vmem:[%s1 + $0x60] sm:$0xff]
  %v35 = vld [vmem:[%s1 + $0x68] sm:$0xff]
  %v36 = vld [vmem:[%s1 + $0x70] sm:$0xff]
  %v37 = vld [vmem:[%s1 + $0x78] sm:$0xff]
  %v38 = vld [vmem:[%s2] sm:$0xf]
  %v40 = vperm.slane %v38, 0
  %v41 = vperm.slane %v38, 1
  %v42 = vperm.slane %v38, 2
  %v43 = vperm.slane %v38, 3
  %v64 = vunpack.c.l.b16 %v22
  %v65 = vunpack.c.h.b16 %v22
  %v66 = vunpack.c.l.b16 %v23
  %v67 = vunpack.c.h.b16 %v23
  %v68 = vunpack.c.l.b16 %v24
  %v69 = vunpack.c.h.b16 %v24
  %v70 = vunpack.c.l.b16 %v25
  %v71 = vunpack.c.h.b16 %v25
  %v72 = vunpack.c.l.b16 %v26
  %v73 = vunpack.c.h.b16 %v26
  %v74 = vunpack.c.l.b16 %v27
  %v75 = vunpack.c.h.b16 %v27
  %v76 = vunpack.c.l.b16 %v28
  %v77 = vunpack.c.h.b16 %v28
  %v78 = vunpack.c.l.b16 %v29
  %v79 = vunpack.c.h.b16 %v29
  %v80 = vunpack.c.l.b16 %v30
  %v81 = vunpack.c.h.b16 %v30
  %v82 = vunpack.c.l.b16 %v31
  %v83 = vunpack.c.h.b16 %v31
  %v84 = vunpack.c.l.b16 %v32
  %v85 = vunpack.c.h.b16 %v32
  %v86 = vunpack.c.l.b16 %v33
  %v87 = vunpack.c.h.b16 %v33
  %v88 = vunpack.c.l.b16 %v34
  %v89 = vunpack.c.h.b16 %v34
  %v90 = vunpack.c.l.b16 %v35
  %v91 = vunpack.c.h.b16 %v35
  %v92 = vunpack.c.l.b16 %v36
  %v93 = vunpack.c.h.b16 %v36
  %v94 = vunpack.c.l.b16 %v37
  %v95 = vunpack.c.h.b16 %v37
  %v96 = vpack.c.b16 %v68, %v64
  %v97 = vpack.c.b16 %v69, %v65
  %v98 = vpack.c.b16 %v70, %v66
  %v99 = vpack.c.b16 %v71, %v67
  %v100 = vpack.c.b16 %v76, %v72
  %v101 = vpack.c.b16 %v77, %v73
  %v102 = vpack.c.b16 %v78, %v74
  %v103 = vpack.c.b16 %v79, %v75
  %v104 = vpack.c.b16 %v84, %v80
  %v105 = vpack.c.b16 %v85, %v81
  %v106 = vpack.c.b16 %v86, %v82
  %v107 = vpack.c.b16 %v87, %v83
  %v108 = vpack.c.b16 %v92, %v88
  %v109 = vpack.c.b16 %v93, %v89
  %v110 = vpack.c.b16 %v94, %v90
  %v111 = vpack.c.b16 %v95, %v91
  %vm128 = vcmask 523264
  %v130 = vsel %vm128, %v21, 0
  %132 = vmatpush.bf16.msra.mxu0 0
  %133 = vmatpush.bf16.msra.mxu0 0
  %134 = vmatpush.bf16.msra.mxu0 0
  %135 = vmatpush.bf16.msra.mxu0 0
  %136 = vmatpush.bf16.msra.mxu0 %v108
  %137 = vmatpush.bf16.msra.mxu0 %v104
  %138 = vmatpush.bf16.msra.mxu0 %v100
  %139 = vmatpush.bf16.msra.mxu0 %v96
  %140 = vmatmul.bf16.gmra.mxu0 %v130
  %v141 = vpop.f32.mrf.mxu0
  %v142 = vadd.f32 %v40, %v141
  %v143 = vpop.f32.mrf.mxu0
  %144 = vdwg.mxu0
  %145 = vmatpush.bf16.msra.mxu0 0
  %146 = vmatpush.bf16.msra.mxu0 0
  %147 = vmatpush.bf16.msra.mxu0 0
  %148 = vmatpush.bf16.msra.mxu0 0
  %149 = vmatpush.bf16.msra.mxu0 %v109
  %150 = vmatpush.bf16.msra.mxu0 %v105
  %151 = vmatpush.bf16.msra.mxu0 %v101
  %152 = vmatpush.bf16.msra.mxu0 %v97
  %153 = vmatmul.bf16.gmra.mxu0 %v130
  %v154 = vpop.f32.mrf.mxu0
  %v155 = vadd.f32 %v41, %v154
  %v156 = vpop.f32.mrf.mxu0
  %157 = vdwg.mxu0
  %158 = vmatpush.bf16.msra.mxu0 0
  %159 = vmatpush.bf16.msra.mxu0 0
  %160 = vmatpush.bf16.msra.mxu0 0
  %161 = vmatpush.bf16.msra.mxu0 0
  %162 = vmatpush.bf16.msra.mxu0 %v110
  %163 = vmatpush.bf16.msra.mxu0 %v106
  %164 = vmatpush.bf16.msra.mxu0 %v102
  %165 = vmatpush.bf16.msra.mxu0 %v98
  %166 = vmatmul.bf16.gmra.mxu0 %v130
  %v167 = vpop.f32.mrf.mxu0
  %v168 = vadd.f32 %v42, %v167
  %v169 = vpop.f32.mrf.mxu0
  %170 = vdwg.mxu0
  %171 = vmatpush.bf16.msra.mxu0 0
  %172 = vmatpush.bf16.msra.mxu0 0
  %173 = vmatpush.bf16.msra.mxu0 0
  %174 = vmatpush.bf16.msra.mxu0 0
  %175 = vmatpush.bf16.msra.mxu0 %v111
  %176 = vmatpush.bf16.msra.mxu0 %v107
  %177 = vmatpush.bf16.msra.mxu0 %v103
  %178 = vmatpush.bf16.msra.mxu0 %v99
  %179 = vmatmul.bf16.gmra.mxu0 %v130
  %v180 = vpop.f32.mrf.mxu0
  %v181 = vadd.f32 %v43, %v180
  %v182 = vpop.f32.mrf.mxu0
  %183 = vdwg.mxu0
  %v184 = vmax.f32 %v142, 0.0
  %v185 = vmax.f32 %v155, 0.0
  %v186 = vmax.f32 %v168, 0.0
  %v187 = vmax.f32 %v181, 0.0
  %v188 = vpack.c.bf16 %v184, %v184
  %v189 = vpack.c.bf16 %v185, %v185
  %v190 = vpack.c.bf16 %v186, %v186
  %v191 = vpack.c.bf16 %v187, %v187
  %v192 = vld [vmem:[%s3] sm:$0xf]
  %v193 = vld [vmem:[%s3 + $0x4] sm:$0xf]
  %v194 = vld [vmem:[%s3 + $0x8] sm:$0xf]
  %v195 = vld [vmem:[%s3 + $0xc] sm:$0xf]
  %v196 = vld [vmem:[%s3 + $0x10] sm:$0xf]
  %v197 = vld [vmem:[%s3 + $0x14] sm:$0xf]
  %v198 = vld [vmem:[%s3 + $0x18] sm:$0xf]
  %v199 = vld [vmem:[%s3 + $0x1c] sm:$0xf]
  %v200 = vld [vmem:[%s3 + $0x20] sm:$0xf]
  %v201 = vld [vmem:[%s3 + $0x24] sm:$0xf]
  %v202 = vld [vmem:[%s3 + $0x28] sm:$0xf]
  %v203 = vld [vmem:[%s3 + $0x2c] sm:$0xf]
  %v204 = vld [vmem:[%s3 + $0x30] sm:$0xf]
  %v205 = vld [vmem:[%s3 + $0x34] sm:$0xf]
  %v206 = vld [vmem:[%s3 + $0x38] sm:$0xf]
  %v207 = vld [vmem:[%s3 + $0x3c] sm:$0xf]
  %v208 = vld [vmem:[%s3 + $0x40] sm:$0xf]
  %v209 = vld [vmem:[%s3 + $0x44] sm:$0xf]
  %v210 = vld [vmem:[%s3 + $0x48] sm:$0xf]
  %v211 = vld [vmem:[%s3 + $0x4c] sm:$0xf]
  %v212 = vld [vmem:[%s3 + $0x50] sm:$0xf]
  %v213 = vld [vmem:[%s3 + $0x54] sm:$0xf]
  %v214 = vld [vmem:[%s3 + $0x58] sm:$0xf]
  %v215 = vld [vmem:[%s3 + $0x5c] sm:$0xf]
  %v216 = vld [vmem:[%s3 + $0x60] sm:$0xf]
  %v217 = vld [vmem:[%s3 + $0x64] sm:$0xf]
  %v218 = vld [vmem:[%s3 + $0x68] sm:$0xf]
  %v219 = vld [vmem:[%s3 + $0x6c] sm:$0xf]
  %v220 = vld [vmem:[%s3 + $0x70] sm:$0xf]
  %v221 = vld [vmem:[%s3 + $0x74] sm:$0xf]
  %v222 = vld [vmem:[%s3 + $0x78] sm:$0xf]
  %v223 = vld [vmem:[%s3 + $0x7c] sm:$0xf]
  %v224 = vld [vmem:[%s3 + $0x80] sm:$0xf]
  %v225 = vld [vmem:[%s3 + $0x84] sm:$0xf]
  %v226 = vld [vmem:[%s3 + $0x88] sm:$0xf]
  %v227 = vld [vmem:[%s3 + $0x8c] sm:$0xf]
  %v228 = vld [vmem:[%s3 + $0x90] sm:$0xf]
  %v229 = vld [vmem:[%s3 + $0x94] sm:$0xf]
  %v230 = vld [vmem:[%s3 + $0x98] sm:$0xf]
  %v231 = vld [vmem:[%s3 + $0x9c] sm:$0xf]
  %v232 = vld [vmem:[%s3 + $0xa0] sm:$0xf]
  %v233 = vld [vmem:[%s3 + $0xa4] sm:$0xf]
  %v234 = vld [vmem:[%s3 + $0xa8] sm:$0xf]
  %v235 = vld [vmem:[%s3 + $0xac] sm:$0xf]
  %v236 = vld [vmem:[%s3 + $0xb0] sm:$0xf]
  %v237 = vld [vmem:[%s3 + $0xb4] sm:$0xf]
  %v238 = vld [vmem:[%s3 + $0xb8] sm:$0xf]
  %v239 = vld [vmem:[%s3 + $0xbc] sm:$0xf]
  %v240 = vld [vmem:[%s3 + $0xc0] sm:$0xf]
  %v241 = vld [vmem:[%s3 + $0xc4] sm:$0xf]
  %v242 = vld [vmem:[%s3 + $0xc8] sm:$0xf]
  %v243 = vld [vmem:[%s3 + $0xcc] sm:$0xf]
  %v244 = vld [vmem:[%s3 + $0xd0] sm:$0xf]
  %v245 = vld [vmem:[%s3 + $0xd4] sm:$0xf]
  %v246 = vld [vmem:[%s3 + $0xd8] sm:$0xf]
  %v247 = vld [vmem:[%s3 + $0xdc] sm:$0xf]
  %v248 = vld [vmem:[%s3 + $0xe0] sm:$0xf]
  %v249 = vld [vmem:[%s3 + $0xe4] sm:$0xf]
  %v250 = vld [vmem:[%s3 + $0xe8] sm:$0xf]
  %v251 = vld [vmem:[%s3 + $0xec] sm:$0xf]
  %v252 = vld [vmem:[%s3 + $0xf0] sm:$0xf]
  %v253 = vld [vmem:[%s3 + $0xf4] sm:$0xf]
  %v254 = vld [vmem:[%s3 + $0xf8] sm:$0xf]
  %v255 = vld [vmem:[%s3 + $0xfc] sm:$0xf]
  %v256 = vld [vmem:[%s4] sm:$0x1]
  %v258 = vperm.slane %v256, 0
  %v324 = vunpack.c.l.b16 %v192
  %v325 = vunpack.c.l.b16 %v193
  %v326 = vunpack.c.l.b16 %v194
  %v327 = vunpack.c.l.b16 %v195
  %v328 = vunpack.c.l.b16 %v196
  %v329 = vunpack.c.l.b16 %v197
  %v330 = vunpack.c.l.b16 %v198
  %v331 = vunpack.c.l.b16 %v199
  %v332 = vunpack.c.l.b16 %v200
  %v333 = vunpack.c.l.b16 %v201
  %v334 = vunpack.c.l.b16 %v202
  %v335 = vunpack.c.l.b16 %v203
  %v336 = vunpack.c.l.b16 %v204
  %v337 = vunpack.c.l.b16 %v205
  %v338 = vunpack.c.l.b16 %v206
  %v339 = vunpack.c.l.b16 %v207
  %v340 = vunpack.c.l.b16 %v208
  %v341 = vunpack.c.l.b16 %v209
  %v342 = vunpack.c.l.b16 %v210
  %v343 = vunpack.c.l.b16 %v211
  %v344 = vunpack.c.l.b16 %v212
  %v345 = vunpack.c.l.b16 %v213
  %v346 = vunpack.c.l.b16 %v214
  %v347 = vunpack.c.l.b16 %v215
  %v348 = vunpack.c.l.b16 %v216
  %v349 = vunpack.c.l.b16 %v217
  %v350 = vunpack.c.l.b16 %v218
  %v351 = vunpack.c.l.b16 %v219
  %v352 = vunpack.c.l.b16 %v220
  %v353 = vunpack.c.l.b16 %v221
  %v354 = vunpack.c.l.b16 %v222
  %v355 = vunpack.c.l.b16 %v223
  %v356 = vunpack.c.l.b16 %v224
  %v357 = vunpack.c.l.b16 %v225
  %v358 = vunpack.c.l.b16 %v226
  %v359 = vunpack.c.l.b16 %v227
  %v360 = vunpack.c.l.b16 %v228
  %v361 = vunpack.c.l.b16 %v229
  %v362 = vunpack.c.l.b16 %v230
  %v363 = vunpack.c.l.b16 %v231
  %v364 = vunpack.c.l.b16 %v232
  %v365 = vunpack.c.l.b16 %v233
  %v366 = vunpack.c.l.b16 %v234
  %v367 = vunpack.c.l.b16 %v235
  %v368 = vunpack.c.l.b16 %v236
  %v369 = vunpack.c.l.b16 %v237
  %v370 = vunpack.c.l.b16 %v238
  %v371 = vunpack.c.l.b16 %v239
  %v372 = vunpack.c.l.b16 %v240
  %v373 = vunpack.c.l.b16 %v241
  %v374 = vunpack.c.l.b16 %v242
  %v375 = vunpack.c.l.b16 %v243
  %v376 = vunpack.c.l.b16 %v244
  %v377 = vunpack.c.l.b16 %v245
  %v378 = vunpack.c.l.b16 %v246
  %v379 = vunpack.c.l.b16 %v247
  %v380 = vunpack.c.l.b16 %v248
  %v381 = vunpack.c.l.b16 %v249
  %v382 = vunpack.c.l.b16 %v250
  %v383 = vunpack.c.l.b16 %v251
  %v384 = vunpack.c.l.b16 %v252
  %v385 = vunpack.c.l.b16 %v253
  %v386 = vunpack.c.l.b16 %v254
  %v387 = vunpack.c.l.b16 %v255
  %v388 = vpack.c.b16 %v325, %v324
  %v389 = vpack.c.b16 %v327, %v326
  %v390 = vpack.c.b16 %v329, %v328
  %v391 = vpack.c.b16 %v331, %v330
  %v392 = vpack.c.b16 %v333, %v332
  %v393 = vpack.c.b16 %v335, %v334
  %v394 = vpack.c.b16 %v337, %v336
  %v395 = vpack.c.b16 %v339, %v338
  %v396 = vpack.c.b16 %v341, %v340
  %v397 = vpack.c.b16 %v343, %v342
  %v398 = vpack.c.b16 %v345, %v344
  %v399 = vpack.c.b16 %v347, %v346
  %v400 = vpack.c.b16 %v349, %v348
  %v401 = vpack.c.b16 %v351, %v350
  %v402 = vpack.c.b16 %v353, %v352
  %v403 = vpack.c.b16 %v355, %v354
  %v404 = vpack.c.b16 %v357, %v356
  %v405 = vpack.c.b16 %v359, %v358
  %v406 = vpack.c.b16 %v361, %v360
  %v407 = vpack.c.b16 %v363, %v362
  %v408 = vpack.c.b16 %v365, %v364
  %v409 = vpack.c.b16 %v367, %v366
  %v410 = vpack.c.b16 %v369, %v368
  %v411 = vpack.c.b16 %v371, %v370
  %v412 = vpack.c.b16 %v373, %v372
  %v413 = vpack.c.b16 %v375, %v374
  %v414 = vpack.c.b16 %v377, %v376
  %v415 = vpack.c.b16 %v379, %v378
  %v416 = vpack.c.b16 %v381, %v380
  %v417 = vpack.c.b16 %v383, %v382
  %v418 = vpack.c.b16 %v385, %v384
  %v419 = vpack.c.b16 %v387, %v386
  %452 = vmatpush.bf16.msra.mxu0 %v395
  %453 = vmatpush.bf16.msra.mxu0 %v394
  %454 = vmatpush.bf16.msra.mxu0 %v393
  %455 = vmatpush.bf16.msra.mxu0 %v392
  %456 = vmatpush.bf16.msra.mxu0 %v391
  %457 = vmatpush.bf16.msra.mxu0 %v390
  %458 = vmatpush.bf16.msra.mxu0 %v389
  %459 = vmatpush.bf16.msra.mxu0 %v388
  %460 = vmatmul.bf16.gmra.mxu0 %v188
  %v461 = vpop.f32.mrf.mxu0
  %v462 = vadd.f32 %v258, %v461
  %v463 = vpop.f32.mrf.mxu0
  %464 = vdwg.mxu0
  %465 = vmatpush.bf16.msra.mxu0 %v403
  %466 = vmatpush.bf16.msra.mxu0 %v402
  %467 = vmatpush.bf16.msra.mxu0 %v401
  %468 = vmatpush.bf16.msra.mxu0 %v400
  %469 = vmatpush.bf16.msra.mxu0 %v399
  %470 = vmatpush.bf16.msra.mxu0 %v398
  %471 = vmatpush.bf16.msra.mxu0 %v397
  %472 = vmatpush.bf16.msra.mxu0 %v396
  %473 = vmatmul.bf16.gmra.mxu0 %v189
  %v474 = vpop.f32.mrf.mxu0
  %v475 = vadd.f32 %v462, %v474
  %v476 = vpop.f32.mrf.mxu0
  %477 = vdwg.mxu0
  %478 = vmatpush.bf16.msra.mxu0 %v411
  %479 = vmatpush.bf16.msra.mxu0 %v410
  %480 = vmatpush.bf16.msra.mxu0 %v409
  %481 = vmatpush.bf16.msra.mxu0 %v408
  %482 = vmatpush.bf16.msra.mxu0 %v407
  %483 = vmatpush.bf16.msra.mxu0 %v406
  %484 = vmatpush.bf16.msra.mxu0 %v405
  %485 = vmatpush.bf16.msra.mxu0 %v404
  %486 = vmatmul.bf16.gmra.mxu0 %v190
  %v487 = vpop.f32.mrf.mxu0
  %v488 = vadd.f32 %v475, %v487
  %v489 = vpop.f32.mrf.mxu0
  %490 = vdwg.mxu0
  %491 = vmatpush.bf16.msra.mxu0 %v419
  %492 = vmatpush.bf16.msra.mxu0 %v418
  %493 = vmatpush.bf16.msra.mxu0 %v417
  %494 = vmatpush.bf16.msra.mxu0 %v416
  %495 = vmatpush.bf16.msra.mxu0 %v415
  %496 = vmatpush.bf16.msra.mxu0 %v414
  %497 = vmatpush.bf16.msra.mxu0 %v413
  %498 = vmatpush.bf16.msra.mxu0 %v412
  %499 = vmatmul.bf16.gmra.mxu0 %v191
  %v500 = vpop.f32.mrf.mxu0
  %v501 = vadd.f32 %v488, %v500
  %v502 = vpop.f32.mrf.mxu0
  %503 = vdwg.mxu0
  %vm504 = vcmask 64512
  %505 = vst.msk [vmem:[%s5] sm:$0xff] %vm504, %v501
  // Predicated region
  $region22: #{convnet_forward.7} parent=0 // pred_check
    _
  $region23: #{convnet_forward.7} parent=0 // pred_check_branch
    %507 = sbr.rel (0) target = $region25
  $region24: #{convnet_forward.7} parent=0 // pred_region
    _
  $region25: #{convnet_forward.7} parent=0 // pred_fallthru
    _
  // Predicated region
  $region26: #{convnet_forward.7} parent=0 // pred_check
    _
  $region27: #{convnet_forward.7} parent=0 // pred_check_branch
    %509 = sbr.rel (0) target = $region29
  $region28: #{convnet_forward.7} parent=0 // pred_region
    _
  $region29: #{convnet_forward.7} parent=0 // pred_fallthru
    _

</llo_original>
